<compile_context>
chip_gen: v5e
topology: v5e:2x2
jax: 0.10.0
libtpu: 0.0.40
codegen_flags: <defaults>
</compile_context>

<pallas_src>
import functools

import jax
import jax.numpy as jnp
from jax.experimental import pallas as pl
from jax.experimental.pallas import tpu as pltpu

_BN_EPS = 1e-5               # PyTorch BatchNorm2d default
_TM_MATMUL = 1024            # target M-tile for matmul kernels
_TM_APPLY = 2048             # target M-tile for the streaming apply kernel


def _round_up(x, m):
    return (x + m - 1) // m * m


@functools.lru_cache(maxsize=None)
def _vmem_limit():
    """Generation-aware scoped-VMEM budget (v7x: 64 MiB/TC, v5e/v6e: 128 MiB)."""
    try:
        cap = int(pltpu.get_tpu_info().vmem_capacity_bytes)
    except Exception:
        cap = 64 * 1024 * 1024
    return max(16 * 1024 * 1024, min(int(cap * 0.4), 96 * 1024 * 1024))


def _choose_tm(m, target):
    """Row-tile: prefer an exact divisor of m (avoids host-side row padding)."""
    if m <= target:
        return _round_up(m, 8)
    t = (target // 16) * 16          # multiple of 16: bf16 sublane packing
    while t >= 16:
        if m % t == 0:
            return t
        t -= 16
    return target                    # ragged tail -> caller pads (rare)


def _pad_rows(x, m_pad):
    m = x.shape[0]
    if m_pad == m:
        return x
    return jnp.pad(x, ((0, m_pad - m), (0, 0)))


# ----------------------------------------------------------------------------
# Pallas kernels
# ----------------------------------------------------------------------------
def _matmul_stats_kernel(p_ref, w_ref, y_ref, ps_ref, pq_ref):
    """bf16 matmul (MXU, f32 acc) + per-tile partial sum / sumsq outputs."""
    y = jnp.dot(p_ref[...], w_ref[...], preferred_element_type=jnp.float32)
    y_ref[...] = y.astype(y_ref.dtype)                       # bf16 store
    s = jnp.sum(y, axis=0, keepdims=True)                    # (1, C) f32
    q = jnp.sum(y * y, axis=0, keepdims=True)
    ps_ref[...] = jnp.broadcast_to(s[None, :, :], ps_ref.shape)
    pq_ref[...] = jnp.broadcast_to(q[None, :, :], pq_ref.shape)


def _matmul_bias_act_kernel(act, p_ref, w_ref, b_ref, o_ref):
    """bf16 matmul + bias + activation (no BN); epilogue in f32, bf16 store."""
    y = jnp.dot(p_ref[...], w_ref[...], preferred_element_type=jnp.float32)
    y = y + b_ref[...]
    if act == "relu":
        y = jnp.maximum(y, 0.0)
    elif act == "tanh":
        y = jnp.tanh(y)
    o_ref[...] = y.astype(o_ref.dtype)


def _apply_kernel(act, add_res, *refs):
    """Folded BN affine (one FMA, f32) + activation + optional residual; bf16 store."""
    if add_res:
        y_ref, s_ref, t_ref, r_ref, o_ref = refs
    else:
        y_ref, s_ref, t_ref, o_ref = refs
    y = y_ref[...].astype(jnp.float32) * s_ref[...] + t_ref[...]
    if act == "relu":
        y = jnp.maximum(y, 0.0)
    elif act == "tanh":
        y = jnp.tanh(y)
    if add_res:
        y = y + r_ref[...].astype(jnp.float32)
    o_ref[...] = y.astype(o_ref.dtype)


# ----------------------------------------------------------------------------
# pallas_call wrappers
# ----------------------------------------------------------------------------
def matmul_stats(patches_bf16, w_bf16):
    """[M,K]bf16 @ [K,C]bf16 -> y [M_pad,C] bf16 + per-channel sum/sumsq f32."""
    m, k = patches_bf16.shape
    c = w_bf16.shape[1]
    tm = _choose_tm(m, _TM_MATMUL)
    m_pad = _round_up(m, tm)
    p = _pad_rows(patches_bf16, m_pad)       # zero rows contribute zero stats
    g = m_pad // tm

    y, ps, pq = pl.pallas_call(
        _matmul_stats_kernel,
        out_shape=(jax.ShapeDtypeStruct((m_pad, c), jnp.bfloat16),
                   jax.ShapeDtypeStruct((g, 8, c), jnp.float32),
                   jax.ShapeDtypeStruct((g, 8, c), jnp.float32)),
        grid=(g,),
        in_specs=[pl.BlockSpec((tm, k), lambda i: (i, 0)),
                  pl.BlockSpec((k, c), lambda i: (0, 0))],
        out_specs=(pl.BlockSpec((tm, c), lambda i: (i, 0)),
                   pl.BlockSpec((1, 8, c), lambda i: (i, 0, 0)),
                   pl.BlockSpec((1, 8, c), lambda i: (i, 0, 0))),
        compiler_params=pltpu.CompilerParams(
            dimension_semantics=("parallel",),      # per-tile partials -> safe
            vmem_limit_bytes=_vmem_limit()),
    )(p, w_bf16)
    s = jnp.sum(ps[:, 0, :], axis=0)
    sq = jnp.sum(pq[:, 0, :], axis=0)
    return y, s, sq


def matmul_bias_act(patches_bf16, w_bf16, bias, act):
    """No-BN path (final layer): matmul + bias + activation, M tiled, parallel."""
    m, k = patches_bf16.shape
    c = w_bf16.shape[1]
    tm = _choose_tm(m, _TM_MATMUL)
    m_pad = _round_up(m, tm)
    p = _pad_rows(patches_bf16, m_pad)

    y = pl.pallas_call(
        functools.partial(_matmul_bias_act_kernel, act),
        out_shape=jax.ShapeDtypeStruct((m_pad, c), jnp.bfloat16),
        grid=(m_pad // tm,),
        in_specs=[pl.BlockSpec((tm, k), lambda i: (i, 0)),
                  pl.BlockSpec((k, c), lambda i: (0, 0)),
                  pl.BlockSpec((1, c), lambda i: (0, 0))],
        out_specs=pl.BlockSpec((tm, c), lambda i: (i, 0)),
        compiler_params=pltpu.CompilerParams(
            dimension_semantics=("parallel",),
            vmem_limit_bytes=_vmem_limit()),
    )(p, w_bf16, bias.reshape(1, c).astype(jnp.float32))
    return y[:m]


def apply_affine_act(y_flat, scale, shift, act, residual=None):
    """y*scale + shift (+act)(+residual).  Rows repacked to >=128 lanes."""
    m, c = y_flat.shape
    f = 1
    if c < 128 and 128 % c == 0 and m % (128 // c) == 0:
        f = 128 // c                     # lane-dense: [M,C] -> [M/f, f*C]
    m2, c2 = m // f, c * f
    y2 = y_flat.reshape(m2, c2)
    s2 = jnp.tile(scale.astype(jnp.float32), f).reshape(1, c2)
    t2 = jnp.tile(shift.astype(jnp.float32), f).reshape(1, c2)

    tm = _choose_tm(m2, _TM_APPLY)
    m_pad = _round_up(m2, tm)
    add_res = residual is not None

    inputs = [_pad_rows(y2, m_pad), s2, t2]
    in_specs = [pl.BlockSpec((tm, c2), lambda i: (i, 0)),
                pl.BlockSpec((1, c2), lambda i: (0, 0)),
                pl.BlockSpec((1, c2), lambda i: (0, 0))]
    if add_res:
        r2 = residual.astype(jnp.bfloat16).reshape(m2, c2)
        inputs.append(_pad_rows(r2, m_pad))
        in_specs.append(pl.BlockSpec((tm, c2), lambda i: (i, 0)))

    out = pl.pallas_call(
        functools.partial(_apply_kernel, act, add_res),
        out_shape=jax.ShapeDtypeStruct((m_pad, c2), jnp.bfloat16),
        grid=(m_pad // tm,),
        in_specs=in_specs,
        out_specs=pl.BlockSpec((tm, c2), lambda i: (i, 0)),
        compiler_params=pltpu.CompilerParams(
            dimension_semantics=("parallel",),
            vmem_limit_bytes=_vmem_limit()),
    )(*inputs)
    return out[:m2].reshape(m, c)


# ----------------------------------------------------------------------------
# Conv / ConvTranspose layers (host-side im2col glue, all bf16)
# ----------------------------------------------------------------------------
def _im2col(x, kh, kw, stride):
    """x: [N,H,W,C] (already padded, bf16). Returns [N*Ho*Wo, kh*kw*C]."""
    n, h, w, c = x.shape
    ho = (h - kh) // stride + 1
    wo = (w - kw) // stride + 1
    cols = []
    for i in range(kh):
        for j in range(kw):
            cols.append(x[:, i:i + stride * ho:stride, j:j + stride * wo:stride, :])
    p = jnp.stack(cols, axis=3)                      # [N,Ho,Wo,kh*kw,C]
    return p.reshape(n * ho * wo, kh * kw * c), (n, ho, wo)


def _spatial_pad(x, pad, pad_mode):
    if pad <= 0:
        return x
    mode = "reflect" if pad_mode == "reflect" else "constant"
    return jnp.pad(x, ((0, 0), (pad, pad), (pad, pad), (0, 0)), mode=mode)


def conv_bn_act(x16, w, *, stride, pad, pad_mode, gamma, beta, act, residual=None):
    """Conv2d (bias cancelled by BN) + BatchNorm(batch stats) + act (+residual)."""
    cout, cin, kh, kw = w.shape
    xp = _spatial_pad(x16, pad, pad_mode)
    patches, (n, ho, wo) = _im2col(xp, kh, kw, stride)
    w_mat = jnp.transpose(w, (2, 3, 1, 0)).reshape(kh * kw * cin, cout)
    w_mat = w_mat.astype(jnp.bfloat16)

    y, s, sq = matmul_stats(patches, w_mat)
    m = n * ho * wo
    mean = s / m
    var = jnp.maximum(sq / m - mean * mean, 0.0)     # biased var (training mode)
    scale = gamma * jax.lax.rsqrt(var + _BN_EPS)
    shift = beta - mean * scale

    res_flat = None if residual is None else residual.reshape(m, cout)
    out = apply_affine_act(y[:m], scale, shift, act, residual=res_flat)
    return out.reshape(n, ho, wo, cout)


def conv_bias_act(x16, w, b, *, stride, pad, pad_mode, act):
    """Conv2d + bias + activation (no BN). Output channels padded to 128 lanes."""
    cout, cin, kh, kw = w.shape
    xp = _spatial_pad(x16, pad, pad_mode)
    patches, (n, ho, wo) = _im2col(xp, kh, kw, stride)

    cpad = _round_up(cout, 128)                      # lane-dense stores
    w_mat = jnp.transpose(w, (2, 3, 1, 0)).reshape(kh * kw * cin, cout)
    w_mat = jnp.pad(w_mat, ((0, 0), (0, cpad - cout))).astype(jnp.bfloat16)
    b_pad = jnp.pad(b, (0, cpad - cout))

    y = matmul_bias_act(patches, w_mat, b_pad, act)  # (m, cpad) bf16
    return y[:, :cout].reshape(n, ho, wo, cout)


def _fuse_deconv_weights(w_t):
    """Fused sub-pixel weights for ConvTranspose2d k=3,s=2,p=1,op=1.

    Returns [4*cin, 4*cout]: a 2x2/stride-1 im2col over the (bottom/right
    zero-padded) input, matmul'd with this matrix, yields the 4 output phases
    concatenated along channels: [phase(0,0) | (0,1) | (1,0) | (1,1)].
    """
    cin, cout = w_t.shape[0], w_t.shape[1]
    wk = jnp.transpose(w_t, (2, 3, 0, 1))            # [ky, kx, cin, cout]
    # phase (r,s): list of (window dy, window dx, ky, kx)
    taps = {
        (0, 0): [(0, 0, 1, 1)],
        (0, 1): [(0, 0, 1, 2), (0, 1, 1, 0)],
        (1, 0): [(0, 0, 2, 1), (1, 0, 0, 1)],
        (1, 1): [(0, 0, 2, 2), (0, 1, 2, 0), (1, 0, 0, 2), (1, 1, 0, 0)],
    }
    cols = []
    for phase in ((0, 0), (0, 1), (1, 0), (1, 1)):
        blk = jnp.zeros((2, 2, cin, cout), w_t.dtype)
        for dy, dx, ky, kx in taps[phase]:
            blk = blk.at[dy, dx].set(wk[ky, kx])
        cols.append(blk.reshape(4 * cin, cout))
    return jnp.concatenate(cols, axis=1)             # [4*cin, 4*cout]


def conv_transpose3_bn_relu(x16, w_t, gamma, beta):
    """ConvTranspose2d k=3, s=2, p=1, op=1 (-> 2x upsample) + BN + ReLU.

    All 4 sub-pixel phases fused into a single lane-dense (N=4*cout) matmul.
    Deconv bias is cancelled by the BN mean subtraction.
    """
    cin, cout = w_t.shape[0], w_t.shape[1]
    n, h, w, _ = x16.shape
    xp = jnp.pad(x16, ((0, 0), (0, 1), (0, 1), (0, 0)))     # zero row/col for odd phases
    patches, _ = _im2col(xp, 2, 2, 1)                        # [n*h*w, 4*cin]
    w_fused = _fuse_deconv_weights(w_t).astype(jnp.bfloat16)

    m = n * h * w
    y, s4, sq4 = matmul_stats(patches, w_fused)              # y: (m_pad, 4*cout) bf16
    # BN stats per output channel = combine the 4 phase column groups.
    s = jnp.sum(s4.reshape(4, cout), axis=0)
    sq = jnp.sum(sq4.reshape(4, cout), axis=0)
    m_out = 4 * m
    mean = s / m_out
    var = jnp.maximum(sq / m_out - mean * mean, 0.0)
    scale = gamma * jax.lax.rsqrt(var + _BN_EPS)
    shift = beta - mean * scale

    yact = apply_affine_act(y[:m], jnp.tile(scale, 4), jnp.tile(shift, 4), "relu")
    # interleave: out[:, 2a+r, 2b+s, :] = yact[:, a, b, (r,s), :]
    yact = yact.reshape(n, h, w, 2, 2, cout)
    out = jnp.transpose(yact, (0, 1, 3, 2, 4, 5)).reshape(n, 2 * h, 2 * w, cout)
    return out


def conv_transpose_dilated_bn_relu(x16, w_t, gamma, beta, k, o_pad):
    """Generic (slower) ConvTranspose path for k != 3: zero-dilate then conv."""
    n, h, w, c = x16.shape
    xd = jnp.zeros((n, (h - 1) * 2 + 1, (w - 1) * 2 + 1, c), x16.dtype)
    xd = xd.at[:, ::2, ::2, :].set(x16)
    p0 = k - 1 - 1                                            # pad=1
    xp = jnp.pad(xd, ((0, 0), (p0, p0 + o_pad), (p0, p0 + o_pad), (0, 0)))
    w_eq = jnp.flip(w_t, axis=(2, 3)).transpose(1, 0, 2, 3)   # [Cout,Cin,k,k]
    return conv_bn_act(xp, w_eq, stride=1, pad=0, pad_mode="zero",
                       gamma=gamma, beta=beta, act="relu")


def resnet_block(x16, p):
    # ReflPad(1)->Conv3x3->BN->ReLU->ReflPad(1)->Conv3x3->BN ; + x
    h = conv_bn_act(x16, p["w1"], stride=1, pad=1, pad_mode="reflect",
                    gamma=p["g1"], beta=p["be1"], act="relu")
    h = conv_bn_act(h, p["w2"], stride=1, pad=1, pad_mode="reflect",
                    gamma=p["g2"], beta=p["be2"], act="none", residual=x16)
    return h


# ----------------------------------------------------------------------------
# Deterministic parameter construction (synthetic weights)
# ----------------------------------------------------------------------------
class _KeyGen:
    def __init__(self, key):
        self.key = key

    def __call__(self):
        self.key, sub = jax.random.split(self.key)
        return sub


def _conv_w(kg, cin, cout, k):
    return 0.05 * jax.random.normal(kg(), (cout, cin, k, k), jnp.float32)


def _convT_w(kg, cin, cout, k):
    return 0.05 * jax.random.normal(kg(), (cin, cout, k, k), jnp.float32)


def _bias(kg, c):
    return 0.05 * jax.random.normal(kg(), (c,), jnp.float32)


def _bn_w(kg, c):
    g = 1.0 + 0.1 * jax.random.normal(kg(), (c,), jnp.float32)
    be = 0.1 * jax.random.normal(kg(), (c,), jnp.float32)
    return g, be


def build_model(key, input_nc, output_nc, ngf=64, k_size=3, n_downsampling=8):
    kg = _KeyGen(key)
    layers = []

    def add_conv_bn(cin, cout, k, stride, pad, pad_mode):
        w = _conv_w(kg, cin, cout, k)
        g, be = _bn_w(kg, cout)
        layers.append(("conv_bn", dict(w=w, g=g, be=be, stride=stride,
                                       pad=pad, pad_mode=pad_mode)))

    def add_res(dim):
        w1 = _conv_w(kg, dim, dim, 3); g1, be1 = _bn_w(kg, dim)
        w2 = _conv_w(kg, dim, dim, 3); g2, be2 = _bn_w(kg, dim)
        layers.append(("res", dict(w1=w1, g1=g1, be1=be1,
                                   w2=w2, g2=g2, be2=be2)))

    def add_convT(cin, cout, k, op):
        w = _convT_w(kg, cin, cout, k)
        g, be = _bn_w(kg, cout)
        layers.append(("convT", dict(w=w, g=g, be=be, k=k, op=op)))

    # ---- encoder ----
    add_conv_bn(input_nc, min(ngf, 64), 7, 1, 3, "reflect")
    for i in range(1):
        mult = 2 ** i
        add_conv_bn(min(ngf * mult, 64), min(ngf * mult * 2, 64),
                    k_size, 2, 1, "zero")
    for i in range(1, n_downsampling - 1):
        mult = 2 ** i
        add_conv_bn(min(ngf * mult, 64), min(ngf * mult * 2, 64),
                    k_size, 2, 1, "zero")
        add_res(min(ngf * mult * 2, 64))
        add_res(min(ngf * mult * 2, 64))
    mult = 2 ** (n_downsampling - 1)
    add_res(min(ngf * mult * 2, 64))
    add_res(min(ngf * mult * 2, 64))

    # ---- decoder ----
    o_pad = 0 if k_size == 4 else 1
    mult = 2 ** n_downsampling
    add_res(min(ngf * mult, 64))
    add_res(min(ngf * mult, 64))
    for i in range(1, n_downsampling - 1):
        mult = 2 ** (n_downsampling - i)
        add_res(min(ngf * mult, 64))
        add_res(min(ngf * mult, 64))
        add_convT(min(ngf * mult, 64), min(int(ngf * mult / 2), 64), k_size, o_pad)
    for i in range(n_downsampling - 1, n_downsampling):
        mult = 2 ** (n_downsampling - i)
        add_convT(min(ngf * mult, 64), min(int(ngf * mult / 2), 64), k_size, o_pad)
    w_last = _conv_w(kg, min(ngf, 64), output_nc, 7)
    b_last = _bias(kg, output_nc)
    layers.append(("conv", dict(w=w_last, b=b_last, stride=1, pad=3,
                                pad_mode="reflect", act="tanh")))
    return layers


def forward(layers, x_nhwc):
    x = x_nhwc.astype(jnp.bfloat16)          # activations stay bf16 throughout
    for kind, p in layers:
        if kind == "conv_bn":
            x = conv_bn_act(x, p["w"], stride=p["stride"], pad=p["pad"],
                            pad_mode=p["pad_mode"], gamma=p["g"], beta=p["be"],
                            act="relu")
        elif kind == "conv":
            x = conv_bias_act(x, p["w"], p["b"], stride=p["stride"], pad=p["pad"],
                              pad_mode=p["pad_mode"], act=p["act"])
        elif kind == "convT":
            if p["k"] == 3:
                x = conv_transpose3_bn_relu(x, p["w"], p["g"], p["be"])
            else:
                x = conv_transpose_dilated_bn_relu(x, p["w"], p["g"], p["be"],
                                                   p["k"], p["op"])
        elif kind == "res":
            x = resnet_block(x, p)
    return x.astype(jnp.float32)


# ----------------------------------------------------------------------------
if __name__ == "__main__":
    key = jax.random.PRNGKey(0)
    kx, kp = jax.random.split(key)

    # small, consistent shapes: batch=2, input_nc=4, 16x16 spatial,
    # ngf=32, n_downsampling=3 (16 -> 8 -> 4 -> 8 -> 16)
    input_nc, output_nc, ngf, k_size, n_down = 4, 3, 32, 3, 3
    x_nchw = jax.random.normal(kx, (2, input_nc, 16, 16), jnp.float32)

    layers = build_model(kp, input_nc, output_nc, ngf=ngf,
                         k_size=k_size, n_downsampling=n_down)

    fwd = jax.jit(lambda t: forward(layers, t))

    x_nhwc = jnp.transpose(x_nchw, (0, 2, 3, 1))
    y_nhwc = fwd(x_nhwc)
    y_nchw = jnp.transpose(y_nhwc, (0, 3, 1, 2))
    jax.block_until_ready(y_nchw)

    assert y_nchw.shape == (2, output_nc, 16, 16), y_nchw.shape
    assert bool(jnp.all(jnp.isfinite(y_nchw)))
    assert bool(jnp.all(jnp.abs(y_nchw) <= 1.0))  # tanh output range
    print("KERNEL_OK")
</pallas_src>

<mosaic_0001>
module attributes {stable_mosaic.version = 11 : i64} {
  func.func @_matmul_stats_kernel(%arg0: i32, %arg1: memref<512x196xbf16, #tpu.memory_space<vmem>>, %arg2: memref<196x32xbf16, #tpu.memory_space<vmem>>, %arg3: memref<512x32xbf16, #tpu.memory_space<vmem>>, %arg4: memref<1x8x32xf32, #tpu.memory_space<vmem>>, %arg5: memref<1x8x32xf32, #tpu.memory_space<vmem>>) attributes {dimension_semantics = [#tpu.dimension_semantics<parallel>], iteration_bounds = array<i64: 1>, scalar_prefetch = 0 : i64, scratch_operands = 0 : i64, tpu.core_type = #tpu.core_type<tc>, window_params = [{transform_indices = @transform_0, window_bounds = array<i64: 512, 196>}, {pipeline_mode = #tpu.pipeline_mode<synchronous>, transform_indices = @transform_1, window_bounds = array<i64: 196, 32>}, {transform_indices = @transform_2, window_bounds = array<i64: 512, 32>}, {transform_indices = @transform_3, window_bounds = array<i64: 1, 8, 32>}, {transform_indices = @transform_4, window_bounds = array<i64: 1, 8, 32>}]} {
    %c0 = arith.constant 0 : index
    %c0_0 = arith.constant 0 : index
    %0 = vector.load %arg1[%c0, %c0_0] : memref<512x196xbf16, #tpu.memory_space<vmem>>, vector<512x196xbf16>
    %c0_1 = arith.constant 0 : index
    %c0_2 = arith.constant 0 : index
    %1 = vector.load %arg2[%c0_1, %c0_2] : memref<196x32xbf16, #tpu.memory_space<vmem>>, vector<196x32xbf16>
    %cst = arith.constant dense<0.000000e+00> : vector<512x32xf32>
    %2 = tpu.matmul %0, %1, %cst {dimension_numbers = #tpu.dot_dimension_numbers<[1], [0], [0], [1], [0, 0, 1, 1], [], []>} : vector<512x196xbf16>, vector<196x32xbf16>, vector<512x32xf32> -> vector<512x32xf32>
    %3 = arith.truncf %2 : vector<512x32xf32> to vector<512x32xbf16>
    %c0_3 = arith.constant 0 : index
    %c0_4 = arith.constant 0 : index
    %4 = vector.load %arg3[%c0_3, %c0_4] : memref<512x32xbf16, #tpu.memory_space<vmem>>, vector<512x32xbf16>
    tpu.vector_store %arg3[%c0_3, %c0_4], %3 {strides = array<i32>} : memref<512x32xbf16, #tpu.memory_space<vmem>>, vector<512x32xbf16>,
    %cst_5 = arith.constant dense<0.000000e+00> : vector<32xf32>
    %5 = vector.multi_reduction <add>, %2, %cst_5 [0] : vector<512x32xf32> to vector<32xf32>
    %6 = vector.shape_cast %5 : vector<32xf32> to vector<1x32xf32>
    %7 = arith.mulf %2, %2 : vector<512x32xf32>
    %cst_6 = arith.constant dense<0.000000e+00> : vector<32xf32>
    %8 = vector.multi_reduction <add>, %7, %cst_6 [0] : vector<512x32xf32> to vector<32xf32>
    %9 = vector.shape_cast %8 : vector<32xf32> to vector<1x32xf32>
    %10 = vector.shape_cast %6 : vector<1x32xf32> to vector<1x1x32xf32>
    %11 = vector.shape_cast %10 : vector<1x1x32xf32> to vector<1x1x32xf32>
    %12 = vector.broadcast %11 : vector<1x1x32xf32> to vector<1x8x32xf32>
    %c0_7 = arith.constant 0 : index
    %c0_8 = arith.constant 0 : index
    %c0_9 = arith.constant 0 : index
    %13 = vector.load %arg4[%c0_7, %c0_8, %c0_9] : memref<1x8x32xf32, #tpu.memory_space<vmem>>, vector<1x8x32xf32>
    tpu.vector_store %arg4[%c0_7, %c0_8, %c0_9], %12 {strides = array<i32>} : memref<1x8x32xf32, #tpu.memory_space<vmem>>, vector<1x8x32xf32>,
    %14 = vector.shape_cast %9 : vector<1x32xf32> to vector<1x1x32xf32>
    %15 = vector.shape_cast %14 : vector<1x1x32xf32> to vector<1x1x32xf32>
    %16 = vector.broadcast %15 : vector<1x1x32xf32> to vector<1x8x32xf32>
    %c0_10 = arith.constant 0 : index
    %c0_11 = arith.constant 0 : index
    %c0_12 = arith.constant 0 : index
    %17 = vector.load %arg5[%c0_10, %c0_11, %c0_12] : memref<1x8x32xf32, #tpu.memory_space<vmem>>, vector<1x8x32xf32>
    tpu.vector_store %arg5[%c0_10, %c0_11, %c0_12], %16 {strides = array<i32>} : memref<1x8x32xf32, #tpu.memory_space<vmem>>, vector<1x8x32xf32>,
    return
  }
  func.func @transform_0(%arg0: i32) -> (i32, i32) {
    %c0_i32 = arith.constant 0 : i32
    %c0_i32_0 = arith.constant 0 : i32
    return %arg0, %c0_i32 : i32, i32
  }
  func.func @transform_1(%arg0: i32) -> (i32, i32) {
    %c0_i32 = arith.constant 0 : i32
    %c0_i32_0 = arith.constant 0 : i32
    %c0_i32_1 = arith.constant 0 : i32
    return %c0_i32, %c0_i32_0 : i32, i32
  }
  func.func @transform_2(%arg0: i32) -> (i32, i32) {
    %c0_i32 = arith.constant 0 : i32
    %c0_i32_0 = arith.constant 0 : i32
    return %arg0, %c0_i32 : i32, i32
  }
  func.func @transform_3(%arg0: i32) -> (i32, i32, i32) {
    %c0_i32 = arith.constant 0 : i32
    %c0_i32_0 = arith.constant 0 : i32
    %c0_i32_1 = arith.constant 0 : i32
    return %arg0, %c0_i32, %c0_i32_0 : i32, i32, i32
  }
  func.func @transform_4(%arg0: i32) -> (i32, i32, i32) {
    %c0_i32 = arith.constant 0 : i32
    %c0_i32_0 = arith.constant 0 : i32
    %c0_i32_1 = arith.constant 0 : i32
    return %arg0, %c0_i32, %c0_i32_0 : i32, i32, i32
  }
}

module attributes {stable_mosaic.version = 11 : i64} {
  func.func @_apply_kernel(%arg0: i32, %arg1: memref<128x128xbf16, #tpu.memory_space<vmem>>, %arg2: memref<1x128xf32, #tpu.memory_space<vmem>>, %arg3: memref<1x128xf32, #tpu.memory_space<vmem>>, %arg4: memref<128x128xbf16, #tpu.memory_space<vmem>>) attributes {dimension_semantics = [#tpu.dimension_semantics<parallel>], iteration_bounds = array<i64: 1>, scalar_prefetch = 0 : i64, scratch_operands = 0 : i64, tpu.core_type = #tpu.core_type<tc>, window_params = [{transform_indices = @transform_0, window_bounds = array<i64: 128, 128>}, {pipeline_mode = #tpu.pipeline_mode<synchronous>, transform_indices = @transform_1, window_bounds = array<i64: 1, 128>}, {pipeline_mode = #tpu.pipeline_mode<synchronous>, transform_indices = @transform_2, window_bounds = array<i64: 1, 128>}, {transform_indices = @transform_3, window_bounds = array<i64: 128, 128>}]} {
    %c0 = arith.constant 0 : index
    %c0_0 = arith.constant 0 : index
    %0 = vector.load %arg1[%c0, %c0_0] : memref<128x128xbf16, #tpu.memory_space<vmem>>, vector<128x128xbf16>
    %1 = arith.extf %0 : vector<128x128xbf16> to vector<128x128xf32>
    %c0_1 = arith.constant 0 : index
    %c0_2 = arith.constant 0 : index
    %2 = vector.load %arg2[%c0_1, %c0_2] : memref<1x128xf32, #tpu.memory_space<vmem>>, vector<1x128xf32>
    %3 = vector.broadcast %2 : vector<1x128xf32> to vector<128x128xf32>
    %4 = arith.mulf %1, %3 : vector<128x128xf32>
    %c0_3 = arith.constant 0 : index
    %c0_4 = arith.constant 0 : index
    %5 = vector.load %arg3[%c0_3, %c0_4] : memref<1x128xf32, #tpu.memory_space<vmem>>, vector<1x128xf32>
    %6 = vector.broadcast %5 : vector<1x128xf32> to vector<128x128xf32>
    %7 = arith.addf %4, %6 : vector<128x128xf32>
    %cst = arith.constant 0.000000e+00 : f32
    %8 = vector.broadcast %cst : f32 to vector<128x128xf32>
    %9 = arith.maximumf %7, %8 : vector<128x128xf32>
    %10 = arith.truncf %9 : vector<128x128xf32> to vector<128x128xbf16>
    %c0_5 = arith.constant 0 : index
    %c0_6 = arith.constant 0 : index
    %11 = vector.load %arg4[%c0_5, %c0_6] : memref<128x128xbf16, #tpu.memory_space<vmem>>, vector<128x128xbf16>
    tpu.vector_store %arg4[%c0_5, %c0_6], %10 {strides = array<i32>} : memref<128x128xbf16, #tpu.memory_space<vmem>>, vector<128x128xbf16>,
    return
  }
  func.func @transform_0(%arg0: i32) -> (i32, i32) {
    %c0_i32 = arith.constant 0 : i32
    %c0_i32_0 = arith.constant 0 : i32
    return %arg0, %c0_i32 : i32, i32
  }
  func.func @transform_1(%arg0: i32) -> (i32, i32) {
    %c0_i32 = arith.constant 0 : i32
    %c0_i32_0 = arith.constant 0 : i32
    %c0_i32_1 = arith.constant 0 : i32
    return %c0_i32, %c0_i32_0 : i32, i32
  }
  func.func @transform_2(%arg0: i32) -> (i32, i32) {
    %c0_i32 = arith.constant 0 : i32
    %c0_i32_0 = arith.constant 0 : i32
    %c0_i32_1 = arith.constant 0 : i32
    return %c0_i32, %c0_i32_0 : i32, i32
  }
  func.func @transform_3(%arg0: i32) -> (i32, i32) {
    %c0_i32 = arith.constant 0 : i32
    %c0_i32_0 = arith.constant 0 : i32
    return %arg0, %c0_i32 : i32, i32
  }
}

module attributes {stable_mosaic.version = 11 : i64} {
  func.func @_matmul_stats_kernel(%arg0: i32, %arg1: memref<128x288xbf16, #tpu.memory_space<vmem>>, %arg2: memref<288x64xbf16, #tpu.memory_space<vmem>>, %arg3: memref<128x64xbf16, #tpu.memory_space<vmem>>, %arg4: memref<1x8x64xf32, #tpu.memory_space<vmem>>, %arg5: memref<1x8x64xf32, #tpu.memory_space<vmem>>) attributes {dimension_semantics = [#tpu.dimension_semantics<parallel>], iteration_bounds = array<i64: 1>, scalar_prefetch = 0 : i64, scratch_operands = 0 : i64, tpu.core_type = #tpu.core_type<tc>, window_params = [{transform_indices = @transform_0, window_bounds = array<i64: 128, 288>}, {pipeline_mode = #tpu.pipeline_mode<synchronous>, transform_indices = @transform_1, window_bounds = array<i64: 288, 64>}, {transform_indices = @transform_2, window_bounds = array<i64: 128, 64>}, {transform_indices = @transform_3, window_bounds = array<i64: 1, 8, 64>}, {transform_indices = @transform_4, window_bounds = array<i64: 1, 8, 64>}]} {
    %c0 = arith.constant 0 : index
    %c0_0 = arith.constant 0 : index
    %0 = vector.load %arg1[%c0, %c0_0] : memref<128x288xbf16, #tpu.memory_space<vmem>>, vector<128x288xbf16>
    %c0_1 = arith.constant 0 : index
    %c0_2 = arith.constant 0 : index
    %1 = vector.load %arg2[%c0_1, %c0_2] : memref<288x64xbf16, #tpu.memory_space<vmem>>, vector<288x64xbf16>
    %cst = arith.constant dense<0.000000e+00> : vector<128x64xf32>
    %2 = tpu.matmul %0, %1, %cst {dimension_numbers = #tpu.dot_dimension_numbers<[1], [0], [0], [1], [0, 0, 1, 1], [], []>} : vector<128x288xbf16>, vector<288x64xbf16>, vector<128x64xf32> -> vector<128x64xf32>
    %3 = arith.truncf %2 : vector<128x64xf32> to vector<128x64xbf16>
    %c0_3 = arith.constant 0 : index
    %c0_4 = arith.constant 0 : index
    %4 = vector.load %arg3[%c0_3, %c0_4] : memref<128x64xbf16, #tpu.memory_space<vmem>>, vector<128x64xbf16>
    tpu.vector_store %arg3[%c0_3, %c0_4], %3 {strides = array<i32>} : memref<128x64xbf16, #tpu.memory_space<vmem>>, vector<128x64xbf16>,
    %cst_5 = arith.constant dense<0.000000e+00> : vector<64xf32>
    %5 = vector.multi_reduction <add>, %2, %cst_5 [0] : vector<128x64xf32> to vector<64xf32>
    %6 = vector.shape_cast %5 : vector<64xf32> to vector<1x64xf32>
    %7 = arith.mulf %2, %2 : vector<128x64xf32>
    %cst_6 = arith.constant dense<0.000000e+00> : vector<64xf32>
    %8 = vector.multi_reduction <add>, %7, %cst_6 [0] : vector<128x64xf32> to vector<64xf32>
    %9 = vector.shape_cast %8 : vector<64xf32> to vector<1x64xf32>
    %10 = vector.shape_cast %6 : vector<1x64xf32> to vector<1x1x64xf32>
    %11 = vector.shape_cast %10 : vector<1x1x64xf32> to vector<1x1x64xf32>
    %12 = vector.broadcast %11 : vector<1x1x64xf32> to vector<1x8x64xf32>
    %c0_7 = arith.constant 0 : index
    %c0_8 = arith.constant 0 : index
    %c0_9 = arith.constant 0 : index
    %13 = vector.load %arg4[%c0_7, %c0_8, %c0_9] : memref<1x8x64xf32, #tpu.memory_space<vmem>>, vector<1x8x64xf32>
    tpu.vector_store %arg4[%c0_7, %c0_8, %c0_9], %12 {strides = array<i32>} : memref<1x8x64xf32, #tpu.memory_space<vmem>>, vector<1x8x64xf32>,
    %14 = vector.shape_cast %9 : vector<1x64xf32> to vector<1x1x64xf32>
    %15 = vector.shape_cast %14 : vector<1x1x64xf32> to vector<1x1x64xf32>
    %16 = vector.broadcast %15 : vector<1x1x64xf32> to vector<1x8x64xf32>
    %c0_10 = arith.constant 0 : index
    %c0_11 = arith.constant 0 : index
    %c0_12 = arith.constant 0 : index
    %17 = vector.load %arg5[%c0_10, %c0_11, %c0_12] : memref<1x8x64xf32, #tpu.memory_space<vmem>>, vector<1x8x64xf32>
    tpu.vector_store %arg5[%c0_10, %c0_11, %c0_12], %16 {strides = array<i32>} : memref<1x8x64xf32, #tpu.memory_space<vmem>>, vector<1x8x64xf32>,
    return
  }
  func.func @transform_0(%arg0: i32) -> (i32, i32) {
    %c0_i32 = arith.constant 0 : i32
    %c0_i32_0 = arith.constant 0 : i32
    return %arg0, %c0_i32 : i32, i32
  }
  func.func @transform_1(%arg0: i32) -> (i32, i32) {
    %c0_i32 = arith.constant 0 : i32
    %c0_i32_0 = arith.constant 0 : i32
    %c0_i32_1 = arith.constant 0 : i32
    return %c0_i32, %c0_i32_0 : i32, i32
  }
  func.func @transform_2(%arg0: i32) -> (i32, i32) {
    %c0_i32 = arith.constant 0 : i32
    %c0_i32_0 = arith.constant 0 : i32
    return %arg0, %c0_i32 : i32, i32
  }
  func.func @transform_3(%arg0: i32) -> (i32, i32, i32) {
    %c0_i32 = arith.constant 0 : i32
    %c0_i32_0 = arith.constant 0 : i32
    %c0_i32_1 = arith.constant 0 : i32
    return %arg0, %c0_i32, %c0_i32_0 : i32, i32, i32
  }
  func.func @transform_4(%arg0: i32) -> (i32, i32, i32) {
    %c0_i32 = arith.constant 0 : i32
    %c0_i32_0 = arith.constant 0 : i32
    %c0_i32_1 = arith.constant 0 : i32
    return %arg0, %c0_i32, %c0_i32_0 : i32, i32, i32
  }
}

module attributes {stable_mosaic.version = 11 : i64} {
  func.func @_apply_kernel(%arg0: i32, %arg1: memref<64x128xbf16, #tpu.memory_space<vmem>>, %arg2: memref<1x128xf32, #tpu.memory_space<vmem>>, %arg3: memref<1x128xf32, #tpu.memory_space<vmem>>, %arg4: memref<64x128xbf16, #tpu.memory_space<vmem>>) attributes {dimension_semantics = [#tpu.dimension_semantics<parallel>], iteration_bounds = array<i64: 1>, scalar_prefetch = 0 : i64, scratch_operands = 0 : i64, tpu.core_type = #tpu.core_type<tc>, window_params = [{transform_indices = @transform_0, window_bounds = array<i64: 64, 128>}, {pipeline_mode = #tpu.pipeline_mode<synchronous>, transform_indices = @transform_1, window_bounds = array<i64: 1, 128>}, {pipeline_mode = #tpu.pipeline_mode<synchronous>, transform_indices = @transform_2, window_bounds = array<i64: 1, 128>}, {transform_indices = @transform_3, window_bounds = array<i64: 64, 128>}]} {
    %c0 = arith.constant 0 : index
    %c0_0 = arith.constant 0 : index
    %0 = vector.load %arg1[%c0, %c0_0] : memref<64x128xbf16, #tpu.memory_space<vmem>>, vector<64x128xbf16>
    %1 = arith.extf %0 : vector<64x128xbf16> to vector<64x128xf32>
    %c0_1 = arith.constant 0 : index
    %c0_2 = arith.constant 0 : index
    %2 = vector.load %arg2[%c0_1, %c0_2] : memref<1x128xf32, #tpu.memory_space<vmem>>, vector<1x128xf32>
    %3 = vector.broadcast %2 : vector<1x128xf32> to vector<64x128xf32>
    %4 = arith.mulf %1, %3 : vector<64x128xf32>
    %c0_3 = arith.constant 0 : index
    %c0_4 = arith.constant 0 : index
    %5 = vector.load %arg3[%c0_3, %c0_4] : memref<1x128xf32, #tpu.memory_space<vmem>>, vector<1x128xf32>
    %6 = vector.broadcast %5 : vector<1x128xf32> to vector<64x128xf32>
    %7 = arith.addf %4, %6 : vector<64x128xf32>
    %cst = arith.constant 0.000000e+00 : f32
    %8 = vector.broadcast %cst : f32 to vector<64x128xf32>
    %9 = arith.maximumf %7, %8 : vector<64x128xf32>
    %10 = arith.truncf %9 : vector<64x128xf32> to vector<64x128xbf16>
    %c0_5 = arith.constant 0 : index
    %c0_6 = arith.constant 0 : index
    %11 = vector.load %arg4[%c0_5, %c0_6] : memref<64x128xbf16, #tpu.memory_space<vmem>>, vector<64x128xbf16>
    tpu.vector_store %arg4[%c0_5, %c0_6], %10 {strides = array<i32>} : memref<64x128xbf16, #tpu.memory_space<vmem>>, vector<64x128xbf16>,
    return
  }
  func.func @transform_0(%arg0: i32) -> (i32, i32) {
    %c0_i32 = arith.constant 0 : i32
    %c0_i32_0 = arith.constant 0 : i32
    return %arg0, %c0_i32 : i32, i32
  }
  func.func @transform_1(%arg0: i32) -> (i32, i32) {
    %c0_i32 = arith.constant 0 : i32
    %c0_i32_0 = arith.constant 0 : i32
    %c0_i32_1 = arith.constant 0 : i32
    return %c0_i32, %c0_i32_0 : i32, i32
  }
  func.func @transform_2(%arg0: i32) -> (i32, i32) {
    %c0_i32 = arith.constant 0 : i32
    %c0_i32_0 = arith.constant 0 : i32
    %c0_i32_1 = arith.constant 0 : i32
    return %c0_i32, %c0_i32_0 : i32, i32
  }
  func.func @transform_3(%arg0: i32) -> (i32, i32) {
    %c0_i32 = arith.constant 0 : i32
    %c0_i32_0 = arith.constant 0 : i32
    return %arg0, %c0_i32 : i32, i32
  }
}

module attributes {stable_mosaic.version = 11 : i64} {
  func.func @_matmul_stats_kernel(%arg0: i32, %arg1: memref<32x576xbf16, #tpu.memory_space<vmem>>, %arg2: memref<576x64xbf16, #tpu.memory_space<vmem>>, %arg3: memref<32x64xbf16, #tpu.memory_space<vmem>>, %arg4: memref<1x8x64xf32, #tpu.memory_space<vmem>>, %arg5: memref<1x8x64xf32, #tpu.memory_space<vmem>>) attributes {dimension_semantics = [#tpu.dimension_semantics<parallel>], iteration_bounds = array<i64: 1>, scalar_prefetch = 0 : i64, scratch_operands = 0 : i64, tpu.core_type = #tpu.core_type<tc>, window_params = [{transform_indices = @transform_0, window_bounds = array<i64: 32, 576>}, {pipeline_mode = #tpu.pipeline_mode<synchronous>, transform_indices = @transform_1, window_bounds = array<i64: 576, 64>}, {transform_indices = @transform_2, window_bounds = array<i64: 32, 64>}, {transform_indices = @transform_3, window_bounds = array<i64: 1, 8, 64>}, {transform_indices = @transform_4, window_bounds = array<i64: 1, 8, 64>}]} {
    %c0 = arith.constant 0 : index
    %c0_0 = arith.constant 0 : index
    %0 = vector.load %arg1[%c0, %c0_0] : memref<32x576xbf16, #tpu.memory_space<vmem>>, vector<32x576xbf16>
    %c0_1 = arith.constant 0 : index
    %c0_2 = arith.constant 0 : index
    %1 = vector.load %arg2[%c0_1, %c0_2] : memref<576x64xbf16, #tpu.memory_space<vmem>>, vector<576x64xbf16>
    %cst = arith.constant dense<0.000000e+00> : vector<32x64xf32>
    %2 = tpu.matmul %0, %1, %cst {dimension_numbers = #tpu.dot_dimension_numbers<[1], [0], [0], [1], [0, 0, 1, 1], [], []>} : vector<32x576xbf16>, vector<576x64xbf16>, vector<32x64xf32> -> vector<32x64xf32>
    %3 = arith.truncf %2 : vector<32x64xf32> to vector<32x64xbf16>
    %c0_3 = arith.constant 0 : index
    %c0_4 = arith.constant 0 : index
    %4 = vector.load %arg3[%c0_3, %c0_4] : memref<32x64xbf16, #tpu.memory_space<vmem>>, vector<32x64xbf16>
    tpu.vector_store %arg3[%c0_3, %c0_4], %3 {strides = array<i32>} : memref<32x64xbf16, #tpu.memory_space<vmem>>, vector<32x64xbf16>,
    %cst_5 = arith.constant dense<0.000000e+00> : vector<64xf32>
    %5 = vector.multi_reduction <add>, %2, %cst_5 [0] : vector<32x64xf32> to vector<64xf32>
    %6 = vector.shape_cast %5 : vector<64xf32> to vector<1x64xf32>
    %7 = arith.mulf %2, %2 : vector<32x64xf32>
    %cst_6 = arith.constant dense<0.000000e+00> : vector<64xf32>
    %8 = vector.multi_reduction <add>, %7, %cst_6 [0] : vector<32x64xf32> to vector<64xf32>
    %9 = vector.shape_cast %8 : vector<64xf32> to vector<1x64xf32>
    %10 = vector.shape_cast %6 : vector<1x64xf32> to vector<1x1x64xf32>
    %11 = vector.shape_cast %10 : vector<1x1x64xf32> to vector<1x1x64xf32>
    %12 = vector.broadcast %11 : vector<1x1x64xf32> to vector<1x8x64xf32>
    %c0_7 = arith.constant 0 : index
    %c0_8 = arith.constant 0 : index
    %c0_9 = arith.constant 0 : index
    %13 = vector.load %arg4[%c0_7, %c0_8, %c0_9] : memref<1x8x64xf32, #tpu.memory_space<vmem>>, vector<1x8x64xf32>
    tpu.vector_store %arg4[%c0_7, %c0_8, %c0_9], %12 {strides = array<i32>} : memref<1x8x64xf32, #tpu.memory_space<vmem>>, vector<1x8x64xf32>,
    %14 = vector.shape_cast %9 : vector<1x64xf32> to vector<1x1x64xf32>
    %15 = vector.shape_cast %14 : vector<1x1x64xf32> to vector<1x1x64xf32>
    %16 = vector.broadcast %15 : vector<1x1x64xf32> to vector<1x8x64xf32>
    %c0_10 = arith.constant 0 : index
    %c0_11 = arith.constant 0 : index
    %c0_12 = arith.constant 0 : index
    %17 = vector.load %arg5[%c0_10, %c0_11, %c0_12] : memref<1x8x64xf32, #tpu.memory_space<vmem>>, vector<1x8x64xf32>
    tpu.vector_store %arg5[%c0_10, %c0_11, %c0_12], %16 {strides = array<i32>} : memref<1x8x64xf32, #tpu.memory_space<vmem>>, vector<1x8x64xf32>,
    return
  }
  func.func @transform_0(%arg0: i32) -> (i32, i32) {
    %c0_i32 = arith.constant 0 : i32
    %c0_i32_0 = arith.constant 0 : i32
    return %arg0, %c0_i32 : i32, i32
  }
  func.func @transform_1(%arg0: i32) -> (i32, i32) {
    %c0_i32 = arith.constant 0 : i32
    %c0_i32_0 = arith.constant 0 : i32
    %c0_i32_1 = arith.constant 0 : i32
    return %c0_i32, %c0_i32_0 : i32, i32
  }
  func.func @transform_2(%arg0: i32) -> (i32, i32) {
    %c0_i32 = arith.constant 0 : i32
    %c0_i32_0 = arith.constant 0 : i32
    return %arg0, %c0_i32 : i32, i32
  }
  func.func @transform_3(%arg0: i32) -> (i32, i32, i32) {
    %c0_i32 = arith.constant 0 : i32
    %c0_i32_0 = arith.constant 0 : i32
    %c0_i32_1 = arith.constant 0 : i32
    return %arg0, %c0_i32, %c0_i32_0 : i32, i32, i32
  }
  func.func @transform_4(%arg0: i32) -> (i32, i32, i32) {
    %c0_i32 = arith.constant 0 : i32
    %c0_i32_0 = arith.constant 0 : i32
    %c0_i32_1 = arith.constant 0 : i32
    return %arg0, %c0_i32, %c0_i32_0 : i32, i32, i32
  }
}

module attributes {stable_mosaic.version = 11 : i64} {
  func.func @_apply_kernel(%arg0: i32, %arg1: memref<16x128xbf16, #tpu.memory_space<vmem>>, %arg2: memref<1x128xf32, #tpu.memory_space<vmem>>, %arg3: memref<1x128xf32, #tpu.memory_space<vmem>>, %arg4: memref<16x128xbf16, #tpu.memory_space<vmem>>) attributes {dimension_semantics = [#tpu.dimension_semantics<parallel>], iteration_bounds = array<i64: 1>, scalar_prefetch = 0 : i64, scratch_operands = 0 : i64, tpu.core_type = #tpu.core_type<tc>, window_params = [{transform_indices = @transform_0, window_bounds = array<i64: 16, 128>}, {pipeline_mode = #tpu.pipeline_mode<synchronous>, transform_indices = @transform_1, window_bounds = array<i64: 1, 128>}, {pipeline_mode = #tpu.pipeline_mode<synchronous>, transform_indices = @transform_2, window_bounds = array<i64: 1, 128>}, {transform_indices = @transform_3, window_bounds = array<i64: 16, 128>}]} {
    %c0 = arith.constant 0 : index
    %c0_0 = arith.constant 0 : index
    %0 = vector.load %arg1[%c0, %c0_0] : memref<16x128xbf16, #tpu.memory_space<vmem>>, vector<16x128xbf16>
    %1 = arith.extf %0 : vector<16x128xbf16> to vector<16x128xf32>
    %c0_1 = arith.constant 0 : index
    %c0_2 = arith.constant 0 : index
    %2 = vector.load %arg2[%c0_1, %c0_2] : memref<1x128xf32, #tpu.memory_space<vmem>>, vector<1x128xf32>
    %3 = vector.broadcast %2 : vector<1x128xf32> to vector<16x128xf32>
    %4 = arith.mulf %1, %3 : vector<16x128xf32>
    %c0_3 = arith.constant 0 : index
    %c0_4 = arith.constant 0 : index
    %5 = vector.load %arg3[%c0_3, %c0_4] : memref<1x128xf32, #tpu.memory_space<vmem>>, vector<1x128xf32>
    %6 = vector.broadcast %5 : vector<1x128xf32> to vector<16x128xf32>
    %7 = arith.addf %4, %6 : vector<16x128xf32>
    %cst = arith.constant 0.000000e+00 : f32
    %8 = vector.broadcast %cst : f32 to vector<16x128xf32>
    %9 = arith.maximumf %7, %8 : vector<16x128xf32>
    %10 = arith.truncf %9 : vector<16x128xf32> to vector<16x128xbf16>
    %c0_5 = arith.constant 0 : index
    %c0_6 = arith.constant 0 : index
    %11 = vector.load %arg4[%c0_5, %c0_6] : memref<16x128xbf16, #tpu.memory_space<vmem>>, vector<16x128xbf16>
    tpu.vector_store %arg4[%c0_5, %c0_6], %10 {strides = array<i32>} : memref<16x128xbf16, #tpu.memory_space<vmem>>, vector<16x128xbf16>,
    return
  }
  func.func @transform_0(%arg0: i32) -> (i32, i32) {
    %c0_i32 = arith.constant 0 : i32
    %c0_i32_0 = arith.constant 0 : i32
    return %arg0, %c0_i32 : i32, i32
  }
  func.func @transform_1(%arg0: i32) -> (i32, i32) {
    %c0_i32 = arith.constant 0 : i32
    %c0_i32_0 = arith.constant 0 : i32
    %c0_i32_1 = arith.constant 0 : i32
    return %c0_i32, %c0_i32_0 : i32, i32
  }
  func.func @transform_2(%arg0: i32) -> (i32, i32) {
    %c0_i32 = arith.constant 0 : i32
    %c0_i32_0 = arith.constant 0 : i32
    %c0_i32_1 = arith.constant 0 : i32
    return %c0_i32, %c0_i32_0 : i32, i32
  }
  func.func @transform_3(%arg0: i32) -> (i32, i32) {
    %c0_i32 = arith.constant 0 : i32
    %c0_i32_0 = arith.constant 0 : i32
    return %arg0, %c0_i32 : i32, i32
  }
}

module attributes {stable_mosaic.version = 11 : i64} {
  func.func @_apply_kernel(%arg0: i32, %arg1: memref<16x128xbf16, #tpu.memory_space<vmem>>, %arg2: memref<1x128xf32, #tpu.memory_space<vmem>>, %arg3: memref<1x128xf32, #tpu.memory_space<vmem>>, %arg4: memref<16x128xbf16, #tpu.memory_space<vmem>>, %arg5: memref<16x128xbf16, #tpu.memory_space<vmem>>) attributes {dimension_semantics = [#tpu.dimension_semantics<parallel>], iteration_bounds = array<i64: 1>, scalar_prefetch = 0 : i64, scratch_operands = 0 : i64, tpu.core_type = #tpu.core_type<tc>, window_params = [{transform_indices = @transform_0, window_bounds = array<i64: 16, 128>}, {pipeline_mode = #tpu.pipeline_mode<synchronous>, transform_indices = @transform_1, window_bounds = array<i64: 1, 128>}, {pipeline_mode = #tpu.pipeline_mode<synchronous>, transform_indices = @transform_2, window_bounds = array<i64: 1, 128>}, {transform_indices = @transform_3, window_bounds = array<i64: 16, 128>}, {transform_indices = @transform_4, window_bounds = array<i64: 16, 128>}]} {
    %c0 = arith.constant 0 : index
    %c0_0 = arith.constant 0 : index
    %0 = vector.load %arg1[%c0, %c0_0] : memref<16x128xbf16, #tpu.memory_space<vmem>>, vector<16x128xbf16>
    %1 = arith.extf %0 : vector<16x128xbf16> to vector<16x128xf32>
    %c0_1 = arith.constant 0 : index
    %c0_2 = arith.constant 0 : index
    %2 = vector.load %arg2[%c0_1, %c0_2] : memref<1x128xf32, #tpu.memory_space<vmem>>, vector<1x128xf32>
    %3 = vector.broadcast %2 : vector<1x128xf32> to vector<16x128xf32>
    %4 = arith.mulf %1, %3 : vector<16x128xf32>
    %c0_3 = arith.constant 0 : index
    %c0_4 = arith.constant 0 : index
    %5 = vector.load %arg3[%c0_3, %c0_4] : memref<1x128xf32, #tpu.memory_space<vmem>>, vector<1x128xf32>
    %6 = vector.broadcast %5 : vector<1x128xf32> to vector<16x128xf32>
    %7 = arith.addf %4, %6 : vector<16x128xf32>
    %c0_5 = arith.constant 0 : index
    %c0_6 = arith.constant 0 : index
    %8 = vector.load %arg4[%c0_5, %c0_6] : memref<16x128xbf16, #tpu.memory_space<vmem>>, vector<16x128xbf16>
    %9 = arith.extf %8 : vector<16x128xbf16> to vector<16x128xf32>
    %10 = arith.addf %7, %9 : vector<16x128xf32>
    %11 = arith.truncf %10 : vector<16x128xf32> to vector<16x128xbf16>
    %c0_7 = arith.constant 0 : index
    %c0_8 = arith.constant 0 : index
    %12 = vector.load %arg5[%c0_7, %c0_8] : memref<16x128xbf16, #tpu.memory_space<vmem>>, vector<16x128xbf16>
    tpu.vector_store %arg5[%c0_7, %c0_8], %11 {strides = array<i32>} : memref<16x128xbf16, #tpu.memory_space<vmem>>, vector<16x128xbf16>,
    return
  }
  func.func @transform_0(%arg0: i32) -> (i32, i32) {
    %c0_i32 = arith.constant 0 : i32
    %c0_i32_0 = arith.constant 0 : i32
    return %arg0, %c0_i32 : i32, i32
  }
  func.func @transform_1(%arg0: i32) -> (i32, i32) {
    %c0_i32 = arith.constant 0 : i32
    %c0_i32_0 = arith.constant 0 : i32
    %c0_i32_1 = arith.constant 0 : i32
    return %c0_i32, %c0_i32_0 : i32, i32
  }
  func.func @transform_2(%arg0: i32) -> (i32, i32) {
    %c0_i32 = arith.constant 0 : i32
    %c0_i32_0 = arith.constant 0 : i32
    %c0_i32_1 = arith.constant 0 : i32
    return %c0_i32, %c0_i32_0 : i32, i32
  }
  func.func @transform_3(%arg0: i32) -> (i32, i32) {
    %c0_i32 = arith.constant 0 : i32
    %c0_i32_0 = arith.constant 0 : i32
    return %arg0, %c0_i32 : i32, i32
  }
  func.func @transform_4(%arg0: i32) -> (i32, i32) {
    %c0_i32 = arith.constant 0 : i32
    %c0_i32_0 = arith.constant 0 : i32
    return %arg0, %c0_i32 : i32, i32
  }
}

module attributes {stable_mosaic.version = 11 : i64} {
  func.func @_matmul_stats_kernel(%arg0: i32, %arg1: memref<32x256xbf16, #tpu.memory_space<vmem>>, %arg2: memref<256x256xbf16, #tpu.memory_space<vmem>>, %arg3: memref<32x256xbf16, #tpu.memory_space<vmem>>, %arg4: memref<1x8x256xf32, #tpu.memory_space<vmem>>, %arg5: memref<1x8x256xf32, #tpu.memory_space<vmem>>) attributes {dimension_semantics = [#tpu.dimension_semantics<parallel>], iteration_bounds = array<i64: 1>, scalar_prefetch = 0 : i64, scratch_operands = 0 : i64, tpu.core_type = #tpu.core_type<tc>, window_params = [{transform_indices = @transform_0, window_bounds = array<i64: 32, 256>}, {pipeline_mode = #tpu.pipeline_mode<synchronous>, transform_indices = @transform_1, window_bounds = array<i64: 256, 256>}, {transform_indices = @transform_2, window_bounds = array<i64: 32, 256>}, {transform_indices = @transform_3, window_bounds = array<i64: 1, 8, 256>}, {transform_indices = @transform_4, window_bounds = array<i64: 1, 8, 256>}]} {
    %c0 = arith.constant 0 : index
    %c0_0 = arith.constant 0 : index
    %0 = vector.load %arg1[%c0, %c0_0] : memref<32x256xbf16, #tpu.memory_space<vmem>>, vector<32x256xbf16>
    %c0_1 = arith.constant 0 : index
    %c0_2 = arith.constant 0 : index
    %1 = vector.load %arg2[%c0_1, %c0_2] : memref<256x256xbf16, #tpu.memory_space<vmem>>, vector<256x256xbf16>
    %cst = arith.constant dense<0.000000e+00> : vector<32x256xf32>
    %2 = tpu.matmul %0, %1, %cst {dimension_numbers = #tpu.dot_dimension_numbers<[1], [0], [0], [1], [0, 0, 1, 1], [], []>} : vector<32x256xbf16>, vector<256x256xbf16>, vector<32x256xf32> -> vector<32x256xf32>
    %3 = arith.truncf %2 : vector<32x256xf32> to vector<32x256xbf16>
    %c0_3 = arith.constant 0 : index
    %c0_4 = arith.constant 0 : index
    %4 = vector.load %arg3[%c0_3, %c0_4] : memref<32x256xbf16, #tpu.memory_space<vmem>>, vector<32x256xbf16>
    tpu.vector_store %arg3[%c0_3, %c0_4], %3 {strides = array<i32>} : memref<32x256xbf16, #tpu.memory_space<vmem>>, vector<32x256xbf16>,
    %cst_5 = arith.constant dense<0.000000e+00> : vector<256xf32>
    %5 = vector.multi_reduction <add>, %2, %cst_5 [0] : vector<32x256xf32> to vector<256xf32>
    %6 = vector.shape_cast %5 : vector<256xf32> to vector<1x256xf32>
    %7 = arith.mulf %2, %2 : vector<32x256xf32>
    %cst_6 = arith.constant dense<0.000000e+00> : vector<256xf32>
    %8 = vector.multi_reduction <add>, %7, %cst_6 [0] : vector<32x256xf32> to vector<256xf32>
    %9 = vector.shape_cast %8 : vector<256xf32> to vector<1x256xf32>
    %10 = vector.shape_cast %6 : vector<1x256xf32> to vector<1x1x256xf32>
    %11 = vector.shape_cast %10 : vector<1x1x256xf32> to vector<1x1x256xf32>
    %12 = vector.broadcast %11 : vector<1x1x256xf32> to vector<1x8x256xf32>
    %c0_7 = arith.constant 0 : index
    %c0_8 = arith.constant 0 : index
    %c0_9 = arith.constant 0 : index
    %13 = vector.load %arg4[%c0_7, %c0_8, %c0_9] : memref<1x8x256xf32, #tpu.memory_space<vmem>>, vector<1x8x256xf32>
    tpu.vector_store %arg4[%c0_7, %c0_8, %c0_9], %12 {strides = array<i32>} : memref<1x8x256xf32, #tpu.memory_space<vmem>>, vector<1x8x256xf32>,
    %14 = vector.shape_cast %9 : vector<1x256xf32> to vector<1x1x256xf32>
    %15 = vector.shape_cast %14 : vector<1x1x256xf32> to vector<1x1x256xf32>
    %16 = vector.broadcast %15 : vector<1x1x256xf32> to vector<1x8x256xf32>
    %c0_10 = arith.constant 0 : index
    %c0_11 = arith.constant 0 : index
    %c0_12 = arith.constant 0 : index
    %17 = vector.load %arg5[%c0_10, %c0_11, %c0_12] : memref<1x8x256xf32, #tpu.memory_space<vmem>>, vector<1x8x256xf32>
    tpu.vector_store %arg5[%c0_10, %c0_11, %c0_12], %16 {strides = array<i32>} : memref<1x8x256xf32, #tpu.memory_space<vmem>>, vector<1x8x256xf32>,
    return
  }
  func.func @transform_0(%arg0: i32) -> (i32, i32) {
    %c0_i32 = arith.constant 0 : i32
    %c0_i32_0 = arith.constant 0 : i32
    return %arg0, %c0_i32 : i32, i32
  }
  func.func @transform_1(%arg0: i32) -> (i32, i32) {
    %c0_i32 = arith.constant 0 : i32
    %c0_i32_0 = arith.constant 0 : i32
    %c0_i32_1 = arith.constant 0 : i32
    return %c0_i32, %c0_i32_0 : i32, i32
  }
  func.func @transform_2(%arg0: i32) -> (i32, i32) {
    %c0_i32 = arith.constant 0 : i32
    %c0_i32_0 = arith.constant 0 : i32
    return %arg0, %c0_i32 : i32, i32
  }
  func.func @transform_3(%arg0: i32) -> (i32, i32, i32) {
    %c0_i32 = arith.constant 0 : i32
    %c0_i32_0 = arith.constant 0 : i32
    %c0_i32_1 = arith.constant 0 : i32
    return %arg0, %c0_i32, %c0_i32_0 : i32, i32, i32
  }
  func.func @transform_4(%arg0: i32) -> (i32, i32, i32) {
    %c0_i32 = arith.constant 0 : i32
    %c0_i32_0 = arith.constant 0 : i32
    %c0_i32_1 = arith.constant 0 : i32
    return %arg0, %c0_i32, %c0_i32_0 : i32, i32, i32
  }
}

module attributes {stable_mosaic.version = 11 : i64} {
  func.func @_apply_kernel(%arg0: i32, %arg1: memref<32x256xbf16, #tpu.memory_space<vmem>>, %arg2: memref<1x256xf32, #tpu.memory_space<vmem>>, %arg3: memref<1x256xf32, #tpu.memory_space<vmem>>, %arg4: memref<32x256xbf16, #tpu.memory_space<vmem>>) attributes {dimension_semantics = [#tpu.dimension_semantics<parallel>], iteration_bounds = array<i64: 1>, scalar_prefetch = 0 : i64, scratch_operands = 0 : i64, tpu.core_type = #tpu.core_type<tc>, window_params = [{transform_indices = @transform_0, window_bounds = array<i64: 32, 256>}, {pipeline_mode = #tpu.pipeline_mode<synchronous>, transform_indices = @transform_1, window_bounds = array<i64: 1, 256>}, {pipeline_mode = #tpu.pipeline_mode<synchronous>, transform_indices = @transform_2, window_bounds = array<i64: 1, 256>}, {transform_indices = @transform_3, window_bounds = array<i64: 32, 256>}]} {
    %c0 = arith.constant 0 : index
    %c0_0 = arith.constant 0 : index
    %0 = vector.load %arg1[%c0, %c0_0] : memref<32x256xbf16, #tpu.memory_space<vmem>>, vector<32x256xbf16>
    %1 = arith.extf %0 : vector<32x256xbf16> to vector<32x256xf32>
    %c0_1 = arith.constant 0 : index
    %c0_2 = arith.constant 0 : index
    %2 = vector.load %arg2[%c0_1, %c0_2] : memref<1x256xf32, #tpu.memory_space<vmem>>, vector<1x256xf32>
    %3 = vector.broadcast %2 : vector<1x256xf32> to vector<32x256xf32>
    %4 = arith.mulf %1, %3 : vector<32x256xf32>
    %c0_3 = arith.constant 0 : index
    %c0_4 = arith.constant 0 : index
    %5 = vector.load %arg3[%c0_3, %c0_4] : memref<1x256xf32, #tpu.memory_space<vmem>>, vector<1x256xf32>
    %6 = vector.broadcast %5 : vector<1x256xf32> to vector<32x256xf32>
    %7 = arith.addf %4, %6 : vector<32x256xf32>
    %cst = arith.constant 0.000000e+00 : f32
    %8 = vector.broadcast %cst : f32 to vector<32x256xf32>
    %9 = arith.maximumf %7, %8 : vector<32x256xf32>
    %10 = arith.truncf %9 : vector<32x256xf32> to vector<32x256xbf16>
    %c0_5 = arith.constant 0 : index
    %c0_6 = arith.constant 0 : index
    %11 = vector.load %arg4[%c0_5, %c0_6] : memref<32x256xbf16, #tpu.memory_space<vmem>>, vector<32x256xbf16>
    tpu.vector_store %arg4[%c0_5, %c0_6], %10 {strides = array<i32>} : memref<32x256xbf16, #tpu.memory_space<vmem>>, vector<32x256xbf16>,
    return
  }
  func.func @transform_0(%arg0: i32) -> (i32, i32) {
    %c0_i32 = arith.constant 0 : i32
    %c0_i32_0 = arith.constant 0 : i32
    return %arg0, %c0_i32 : i32, i32
  }
  func.func @transform_1(%arg0: i32) -> (i32, i32) {
    %c0_i32 = arith.constant 0 : i32
    %c0_i32_0 = arith.constant 0 : i32
    %c0_i32_1 = arith.constant 0 : i32
    return %c0_i32, %c0_i32_0 : i32, i32
  }
  func.func @transform_2(%arg0: i32) -> (i32, i32) {
    %c0_i32 = arith.constant 0 : i32
    %c0_i32_0 = arith.constant 0 : i32
    %c0_i32_1 = arith.constant 0 : i32
    return %c0_i32, %c0_i32_0 : i32, i32
  }
  func.func @transform_3(%arg0: i32) -> (i32, i32) {
    %c0_i32 = arith.constant 0 : i32
    %c0_i32_0 = arith.constant 0 : i32
    return %arg0, %c0_i32 : i32, i32
  }
}

module attributes {stable_mosaic.version = 11 : i64} {
  func.func @_matmul_stats_kernel(%arg0: i32, %arg1: memref<128x256xbf16, #tpu.memory_space<vmem>>, %arg2: memref<256x128xbf16, #tpu.memory_space<vmem>>, %arg3: memref<128x128xbf16, #tpu.memory_space<vmem>>, %arg4: memref<1x8x128xf32, #tpu.memory_space<vmem>>, %arg5: memref<1x8x128xf32, #tpu.memory_space<vmem>>) attributes {dimension_semantics = [#tpu.dimension_semantics<parallel>], iteration_bounds = array<i64: 1>, scalar_prefetch = 0 : i64, scratch_operands = 0 : i64, tpu.core_type = #tpu.core_type<tc>, window_params = [{transform_indices = @transform_0, window_bounds = array<i64: 128, 256>}, {pipeline_mode = #tpu.pipeline_mode<synchronous>, transform_indices = @transform_1, window_bounds = array<i64: 256, 128>}, {transform_indices = @transform_2, window_bounds = array<i64: 128, 128>}, {transform_indices = @transform_3, window_bounds = array<i64: 1, 8, 128>}, {transform_indices = @transform_4, window_bounds = array<i64: 1, 8, 128>}]} {
    %c0 = arith.constant 0 : index
    %c0_0 = arith.constant 0 : index
    %0 = vector.load %arg1[%c0, %c0_0] : memref<128x256xbf16, #tpu.memory_space<vmem>>, vector<128x256xbf16>
    %c0_1 = arith.constant 0 : index
    %c0_2 = arith.constant 0 : index
    %1 = vector.load %arg2[%c0_1, %c0_2] : memref<256x128xbf16, #tpu.memory_space<vmem>>, vector<256x128xbf16>
    %cst = arith.constant dense<0.000000e+00> : vector<128x128xf32>
    %2 = tpu.matmul %0, %1, %cst {dimension_numbers = #tpu.dot_dimension_numbers<[1], [0], [0], [1], [0, 0, 1, 1], [], []>} : vector<128x256xbf16>, vector<256x128xbf16>, vector<128x128xf32> -> vector<128x128xf32>
    %3 = arith.truncf %2 : vector<128x128xf32> to vector<128x128xbf16>
    %c0_3 = arith.constant 0 : index
    %c0_4 = arith.constant 0 : index
    %4 = vector.load %arg3[%c0_3, %c0_4] : memref<128x128xbf16, #tpu.memory_space<vmem>>, vector<128x128xbf16>
    tpu.vector_store %arg3[%c0_3, %c0_4], %3 {strides = array<i32>} : memref<128x128xbf16, #tpu.memory_space<vmem>>, vector<128x128xbf16>,
    %cst_5 = arith.constant dense<0.000000e+00> : vector<128xf32>
    %5 = vector.multi_reduction <add>, %2, %cst_5 [0] : vector<128x128xf32> to vector<128xf32>
    %6 = vector.shape_cast %5 : vector<128xf32> to vector<1x128xf32>
    %7 = arith.mulf %2, %2 : vector<128x128xf32>
    %cst_6 = arith.constant dense<0.000000e+00> : vector<128xf32>
    %8 = vector.multi_reduction <add>, %7, %cst_6 [0] : vector<128x128xf32> to vector<128xf32>
    %9 = vector.shape_cast %8 : vector<128xf32> to vector<1x128xf32>
    %10 = vector.shape_cast %6 : vector<1x128xf32> to vector<1x1x128xf32>
    %11 = vector.shape_cast %10 : vector<1x1x128xf32> to vector<1x1x128xf32>
    %12 = vector.broadcast %11 : vector<1x1x128xf32> to vector<1x8x128xf32>
    %c0_7 = arith.constant 0 : index
    %c0_8 = arith.constant 0 : index
    %c0_9 = arith.constant 0 : index
    %13 = vector.load %arg4[%c0_7, %c0_8, %c0_9] : memref<1x8x128xf32, #tpu.memory_space<vmem>>, vector<1x8x128xf32>
    tpu.vector_store %arg4[%c0_7, %c0_8, %c0_9], %12 {strides = array<i32>} : memref<1x8x128xf32, #tpu.memory_space<vmem>>, vector<1x8x128xf32>,
    %14 = vector.shape_cast %9 : vector<1x128xf32> to vector<1x1x128xf32>
    %15 = vector.shape_cast %14 : vector<1x1x128xf32> to vector<1x1x128xf32>
    %16 = vector.broadcast %15 : vector<1x1x128xf32> to vector<1x8x128xf32>
    %c0_10 = arith.constant 0 : index
    %c0_11 = arith.constant 0 : index
    %c0_12 = arith.constant 0 : index
    %17 = vector.load %arg5[%c0_10, %c0_11, %c0_12] : memref<1x8x128xf32, #tpu.memory_space<vmem>>, vector<1x8x128xf32>
    tpu.vector_store %arg5[%c0_10, %c0_11, %c0_12], %16 {strides = array<i32>} : memref<1x8x128xf32, #tpu.memory_space<vmem>>, vector<1x8x128xf32>,
    return
  }
  func.func @transform_0(%arg0: i32) -> (i32, i32) {
    %c0_i32 = arith.constant 0 : i32
    %c0_i32_0 = arith.constant 0 : i32
    return %arg0, %c0_i32 : i32, i32
  }
  func.func @transform_1(%arg0: i32) -> (i32, i32) {
    %c0_i32 = arith.constant 0 : i32
    %c0_i32_0 = arith.constant 0 : i32
    %c0_i32_1 = arith.constant 0 : i32
    return %c0_i32, %c0_i32_0 : i32, i32
  }
  func.func @transform_2(%arg0: i32) -> (i32, i32) {
    %c0_i32 = arith.constant 0 : i32
    %c0_i32_0 = arith.constant 0 : i32
    return %arg0, %c0_i32 : i32, i32
  }
  func.func @transform_3(%arg0: i32) -> (i32, i32, i32) {
    %c0_i32 = arith.constant 0 : i32
    %c0_i32_0 = arith.constant 0 : i32
    %c0_i32_1 = arith.constant 0 : i32
    return %arg0, %c0_i32, %c0_i32_0 : i32, i32, i32
  }
  func.func @transform_4(%arg0: i32) -> (i32, i32, i32) {
    %c0_i32 = arith.constant 0 : i32
    %c0_i32_0 = arith.constant 0 : i32
    %c0_i32_1 = arith.constant 0 : i32
    return %arg0, %c0_i32, %c0_i32_0 : i32, i32, i32
  }
}

module attributes {stable_mosaic.version = 11 : i64} {
  func.func @_matmul_bias_act_kernel(%arg0: i32, %arg1: memref<512x1568xbf16, #tpu.memory_space<vmem>>, %arg2: memref<1568x128xbf16, #tpu.memory_space<vmem>>, %arg3: memref<1x128xf32, #tpu.memory_space<vmem>>, %arg4: memref<512x128xbf16, #tpu.memory_space<vmem>>) attributes {dimension_semantics = [#tpu.dimension_semantics<parallel>], iteration_bounds = array<i64: 1>, scalar_prefetch = 0 : i64, scratch_operands = 0 : i64, tpu.core_type = #tpu.core_type<tc>, window_params = [{transform_indices = @transform_0, window_bounds = array<i64: 512, 1568>}, {pipeline_mode = #tpu.pipeline_mode<synchronous>, transform_indices = @transform_1, window_bounds = array<i64: 1568, 128>}, {pipeline_mode = #tpu.pipeline_mode<synchronous>, transform_indices = @transform_2, window_bounds = array<i64: 1, 128>}, {transform_indices = @transform_3, window_bounds = array<i64: 512, 128>}]} {
    %c0 = arith.constant 0 : index
    %c0_0 = arith.constant 0 : index
    %0 = vector.load %arg1[%c0, %c0_0] : memref<512x1568xbf16, #tpu.memory_space<vmem>>, vector<512x1568xbf16>
    %c0_1 = arith.constant 0 : index
    %c0_2 = arith.constant 0 : index
    %1 = vector.load %arg2[%c0_1, %c0_2] : memref<1568x128xbf16, #tpu.memory_space<vmem>>, vector<1568x128xbf16>
    %cst = arith.constant dense<0.000000e+00> : vector<512x128xf32>
    %2 = tpu.matmul %0, %1, %cst {dimension_numbers = #tpu.dot_dimension_numbers<[1], [0], [0], [1], [0, 0, 1, 1], [], []>} : vector<512x1568xbf16>, vector<1568x128xbf16>, vector<512x128xf32> -> vector<512x128xf32>
    %c0_3 = arith.constant 0 : index
    %c0_4 = arith.constant 0 : index
    %3 = vector.load %arg3[%c0_3, %c0_4] : memref<1x128xf32, #tpu.memory_space<vmem>>, vector<1x128xf32>
    %4 = vector.broadcast %3 : vector<1x128xf32> to vector<512x128xf32>
    %5 = arith.addf %2, %4 : vector<512x128xf32>
    %6 = math.tanh %5 : vector<512x128xf32>
    %7 = arith.truncf %6 : vector<512x128xf32> to vector<512x128xbf16>
    %c0_5 = arith.constant 0 : index
    %c0_6 = arith.constant 0 : index
    %8 = vector.load %arg4[%c0_5, %c0_6] : memref<512x128xbf16, #tpu.memory_space<vmem>>, vector<512x128xbf16>
    tpu.vector_store %arg4[%c0_5, %c0_6], %7 {strides = array<i32>} : memref<512x128xbf16, #tpu.memory_space<vmem>>, vector<512x128xbf16>,
    return
  }
  func.func @transform_0(%arg0: i32) -> (i32, i32) {
    %c0_i32 = arith.constant 0 : i32
    %c0_i32_0 = arith.constant 0 : i32
    return %arg0, %c0_i32 : i32, i32
  }
  func.func @transform_1(%arg0: i32) -> (i32, i32) {
    %c0_i32 = arith.constant 0 : i32
    %c0_i32_0 = arith.constant 0 : i32
    %c0_i32_1 = arith.constant 0 : i32
    return %c0_i32, %c0_i32_0 : i32, i32
  }
  func.func @transform_2(%arg0: i32) -> (i32, i32) {
    %c0_i32 = arith.constant 0 : i32
    %c0_i32_0 = arith.constant 0 : i32
    %c0_i32_1 = arith.constant 0 : i32
    return %c0_i32, %c0_i32_0 : i32, i32
  }
  func.func @transform_3(%arg0: i32) -> (i32, i32) {
    %c0_i32 = arith.constant 0 : i32
    %c0_i32_0 = arith.constant 0 : i32
    return %arg0, %c0_i32 : i32, i32
  }
}

</mosaic_0001>

<llo_original>
// kernel: tile.218
$region0: #{tile.218}
  #allocation0 [shape = 's32[1]{0}', space=sflag, size = 0x4, scoped, tag = 'scoped memory for tile.218']
  %s0 = inlined_call_operand.vmem [shape: f32[32], index: 0, kind: input, shape index: {}]
  %s1 = inlined_call_operand.vmem [shape: f32[4,32], index: 1, kind: output, shape index: {}]
  // Predicated region
  $region2: #{tile.218} parent=0 // pred_check
    _
  $region3: #{tile.218} parent=0 // pred_check_branch
    %3 = sbr.rel (0) target = $region5
  $region4: #{tile.218} parent=0 // pred_region
    _
  $region5: #{tile.218} parent=0 // pred_fallthru
    _
  %v4 = vld [vmem:[%s0] ss:$0 sm:$0xff]
  %5 = vst [vmem:[%s1] sm:$0xf] %v4

// kernel: tile.219
$region0: #{tile.219}
  %s0 = inlined_call_operand.vmem [shape: f32[4,32], index: 0, kind: input, shape index: {}]
  %s1 = inlined_call_operand.vmem [shape: f32[1,128], index: 1, kind: output, shape index: {}]
  $region1: #{tile.219} parent=0
    #allocation0 [shape = 'u8[4096]{0}', space=vmem, size = 0x1000, scoped, tag = 'scoped mem for output reshape']
    #allocation1 [shape = 'u8[4096]{0}', space=vmem, size = 0x1000, scoped, tag = 'scoped mem for input reshape']
    %s3 = ssub.s32 16, 1
    %v4 = vld [vmem:[%s0] sm:%s3]
    %5 = vst [vmem:[#allocation1] sm:%s3] %v4
    %v6 = vld [vmem:[#allocation1] sm:$0x1]
    %vm7 = vcmask 261120
    %8 = vst.msk [vmem:[#allocation0] sm:$0x1] %vm7, %v6
    %s9 = scalar_lea.vmem [#allocation1], 3
    %v10 = vld [vmem:[%s9] sm:$0x1]
    %11 = vrot.lane.b32.xlu0 %v10, 96
    %v12 = vpop.permute.xlu0 %11
    %vm13 = vcmask 1048320
    %14 = vst.msk [vmem:[#allocation0] sm:$0x1] %vm13, %v12
    %s15 = scalar_lea.vmem [#allocation1], 2
    %v16 = vld [vmem:[%s15] sm:$0x1]
    %17 = vrot.lane.b32.xlu0 %v16, 64
    %v18 = vpop.permute.xlu0 %17
    %vm19 = vcmask 785920
    %20 = vst.msk [vmem:[#allocation0] sm:$0x1] %vm19, %v18
    %s21 = scalar_lea.vmem [#allocation1], 1
    %v22 = vld [vmem:[%s21] sm:$0x1]
    %23 = vrot.lane.b32.xlu0 %v22, 32
    %v24 = vpop.permute.xlu0 %23
    %vm25 = vcmask 523520
    %26 = vst.msk [vmem:[#allocation0] sm:$0x1] %vm25, %v24
    %s28 = ssub.s32 2, 1
    %v29 = vld [vmem:[#allocation0] sm:%s28]
    %s31 = ssub.s32 2, 1
    %32 = vst [vmem:[%s1] sm:%s31] %v29

// kernel: _lambda_.44
$region0: #{_lambda_.44}
  #allocation0 [shape = 'u32[]', space=smem, size = 0x4, offset = 0x4, fixed_abs, tag = 'smem constant byte address 0x4 - core index']
  #allocation1 [shape = 'u32[72,128]{1,0:T(1,128)}', space=vmem, size = 0x9000, scoped, tag = 'internal scratch']
  %s0 = inlined_call_operand.vmem [shape: bf16[128,128], index: 0, kind: input, shape index: {}]
  %s1 = inlined_call_operand.vmem [shape: f32[1,128], index: 1, kind: input, shape index: {}]
  %s2 = inlined_call_operand.vmem [shape: f32[1,128], index: 2, kind: input, shape index: {}]
  %s3 = inlined_call_operand.vmem [shape: bf16[128,128], index: 3, kind: output, shape index: {}]
  %s4 = sld [smem:[#allocation0]]
  $region22: #{_lambda_.44} parent=0
    _
  %s6 = ssub.s32 1, %s4
  %s7 = scalar_select 0, %s6, %s4
  // Predicated region
  $region2: #{_lambda_.44} parent=0 // pred_check
    _
  $region3: #{_lambda_.44} parent=0 // pred_check_branch
    %9 = sbr.rel (0) target = $region5
  $region4: #{_lambda_.44} parent=0 // pred_region
    _
  $region5: #{_lambda_.44} parent=0 // pred_fallthru
    _
  // Predicated region
  $region6: #{_lambda_.44} parent=0 // pred_check
    _
  $region7: #{_lambda_.44} parent=0 // pred_check_branch
    %11 = sbr.rel (0) target = $region9
  $region8: #{_lambda_.44} parent=0 // pred_region
    _
  $region9: #{_lambda_.44} parent=0 // pred_fallthru
    _
  // Predicated region
  $region10: #{_lambda_.44} parent=0 // pred_check
    _
  $region11: #{_lambda_.44} parent=0 // pred_check_branch
    %13 = sbr.rel (0) target = $region13
  $region12: #{_lambda_.44} parent=0 // pred_region
    _
  $region13: #{_lambda_.44} parent=0 // pred_fallthru
    _
  %v14 = vld [vmem:[%s0] sm:$0xf]
  %v15 = vld [vmem:[%s0 + $0x4] sm:$0xf]
  %v16 = vld [vmem:[%s0 + $0x8] sm:$0xf]
  %v17 = vld [vmem:[%s0 + $0xc] sm:$0xf]
  %v18 = vld [vmem:[%s0 + $0x10] sm:$0xf]
  %v19 = vld [vmem:[%s0 + $0x14] sm:$0xf]
  %v20 = vld [vmem:[%s0 + $0x18] sm:$0xf]
  %v21 = vld [vmem:[%s0 + $0x1c] sm:$0xf]
  %v22 = vld [vmem:[%s0 + $0x20] sm:$0xf]
  %v23 = vld [vmem:[%s0 + $0x24] sm:$0xf]
  %v24 = vld [vmem:[%s0 + $0x28] sm:$0xf]
  %v25 = vld [vmem:[%s0 + $0x2c] sm:$0xf]
  %v26 = vld [vmem:[%s0 + $0x30] sm:$0xf]
  %v27 = vld [vmem:[%s0 + $0x34] sm:$0xf]
  %v28 = vld [vmem:[%s0 + $0x38] sm:$0xf]
  %v29 = vld [vmem:[%s0 + $0x3c] sm:$0xf]
  %v30 = vunpack.c.l.bf16 %v14
  %v31 = vunpack.c.l.bf16 %v15
  %v32 = vunpack.c.l.bf16 %v16
  %v33 = vunpack.c.l.bf16 %v17
  %v34 = vunpack.c.l.bf16 %v18
  %v35 = vunpack.c.l.bf16 %v19
  %v36 = vunpack.c.l.bf16 %v20
  %v37 = vunpack.c.l.bf16 %v21
  %v38 = vunpack.c.l.bf16 %v22
  %v39 = vunpack.c.l.bf16 %v23
  %v40 = vunpack.c.l.bf16 %v24
  %v41 = vunpack.c.l.bf16 %v25
  %v42 = vunpack.c.l.bf16 %v26
  %v43 = vunpack.c.l.bf16 %v27
  %v44 = vunpack.c.l.bf16 %v28
  %v45 = vunpack.c.l.bf16 %v29
  %v46 = vld [vmem:[%s1] sm:$0x1]
  %v48 = vperm.slane %v46, 0
  %v50 = vmul.f32 %v30, %v48
  %v51 = vmul.f32 %v31, %v48
  %v52 = vmul.f32 %v32, %v48
  %v53 = vmul.f32 %v33, %v48
  %v54 = vmul.f32 %v34, %v48
  %v55 = vmul.f32 %v35, %v48
  %v56 = vmul.f32 %v36, %v48
  %v57 = vmul.f32 %v37, %v48
  %v58 = vmul.f32 %v38, %v48
  %v59 = vmul.f32 %v39, %v48
  %v60 = vmul.f32 %v40, %v48
  %v61 = vmul.f32 %v41, %v48
  %v62 = vmul.f32 %v42, %v48
  %v63 = vmul.f32 %v43, %v48
  %v64 = vmul.f32 %v44, %v48
  %v65 = vmul.f32 %v45, %v48
  %v66 = vld [vmem:[%s2] sm:$0x1]
  %v68 = vperm.slane %v66, 0
  %v70 = vadd.f32 %v50, %v68
  %v71 = vadd.f32 %v51, %v68
  %v72 = vadd.f32 %v52, %v68
  %v73 = vadd.f32 %v53, %v68
  %v74 = vadd.f32 %v54, %v68
  %v75 = vadd.f32 %v55, %v68
  %v76 = vadd.f32 %v56, %v68
  %v77 = vadd.f32 %v57, %v68
  %v78 = vadd.f32 %v58, %v68
  %v79 = vadd.f32 %v59, %v68
  %v80 = vadd.f32 %v60, %v68
  %v81 = vadd.f32 %v61, %v68
  %v82 = vadd.f32 %v62, %v68
  %v83 = vadd.f32 %v63, %v68
  %v84 = vadd.f32 %v64, %v68
  %v85 = vadd.f32 %v65, %v68
  %v86 = vmax.f32 %v70, 0.0
  %v87 = vmax.f32 %v71, 0.0
  %v88 = vmax.f32 %v72, 0.0
  %v89 = vmax.f32 %v73, 0.0
  %v90 = vmax.f32 %v74, 0.0
  %v91 = vmax.f32 %v75, 0.0
  %v92 = vmax.f32 %v76, 0.0
  %v93 = vmax.f32 %v77, 0.0
  %v94 = vmax.f32 %v78, 0.0
  %v95 = vmax.f32 %v79, 0.0
  %v96 = vmax.f32 %v80, 0.0
  %v97 = vmax.f32 %v81, 0.0
  %v98 = vmax.f32 %v82, 0.0
  %v99 = vmax.f32 %v83, 0.0
  %v100 = vmax.f32 %v84, 0.0
  %v101 = vmax.f32 %v85, 0.0
  %v102 = vpack.c.bf16 %v86, %v86
  %v103 = vpack.c.bf16 %v87, %v87
  %v104 = vpack.c.bf16 %v88, %v88
  %v105 = vpack.c.bf16 %v89, %v89
  %v106 = vpack.c.bf16 %v90, %v90
  %v107 = vpack.c.bf16 %v91, %v91
  %v108 = vpack.c.bf16 %v92, %v92
  %v109 = vpack.c.bf16 %v93, %v93
  %v110 = vpack.c.bf16 %v94, %v94
  %v111 = vpack.c.bf16 %v95, %v95
  %v112 = vpack.c.bf16 %v96, %v96
  %v113 = vpack.c.bf16 %v97, %v97
  %v114 = vpack.c.bf16 %v98, %v98
  %v115 = vpack.c.bf16 %v99, %v99
  %v116 = vpack.c.bf16 %v100, %v100
  %v117 = vpack.c.bf16 %v101, %v101
  %118 = vst [vmem:[%s3] sm:$0xf] %v102
  %119 = vst [vmem:[%s3 + $0x4] sm:$0xf] %v103
  %120 = vst [vmem:[%s3 + $0x8] sm:$0xf] %v104
  %121 = vst [vmem:[%s3 + $0xc] sm:$0xf] %v105
  %122 = vst [vmem:[%s3 + $0x10] sm:$0xf] %v106
  %123 = vst [vmem:[%s3 + $0x14] sm:$0xf] %v107
  %124 = vst [vmem:[%s3 + $0x18] sm:$0xf] %v108
  %125 = vst [vmem:[%s3 + $0x1c] sm:$0xf] %v109
  %126 = vst [vmem:[%s3 + $0x20] sm:$0xf] %v110
  %127 = vst [vmem:[%s3 + $0x24] sm:$0xf] %v111
  %128 = vst [vmem:[%s3 + $0x28] sm:$0xf] %v112
  %129 = vst [vmem:[%s3 + $0x2c] sm:$0xf] %v113
  %130 = vst [vmem:[%s3 + $0x30] sm:$0xf] %v114
  %131 = vst [vmem:[%s3 + $0x34] sm:$0xf] %v115
  %132 = vst [vmem:[%s3 + $0x38] sm:$0xf] %v116
  %133 = vst [vmem:[%s3 + $0x3c] sm:$0xf] %v117
  // Predicated region
  $region14: #{_lambda_.44} parent=0 // pred_check
    _
  $region15: #{_lambda_.44} parent=0 // pred_check_branch
    %135 = sbr.rel (0) target = $region17
  $region16: #{_lambda_.44} parent=0 // pred_region
    _
  $region17: #{_lambda_.44} parent=0 // pred_fallthru
    _
  // Predicated region
  $region18: #{_lambda_.44} parent=0 // pred_check
    _
  $region19: #{_lambda_.44} parent=0 // pred_check_branch
    %137 = sbr.rel (0) target = $region21
  $region20: #{_lambda_.44} parent=0 // pred_region
    _
  $region21: #{_lambda_.44} parent=0 // pred_fallthru
    _

// kernel: _lambda_.43
$region0: #{_lambda_.43}
  #allocation0 [shape = 'u32[]', space=smem, size = 0x4, offset = 0x4, fixed_abs, tag = 'smem constant byte address 0x4 - core index']
  #allocation1 [shape = 'u32[72,128]{1,0:T(1,128)}', space=vmem, size = 0x9000, scoped, tag = 'internal scratch']
  %s0 = inlined_call_operand.vmem [shape: bf16[512,196], index: 0, kind: input, shape index: {}]
  %s1 = inlined_call_operand.vmem [shape: bf16[196,32], index: 1, kind: input, shape index: {}]
  %s2 = inlined_call_operand.vmem [shape: bf16[512,32], index: 2, kind: output, shape index: {0}]
  %s3 = inlined_call_operand.vmem [shape: f32[1,8,32], index: 3, kind: output, shape index: {1}]
  %s4 = inlined_call_operand.vmem [shape: f32[1,8,32], index: 4, kind: output, shape index: {2}]
  %5 = xla_tuple %s2, %s3, %s4
  %s6 = sld [smem:[#allocation0]]
  $region34: #{_lambda_.43} parent=0
    _
  %s8 = ssub.s32 1, %s6
  %s9 = scalar_select 0, %s8, %s6
  // Predicated region
  $region2: #{_lambda_.43} parent=0 // pred_check
    _
  $region3: #{_lambda_.43} parent=0 // pred_check_branch
    %11 = sbr.rel (0) target = $region5
  $region4: #{_lambda_.43} parent=0 // pred_region
    _
  $region5: #{_lambda_.43} parent=0 // pred_fallthru
    _
  // Predicated region
  $region6: #{_lambda_.43} parent=0 // pred_check
    _
  $region7: #{_lambda_.43} parent=0 // pred_check_branch
    %13 = sbr.rel (0) target = $region9
  $region8: #{_lambda_.43} parent=0 // pred_region
    _
  $region9: #{_lambda_.43} parent=0 // pred_fallthru
    _
  %v15 = vld [vmem:[%s0] sm:$0xff]
  %v16 = vld [vmem:[%s0 + $0x8] sm:$0xff]
  %v17 = vld [vmem:[%s0 + $0x10] sm:$0xff]
  %v18 = vld [vmem:[%s0 + $0x18] sm:$0xff]
  %v19 = vld [vmem:[%s0 + $0x20] sm:$0xff]
  %v20 = vld [vmem:[%s0 + $0x28] sm:$0xff]
  %v21 = vld [vmem:[%s0 + $0x30] sm:$0xff]
  %v22 = vld [vmem:[%s0 + $0x38] sm:$0xff]
  %v23 = vld [vmem:[%s0 + $0x40] sm:$0xff]
  %v24 = vld [vmem:[%s0 + $0x48] sm:$0xff]
  %v25 = vld [vmem:[%s0 + $0x50] sm:$0xff]
  %v26 = vld [vmem:[%s0 + $0x58] sm:$0xff]
  %v27 = vld [vmem:[%s0 + $0x60] sm:$0xff]
  %v28 = vld [vmem:[%s0 + $0x68] sm:$0xff]
  %v29 = vld [vmem:[%s0 + $0x70] sm:$0xff]
  %v30 = vld [vmem:[%s0 + $0x78] sm:$0xff]
  %v31 = vld [vmem:[%s0 + $0x80] sm:$0xff]
  %v32 = vld [vmem:[%s0 + $0x88] sm:$0xff]
  %v33 = vld [vmem:[%s0 + $0x90] sm:$0xff]
  %v34 = vld [vmem:[%s0 + $0x98] sm:$0xff]
  %v35 = vld [vmem:[%s0 + $0xa0] sm:$0xff]
  %v36 = vld [vmem:[%s0 + $0xa8] sm:$0xff]
  %v37 = vld [vmem:[%s0 + $0xb0] sm:$0xff]
  %v38 = vld [vmem:[%s0 + $0xb8] sm:$0xff]
  %v39 = vld [vmem:[%s0 + $0xc0] sm:$0xff]
  %v40 = vld [vmem:[%s0 + $0xc8] sm:$0xff]
  %v41 = vld [vmem:[%s0 + $0xd0] sm:$0xff]
  %v42 = vld [vmem:[%s0 + $0xd8] sm:$0xff]
  %v43 = vld [vmem:[%s0 + $0xe0] sm:$0xff]
  %v44 = vld [vmem:[%s0 + $0xe8] sm:$0xff]
  %v45 = vld [vmem:[%s0 + $0xf0] sm:$0xff]
  %v46 = vld [vmem:[%s0 + $0xf8] sm:$0xff]
  %v47 = vld [vmem:[%s0 + $0x100] sm:$0xff]
  %v48 = vld [vmem:[%s0 + $0x108] sm:$0xff]
  %v49 = vld [vmem:[%s0 + $0x110] sm:$0xff]
  %v50 = vld [vmem:[%s0 + $0x118] sm:$0xff]
  %v51 = vld [vmem:[%s0 + $0x120] sm:$0xff]
  %v52 = vld [vmem:[%s0 + $0x128] sm:$0xff]
  %v53 = vld [vmem:[%s0 + $0x130] sm:$0xff]
  %v54 = vld [vmem:[%s0 + $0x138] sm:$0xff]
  %v55 = vld [vmem:[%s0 + $0x140] sm:$0xff]
  %v56 = vld [vmem:[%s0 + $0x148] sm:$0xff]
  %v57 = vld [vmem:[%s0 + $0x150] sm:$0xff]
  %v58 = vld [vmem:[%s0 + $0x158] sm:$0xff]
  %v59 = vld [vmem:[%s0 + $0x160] sm:$0xff]
  %v60 = vld [vmem:[%s0 + $0x168] sm:$0xff]
  %v61 = vld [vmem:[%s0 + $0x170] sm:$0xff]
  %v62 = vld [vmem:[%s0 + $0x178] sm:$0xff]
  %v63 = vld [vmem:[%s0 + $0x180] sm:$0xff]
  %v64 = vld [vmem:[%s0 + $0x188] sm:$0xff]
  %v65 = vld [vmem:[%s0 + $0x190] sm:$0xff]
  %v66 = vld [vmem:[%s0 + $0x198] sm:$0xff]
  %v67 = vld [vmem:[%s0 + $0x1a0] sm:$0xff]
  %v68 = vld [vmem:[%s0 + $0x1a8] sm:$0xff]
  %v69 = vld [vmem:[%s0 + $0x1b0] sm:$0xff]
  %v70 = vld [vmem:[%s0 + $0x1b8] sm:$0xff]
  %v71 = vld [vmem:[%s0 + $0x1c0] sm:$0xff]
  %v72 = vld [vmem:[%s0 + $0x1c8] sm:$0xff]
  %v73 = vld [vmem:[%s0 + $0x1d0] sm:$0xff]
  %v74 = vld [vmem:[%s0 + $0x1d8] sm:$0xff]
  %v75 = vld [vmem:[%s0 + $0x1e0] sm:$0xff]
  %v76 = vld [vmem:[%s0 + $0x1e8] sm:$0xff]
  %v77 = vld [vmem:[%s0 + $0x1f0] sm:$0xff]
  %v78 = vld [vmem:[%s0 + $0x1f8] sm:$0xff]
  %v79 = vld [vmem:[%s1] sm:$0xf]
  %v80 = vld [vmem:[%s1 + $0x4] sm:$0xf]
  %v81 = vld [vmem:[%s1 + $0x8] sm:$0xf]
  %v82 = vld [vmem:[%s1 + $0xc] sm:$0xf]
  %v83 = vld [vmem:[%s1 + $0x10] sm:$0xf]
  %v84 = vld [vmem:[%s1 + $0x14] sm:$0xf]
  %v85 = vld [vmem:[%s1 + $0x18] sm:$0xf]
  %v86 = vld [vmem:[%s1 + $0x1c] sm:$0xf]
  %v87 = vld [vmem:[%s1 + $0x20] sm:$0xf]
  %v88 = vld [vmem:[%s1 + $0x24] sm:$0xf]
  %v89 = vld [vmem:[%s1 + $0x28] sm:$0xf]
  %v90 = vld [vmem:[%s1 + $0x2c] sm:$0xf]
  %v91 = vld [vmem:[%s1 + $0x30] sm:$0xf]
  %v92 = vld [vmem:[%s1 + $0x34] sm:$0xf]
  %v93 = vld [vmem:[%s1 + $0x38] sm:$0xf]
  %v94 = vld [vmem:[%s1 + $0x3c] sm:$0xf]
  %v95 = vld [vmem:[%s1 + $0x40] sm:$0xf]
  %v96 = vld [vmem:[%s1 + $0x44] sm:$0xf]
  %v97 = vld [vmem:[%s1 + $0x48] sm:$0xf]
  %v98 = vld [vmem:[%s1 + $0x4c] sm:$0xf]
  %v99 = vld [vmem:[%s1 + $0x50] sm:$0xf]
  %v100 = vld [vmem:[%s1 + $0x54] sm:$0xf]
  %v101 = vld [vmem:[%s1 + $0x58] sm:$0xf]
  %v102 = vld [vmem:[%s1 + $0x5c] sm:$0xf]
  %v103 = vld [vmem:[%s1 + $0x60] sm:$0x3]
  %v168 = vunpack.c.l.b16 %v15
  %v169 = vunpack.c.h.b16 %v15
  %v170 = vunpack.c.l.b16 %v16
  %v171 = vunpack.c.h.b16 %v16
  %v172 = vunpack.c.l.b16 %v17
  %v173 = vunpack.c.h.b16 %v17
  %v174 = vunpack.c.l.b16 %v18
  %v175 = vunpack.c.h.b16 %v18
  %v176 = vunpack.c.l.b16 %v19
  %v177 = vunpack.c.h.b16 %v19
  %v178 = vunpack.c.l.b16 %v20
  %v179 = vunpack.c.h.b16 %v20
  %v180 = vunpack.c.l.b16 %v21
  %v181 = vunpack.c.h.b16 %v21
  %v182 = vunpack.c.l.b16 %v22
  %v183 = vunpack.c.h.b16 %v22
  %v184 = vunpack.c.l.b16 %v23
  %v185 = vunpack.c.h.b16 %v23
  %v186 = vunpack.c.l.b16 %v24
  %v187 = vunpack.c.h.b16 %v24
  %v188 = vunpack.c.l.b16 %v25
  %v189 = vunpack.c.h.b16 %v25
  %v190 = vunpack.c.l.b16 %v26
  %v191 = vunpack.c.h.b16 %v26
  %v192 = vunpack.c.l.b16 %v27
  %v193 = vunpack.c.h.b16 %v27
  %v194 = vunpack.c.l.b16 %v28
  %v195 = vunpack.c.h.b16 %v28
  %v196 = vunpack.c.l.b16 %v29
  %v197 = vunpack.c.h.b16 %v29
  %v198 = vunpack.c.l.b16 %v30
  %v199 = vunpack.c.h.b16 %v30
  %v200 = vunpack.c.l.b16 %v31
  %v201 = vunpack.c.h.b16 %v31
  %v202 = vunpack.c.l.b16 %v32
  %v203 = vunpack.c.h.b16 %v32
  %v204 = vunpack.c.l.b16 %v33
  %v205 = vunpack.c.h.b16 %v33
  %v206 = vunpack.c.l.b16 %v34
  %v207 = vunpack.c.h.b16 %v34
  %v208 = vunpack.c.l.b16 %v35
  %v209 = vunpack.c.h.b16 %v35
  %v210 = vunpack.c.l.b16 %v36
  %v211 = vunpack.c.h.b16 %v36
  %v212 = vunpack.c.l.b16 %v37
  %v213 = vunpack.c.h.b16 %v37
  %v214 = vunpack.c.l.b16 %v38
  %v215 = vunpack.c.h.b16 %v38
  %v216 = vunpack.c.l.b16 %v39
  %v217 = vunpack.c.h.b16 %v39
  %v218 = vunpack.c.l.b16 %v40
  %v219 = vunpack.c.h.b16 %v40
  %v220 = vunpack.c.l.b16 %v41
  %v221 = vunpack.c.h.b16 %v41
  %v222 = vunpack.c.l.b16 %v42
  %v223 = vunpack.c.h.b16 %v42
  %v224 = vunpack.c.l.b16 %v43
  %v225 = vunpack.c.h.b16 %v43
  %v226 = vunpack.c.l.b16 %v44
  %v227 = vunpack.c.h.b16 %v44
  %v228 = vunpack.c.l.b16 %v45
  %v229 = vunpack.c.h.b16 %v45
  %v230 = vunpack.c.l.b16 %v46
  %v231 = vunpack.c.h.b16 %v46
  %v232 = vunpack.c.l.b16 %v47
  %v233 = vunpack.c.h.b16 %v47
  %v234 = vunpack.c.l.b16 %v48
  %v235 = vunpack.c.h.b16 %v48
  %v236 = vunpack.c.l.b16 %v49
  %v237 = vunpack.c.h.b16 %v49
  %v238 = vunpack.c.l.b16 %v50
  %v239 = vunpack.c.h.b16 %v50
  %v240 = vunpack.c.l.b16 %v51
  %v241 = vunpack.c.h.b16 %v51
  %v242 = vunpack.c.l.b16 %v52
  %v243 = vunpack.c.h.b16 %v52
  %v244 = vunpack.c.l.b16 %v53
  %v245 = vunpack.c.h.b16 %v53
  %v246 = vunpack.c.l.b16 %v54
  %v247 = vunpack.c.h.b16 %v54
  %v248 = vunpack.c.l.b16 %v55
  %v249 = vunpack.c.h.b16 %v55
  %v250 = vunpack.c.l.b16 %v56
  %v251 = vunpack.c.h.b16 %v56
  %v252 = vunpack.c.l.b16 %v57
  %v253 = vunpack.c.h.b16 %v57
  %v254 = vunpack.c.l.b16 %v58
  %v255 = vunpack.c.h.b16 %v58
  %v256 = vunpack.c.l.b16 %v59
  %v257 = vunpack.c.h.b16 %v59
  %v258 = vunpack.c.l.b16 %v60
  %v259 = vunpack.c.h.b16 %v60
  %v260 = vunpack.c.l.b16 %v61
  %v261 = vunpack.c.h.b16 %v61
  %v262 = vunpack.c.l.b16 %v62
  %v263 = vunpack.c.h.b16 %v62
  %v264 = vunpack.c.l.b16 %v63
  %v265 = vunpack.c.h.b16 %v63
  %v266 = vunpack.c.l.b16 %v64
  %v267 = vunpack.c.h.b16 %v64
  %v268 = vunpack.c.l.b16 %v65
  %v269 = vunpack.c.h.b16 %v65
  %v270 = vunpack.c.l.b16 %v66
  %v271 = vunpack.c.h.b16 %v66
  %v272 = vunpack.c.l.b16 %v67
  %v273 = vunpack.c.h.b16 %v67
  %v274 = vunpack.c.l.b16 %v68
  %v275 = vunpack.c.h.b16 %v68
  %v276 = vunpack.c.l.b16 %v69
  %v277 = vunpack.c.h.b16 %v69
  %v278 = vunpack.c.l.b16 %v70
  %v279 = vunpack.c.h.b16 %v70
  %v280 = vunpack.c.l.b16 %v71
  %v281 = vunpack.c.h.b16 %v71
  %v282 = vunpack.c.l.b16 %v72
  %v283 = vunpack.c.h.b16 %v72
  %v284 = vunpack.c.l.b16 %v73
  %v285 = vunpack.c.h.b16 %v73
  %v286 = vunpack.c.l.b16 %v74
  %v287 = vunpack.c.h.b16 %v74
  %v288 = vunpack.c.l.b16 %v75
  %v289 = vunpack.c.h.b16 %v75
  %v290 = vunpack.c.l.b16 %v76
  %v291 = vunpack.c.h.b16 %v76
  %v292 = vunpack.c.l.b16 %v77
  %v293 = vunpack.c.h.b16 %v77
  %v294 = vunpack.c.l.b16 %v78
  %v295 = vunpack.c.h.b16 %v78
  %v296 = vpack.c.b16 %v170, %v168
  %v297 = vpack.c.b16 %v171, %v169
  %v298 = vpack.c.b16 %v174, %v172
  %v299 = vpack.c.b16 %v175, %v173
  %v300 = vpack.c.b16 %v178, %v176
  %v301 = vpack.c.b16 %v179, %v177
  %v302 = vpack.c.b16 %v182, %v180
  %v303 = vpack.c.b16 %v183, %v181
  %v304 = vpack.c.b16 %v186, %v184
  %v305 = vpack.c.b16 %v187, %v185
  %v306 = vpack.c.b16 %v190, %v188
  %v307 = vpack.c.b16 %v191, %v189
  %v308 = vpack.c.b16 %v194, %v192
  %v309 = vpack.c.b16 %v195, %v193
  %v310 = vpack.c.b16 %v198, %v196
  %v311 = vpack.c.b16 %v199, %v197
  %v312 = vpack.c.b16 %v202, %v200
  %v313 = vpack.c.b16 %v203, %v201
  %v314 = vpack.c.b16 %v206, %v204
  %v315 = vpack.c.b16 %v207, %v205
  %v316 = vpack.c.b16 %v210, %v208
  %v317 = vpack.c.b16 %v211, %v209
  %v318 = vpack.c.b16 %v214, %v212
  %v319 = vpack.c.b16 %v215, %v213
  %v320 = vpack.c.b16 %v218, %v216
  %v321 = vpack.c.b16 %v219, %v217
  %v322 = vpack.c.b16 %v222, %v220
  %v323 = vpack.c.b16 %v223, %v221
  %v324 = vpack.c.b16 %v226, %v224
  %v325 = vpack.c.b16 %v227, %v225
  %v326 = vpack.c.b16 %v230, %v228
  %v327 = vpack.c.b16 %v231, %v229
  %v328 = vpack.c.b16 %v234, %v232
  %v329 = vpack.c.b16 %v235, %v233
  %v330 = vpack.c.b16 %v238, %v236
  %v331 = vpack.c.b16 %v239, %v237
  %v332 = vpack.c.b16 %v242, %v240
  %v333 = vpack.c.b16 %v243, %v241
  %v334 = vpack.c.b16 %v246, %v244
  %v335 = vpack.c.b16 %v247, %v245
  %v336 = vpack.c.b16 %v250, %v248
  %v337 = vpack.c.b16 %v251, %v249
  %v338 = vpack.c.b16 %v254, %v252
  %v339 = vpack.c.b16 %v255, %v253
  %v340 = vpack.c.b16 %v258, %v256
  %v341 = vpack.c.b16 %v259, %v257
  %v342 = vpack.c.b16 %v262, %v260
  %v343 = vpack.c.b16 %v263, %v261
  %v344 = vpack.c.b16 %v266, %v264
  %v345 = vpack.c.b16 %v267, %v265
  %v346 = vpack.c.b16 %v270, %v268
  %v347 = vpack.c.b16 %v271, %v269
  %v348 = vpack.c.b16 %v274, %v272
  %v349 = vpack.c.b16 %v275, %v273
  %v350 = vpack.c.b16 %v278, %v276
  %v351 = vpack.c.b16 %v279, %v277
  %v352 = vpack.c.b16 %v282, %v280
  %v353 = vpack.c.b16 %v283, %v281
  %v354 = vpack.c.b16 %v286, %v284
  %v355 = vpack.c.b16 %v287, %v285
  %v356 = vpack.c.b16 %v290, %v288
  %v357 = vpack.c.b16 %v291, %v289
  %v358 = vpack.c.b16 %v294, %v292
  %v359 = vpack.c.b16 %v295, %v293
  %v417 = vunpack.c.l.b16 %v79
  %v418 = vunpack.c.l.b16 %v80
  %v419 = vunpack.c.l.b16 %v81
  %v420 = vunpack.c.l.b16 %v82
  %v421 = vunpack.c.l.b16 %v83
  %v422 = vunpack.c.l.b16 %v84
  %v423 = vunpack.c.l.b16 %v85
  %v424 = vunpack.c.l.b16 %v86
  %v425 = vunpack.c.l.b16 %v87
  %v426 = vunpack.c.l.b16 %v88
  %v427 = vunpack.c.l.b16 %v89
  %v428 = vunpack.c.l.b16 %v90
  %v429 = vunpack.c.l.b16 %v91
  %v430 = vunpack.c.l.b16 %v92
  %v431 = vunpack.c.l.b16 %v93
  %v432 = vunpack.c.l.b16 %v94
  %v433 = vunpack.c.l.b16 %v95
  %v434 = vunpack.c.l.b16 %v96
  %v435 = vunpack.c.l.b16 %v97
  %v436 = vunpack.c.l.b16 %v98
  %v437 = vunpack.c.l.b16 %v99
  %v438 = vunpack.c.l.b16 %v100
  %v439 = vunpack.c.l.b16 %v101
  %v440 = vunpack.c.l.b16 %v102
  %v441 = vunpack.c.l.b16 %v103
  %v442 = vpack.c.b16 %v418, %v417
  %v443 = vpack.c.b16 %v420, %v419
  %v444 = vpack.c.b16 %v422, %v421
  %v445 = vpack.c.b16 %v424, %v423
  %v446 = vpack.c.b16 %v426, %v425
  %v447 = vpack.c.b16 %v428, %v427
  %v448 = vpack.c.b16 %v430, %v429
  %v449 = vpack.c.b16 %v432, %v431
  %v450 = vpack.c.b16 %v434, %v433
  %v451 = vpack.c.b16 %v436, %v435
  %v452 = vpack.c.b16 %v438, %v437
  %v453 = vpack.c.b16 %v440, %v439
  %v454 = vpack.c.b16 %v441, %v441
  %vm467 = vcmask 556032
  %v469 = vsel %vm467, %v297, 0
  %v472 = vsel %vm467, %v299, 0
  %v475 = vsel %vm467, %v301, 0
  %v478 = vsel %vm467, %v303, 0
  %v481 = vsel %vm467, %v305, 0
  %v484 = vsel %vm467, %v307, 0
  %v487 = vsel %vm467, %v309, 0
  %v490 = vsel %vm467, %v311, 0
  %v493 = vsel %vm467, %v313, 0
  %v496 = vsel %vm467, %v315, 0
  %v499 = vsel %vm467, %v317, 0
  %v502 = vsel %vm467, %v319, 0
  %v505 = vsel %vm467, %v321, 0
  %v508 = vsel %vm467, %v323, 0
  %v511 = vsel %vm467, %v325, 0
  %v514 = vsel %vm467, %v327, 0
  %v517 = vsel %vm467, %v329, 0
  %v520 = vsel %vm467, %v331, 0
  %v523 = vsel %vm467, %v333, 0
  %v526 = vsel %vm467, %v335, 0
  %v529 = vsel %vm467, %v337, 0
  %v532 = vsel %vm467, %v339, 0
  %v535 = vsel %vm467, %v341, 0
  %v538 = vsel %vm467, %v343, 0
  %v541 = vsel %vm467, %v345, 0
  %v544 = vsel %vm467, %v347, 0
  %v547 = vsel %vm467, %v349, 0
  %v550 = vsel %vm467, %v351, 0
  %v553 = vsel %vm467, %v353, 0
  %v556 = vsel %vm467, %v355, 0
  %v559 = vsel %vm467, %v357, 0
  %v562 = vsel %vm467, %v359, 0
  %vm564 = vcmask 1041408
  %v566 = vsel %vm564, %v454, 0
  %568 = vmatpush.bf16.msra.mxu0 %v449
  %569 = vmatpush.bf16.msra.mxu0 %v448
  %570 = vmatpush.bf16.msra.mxu0 %v447
  %571 = vmatpush.bf16.msra.mxu0 %v446
  %572 = vmatpush.bf16.msra.mxu0 %v445
  %573 = vmatpush.bf16.msra.mxu0 %v444
  %574 = vmatpush.bf16.msra.mxu0 %v443
  %575 = vmatpush.bf16.msra.mxu0 %v442
  %576 = vmatmul.bf16.gmra.mxu0 %v296
  %v577 = vpop.f32.mrf.mxu0
  %v578 = vadd.f32 0.0, %v577
  %v579 = vpop.f32.mrf.mxu0
  %v580 = vadd.f32 0.0, %v579
  %581 = vmatmul.bf16.gmra.mxu0 %v298
  %v582 = vpop.f32.mrf.mxu0
  %v583 = vadd.f32 0.0, %v582
  %v584 = vpop.f32.mrf.mxu0
  %v585 = vadd.f32 0.0, %v584
  %586 = vmatmul.bf16.gmra.mxu0 %v300
  %v587 = vpop.f32.mrf.mxu0
  %v588 = vadd.f32 0.0, %v587
  %v589 = vpop.f32.mrf.mxu0
  %v590 = vadd.f32 0.0, %v589
  %591 = vmatmul.bf16.gmra.mxu0 %v302
  %v592 = vpop.f32.mrf.mxu0
  %v593 = vadd.f32 0.0, %v592
  %v594 = vpop.f32.mrf.mxu0
  %v595 = vadd.f32 0.0, %v594
  %596 = vmatmul.bf16.gmra.mxu0 %v304
  %v597 = vpop.f32.mrf.mxu0
  %v598 = vadd.f32 0.0, %v597
  %v599 = vpop.f32.mrf.mxu0
  %v600 = vadd.f32 0.0, %v599
  %601 = vmatmul.bf16.gmra.mxu0 %v306
  %v602 = vpop.f32.mrf.mxu0
  %v603 = vadd.f32 0.0, %v602
  %v604 = vpop.f32.mrf.mxu0
  %v605 = vadd.f32 0.0, %v604
  %606 = vmatmul.bf16.gmra.mxu0 %v308
  %v607 = vpop.f32.mrf.mxu0
  %v608 = vadd.f32 0.0, %v607
  %v609 = vpop.f32.mrf.mxu0
  %v610 = vadd.f32 0.0, %v609
  %611 = vmatmul.bf16.gmra.mxu0 %v310
  %v612 = vpop.f32.mrf.mxu0
  %v613 = vadd.f32 0.0, %v612
  %v614 = vpop.f32.mrf.mxu0
  %v615 = vadd.f32 0.0, %v614
  %616 = vmatmul.bf16.gmra.mxu0 %v312
  %v617 = vpop.f32.mrf.mxu0
  %v618 = vadd.f32 0.0, %v617
  %v619 = vpop.f32.mrf.mxu0
  %v620 = vadd.f32 0.0, %v619
  %621 = vmatmul.bf16.gmra.mxu0 %v314
  %v622 = vpop.f32.mrf.mxu0
  %v623 = vadd.f32 0.0, %v622
  %v624 = vpop.f32.mrf.mxu0
  %v625 = vadd.f32 0.0, %v624
  %626 = vmatmul.bf16.gmra.mxu0 %v316
  %v627 = vpop.f32.mrf.mxu0
  %v628 = vadd.f32 0.0, %v627
  %v629 = vpop.f32.mrf.mxu0
  %v630 = vadd.f32 0.0, %v629
  %631 = vmatmul.bf16.gmra.mxu0 %v318
  %v632 = vpop.f32.mrf.mxu0
  %v633 = vadd.f32 0.0, %v632
  %v634 = vpop.f32.mrf.mxu0
  %v635 = vadd.f32 0.0, %v634
  %636 = vmatmul.bf16.gmra.mxu0 %v320
  %v637 = vpop.f32.mrf.mxu0
  %v638 = vadd.f32 0.0, %v637
  %v639 = vpop.f32.mrf.mxu0
  %v640 = vadd.f32 0.0, %v639
  %641 = vmatmul.bf16.gmra.mxu0 %v322
  %v642 = vpop.f32.mrf.mxu0
  %v643 = vadd.f32 0.0, %v642
  %v644 = vpop.f32.mrf.mxu0
  %v645 = vadd.f32 0.0, %v644
  %646 = vmatmul.bf16.gmra.mxu0 %v324
  %v647 = vpop.f32.mrf.mxu0
  %v648 = vadd.f32 0.0, %v647
  %v649 = vpop.f32.mrf.mxu0
  %v650 = vadd.f32 0.0, %v649
  %651 = vmatmul.bf16.gmra.mxu0 %v326
  %v652 = vpop.f32.mrf.mxu0
  %v653 = vadd.f32 0.0, %v652
  %v654 = vpop.f32.mrf.mxu0
  %v655 = vadd.f32 0.0, %v654
  %656 = vmatmul.bf16.gmra.mxu0 %v328
  %v657 = vpop.f32.mrf.mxu0
  %v658 = vadd.f32 0.0, %v657
  %v659 = vpop.f32.mrf.mxu0
  %v660 = vadd.f32 0.0, %v659
  %661 = vmatmul.bf16.gmra.mxu0 %v330
  %v662 = vpop.f32.mrf.mxu0
  %v663 = vadd.f32 0.0, %v662
  %v664 = vpop.f32.mrf.mxu0
  %v665 = vadd.f32 0.0, %v664
  %666 = vmatmul.bf16.gmra.mxu0 %v332
  %v667 = vpop.f32.mrf.mxu0
  %v668 = vadd.f32 0.0, %v667
  %v669 = vpop.f32.mrf.mxu0
  %v670 = vadd.f32 0.0, %v669
  %671 = vmatmul.bf16.gmra.mxu0 %v334
  %v672 = vpop.f32.mrf.mxu0
  %v673 = vadd.f32 0.0, %v672
  %v674 = vpop.f32.mrf.mxu0
  %v675 = vadd.f32 0.0, %v674
  %676 = vmatmul.bf16.gmra.mxu0 %v336
  %v677 = vpop.f32.mrf.mxu0
  %v678 = vadd.f32 0.0, %v677
  %v679 = vpop.f32.mrf.mxu0
  %v680 = vadd.f32 0.0, %v679
  %681 = vmatmul.bf16.gmra.mxu0 %v338
  %v682 = vpop.f32.mrf.mxu0
  %v683 = vadd.f32 0.0, %v682
  %v684 = vpop.f32.mrf.mxu0
  %v685 = vadd.f32 0.0, %v684
  %686 = vmatmul.bf16.gmra.mxu0 %v340
  %v687 = vpop.f32.mrf.mxu0
  %v688 = vadd.f32 0.0, %v687
  %v689 = vpop.f32.mrf.mxu0
  %v690 = vadd.f32 0.0, %v689
  %691 = vmatmul.bf16.gmra.mxu0 %v342
  %v692 = vpop.f32.mrf.mxu0
  %v693 = vadd.f32 0.0, %v692
  %v694 = vpop.f32.mrf.mxu0
  %v695 = vadd.f32 0.0, %v694
  %696 = vmatmul.bf16.gmra.mxu0 %v344
  %v697 = vpop.f32.mrf.mxu0
  %v698 = vadd.f32 0.0, %v697
  %v699 = vpop.f32.mrf.mxu0
  %v700 = vadd.f32 0.0, %v699
  %701 = vmatmul.bf16.gmra.mxu0 %v346
  %v702 = vpop.f32.mrf.mxu0
  %v703 = vadd.f32 0.0, %v702
  %v704 = vpop.f32.mrf.mxu0
  %v705 = vadd.f32 0.0, %v704
  %706 = vmatmul.bf16.gmra.mxu0 %v348
  %v707 = vpop.f32.mrf.mxu0
  %v708 = vadd.f32 0.0, %v707
  %v709 = vpop.f32.mrf.mxu0
  %v710 = vadd.f32 0.0, %v709
  %711 = vmatmul.bf16.gmra.mxu0 %v350
  %v712 = vpop.f32.mrf.mxu0
  %v713 = vadd.f32 0.0, %v712
  %v714 = vpop.f32.mrf.mxu0
  %v715 = vadd.f32 0.0, %v714
  %716 = vmatmul.bf16.gmra.mxu0 %v352
  %v717 = vpop.f32.mrf.mxu0
  %v718 = vadd.f32 0.0, %v717
  %v719 = vpop.f32.mrf.mxu0
  %v720 = vadd.f32 0.0, %v719
  %721 = vmatmul.bf16.gmra.mxu0 %v354
  %v722 = vpop.f32.mrf.mxu0
  %v723 = vadd.f32 0.0, %v722
  %v724 = vpop.f32.mrf.mxu0
  %v725 = vadd.f32 0.0, %v724
  %726 = vmatmul.bf16.gmra.mxu0 %v356
  %v727 = vpop.f32.mrf.mxu0
  %v728 = vadd.f32 0.0, %v727
  %v729 = vpop.f32.mrf.mxu0
  %v730 = vadd.f32 0.0, %v729
  %731 = vmatmul.bf16.gmra.mxu0 %v358
  %v732 = vpop.f32.mrf.mxu0
  %v733 = vadd.f32 0.0, %v732
  %v734 = vpop.f32.mrf.mxu0
  %v735 = vadd.f32 0.0, %v734
  %736 = vdwg.mxu0
  %737 = vmatpush.bf16.msra.mxu0 0
  %738 = vmatpush.bf16.msra.mxu0 0
  %739 = vmatpush.bf16.msra.mxu0 0
  %740 = vmatpush.bf16.msra.mxu0 %v566
  %741 = vmatpush.bf16.msra.mxu0 %v453
  %742 = vmatpush.bf16.msra.mxu0 %v452
  %743 = vmatpush.bf16.msra.mxu0 %v451
  %744 = vmatpush.bf16.msra.mxu0 %v450
  %745 = vmatmul.bf16.gmra.mxu0 %v469
  %v746 = vpop.f32.mrf.mxu0
  %v747 = vadd.f32 %v578, %v746
  %v748 = vpop.f32.mrf.mxu0
  %v749 = vadd.f32 %v580, %v748
  %750 = vmatmul.bf16.gmra.mxu0 %v472
  %v751 = vpop.f32.mrf.mxu0
  %v752 = vadd.f32 %v583, %v751
  %v753 = vpop.f32.mrf.mxu0
  %v754 = vadd.f32 %v585, %v753
  %755 = vmatmul.bf16.gmra.mxu0 %v475
  %v756 = vpop.f32.mrf.mxu0
  %v757 = vadd.f32 %v588, %v756
  %v758 = vpop.f32.mrf.mxu0
  %v759 = vadd.f32 %v590, %v758
  %760 = vmatmul.bf16.gmra.mxu0 %v478
  %v761 = vpop.f32.mrf.mxu0
  %v762 = vadd.f32 %v593, %v761
  %v763 = vpop.f32.mrf.mxu0
  %v764 = vadd.f32 %v595, %v763
  %765 = vmatmul.bf16.gmra.mxu0 %v481
  %v766 = vpop.f32.mrf.mxu0
  %v767 = vadd.f32 %v598, %v766
  %v768 = vpop.f32.mrf.mxu0
  %v769 = vadd.f32 %v600, %v768
  %770 = vmatmul.bf16.gmra.mxu0 %v484
  %v771 = vpop.f32.mrf.mxu0
  %v772 = vadd.f32 %v603, %v771
  %v773 = vpop.f32.mrf.mxu0
  %v774 = vadd.f32 %v605, %v773
  %775 = vmatmul.bf16.gmra.mxu0 %v487
  %v776 = vpop.f32.mrf.mxu0
  %v777 = vadd.f32 %v608, %v776
  %v778 = vpop.f32.mrf.mxu0
  %v779 = vadd.f32 %v610, %v778
  %780 = vmatmul.bf16.gmra.mxu0 %v490
  %v781 = vpop.f32.mrf.mxu0
  %v782 = vadd.f32 %v613, %v781
  %v783 = vpop.f32.mrf.mxu0
  %v784 = vadd.f32 %v615, %v783
  %785 = vmatmul.bf16.gmra.mxu0 %v493
  %v786 = vpop.f32.mrf.mxu0
  %v787 = vadd.f32 %v618, %v786
  %v788 = vpop.f32.mrf.mxu0
  %v789 = vadd.f32 %v620, %v788
  %790 = vmatmul.bf16.gmra.mxu0 %v496
  %v791 = vpop.f32.mrf.mxu0
  %v792 = vadd.f32 %v623, %v791
  %v793 = vpop.f32.mrf.mxu0
  %v794 = vadd.f32 %v625, %v793
  %795 = vmatmul.bf16.gmra.mxu0 %v499
  %v796 = vpop.f32.mrf.mxu0
  %v797 = vadd.f32 %v628, %v796
  %v798 = vpop.f32.mrf.mxu0
  %v799 = vadd.f32 %v630, %v798
  %800 = vmatmul.bf16.gmra.mxu0 %v502
  %v801 = vpop.f32.mrf.mxu0
  %v802 = vadd.f32 %v633, %v801
  %v803 = vpop.f32.mrf.mxu0
  %v804 = vadd.f32 %v635, %v803
  %805 = vmatmul.bf16.gmra.mxu0 %v505
  %v806 = vpop.f32.mrf.mxu0
  %v807 = vadd.f32 %v638, %v806
  %v808 = vpop.f32.mrf.mxu0
  %v809 = vadd.f32 %v640, %v808
  %810 = vmatmul.bf16.gmra.mxu0 %v508
  %v811 = vpop.f32.mrf.mxu0
  %v812 = vadd.f32 %v643, %v811
  %v813 = vpop.f32.mrf.mxu0
  %v814 = vadd.f32 %v645, %v813
  %815 = vmatmul.bf16.gmra.mxu0 %v511
  %v816 = vpop.f32.mrf.mxu0
  %v817 = vadd.f32 %v648, %v816
  %v818 = vpop.f32.mrf.mxu0
  %v819 = vadd.f32 %v650, %v818
  %820 = vmatmul.bf16.gmra.mxu0 %v514
  %v821 = vpop.f32.mrf.mxu0
  %v822 = vadd.f32 %v653, %v821
  %v823 = vpop.f32.mrf.mxu0
  %v824 = vadd.f32 %v655, %v823
  %825 = vmatmul.bf16.gmra.mxu0 %v517
  %v826 = vpop.f32.mrf.mxu0
  %v827 = vadd.f32 %v658, %v826
  %v828 = vpop.f32.mrf.mxu0
  %v829 = vadd.f32 %v660, %v828
  %830 = vmatmul.bf16.gmra.mxu0 %v520
  %v831 = vpop.f32.mrf.mxu0
  %v832 = vadd.f32 %v663, %v831
  %v833 = vpop.f32.mrf.mxu0
  %v834 = vadd.f32 %v665, %v833
  %835 = vmatmul.bf16.gmra.mxu0 %v523
  %v836 = vpop.f32.mrf.mxu0
  %v837 = vadd.f32 %v668, %v836
  %v838 = vpop.f32.mrf.mxu0
  %v839 = vadd.f32 %v670, %v838
  %840 = vmatmul.bf16.gmra.mxu0 %v526
  %v841 = vpop.f32.mrf.mxu0
  %v842 = vadd.f32 %v673, %v841
  %v843 = vpop.f32.mrf.mxu0
  %v844 = vadd.f32 %v675, %v843
  %845 = vmatmul.bf16.gmra.mxu0 %v529
  %v846 = vpop.f32.mrf.mxu0
  %v847 = vadd.f32 %v678, %v846
  %v848 = vpop.f32.mrf.mxu0
  %v849 = vadd.f32 %v680, %v848
  %850 = vmatmul.bf16.gmra.mxu0 %v532
  %v851 = vpop.f32.mrf.mxu0
  %v852 = vadd.f32 %v683, %v851
  %v853 = vpop.f32.mrf.mxu0
  %v854 = vadd.f32 %v685, %v853
  %855 = vmatmul.bf16.gmra.mxu0 %v535
  %v856 = vpop.f32.mrf.mxu0
  %v857 = vadd.f32 %v688, %v856
  %v858 = vpop.f32.mrf.mxu0
  %v859 = vadd.f32 %v690, %v858
  %860 = vmatmul.bf16.gmra.mxu0 %v538
  %v861 = vpop.f32.mrf.mxu0
  %v862 = vadd.f32 %v693, %v861
  %v863 = vpop.f32.mrf.mxu0
  %v864 = vadd.f32 %v695, %v863
  %865 = vmatmul.bf16.gmra.mxu0 %v541
  %v866 = vpop.f32.mrf.mxu0
  %v867 = vadd.f32 %v698, %v866
  %v868 = vpop.f32.mrf.mxu0
  %v869 = vadd.f32 %v700, %v868
  %870 = vmatmul.bf16.gmra.mxu0 %v544
  %v871 = vpop.f32.mrf.mxu0
  %v872 = vadd.f32 %v703, %v871
  %v873 = vpop.f32.mrf.mxu0
  %v874 = vadd.f32 %v705, %v873
  %875 = vmatmul.bf16.gmra.mxu0 %v547
  %v876 = vpop.f32.mrf.mxu0
  %v877 = vadd.f32 %v708, %v876
  %v878 = vpop.f32.mrf.mxu0
  %v879 = vadd.f32 %v710, %v878
  %880 = vmatmul.bf16.gmra.mxu0 %v550
  %v881 = vpop.f32.mrf.mxu0
  %v882 = vadd.f32 %v713, %v881
  %v883 = vpop.f32.mrf.mxu0
  %v884 = vadd.f32 %v715, %v883
  %885 = vmatmul.bf16.gmra.mxu0 %v553
  %v886 = vpop.f32.mrf.mxu0
  %v887 = vadd.f32 %v718, %v886
  %v888 = vpop.f32.mrf.mxu0
  %v889 = vadd.f32 %v720, %v888
  %890 = vmatmul.bf16.gmra.mxu0 %v556
  %v891 = vpop.f32.mrf.mxu0
  %v892 = vadd.f32 %v723, %v891
  %v893 = vpop.f32.mrf.mxu0
  %v894 = vadd.f32 %v725, %v893
  %895 = vmatmul.bf16.gmra.mxu0 %v559
  %v896 = vpop.f32.mrf.mxu0
  %v897 = vadd.f32 %v728, %v896
  %v898 = vpop.f32.mrf.mxu0
  %v899 = vadd.f32 %v730, %v898
  %900 = vmatmul.bf16.gmra.mxu0 %v562
  %v901 = vpop.f32.mrf.mxu0
  %v902 = vadd.f32 %v733, %v901
  %v903 = vpop.f32.mrf.mxu0
  %v904 = vadd.f32 %v735, %v903
  %905 = vdwg.mxu0
  %v906 = vpack.c.bf16 %v747, %v747
  %v907 = vpack.c.bf16 %v749, %v749
  %v908 = vpack.c.bf16 %v752, %v752
  %v909 = vpack.c.bf16 %v754, %v754
  %v910 = vpack.c.bf16 %v757, %v757
  %v911 = vpack.c.bf16 %v759, %v759
  %v912 = vpack.c.bf16 %v762, %v762
  %v913 = vpack.c.bf16 %v764, %v764
  %v914 = vpack.c.bf16 %v767, %v767
  %v915 = vpack.c.bf16 %v769, %v769
  %v916 = vpack.c.bf16 %v772, %v772
  %v917 = vpack.c.bf16 %v774, %v774
  %v918 = vpack.c.bf16 %v777, %v777
  %v919 = vpack.c.bf16 %v779, %v779
  %v920 = vpack.c.bf16 %v782, %v782
  %v921 = vpack.c.bf16 %v784, %v784
  %v922 = vpack.c.bf16 %v787, %v787
  %v923 = vpack.c.bf16 %v789, %v789
  %v924 = vpack.c.bf16 %v792, %v792
  %v925 = vpack.c.bf16 %v794, %v794
  %v926 = vpack.c.bf16 %v797, %v797
  %v927 = vpack.c.bf16 %v799, %v799
  %v928 = vpack.c.bf16 %v802, %v802
  %v929 = vpack.c.bf16 %v804, %v804
  %v930 = vpack.c.bf16 %v807, %v807
  %v931 = vpack.c.bf16 %v809, %v809
  %v932 = vpack.c.bf16 %v812, %v812
  %v933 = vpack.c.bf16 %v814, %v814
  %v934 = vpack.c.bf16 %v817, %v817
  %v935 = vpack.c.bf16 %v819, %v819
  %v936 = vpack.c.bf16 %v822, %v822
  %v937 = vpack.c.bf16 %v824, %v824
  %v938 = vpack.c.bf16 %v827, %v827
  %v939 = vpack.c.bf16 %v829, %v829
  %v940 = vpack.c.bf16 %v832, %v832
  %v941 = vpack.c.bf16 %v834, %v834
  %v942 = vpack.c.bf16 %v837, %v837
  %v943 = vpack.c.bf16 %v839, %v839
  %v944 = vpack.c.bf16 %v842, %v842
  %v945 = vpack.c.bf16 %v844, %v844
  %v946 = vpack.c.bf16 %v847, %v847
  %v947 = vpack.c.bf16 %v849, %v849
  %v948 = vpack.c.bf16 %v852, %v852
  %v949 = vpack.c.bf16 %v854, %v854
  %v950 = vpack.c.bf16 %v857, %v857
  %v951 = vpack.c.bf16 %v859, %v859
  %v952 = vpack.c.bf16 %v862, %v862
  %v953 = vpack.c.bf16 %v864, %v864
  %v954 = vpack.c.bf16 %v867, %v867
  %v955 = vpack.c.bf16 %v869, %v869
  %v956 = vpack.c.bf16 %v872, %v872
  %v957 = vpack.c.bf16 %v874, %v874
  %v958 = vpack.c.bf16 %v877, %v877
  %v959 = vpack.c.bf16 %v879, %v879
  %v960 = vpack.c.bf16 %v882, %v882
  %v961 = vpack.c.bf16 %v884, %v884
  %v962 = vpack.c.bf16 %v887, %v887
  %v963 = vpack.c.bf16 %v889, %v889
  %v964 = vpack.c.bf16 %v892, %v892
  %v965 = vpack.c.bf16 %v894, %v894
  %v966 = vpack.c.bf16 %v897, %v897
  %v967 = vpack.c.bf16 %v899, %v899
  %v968 = vpack.c.bf16 %v902, %v902
  %v969 = vpack.c.bf16 %v904, %v904
  %vm970 = vcmask 257024
  %971 = vst.msk [vmem:[%s2] sm:$0xf] %vm970, %v906
  %972 = vst.msk [vmem:[%s2 + $0x4] sm:$0xf] %vm970, %v907
  %973 = vst.msk [vmem:[%s2 + $0x8] sm:$0xf] %vm970, %v908
  %974 = vst.msk [vmem:[%s2 + $0xc] sm:$0xf] %vm970, %v909
  %975 = vst.msk [vmem:[%s2 + $0x10] sm:$0xf] %vm970, %v910
  %976 = vst.msk [vmem:[%s2 + $0x14] sm:$0xf] %vm970, %v911
  %977 = vst.msk [vmem:[%s2 + $0x18] sm:$0xf] %vm970, %v912
  %978 = vst.msk [vmem:[%s2 + $0x1c] sm:$0xf] %vm970, %v913
  %979 = vst.msk [vmem:[%s2 + $0x20] sm:$0xf] %vm970, %v914
  %980 = vst.msk [vmem:[%s2 + $0x24] sm:$0xf] %vm970, %v915
  %981 = vst.msk [vmem:[%s2 + $0x28] sm:$0xf] %vm970, %v916
  %982 = vst.msk [vmem:[%s2 + $0x2c] sm:$0xf] %vm970, %v917
  %983 = vst.msk [vmem:[%s2 + $0x30] sm:$0xf] %vm970, %v918
  %984 = vst.msk [vmem:[%s2 + $0x34] sm:$0xf] %vm970, %v919
  %985 = vst.msk [vmem:[%s2 + $0x38] sm:$0xf] %vm970, %v920
  %986 = vst.msk [vmem:[%s2 + $0x3c] sm:$0xf] %vm970, %v921
  %987 = vst.msk [vmem:[%s2 + $0x40] sm:$0xf] %vm970, %v922
  %988 = vst.msk [vmem:[%s2 + $0x44] sm:$0xf] %vm970, %v923
  %989 = vst.msk [vmem:[%s2 + $0x48] sm:$0xf] %vm970, %v924
  %990 = vst.msk [vmem:[%s2 + $0x4c] sm:$0xf] %vm970, %v925
  %991 = vst.msk [vmem:[%s2 + $0x50] sm:$0xf] %vm970, %v926
  %992 = vst.msk [vmem:[%s2 + $0x54] sm:$0xf] %vm970, %v927
  %993 = vst.msk [vmem:[%s2 + $0x58] sm:$0xf] %vm970, %v928
  %994 = vst.msk [vmem:[%s2 + $0x5c] sm:$0xf] %vm970, %v929
  %995 = vst.msk [vmem:[%s2 + $0x60] sm:$0xf] %vm970, %v930
  %996 = vst.msk [vmem:[%s2 + $0x64] sm:$0xf] %vm970, %v931
  %997 = vst.msk [vmem:[%s2 + $0x68] sm:$0xf] %vm970, %v932
  %998 = vst.msk [vmem:[%s2 + $0x6c] sm:$0xf] %vm970, %v933
  %999 = vst.msk [vmem:[%s2 + $0x70] sm:$0xf] %vm970, %v934
  %1000 = vst.msk [vmem:[%s2 + $0x74] sm:$0xf] %vm970, %v935
  %1001 = vst.msk [vmem:[%s2 + $0x78] sm:$0xf] %vm970, %v936
  %1002 = vst.msk [vmem:[%s2 + $0x7c] sm:$0xf] %vm970, %v937
  %1003 = vst.msk [vmem:[%s2 + $0x80] sm:$0xf] %vm970, %v938
  %1004 = vst.msk [vmem:[%s2 + $0x84] sm:$0xf] %vm970, %v939
  %1005 = vst.msk [vmem:[%s2 + $0x88] sm:$0xf] %vm970, %v940
  %1006 = vst.msk [vmem:[%s2 + $0x8c] sm:$0xf] %vm970, %v941
  %1007 = vst.msk [vmem:[%s2 + $0x90] sm:$0xf] %vm970, %v942
  %1008 = vst.msk [vmem:[%s2 + $0x94] sm:$0xf] %vm970, %v943
  %1009 = vst.msk [vmem:[%s2 + $0x98] sm:$0xf] %vm970, %v944
  %1010 = vst.msk [vmem:[%s2 + $0x9c] sm:$0xf] %vm970, %v945
  %1011 = vst.msk [vmem:[%s2 + $0xa0] sm:$0xf] %vm970, %v946
  %1012 = vst.msk [vmem:[%s2 + $0xa4] sm:$0xf] %vm970, %v947
  %1013 = vst.msk [vmem:[%s2 + $0xa8] sm:$0xf] %vm970, %v948
  %1014 = vst.msk [vmem:[%s2 + $0xac] sm:$0xf] %vm970, %v949
  %1015 = vst.msk [vmem:[%s2 + $0xb0] sm:$0xf] %vm970, %v950
  %1016 = vst.msk [vmem:[%s2 + $0xb4] sm:$0xf] %vm970, %v951
  %1017 = vst.msk [vmem:[%s2 + $0xb8] sm:$0xf] %vm970, %v952
  %1018 = vst.msk [vmem:[%s2 + $0xbc] sm:$0xf] %vm970, %v953
  %1019 = vst.msk [vmem:[%s2 + $0xc0] sm:$0xf] %vm970, %v954
  %1020 = vst.msk [vmem:[%s2 + $0xc4] sm:$0xf] %vm970, %v955
  %1021 = vst.msk [vmem:[%s2 + $0xc8] sm:$0xf] %vm970, %v956
  %1022 = vst.msk [vmem:[%s2 + $0xcc] sm:$0xf] %vm970, %v957
  %1023 = vst.msk [vmem:[%s2 + $0xd0] sm:$0xf] %vm970, %v958
  %1024 = vst.msk [vmem:[%s2 + $0xd4] sm:$0xf] %vm970, %v959
  %1025 = vst.msk [vmem:[%s2 + $0xd8] sm:$0xf] %vm970, %v960
  %1026 = vst.msk [vmem:[%s2 + $0xdc] sm:$0xf] %vm970, %v961
  %1027 = vst.msk [vmem:[%s2 + $0xe0] sm:$0xf] %vm970, %v962
  %1028 = vst.msk [vmem:[%s2 + $0xe4] sm:$0xf] %vm970, %v963
  %1029 = vst.msk [vmem:[%s2 + $0xe8] sm:$0xf] %vm970, %v964
  %1030 = vst.msk [vmem:[%s2 + $0xec] sm:$0xf] %vm970, %v965
  %1031 = vst.msk [vmem:[%s2 + $0xf0] sm:$0xf] %vm970, %v966
  %1032 = vst.msk [vmem:[%s2 + $0xf4] sm:$0xf] %vm970, %v967
  %1033 = vst.msk [vmem:[%s2 + $0xf8] sm:$0xf] %vm970, %v968
  %1034 = vst.msk [vmem:[%s2 + $0xfc] sm:$0xf] %vm970, %v969
  %vm1035 = vcmask 261120
  %v1036 = vsel %vm1035, %v747, 0.0
  %v1037 = vsel %vm1035, %v749, 0.0
  %v1038 = vadd.f32 %v1036, %v1037
  %v1039 = vsel %vm1035, %v752, 0.0
  %v1040 = vadd.f32 %v1038, %v1039
  %v1041 = vsel %vm1035, %v754, 0.0
  %v1042 = vadd.f32 %v1040, %v1041
  %v1043 = vsel %vm1035, %v757, 0.0
  %v1044 = vadd.f32 %v1042, %v1043
  %v1045 = vsel %vm1035, %v759, 0.0
  %v1046 = vadd.f32 %v1044, %v1045
  %v1047 = vsel %vm1035, %v762, 0.0
  %v1048 = vadd.f32 %v1046, %v1047
  %v1049 = vsel %vm1035, %v764, 0.0
  %v1050 = vadd.f32 %v1048, %v1049
  %v1051 = vsel %vm1035, %v767, 0.0
  %v1052 = vadd.f32 %v1050, %v1051
  %v1053 = vsel %vm1035, %v769, 0.0
  %v1054 = vadd.f32 %v1052, %v1053
  %v1055 = vsel %vm1035, %v772, 0.0
  %v1056 = vadd.f32 %v1054, %v1055
  %v1057 = vsel %vm1035, %v774, 0.0
  %v1058 = vadd.f32 %v1056, %v1057
  %v1059 = vsel %vm1035, %v777, 0.0
  %v1060 = vadd.f32 %v1058, %v1059
  %v1061 = vsel %vm1035, %v779, 0.0
  %v1062 = vadd.f32 %v1060, %v1061
  %v1063 = vsel %vm1035, %v782, 0.0
  %v1064 = vadd.f32 %v1062, %v1063
  %v1065 = vsel %vm1035, %v784, 0.0
  %v1066 = vadd.f32 %v1064, %v1065
  %v1067 = vsel %vm1035, %v787, 0.0
  %v1068 = vadd.f32 %v1066, %v1067
  %v1069 = vsel %vm1035, %v789, 0.0
  %v1070 = vadd.f32 %v1068, %v1069
  %v1071 = vsel %vm1035, %v792, 0.0
  %v1072 = vadd.f32 %v1070, %v1071
  %v1073 = vsel %vm1035, %v794, 0.0
  %v1074 = vadd.f32 %v1072, %v1073
  %v1075 = vsel %vm1035, %v797, 0.0
  %v1076 = vadd.f32 %v1074, %v1075
  %v1077 = vsel %vm1035, %v799, 0.0
  %v1078 = vadd.f32 %v1076, %v1077
  %v1079 = vsel %vm1035, %v802, 0.0
  %v1080 = vadd.f32 %v1078, %v1079
  %v1081 = vsel %vm1035, %v804, 0.0
  %v1082 = vadd.f32 %v1080, %v1081
  %v1083 = vsel %vm1035, %v807, 0.0
  %v1084 = vadd.f32 %v1082, %v1083
  %v1085 = vsel %vm1035, %v809, 0.0
  %v1086 = vadd.f32 %v1084, %v1085
  %v1087 = vsel %vm1035, %v812, 0.0
  %v1088 = vadd.f32 %v1086, %v1087
  %v1089 = vsel %vm1035, %v814, 0.0
  %v1090 = vadd.f32 %v1088, %v1089
  %v1091 = vsel %vm1035, %v817, 0.0
  %v1092 = vadd.f32 %v1090, %v1091
  %v1093 = vsel %vm1035, %v819, 0.0
  %v1094 = vadd.f32 %v1092, %v1093
  %v1095 = vsel %vm1035, %v822, 0.0
  %v1096 = vadd.f32 %v1094, %v1095
  %v1097 = vsel %vm1035, %v824, 0.0
  %v1098 = vadd.f32 %v1096, %v1097
  %v1099 = vsel %vm1035, %v827, 0.0
  %v1100 = vadd.f32 %v1098, %v1099
  %v1101 = vsel %vm1035, %v829, 0.0
  %v1102 = vadd.f32 %v1100, %v1101
  %v1103 = vsel %vm1035, %v832, 0.0
  %v1104 = vadd.f32 %v1102, %v1103
  %v1105 = vsel %vm1035, %v834, 0.0
  %v1106 = vadd.f32 %v1104, %v1105
  %v1107 = vsel %vm1035, %v837, 0.0
  %v1108 = vadd.f32 %v1106, %v1107
  %v1109 = vsel %vm1035, %v839, 0.0
  %v1110 = vadd.f32 %v1108, %v1109
  %v1111 = vsel %vm1035, %v842, 0.0
  %v1112 = vadd.f32 %v1110, %v1111
  %v1113 = vsel %vm1035, %v844, 0.0
  %v1114 = vadd.f32 %v1112, %v1113
  %v1115 = vsel %vm1035, %v847, 0.0
  %v1116 = vadd.f32 %v1114, %v1115
  %v1117 = vsel %vm1035, %v849, 0.0
  %v1118 = vadd.f32 %v1116, %v1117
  %v1119 = vsel %vm1035, %v852, 0.0
  %v1120 = vadd.f32 %v1118, %v1119
  %v1121 = vsel %vm1035, %v854, 0.0
  %v1122 = vadd.f32 %v1120, %v1121
  %v1123 = vsel %vm1035, %v857, 0.0
  %v1124 = vadd.f32 %v1122, %v1123
  %v1125 = vsel %vm1035, %v859, 0.0
  %v1126 = vadd.f32 %v1124, %v1125
  %v1127 = vsel %vm1035, %v862, 0.0
  %v1128 = vadd.f32 %v1126, %v1127
  %v1129 = vsel %vm1035, %v864, 0.0
  %v1130 = vadd.f32 %v1128, %v1129
  %v1131 = vsel %vm1035, %v867, 0.0
  %v1132 = vadd.f32 %v1130, %v1131
  %v1133 = vsel %vm1035, %v869, 0.0
  %v1134 = vadd.f32 %v1132, %v1133
  %v1135 = vsel %vm1035, %v872, 0.0
  %v1136 = vadd.f32 %v1134, %v1135
  %v1137 = vsel %vm1035, %v874, 0.0
  %v1138 = vadd.f32 %v1136, %v1137
  %v1139 = vsel %vm1035, %v877, 0.0
  %v1140 = vadd.f32 %v1138, %v1139
  %v1141 = vsel %vm1035, %v879, 0.0
  %v1142 = vadd.f32 %v1140, %v1141
  %v1143 = vsel %vm1035, %v882, 0.0
  %v1144 = vadd.f32 %v1142, %v1143
  %v1145 = vsel %vm1035, %v884, 0.0
  %v1146 = vadd.f32 %v1144, %v1145
  %v1147 = vsel %vm1035, %v887, 0.0
  %v1148 = vadd.f32 %v1146, %v1147
  %v1149 = vsel %vm1035, %v889, 0.0
  %v1150 = vadd.f32 %v1148, %v1149
  %v1151 = vsel %vm1035, %v892, 0.0
  %v1152 = vadd.f32 %v1150, %v1151
  %v1153 = vsel %vm1035, %v894, 0.0
  %v1154 = vadd.f32 %v1152, %v1153
  %v1155 = vsel %vm1035, %v897, 0.0
  %v1156 = vadd.f32 %v1154, %v1155
  %v1157 = vsel %vm1035, %v899, 0.0
  %v1158 = vadd.f32 %v1156, %v1157
  %v1159 = vsel %vm1035, %v902, 0.0
  %v1160 = vadd.f32 %v1158, %v1159
  %v1161 = vsel %vm1035, %v904, 0.0
  %v1162 = vadd.f32 %v1160, %v1161
  %v1163 = vrot.slane %v1162, 4
  %v1164 = vadd.f32 %v1162, %v1163
  %v1165 = vrot.slane %v1164, 2
  %v1166 = vadd.f32 %v1164, %v1165
  %v1167 = vrot.slane %v1166, 1
  %v1168 = vadd.f32 %v1166, %v1167
  %v1169 = vmul.f32 %v747, %v747
  %v1170 = vmul.f32 %v749, %v749
  %v1171 = vmul.f32 %v752, %v752
  %v1172 = vmul.f32 %v754, %v754
  %v1173 = vmul.f32 %v757, %v757
  %v1174 = vmul.f32 %v759, %v759
  %v1175 = vmul.f32 %v762, %v762
  %v1176 = vmul.f32 %v764, %v764
  %v1177 = vmul.f32 %v767, %v767
  %v1178 = vmul.f32 %v769, %v769
  %v1179 = vmul.f32 %v772, %v772
  %v1180 = vmul.f32 %v774, %v774
  %v1181 = vmul.f32 %v777, %v777
  %v1182 = vmul.f32 %v779, %v779
  %v1183 = vmul.f32 %v782, %v782
  %v1184 = vmul.f32 %v784, %v784
  %v1185 = vmul.f32 %v787, %v787
  %v1186 = vmul.f32 %v789, %v789
  %v1187 = vmul.f32 %v792, %v792
  %v1188 = vmul.f32 %v794, %v794
  %v1189 = vmul.f32 %v797, %v797
  %v1190 = vmul.f32 %v799, %v799
  %v1191 = vmul.f32 %v802, %v802
  %v1192 = vmul.f32 %v804, %v804
  %v1193 = vmul.f32 %v807, %v807
  %v1194 = vmul.f32 %v809, %v809
  %v1195 = vmul.f32 %v812, %v812
  %v1196 = vmul.f32 %v814, %v814
  %v1197 = vmul.f32 %v817, %v817
  %v1198 = vmul.f32 %v819, %v819
  %v1199 = vmul.f32 %v822, %v822
  %v1200 = vmul.f32 %v824, %v824
  %v1201 = vmul.f32 %v827, %v827
  %v1202 = vmul.f32 %v829, %v829
  %v1203 = vmul.f32 %v832, %v832
  %v1204 = vmul.f32 %v834, %v834
  %v1205 = vmul.f32 %v837, %v837
  %v1206 = vmul.f32 %v839, %v839
  %v1207 = vmul.f32 %v842, %v842
  %v1208 = vmul.f32 %v844, %v844
  %v1209 = vmul.f32 %v847, %v847
  %v1210 = vmul.f32 %v849, %v849
  %v1211 = vmul.f32 %v852, %v852
  %v1212 = vmul.f32 %v854, %v854
  %v1213 = vmul.f32 %v857, %v857
  %v1214 = vmul.f32 %v859, %v859
  %v1215 = vmul.f32 %v862, %v862
  %v1216 = vmul.f32 %v864, %v864
  %v1217 = vmul.f32 %v867, %v867
  %v1218 = vmul.f32 %v869, %v869
  %v1219 = vmul.f32 %v872, %v872
  %v1220 = vmul.f32 %v874, %v874
  %v1221 = vmul.f32 %v877, %v877
  %v1222 = vmul.f32 %v879, %v879
  %v1223 = vmul.f32 %v882, %v882
  %v1224 = vmul.f32 %v884, %v884
  %v1225 = vmul.f32 %v887, %v887
  %v1226 = vmul.f32 %v889, %v889
  %v1227 = vmul.f32 %v892, %v892
  %v1228 = vmul.f32 %v894, %v894
  %v1229 = vmul.f32 %v897, %v897
  %v1230 = vmul.f32 %v899, %v899
  %v1231 = vmul.f32 %v902, %v902
  %v1232 = vmul.f32 %v904, %v904
  %v1233 = vsel %vm1035, %v1169, 0.0
  %v1234 = vsel %vm1035, %v1170, 0.0
  %v1235 = vadd.f32 %v1233, %v1234
  %v1236 = vsel %vm1035, %v1171, 0.0
  %v1237 = vadd.f32 %v1235, %v1236
  %v1238 = vsel %vm1035, %v1172, 0.0
  %v1239 = vadd.f32 %v1237, %v1238
  %v1240 = vsel %vm1035, %v1173, 0.0
  %v1241 = vadd.f32 %v1239, %v1240
  %v1242 = vsel %vm1035, %v1174, 0.0
  %v1243 = vadd.f32 %v1241, %v1242
  %v1244 = vsel %vm1035, %v1175, 0.0
  %v1245 = vadd.f32 %v1243, %v1244
  %v1246 = vsel %vm1035, %v1176, 0.0
  %v1247 = vadd.f32 %v1245, %v1246
  %v1248 = vsel %vm1035, %v1177, 0.0
  %v1249 = vadd.f32 %v1247, %v1248
  %v1250 = vsel %vm1035, %v1178, 0.0
  %v1251 = vadd.f32 %v1249, %v1250
  %v1252 = vsel %vm1035, %v1179, 0.0
  %v1253 = vadd.f32 %v1251, %v1252
  %v1254 = vsel %vm1035, %v1180, 0.0
  %v1255 = vadd.f32 %v1253, %v1254
  %v1256 = vsel %vm1035, %v1181, 0.0
  %v1257 = vadd.f32 %v1255, %v1256
  %v1258 = vsel %vm1035, %v1182, 0.0
  %v1259 = vadd.f32 %v1257, %v1258
  %v1260 = vsel %vm1035, %v1183, 0.0
  %v1261 = vadd.f32 %v1259, %v1260
  %v1262 = vsel %vm1035, %v1184, 0.0
  %v1263 = vadd.f32 %v1261, %v1262
  %v1264 = vsel %vm1035, %v1185, 0.0
  %v1265 = vadd.f32 %v1263, %v1264
  %v1266 = vsel %vm1035, %v1186, 0.0
  %v1267 = vadd.f32 %v1265, %v1266
  %v1268 = vsel %vm1035, %v1187, 0.0
  %v1269 = vadd.f32 %v1267, %v1268
  %v1270 = vsel %vm1035, %v1188, 0.0
  %v1271 = vadd.f32 %v1269, %v1270
  %v1272 = vsel %vm1035, %v1189, 0.0
  %v1273 = vadd.f32 %v1271, %v1272
  %v1274 = vsel %vm1035, %v1190, 0.0
  %v1275 = vadd.f32 %v1273, %v1274
  %v1276 = vsel %vm1035, %v1191, 0.0
  %v1277 = vadd.f32 %v1275, %v1276
  %v1278 = vsel %vm1035, %v1192, 0.0
  %v1279 = vadd.f32 %v1277, %v1278
  %v1280 = vsel %vm1035, %v1193, 0.0
  %v1281 = vadd.f32 %v1279, %v1280
  %v1282 = vsel %vm1035, %v1194, 0.0
  %v1283 = vadd.f32 %v1281, %v1282
  %v1284 = vsel %vm1035, %v1195, 0.0
  %v1285 = vadd.f32 %v1283, %v1284
  %v1286 = vsel %vm1035, %v1196, 0.0
  %v1287 = vadd.f32 %v1285, %v1286
  %v1288 = vsel %vm1035, %v1197, 0.0
  %v1289 = vadd.f32 %v1287, %v1288
  %v1290 = vsel %vm1035, %v1198, 0.0
  %v1291 = vadd.f32 %v1289, %v1290
  %v1292 = vsel %vm1035, %v1199, 0.0
  %v1293 = vadd.f32 %v1291, %v1292
  %v1294 = vsel %vm1035, %v1200, 0.0
  %v1295 = vadd.f32 %v1293, %v1294
  %v1296 = vsel %vm1035, %v1201, 0.0
  %v1297 = vadd.f32 %v1295, %v1296
  %v1298 = vsel %vm1035, %v1202, 0.0
  %v1299 = vadd.f32 %v1297, %v1298
  %v1300 = vsel %vm1035, %v1203, 0.0
  %v1301 = vadd.f32 %v1299, %v1300
  %v1302 = vsel %vm1035, %v1204, 0.0
  %v1303 = vadd.f32 %v1301, %v1302
  %v1304 = vsel %vm1035, %v1205, 0.0
  %v1305 = vadd.f32 %v1303, %v1304
  %v1306 = vsel %vm1035, %v1206, 0.0
  %v1307 = vadd.f32 %v1305, %v1306
  %v1308 = vsel %vm1035, %v1207, 0.0
  %v1309 = vadd.f32 %v1307, %v1308
  %v1310 = vsel %vm1035, %v1208, 0.0
  %v1311 = vadd.f32 %v1309, %v1310
  %v1312 = vsel %vm1035, %v1209, 0.0
  %v1313 = vadd.f32 %v1311, %v1312
  %v1314 = vsel %vm1035, %v1210, 0.0
  %v1315 = vadd.f32 %v1313, %v1314
  %v1316 = vsel %vm1035, %v1211, 0.0
  %v1317 = vadd.f32 %v1315, %v1316
  %v1318 = vsel %vm1035, %v1212, 0.0
  %v1319 = vadd.f32 %v1317, %v1318
  %v1320 = vsel %vm1035, %v1213, 0.0
  %v1321 = vadd.f32 %v1319, %v1320
  %v1322 = vsel %vm1035, %v1214, 0.0
  %v1323 = vadd.f32 %v1321, %v1322
  %v1324 = vsel %vm1035, %v1215, 0.0
  %v1325 = vadd.f32 %v1323, %v1324
  %v1326 = vsel %vm1035, %v1216, 0.0
  %v1327 = vadd.f32 %v1325, %v1326
  %v1328 = vsel %vm1035, %v1217, 0.0
  %v1329 = vadd.f32 %v1327, %v1328
  %v1330 = vsel %vm1035, %v1218, 0.0
  %v1331 = vadd.f32 %v1329, %v1330
  %v1332 = vsel %vm1035, %v1219, 0.0
  %v1333 = vadd.f32 %v1331, %v1332
  %v1334 = vsel %vm1035, %v1220, 0.0
  %v1335 = vadd.f32 %v1333, %v1334
  %v1336 = vsel %vm1035, %v1221, 0.0
  %v1337 = vadd.f32 %v1335, %v1336
  %v1338 = vsel %vm1035, %v1222, 0.0
  %v1339 = vadd.f32 %v1337, %v1338
  %v1340 = vsel %vm1035, %v1223, 0.0
  %v1341 = vadd.f32 %v1339, %v1340
  %v1342 = vsel %vm1035, %v1224, 0.0
  %v1343 = vadd.f32 %v1341, %v1342
  %v1344 = vsel %vm1035, %v1225, 0.0
  %v1345 = vadd.f32 %v1343, %v1344
  %v1346 = vsel %vm1035, %v1226, 0.0
  %v1347 = vadd.f32 %v1345, %v1346
  %v1348 = vsel %vm1035, %v1227, 0.0
  %v1349 = vadd.f32 %v1347, %v1348
  %v1350 = vsel %vm1035, %v1228, 0.0
  %v1351 = vadd.f32 %v1349, %v1350
  %v1352 = vsel %vm1035, %v1229, 0.0
  %v1353 = vadd.f32 %v1351, %v1352
  %v1354 = vsel %vm1035, %v1230, 0.0
  %v1355 = vadd.f32 %v1353, %v1354
  %v1356 = vsel %vm1035, %v1231, 0.0
  %v1357 = vadd.f32 %v1355, %v1356
  %v1358 = vsel %vm1035, %v1232, 0.0
  %v1359 = vadd.f32 %v1357, %v1358
  %v1360 = vrot.slane %v1359, 4
  %v1361 = vadd.f32 %v1359, %v1360
  %v1362 = vrot.slane %v1361, 2
  %v1363 = vadd.f32 %v1361, %v1362
  %v1364 = vrot.slane %v1363, 1
  %v1365 = vadd.f32 %v1363, %v1364
  %1366 = vst.msk [vmem:[%s3] sm:$0xff] %vm1035, %v1168
  %1367 = vst.msk [vmem:[%s4] sm:$0xff] %vm1035, %v1365
  // Predicated region
  $region10: #{_lambda_.43} parent=0 // pred_check
    _
  $region11: #{_lambda_.43} parent=0 // pred_check_branch
    %1369 = sbr.rel (0) target = $region13
  $region12: #{_lambda_.43} parent=0 // pred_region
    _
  $region13: #{_lambda_.43} parent=0 // pred_fallthru
    _
  // Predicated region
  $region14: #{_lambda_.43} parent=0 // pred_check
    _
  $region15: #{_lambda_.43} parent=0 // pred_check_branch
    %1371 = sbr.rel (0) target = $region17
  $region16: #{_lambda_.43} parent=0 // pred_region
    _
  $region17: #{_lambda_.43} parent=0 // pred_fallthru
    _
  // Predicated region
  $region18: #{_lambda_.43} parent=0 // pred_check
    _
  $region19: #{_lambda_.43} parent=0 // pred_check_branch
    %1373 = sbr.rel (0) target = $region21
  $region20: #{_lambda_.43} parent=0 // pred_region
    _
  $region21: #{_lambda_.43} parent=0 // pred_fallthru
    _
  // Predicated region
  $region22: #{_lambda_.43} parent=0 // pred_check
    _
  $region23: #{_lambda_.43} parent=0 // pred_check_branch
    %1375 = sbr.rel (0) target = $region25
  $region24: #{_lambda_.43} parent=0 // pred_region
    _
  $region25: #{_lambda_.43} parent=0 // pred_fallthru
    _
  // Predicated region
  $region26: #{_lambda_.43} parent=0 // pred_check
    _
  $region27: #{_lambda_.43} parent=0 // pred_check_branch
    %1377 = sbr.rel (0) target = $region29
  $region28: #{_lambda_.43} parent=0 // pred_region
    _
  $region29: #{_lambda_.43} parent=0 // pred_fallthru
    _
  // Predicated region
  $region30: #{_lambda_.43} parent=0 // pred_check
    _
  $region31: #{_lambda_.43} parent=0 // pred_check_branch
    %1379 = sbr.rel (0) target = $region33
  $region32: #{_lambda_.43} parent=0 // pred_region
    _
  $region33: #{_lambda_.43} parent=0 // pred_fallthru
    _

// kernel: _lambda_.45
$region0: #{_lambda_.45}
  #allocation0 [shape = 'u32[]', space=smem, size = 0x4, offset = 0x4, fixed_abs, tag = 'smem constant byte address 0x4 - core index']
  #allocation1 [shape = 'u32[72,128]{1,0:T(1,128)}', space=vmem, size = 0x9000, scoped, tag = 'internal scratch']
  %s0 = inlined_call_operand.vmem [shape: bf16[128,288], index: 0, kind: input, shape index: {}]
  %s1 = inlined_call_operand.vmem [shape: bf16[288,64], index: 1, kind: input, shape index: {}]
  %s2 = inlined_call_operand.vmem [shape: bf16[128,64], index: 2, kind: output, shape index: {0}]
  %s3 = inlined_call_operand.vmem [shape: f32[1,8,64], index: 3, kind: output, shape index: {1}]
  %s4 = inlined_call_operand.vmem [shape: f32[1,8,64], index: 4, kind: output, shape index: {2}]
  %5 = xla_tuple %s2, %s3, %s4
  %s6 = sld [smem:[#allocation0]]
  $region34: #{_lambda_.45} parent=0
    _
  %s8 = ssub.s32 1, %s6
  %s9 = scalar_select 0, %s8, %s6
  // Predicated region
  $region2: #{_lambda_.45} parent=0 // pred_check
    _
  $region3: #{_lambda_.45} parent=0 // pred_check_branch
    %11 = sbr.rel (0) target = $region5
  $region4: #{_lambda_.45} parent=0 // pred_region
    _
  $region5: #{_lambda_.45} parent=0 // pred_fallthru
    _
  // Predicated region
  $region6: #{_lambda_.45} parent=0 // pred_check
    _
  $region7: #{_lambda_.45} parent=0 // pred_check_branch
    %13 = sbr.rel (0) target = $region9
  $region8: #{_lambda_.45} parent=0 // pred_region
    _
  $region9: #{_lambda_.45} parent=0 // pred_fallthru
    _
  %v15 = vld [vmem:[%s0] sm:$0xff]
  %v16 = vld [vmem:[%s0 + $0x8] sm:$0xf]
  %v17 = vld [vmem:[%s0 + $0xc] sm:$0xff]
  %v18 = vld [vmem:[%s0 + $0x14] sm:$0xf]
  %v19 = vld [vmem:[%s0 + $0x18] sm:$0xff]
  %v20 = vld [vmem:[%s0 + $0x20] sm:$0xf]
  %v21 = vld [vmem:[%s0 + $0x24] sm:$0xff]
  %v22 = vld [vmem:[%s0 + $0x2c] sm:$0xf]
  %v23 = vld [vmem:[%s0 + $0x30] sm:$0xff]
  %v24 = vld [vmem:[%s0 + $0x38] sm:$0xf]
  %v25 = vld [vmem:[%s0 + $0x3c] sm:$0xff]
  %v26 = vld [vmem:[%s0 + $0x44] sm:$0xf]
  %v27 = vld [vmem:[%s0 + $0x48] sm:$0xff]
  %v28 = vld [vmem:[%s0 + $0x50] sm:$0xf]
  %v29 = vld [vmem:[%s0 + $0x54] sm:$0xff]
  %v30 = vld [vmem:[%s0 + $0x5c] sm:$0xf]
  %v31 = vld [vmem:[%s0 + $0x60] sm:$0xff]
  %v32 = vld [vmem:[%s0 + $0x68] sm:$0xf]
  %v33 = vld [vmem:[%s0 + $0x6c] sm:$0xff]
  %v34 = vld [vmem:[%s0 + $0x74] sm:$0xf]
  %v35 = vld [vmem:[%s0 + $0x78] sm:$0xff]
  %v36 = vld [vmem:[%s0 + $0x80] sm:$0xf]
  %v37 = vld [vmem:[%s0 + $0x84] sm:$0xff]
  %v38 = vld [vmem:[%s0 + $0x8c] sm:$0xf]
  %v39 = vld [vmem:[%s0 + $0x90] sm:$0xff]
  %v40 = vld [vmem:[%s0 + $0x98] sm:$0xf]
  %v41 = vld [vmem:[%s0 + $0x9c] sm:$0xff]
  %v42 = vld [vmem:[%s0 + $0xa4] sm:$0xf]
  %v43 = vld [vmem:[%s0 + $0xa8] sm:$0xff]
  %v44 = vld [vmem:[%s0 + $0xb0] sm:$0xf]
  %v45 = vld [vmem:[%s0 + $0xb4] sm:$0xff]
  %v46 = vld [vmem:[%s0 + $0xbc] sm:$0xf]
  %v47 = vld [vmem:[%s1] sm:$0xf]
  %v48 = vld [vmem:[%s1 + $0x4] sm:$0xf]
  %v49 = vld [vmem:[%s1 + $0x8] sm:$0xf]
  %v50 = vld [vmem:[%s1 + $0xc] sm:$0xf]
  %v51 = vld [vmem:[%s1 + $0x10] sm:$0xf]
  %v52 = vld [vmem:[%s1 + $0x14] sm:$0xf]
  %v53 = vld [vmem:[%s1 + $0x18] sm:$0xf]
  %v54 = vld [vmem:[%s1 + $0x1c] sm:$0xf]
  %v55 = vld [vmem:[%s1 + $0x20] sm:$0xf]
  %v56 = vld [vmem:[%s1 + $0x24] sm:$0xf]
  %v57 = vld [vmem:[%s1 + $0x28] sm:$0xf]
  %v58 = vld [vmem:[%s1 + $0x2c] sm:$0xf]
  %v59 = vld [vmem:[%s1 + $0x30] sm:$0xf]
  %v60 = vld [vmem:[%s1 + $0x34] sm:$0xf]
  %v61 = vld [vmem:[%s1 + $0x38] sm:$0xf]
  %v62 = vld [vmem:[%s1 + $0x3c] sm:$0xf]
  %v63 = vld [vmem:[%s1 + $0x40] sm:$0xf]
  %v64 = vld [vmem:[%s1 + $0x44] sm:$0xf]
  %v65 = vld [vmem:[%s1 + $0x48] sm:$0xf]
  %v66 = vld [vmem:[%s1 + $0x4c] sm:$0xf]
  %v67 = vld [vmem:[%s1 + $0x50] sm:$0xf]
  %v68 = vld [vmem:[%s1 + $0x54] sm:$0xf]
  %v69 = vld [vmem:[%s1 + $0x58] sm:$0xf]
  %v70 = vld [vmem:[%s1 + $0x5c] sm:$0xf]
  %v71 = vld [vmem:[%s1 + $0x60] sm:$0xf]
  %v72 = vld [vmem:[%s1 + $0x64] sm:$0xf]
  %v73 = vld [vmem:[%s1 + $0x68] sm:$0xf]
  %v74 = vld [vmem:[%s1 + $0x6c] sm:$0xf]
  %v75 = vld [vmem:[%s1 + $0x70] sm:$0xf]
  %v76 = vld [vmem:[%s1 + $0x74] sm:$0xf]
  %v77 = vld [vmem:[%s1 + $0x78] sm:$0xf]
  %v78 = vld [vmem:[%s1 + $0x7c] sm:$0xf]
  %v79 = vld [vmem:[%s1 + $0x80] sm:$0xf]
  %v80 = vld [vmem:[%s1 + $0x84] sm:$0xf]
  %v81 = vld [vmem:[%s1 + $0x88] sm:$0xf]
  %v82 = vld [vmem:[%s1 + $0x8c] sm:$0xf]
  %v115 = vunpack.c.l.b16 %v15
  %v116 = vunpack.c.h.b16 %v15
  %v117 = vunpack.c.l.b16 %v16
  %v118 = vunpack.c.l.b16 %v17
  %v119 = vunpack.c.h.b16 %v17
  %v120 = vunpack.c.l.b16 %v18
  %v121 = vunpack.c.l.b16 %v19
  %v122 = vunpack.c.h.b16 %v19
  %v123 = vunpack.c.l.b16 %v20
  %v124 = vunpack.c.l.b16 %v21
  %v125 = vunpack.c.h.b16 %v21
  %v126 = vunpack.c.l.b16 %v22
  %v127 = vunpack.c.l.b16 %v23
  %v128 = vunpack.c.h.b16 %v23
  %v129 = vunpack.c.l.b16 %v24
  %v130 = vunpack.c.l.b16 %v25
  %v131 = vunpack.c.h.b16 %v25
  %v132 = vunpack.c.l.b16 %v26
  %v133 = vunpack.c.l.b16 %v27
  %v134 = vunpack.c.h.b16 %v27
  %v135 = vunpack.c.l.b16 %v28
  %v136 = vunpack.c.l.b16 %v29
  %v137 = vunpack.c.h.b16 %v29
  %v138 = vunpack.c.l.b16 %v30
  %v139 = vunpack.c.l.b16 %v31
  %v140 = vunpack.c.h.b16 %v31
  %v141 = vunpack.c.l.b16 %v32
  %v142 = vunpack.c.l.b16 %v33
  %v143 = vunpack.c.h.b16 %v33
  %v144 = vunpack.c.l.b16 %v34
  %v145 = vunpack.c.l.b16 %v35
  %v146 = vunpack.c.h.b16 %v35
  %v147 = vunpack.c.l.b16 %v36
  %v148 = vunpack.c.l.b16 %v37
  %v149 = vunpack.c.h.b16 %v37
  %v150 = vunpack.c.l.b16 %v38
  %v151 = vunpack.c.l.b16 %v39
  %v152 = vunpack.c.h.b16 %v39
  %v153 = vunpack.c.l.b16 %v40
  %v154 = vunpack.c.l.b16 %v41
  %v155 = vunpack.c.h.b16 %v41
  %v156 = vunpack.c.l.b16 %v42
  %v157 = vunpack.c.l.b16 %v43
  %v158 = vunpack.c.h.b16 %v43
  %v159 = vunpack.c.l.b16 %v44
  %v160 = vunpack.c.l.b16 %v45
  %v161 = vunpack.c.h.b16 %v45
  %v162 = vunpack.c.l.b16 %v46
  %v163 = vpack.c.b16 %v118, %v115
  %v164 = vpack.c.b16 %v119, %v116
  %v165 = vpack.c.b16 %v120, %v117
  %v166 = vpack.c.b16 %v124, %v121
  %v167 = vpack.c.b16 %v125, %v122
  %v168 = vpack.c.b16 %v126, %v123
  %v169 = vpack.c.b16 %v130, %v127
  %v170 = vpack.c.b16 %v131, %v128
  %v171 = vpack.c.b16 %v132, %v129
  %v172 = vpack.c.b16 %v136, %v133
  %v173 = vpack.c.b16 %v137, %v134
  %v174 = vpack.c.b16 %v138, %v135
  %v175 = vpack.c.b16 %v142, %v139
  %v176 = vpack.c.b16 %v143, %v140
  %v177 = vpack.c.b16 %v144, %v141
  %v178 = vpack.c.b16 %v148, %v145
  %v179 = vpack.c.b16 %v149, %v146
  %v180 = vpack.c.b16 %v150, %v147
  %v181 = vpack.c.b16 %v154, %v151
  %v182 = vpack.c.b16 %v155, %v152
  %v183 = vpack.c.b16 %v156, %v153
  %v184 = vpack.c.b16 %v160, %v157
  %v185 = vpack.c.b16 %v161, %v158
  %v186 = vpack.c.b16 %v162, %v159
  %v239 = vunpack.c.l.b16 %v47
  %v240 = vunpack.c.l.b16 %v48
  %v241 = vunpack.c.l.b16 %v49
  %v242 = vunpack.c.l.b16 %v50
  %v243 = vunpack.c.l.b16 %v51
  %v244 = vunpack.c.l.b16 %v52
  %v245 = vunpack.c.l.b16 %v53
  %v246 = vunpack.c.l.b16 %v54
  %v247 = vunpack.c.l.b16 %v55
  %v248 = vunpack.c.l.b16 %v56
  %v249 = vunpack.c.l.b16 %v57
  %v250 = vunpack.c.l.b16 %v58
  %v251 = vunpack.c.l.b16 %v59
  %v252 = vunpack.c.l.b16 %v60
  %v253 = vunpack.c.l.b16 %v61
  %v254 = vunpack.c.l.b16 %v62
  %v255 = vunpack.c.l.b16 %v63
  %v256 = vunpack.c.l.b16 %v64
  %v257 = vunpack.c.l.b16 %v65
  %v258 = vunpack.c.l.b16 %v66
  %v259 = vunpack.c.l.b16 %v67
  %v260 = vunpack.c.l.b16 %v68
  %v261 = vunpack.c.l.b16 %v69
  %v262 = vunpack.c.l.b16 %v70
  %v263 = vunpack.c.l.b16 %v71
  %v264 = vunpack.c.l.b16 %v72
  %v265 = vunpack.c.l.b16 %v73
  %v266 = vunpack.c.l.b16 %v74
  %v267 = vunpack.c.l.b16 %v75
  %v268 = vunpack.c.l.b16 %v76
  %v269 = vunpack.c.l.b16 %v77
  %v270 = vunpack.c.l.b16 %v78
  %v271 = vunpack.c.l.b16 %v79
  %v272 = vunpack.c.l.b16 %v80
  %v273 = vunpack.c.l.b16 %v81
  %v274 = vunpack.c.l.b16 %v82
  %v275 = vpack.c.b16 %v240, %v239
  %v276 = vpack.c.b16 %v242, %v241
  %v277 = vpack.c.b16 %v244, %v243
  %v278 = vpack.c.b16 %v246, %v245
  %v279 = vpack.c.b16 %v248, %v247
  %v280 = vpack.c.b16 %v250, %v249
  %v281 = vpack.c.b16 %v252, %v251
  %v282 = vpack.c.b16 %v254, %v253
  %v283 = vpack.c.b16 %v256, %v255
  %v284 = vpack.c.b16 %v258, %v257
  %v285 = vpack.c.b16 %v260, %v259
  %v286 = vpack.c.b16 %v262, %v261
  %v287 = vpack.c.b16 %v264, %v263
  %v288 = vpack.c.b16 %v266, %v265
  %v289 = vpack.c.b16 %v268, %v267
  %v290 = vpack.c.b16 %v270, %v269
  %v291 = vpack.c.b16 %v272, %v271
  %v292 = vpack.c.b16 %v274, %v273
  %vm311 = vcmask 261120
  %v313 = vsel %vm311, %v165, 0
  %v316 = vsel %vm311, %v168, 0
  %v319 = vsel %vm311, %v171, 0
  %v322 = vsel %vm311, %v174, 0
  %v325 = vsel %vm311, %v177, 0
  %v328 = vsel %vm311, %v180, 0
  %v331 = vsel %vm311, %v183, 0
  %v334 = vsel %vm311, %v186, 0
  %336 = vmatpush.bf16.msra.mxu0 %v282
  %337 = vmatpush.bf16.msra.mxu0 %v281
  %338 = vmatpush.bf16.msra.mxu0 %v280
  %339 = vmatpush.bf16.msra.mxu0 %v279
  %340 = vmatpush.bf16.msra.mxu0 %v278
  %341 = vmatpush.bf16.msra.mxu0 %v277
  %342 = vmatpush.bf16.msra.mxu0 %v276
  %343 = vmatpush.bf16.msra.mxu0 %v275
  %344 = vmatmul.bf16.gmra.mxu0 %v163
  %v345 = vpop.f32.mrf.mxu0
  %v346 = vadd.f32 0.0, %v345
  %v347 = vpop.f32.mrf.mxu0
  %v348 = vadd.f32 0.0, %v347
  %349 = vmatmul.bf16.gmra.mxu0 %v166
  %v350 = vpop.f32.mrf.mxu0
  %v351 = vadd.f32 0.0, %v350
  %v352 = vpop.f32.mrf.mxu0
  %v353 = vadd.f32 0.0, %v352
  %354 = vmatmul.bf16.gmra.mxu0 %v169
  %v355 = vpop.f32.mrf.mxu0
  %v356 = vadd.f32 0.0, %v355
  %v357 = vpop.f32.mrf.mxu0
  %v358 = vadd.f32 0.0, %v357
  %359 = vmatmul.bf16.gmra.mxu0 %v172
  %v360 = vpop.f32.mrf.mxu0
  %v361 = vadd.f32 0.0, %v360
  %v362 = vpop.f32.mrf.mxu0
  %v363 = vadd.f32 0.0, %v362
  %364 = vmatmul.bf16.gmra.mxu0 %v175
  %v365 = vpop.f32.mrf.mxu0
  %v366 = vadd.f32 0.0, %v365
  %v367 = vpop.f32.mrf.mxu0
  %v368 = vadd.f32 0.0, %v367
  %369 = vmatmul.bf16.gmra.mxu0 %v178
  %v370 = vpop.f32.mrf.mxu0
  %v371 = vadd.f32 0.0, %v370
  %v372 = vpop.f32.mrf.mxu0
  %v373 = vadd.f32 0.0, %v372
  %374 = vmatmul.bf16.gmra.mxu0 %v181
  %v375 = vpop.f32.mrf.mxu0
  %v376 = vadd.f32 0.0, %v375
  %v377 = vpop.f32.mrf.mxu0
  %v378 = vadd.f32 0.0, %v377
  %379 = vmatmul.bf16.gmra.mxu0 %v184
  %v380 = vpop.f32.mrf.mxu0
  %v381 = vadd.f32 0.0, %v380
  %v382 = vpop.f32.mrf.mxu0
  %v383 = vadd.f32 0.0, %v382
  %384 = vdwg.mxu0
  %385 = vmatpush.bf16.msra.mxu0 %v290
  %386 = vmatpush.bf16.msra.mxu0 %v289
  %387 = vmatpush.bf16.msra.mxu0 %v288
  %388 = vmatpush.bf16.msra.mxu0 %v287
  %389 = vmatpush.bf16.msra.mxu0 %v286
  %390 = vmatpush.bf16.msra.mxu0 %v285
  %391 = vmatpush.bf16.msra.mxu0 %v284
  %392 = vmatpush.bf16.msra.mxu0 %v283
  %393 = vmatmul.bf16.gmra.mxu0 %v164
  %v394 = vpop.f32.mrf.mxu0
  %v395 = vadd.f32 %v346, %v394
  %v396 = vpop.f32.mrf.mxu0
  %v397 = vadd.f32 %v348, %v396
  %398 = vmatmul.bf16.gmra.mxu0 %v167
  %v399 = vpop.f32.mrf.mxu0
  %v400 = vadd.f32 %v351, %v399
  %v401 = vpop.f32.mrf.mxu0
  %v402 = vadd.f32 %v353, %v401
  %403 = vmatmul.bf16.gmra.mxu0 %v170
  %v404 = vpop.f32.mrf.mxu0
  %v405 = vadd.f32 %v356, %v404
  %v406 = vpop.f32.mrf.mxu0
  %v407 = vadd.f32 %v358, %v406
  %408 = vmatmul.bf16.gmra.mxu0 %v173
  %v409 = vpop.f32.mrf.mxu0
  %v410 = vadd.f32 %v361, %v409
  %v411 = vpop.f32.mrf.mxu0
  %v412 = vadd.f32 %v363, %v411
  %413 = vmatmul.bf16.gmra.mxu0 %v176
  %v414 = vpop.f32.mrf.mxu0
  %v415 = vadd.f32 %v366, %v414
  %v416 = vpop.f32.mrf.mxu0
  %v417 = vadd.f32 %v368, %v416
  %418 = vmatmul.bf16.gmra.mxu0 %v179
  %v419 = vpop.f32.mrf.mxu0
  %v420 = vadd.f32 %v371, %v419
  %v421 = vpop.f32.mrf.mxu0
  %v422 = vadd.f32 %v373, %v421
  %423 = vmatmul.bf16.gmra.mxu0 %v182
  %v424 = vpop.f32.mrf.mxu0
  %v425 = vadd.f32 %v376, %v424
  %v426 = vpop.f32.mrf.mxu0
  %v427 = vadd.f32 %v378, %v426
  %428 = vmatmul.bf16.gmra.mxu0 %v185
  %v429 = vpop.f32.mrf.mxu0
  %v430 = vadd.f32 %v381, %v429
  %v431 = vpop.f32.mrf.mxu0
  %v432 = vadd.f32 %v383, %v431
  %433 = vdwg.mxu0
  %434 = vmatpush.bf16.msra.mxu0 0
  %435 = vmatpush.bf16.msra.mxu0 0
  %436 = vmatpush.bf16.msra.mxu0 0
  %437 = vmatpush.bf16.msra.mxu0 0
  %438 = vmatpush.bf16.msra.mxu0 0
  %439 = vmatpush.bf16.msra.mxu0 0
  %440 = vmatpush.bf16.msra.mxu0 %v292
  %441 = vmatpush.bf16.msra.mxu0 %v291
  %442 = vmatmul.bf16.gmra.mxu0 %v313
  %v443 = vpop.f32.mrf.mxu0
  %v444 = vadd.f32 %v395, %v443
  %v445 = vpop.f32.mrf.mxu0
  %v446 = vadd.f32 %v397, %v445
  %447 = vmatmul.bf16.gmra.mxu0 %v316
  %v448 = vpop.f32.mrf.mxu0
  %v449 = vadd.f32 %v400, %v448
  %v450 = vpop.f32.mrf.mxu0
  %v451 = vadd.f32 %v402, %v450
  %452 = vmatmul.bf16.gmra.mxu0 %v319
  %v453 = vpop.f32.mrf.mxu0
  %v454 = vadd.f32 %v405, %v453
  %v455 = vpop.f32.mrf.mxu0
  %v456 = vadd.f32 %v407, %v455
  %457 = vmatmul.bf16.gmra.mxu0 %v322
  %v458 = vpop.f32.mrf.mxu0
  %v459 = vadd.f32 %v410, %v458
  %v460 = vpop.f32.mrf.mxu0
  %v461 = vadd.f32 %v412, %v460
  %462 = vmatmul.bf16.gmra.mxu0 %v325
  %v463 = vpop.f32.mrf.mxu0
  %v464 = vadd.f32 %v415, %v463
  %v465 = vpop.f32.mrf.mxu0
  %v466 = vadd.f32 %v417, %v465
  %467 = vmatmul.bf16.gmra.mxu0 %v328
  %v468 = vpop.f32.mrf.mxu0
  %v469 = vadd.f32 %v420, %v468
  %v470 = vpop.f32.mrf.mxu0
  %v471 = vadd.f32 %v422, %v470
  %472 = vmatmul.bf16.gmra.mxu0 %v331
  %v473 = vpop.f32.mrf.mxu0
  %v474 = vadd.f32 %v425, %v473
  %v475 = vpop.f32.mrf.mxu0
  %v476 = vadd.f32 %v427, %v475
  %477 = vmatmul.bf16.gmra.mxu0 %v334
  %v478 = vpop.f32.mrf.mxu0
  %v479 = vadd.f32 %v430, %v478
  %v480 = vpop.f32.mrf.mxu0
  %v481 = vadd.f32 %v432, %v480
  %482 = vdwg.mxu0
  %v483 = vpack.c.bf16 %v444, %v444
  %v484 = vpack.c.bf16 %v446, %v446
  %v485 = vpack.c.bf16 %v449, %v449
  %v486 = vpack.c.bf16 %v451, %v451
  %v487 = vpack.c.bf16 %v454, %v454
  %v488 = vpack.c.bf16 %v456, %v456
  %v489 = vpack.c.bf16 %v459, %v459
  %v490 = vpack.c.bf16 %v461, %v461
  %v491 = vpack.c.bf16 %v464, %v464
  %v492 = vpack.c.bf16 %v466, %v466
  %v493 = vpack.c.bf16 %v469, %v469
  %v494 = vpack.c.bf16 %v471, %v471
  %v495 = vpack.c.bf16 %v474, %v474
  %v496 = vpack.c.bf16 %v476, %v476
  %v497 = vpack.c.bf16 %v479, %v479
  %v498 = vpack.c.bf16 %v481, %v481
  %vm499 = vcmask 519168
  %500 = vst.msk [vmem:[%s2] sm:$0xf] %vm499, %v483
  %501 = vst.msk [vmem:[%s2 + $0x4] sm:$0xf] %vm499, %v484
  %502 = vst.msk [vmem:[%s2 + $0x8] sm:$0xf] %vm499, %v485
  %503 = vst.msk [vmem:[%s2 + $0xc] sm:$0xf] %vm499, %v486
  %504 = vst.msk [vmem:[%s2 + $0x10] sm:$0xf] %vm499, %v487
  %505 = vst.msk [vmem:[%s2 + $0x14] sm:$0xf] %vm499, %v488
  %506 = vst.msk [vmem:[%s2 + $0x18] sm:$0xf] %vm499, %v489
  %507 = vst.msk [vmem:[%s2 + $0x1c] sm:$0xf] %vm499, %v490
  %508 = vst.msk [vmem:[%s2 + $0x20] sm:$0xf] %vm499, %v491
  %509 = vst.msk [vmem:[%s2 + $0x24] sm:$0xf] %vm499, %v492
  %510 = vst.msk [vmem:[%s2 + $0x28] sm:$0xf] %vm499, %v493
  %511 = vst.msk [vmem:[%s2 + $0x2c] sm:$0xf] %vm499, %v494
  %512 = vst.msk [vmem:[%s2 + $0x30] sm:$0xf] %vm499, %v495
  %513 = vst.msk [vmem:[%s2 + $0x34] sm:$0xf] %vm499, %v496
  %514 = vst.msk [vmem:[%s2 + $0x38] sm:$0xf] %vm499, %v497
  %515 = vst.msk [vmem:[%s2 + $0x3c] sm:$0xf] %vm499, %v498
  %vm516 = vcmask 523264
  %v517 = vsel %vm516, %v444, 0.0
  %v518 = vsel %vm516, %v446, 0.0
  %v519 = vadd.f32 %v517, %v518
  %v520 = vsel %vm516, %v449, 0.0
  %v521 = vadd.f32 %v519, %v520
  %v522 = vsel %vm516, %v451, 0.0
  %v523 = vadd.f32 %v521, %v522
  %v524 = vsel %vm516, %v454, 0.0
  %v525 = vadd.f32 %v523, %v524
  %v526 = vsel %vm516, %v456, 0.0
  %v527 = vadd.f32 %v525, %v526
  %v528 = vsel %vm516, %v459, 0.0
  %v529 = vadd.f32 %v527, %v528
  %v530 = vsel %vm516, %v461, 0.0
  %v531 = vadd.f32 %v529, %v530
  %v532 = vsel %vm516, %v464, 0.0
  %v533 = vadd.f32 %v531, %v532
  %v534 = vsel %vm516, %v466, 0.0
  %v535 = vadd.f32 %v533, %v534
  %v536 = vsel %vm516, %v469, 0.0
  %v537 = vadd.f32 %v535, %v536
  %v538 = vsel %vm516, %v471, 0.0
  %v539 = vadd.f32 %v537, %v538
  %v540 = vsel %vm516, %v474, 0.0
  %v541 = vadd.f32 %v539, %v540
  %v542 = vsel %vm516, %v476, 0.0
  %v543 = vadd.f32 %v541, %v542
  %v544 = vsel %vm516, %v479, 0.0
  %v545 = vadd.f32 %v543, %v544
  %v546 = vsel %vm516, %v481, 0.0
  %v547 = vadd.f32 %v545, %v546
  %v548 = vrot.slane %v547, 4
  %v549 = vadd.f32 %v547, %v548
  %v550 = vrot.slane %v549, 2
  %v551 = vadd.f32 %v549, %v550
  %v552 = vrot.slane %v551, 1
  %v553 = vadd.f32 %v551, %v552
  %v554 = vmul.f32 %v444, %v444
  %v555 = vmul.f32 %v446, %v446
  %v556 = vmul.f32 %v449, %v449
  %v557 = vmul.f32 %v451, %v451
  %v558 = vmul.f32 %v454, %v454
  %v559 = vmul.f32 %v456, %v456
  %v560 = vmul.f32 %v459, %v459
  %v561 = vmul.f32 %v461, %v461
  %v562 = vmul.f32 %v464, %v464
  %v563 = vmul.f32 %v466, %v466
  %v564 = vmul.f32 %v469, %v469
  %v565 = vmul.f32 %v471, %v471
  %v566 = vmul.f32 %v474, %v474
  %v567 = vmul.f32 %v476, %v476
  %v568 = vmul.f32 %v479, %v479
  %v569 = vmul.f32 %v481, %v481
  %v570 = vsel %vm516, %v554, 0.0
  %v571 = vsel %vm516, %v555, 0.0
  %v572 = vadd.f32 %v570, %v571
  %v573 = vsel %vm516, %v556, 0.0
  %v574 = vadd.f32 %v572, %v573
  %v575 = vsel %vm516, %v557, 0.0
  %v576 = vadd.f32 %v574, %v575
  %v577 = vsel %vm516, %v558, 0.0
  %v578 = vadd.f32 %v576, %v577
  %v579 = vsel %vm516, %v559, 0.0
  %v580 = vadd.f32 %v578, %v579
  %v581 = vsel %vm516, %v560, 0.0
  %v582 = vadd.f32 %v580, %v581
  %v583 = vsel %vm516, %v561, 0.0
  %v584 = vadd.f32 %v582, %v583
  %v585 = vsel %vm516, %v562, 0.0
  %v586 = vadd.f32 %v584, %v585
  %v587 = vsel %vm516, %v563, 0.0
  %v588 = vadd.f32 %v586, %v587
  %v589 = vsel %vm516, %v564, 0.0
  %v590 = vadd.f32 %v588, %v589
  %v591 = vsel %vm516, %v565, 0.0
  %v592 = vadd.f32 %v590, %v591
  %v593 = vsel %vm516, %v566, 0.0
  %v594 = vadd.f32 %v592, %v593
  %v595 = vsel %vm516, %v567, 0.0
  %v596 = vadd.f32 %v594, %v595
  %v597 = vsel %vm516, %v568, 0.0
  %v598 = vadd.f32 %v596, %v597
  %v599 = vsel %vm516, %v569, 0.0
  %v600 = vadd.f32 %v598, %v599
  %v601 = vrot.slane %v600, 4
  %v602 = vadd.f32 %v600, %v601
  %v603 = vrot.slane %v602, 2
  %v604 = vadd.f32 %v602, %v603
  %v605 = vrot.slane %v604, 1
  %v606 = vadd.f32 %v604, %v605
  %607 = vst.msk [vmem:[%s3] sm:$0xff] %vm516, %v553
  %608 = vst.msk [vmem:[%s4] sm:$0xff] %vm516, %v606
  // Predicated region
  $region10: #{_lambda_.45} parent=0 // pred_check
    _
  $region11: #{_lambda_.45} parent=0 // pred_check_branch
    %610 = sbr.rel (0) target = $region13
  $region12: #{_lambda_.45} parent=0 // pred_region
    _
  $region13: #{_lambda_.45} parent=0 // pred_fallthru
    _
  // Predicated region
  $region14: #{_lambda_.45} parent=0 // pred_check
    _
  $region15: #{_lambda_.45} parent=0 // pred_check_branch
    %612 = sbr.rel (0) target = $region17
  $region16: #{_lambda_.45} parent=0 // pred_region
    _
  $region17: #{_lambda_.45} parent=0 // pred_fallthru
    _
  // Predicated region
  $region18: #{_lambda_.45} parent=0 // pred_check
    _
  $region19: #{_lambda_.45} parent=0 // pred_check_branch
    %614 = sbr.rel (0) target = $region21
  $region20: #{_lambda_.45} parent=0 // pred_region
    _
  $region21: #{_lambda_.45} parent=0 // pred_fallthru
    _
  // Predicated region
  $region22: #{_lambda_.45} parent=0 // pred_check
    _
  $region23: #{_lambda_.45} parent=0 // pred_check_branch
    %616 = sbr.rel (0) target = $region25
  $region24: #{_lambda_.45} parent=0 // pred_region
    _
  $region25: #{_lambda_.45} parent=0 // pred_fallthru
    _
  // Predicated region
  $region26: #{_lambda_.45} parent=0 // pred_check
    _
  $region27: #{_lambda_.45} parent=0 // pred_check_branch
    %618 = sbr.rel (0) target = $region29
  $region28: #{_lambda_.45} parent=0 // pred_region
    _
  $region29: #{_lambda_.45} parent=0 // pred_fallthru
    _
  // Predicated region
  $region30: #{_lambda_.45} parent=0 // pred_check
    _
  $region31: #{_lambda_.45} parent=0 // pred_check_branch
    %620 = sbr.rel (0) target = $region33
  $region32: #{_lambda_.45} parent=0 // pred_region
    _
  $region33: #{_lambda_.45} parent=0 // pred_fallthru
    _

// kernel: tile.228
$region0: #{tile.228}
  #allocation0 [shape = 's32[1]{0}', space=sflag, size = 0x4, scoped, tag = 'scoped memory for tile.228']
  %s0 = inlined_call_operand.vmem [shape: f32[64], index: 0, kind: input, shape index: {}]
  %s1 = inlined_call_operand.vmem [shape: f32[2,64], index: 1, kind: output, shape index: {}]
  // Predicated region
  $region2: #{tile.228} parent=0 // pred_check
    _
  $region3: #{tile.228} parent=0 // pred_check_branch
    %3 = sbr.rel (0) target = $region5
  $region4: #{tile.228} parent=0 // pred_region
    _
  $region5: #{tile.228} parent=0 // pred_fallthru
    _
  %v4 = vld [vmem:[%s0] ss:$0 sm:$0xff]
  %5 = vst [vmem:[%s1] sm:$0x3] %v4

// kernel: tile.229
$region0: #{tile.229}
  %s0 = inlined_call_operand.vmem [shape: f32[2,64], index: 0, kind: input, shape index: {}]
  %s1 = inlined_call_operand.vmem [shape: f32[1,128], index: 1, kind: output, shape index: {}]
  $region1: #{tile.229} parent=0
    #allocation0 [shape = 'u8[4096]{0}', space=vmem, size = 0x1000, scoped, tag = 'scoped mem for output reshape']
    #allocation1 [shape = 'u8[4096]{0}', space=vmem, size = 0x1000, scoped, tag = 'scoped mem for input reshape']
    %s3 = ssub.s32 4, 1
    %v4 = vld [vmem:[%s0] sm:%s3]
    %5 = vst [vmem:[#allocation1] sm:%s3] %v4
    %v6 = vld [vmem:[#allocation1] sm:$0x1]
    %vm7 = vcmask 523264
    %8 = vst.msk [vmem:[#allocation0] sm:$0x1] %vm7, %v6
    %s9 = scalar_lea.vmem [#allocation1], 1
    %v10 = vld [vmem:[%s9] sm:$0x1]
    %11 = vrot.lane.b32.xlu0 %v10, 64
    %v12 = vpop.permute.xlu0 %11
    %vm13 = vcmask 1048064
    %14 = vst.msk [vmem:[#allocation0] sm:$0x1] %vm13, %v12
    %s16 = ssub.s32 2, 1
    %v17 = vld [vmem:[#allocation0] sm:%s16]
    %s19 = ssub.s32 2, 1
    %20 = vst [vmem:[%s1] sm:%s19] %v17

// kernel: _lambda_.46
$region0: #{_lambda_.46}
  #allocation0 [shape = 'u32[]', space=smem, size = 0x4, offset = 0x4, fixed_abs, tag = 'smem constant byte address 0x4 - core index']
  #allocation1 [shape = 'u32[72,128]{1,0:T(1,128)}', space=vmem, size = 0x9000, scoped, tag = 'internal scratch']
  %s0 = inlined_call_operand.vmem [shape: bf16[64,128], index: 0, kind: input, shape index: {}]
  %s1 = inlined_call_operand.vmem [shape: f32[1,128], index: 1, kind: input, shape index: {}]
  %s2 = inlined_call_operand.vmem [shape: f32[1,128], index: 2, kind: input, shape index: {}]
  %s3 = inlined_call_operand.vmem [shape: bf16[64,128], index: 3, kind: output, shape index: {}]
  %s4 = sld [smem:[#allocation0]]
  $region22: #{_lambda_.46} parent=0
    _
  %s6 = ssub.s32 1, %s4
  %s7 = scalar_select 0, %s6, %s4
  // Predicated region
  $region2: #{_lambda_.46} parent=0 // pred_check
    _
  $region3: #{_lambda_.46} parent=0 // pred_check_branch
    %9 = sbr.rel (0) target = $region5
  $region4: #{_lambda_.46} parent=0 // pred_region
    _
  $region5: #{_lambda_.46} parent=0 // pred_fallthru
    _
  // Predicated region
  $region6: #{_lambda_.46} parent=0 // pred_check
    _
  $region7: #{_lambda_.46} parent=0 // pred_check_branch
    %11 = sbr.rel (0) target = $region9
  $region8: #{_lambda_.46} parent=0 // pred_region
    _
  $region9: #{_lambda_.46} parent=0 // pred_fallthru
    _
  // Predicated region
  $region10: #{_lambda_.46} parent=0 // pred_check
    _
  $region11: #{_lambda_.46} parent=0 // pred_check_branch
    %13 = sbr.rel (0) target = $region13
  $region12: #{_lambda_.46} parent=0 // pred_region
    _
  $region13: #{_lambda_.46} parent=0 // pred_fallthru
    _
  %v14 = vld [vmem:[%s0] sm:$0xf]
  %v15 = vld [vmem:[%s0 + $0x4] sm:$0xf]
  %v16 = vld [vmem:[%s0 + $0x8] sm:$0xf]
  %v17 = vld [vmem:[%s0 + $0xc] sm:$0xf]
  %v18 = vld [vmem:[%s0 + $0x10] sm:$0xf]
  %v19 = vld [vmem:[%s0 + $0x14] sm:$0xf]
  %v20 = vld [vmem:[%s0 + $0x18] sm:$0xf]
  %v21 = vld [vmem:[%s0 + $0x1c] sm:$0xf]
  %v22 = vunpack.c.l.bf16 %v14
  %v23 = vunpack.c.l.bf16 %v15
  %v24 = vunpack.c.l.bf16 %v16
  %v25 = vunpack.c.l.bf16 %v17
  %v26 = vunpack.c.l.bf16 %v18
  %v27 = vunpack.c.l.bf16 %v19
  %v28 = vunpack.c.l.bf16 %v20
  %v29 = vunpack.c.l.bf16 %v21
  %v30 = vld [vmem:[%s1] sm:$0x1]
  %v32 = vperm.slane %v30, 0
  %v34 = vmul.f32 %v22, %v32
  %v35 = vmul.f32 %v23, %v32
  %v36 = vmul.f32 %v24, %v32
  %v37 = vmul.f32 %v25, %v32
  %v38 = vmul.f32 %v26, %v32
  %v39 = vmul.f32 %v27, %v32
  %v40 = vmul.f32 %v28, %v32
  %v41 = vmul.f32 %v29, %v32
  %v42 = vld [vmem:[%s2] sm:$0x1]
  %v44 = vperm.slane %v42, 0
  %v46 = vadd.f32 %v34, %v44
  %v47 = vadd.f32 %v35, %v44
  %v48 = vadd.f32 %v36, %v44
  %v49 = vadd.f32 %v37, %v44
  %v50 = vadd.f32 %v38, %v44
  %v51 = vadd.f32 %v39, %v44
  %v52 = vadd.f32 %v40, %v44
  %v53 = vadd.f32 %v41, %v44
  %v54 = vmax.f32 %v46, 0.0
  %v55 = vmax.f32 %v47, 0.0
  %v56 = vmax.f32 %v48, 0.0
  %v57 = vmax.f32 %v49, 0.0
  %v58 = vmax.f32 %v50, 0.0
  %v59 = vmax.f32 %v51, 0.0
  %v60 = vmax.f32 %v52, 0.0
  %v61 = vmax.f32 %v53, 0.0
  %v62 = vpack.c.bf16 %v54, %v54
  %v63 = vpack.c.bf16 %v55, %v55
  %v64 = vpack.c.bf16 %v56, %v56
  %v65 = vpack.c.bf16 %v57, %v57
  %v66 = vpack.c.bf16 %v58, %v58
  %v67 = vpack.c.bf16 %v59, %v59
  %v68 = vpack.c.bf16 %v60, %v60
  %v69 = vpack.c.bf16 %v61, %v61
  %70 = vst [vmem:[%s3] sm:$0xf] %v62
  %71 = vst [vmem:[%s3 + $0x4] sm:$0xf] %v63
  %72 = vst [vmem:[%s3 + $0x8] sm:$0xf] %v64
  %73 = vst [vmem:[%s3 + $0xc] sm:$0xf] %v65
  %74 = vst [vmem:[%s3 + $0x10] sm:$0xf] %v66
  %75 = vst [vmem:[%s3 + $0x14] sm:$0xf] %v67
  %76 = vst [vmem:[%s3 + $0x18] sm:$0xf] %v68
  %77 = vst [vmem:[%s3 + $0x1c] sm:$0xf] %v69
  // Predicated region
  $region14: #{_lambda_.46} parent=0 // pred_check
    _
  $region15: #{_lambda_.46} parent=0 // pred_check_branch
    %79 = sbr.rel (0) target = $region17
  $region16: #{_lambda_.46} parent=0 // pred_region
    _
  $region17: #{_lambda_.46} parent=0 // pred_fallthru
    _
  // Predicated region
  $region18: #{_lambda_.46} parent=0 // pred_check
    _
  $region19: #{_lambda_.46} parent=0 // pred_check_branch
    %81 = sbr.rel (0) target = $region21
  $region20: #{_lambda_.46} parent=0 // pred_region
    _
  $region21: #{_lambda_.46} parent=0 // pred_fallthru
    _

// kernel: _lambda_.48
$region0: #{_lambda_.48}
  #allocation0 [shape = 'u32[]', space=smem, size = 0x4, offset = 0x4, fixed_abs, tag = 'smem constant byte address 0x4 - core index']
  #allocation1 [shape = 'u32[72,128]{1,0:T(1,128)}', space=vmem, size = 0x9000, scoped, tag = 'internal scratch']
  %s0 = inlined_call_operand.vmem [shape: bf16[16,128], index: 0, kind: input, shape index: {}]
  %s1 = inlined_call_operand.vmem [shape: f32[1,128], index: 1, kind: input, shape index: {}]
  %s2 = inlined_call_operand.vmem [shape: f32[1,128], index: 2, kind: input, shape index: {}]
  %s3 = inlined_call_operand.vmem [shape: bf16[16,128], index: 3, kind: output, shape index: {}]
  %s4 = sld [smem:[#allocation0]]
  $region22: #{_lambda_.48} parent=0
    _
  %s6 = ssub.s32 1, %s4
  %s7 = scalar_select 0, %s6, %s4
  // Predicated region
  $region2: #{_lambda_.48} parent=0 // pred_check
    _
  $region3: #{_lambda_.48} parent=0 // pred_check_branch
    %9 = sbr.rel (0) target = $region5
  $region4: #{_lambda_.48} parent=0 // pred_region
    _
  $region5: #{_lambda_.48} parent=0 // pred_fallthru
    _
  // Predicated region
  $region6: #{_lambda_.48} parent=0 // pred_check
    _
  $region7: #{_lambda_.48} parent=0 // pred_check_branch
    %11 = sbr.rel (0) target = $region9
  $region8: #{_lambda_.48} parent=0 // pred_region
    _
  $region9: #{_lambda_.48} parent=0 // pred_fallthru
    _
  // Predicated region
  $region10: #{_lambda_.48} parent=0 // pred_check
    _
  $region11: #{_lambda_.48} parent=0 // pred_check_branch
    %13 = sbr.rel (0) target = $region13
  $region12: #{_lambda_.48} parent=0 // pred_region
    _
  $region13: #{_lambda_.48} parent=0 // pred_fallthru
    _
  %v14 = vld [vmem:[%s0] sm:$0xf]
  %v15 = vld [vmem:[%s0 + $0x4] sm:$0xf]
  %v16 = vunpack.c.l.bf16 %v14
  %v17 = vunpack.c.l.bf16 %v15
  %v18 = vld [vmem:[%s1] sm:$0x1]
  %v20 = vperm.slane %v18, 0
  %v22 = vmul.f32 %v16, %v20
  %v23 = vmul.f32 %v17, %v20
  %v24 = vld [vmem:[%s2] sm:$0x1]
  %v26 = vperm.slane %v24, 0
  %v28 = vadd.f32 %v22, %v26
  %v29 = vadd.f32 %v23, %v26
  %v30 = vmax.f32 %v28, 0.0
  %v31 = vmax.f32 %v29, 0.0
  %v32 = vpack.c.bf16 %v30, %v30
  %v33 = vpack.c.bf16 %v31, %v31
  %34 = vst [vmem:[%s3] sm:$0xf] %v32
  %35 = vst [vmem:[%s3 + $0x4] sm:$0xf] %v33
  // Predicated region
  $region14: #{_lambda_.48} parent=0 // pred_check
    _
  $region15: #{_lambda_.48} parent=0 // pred_check_branch
    %37 = sbr.rel (0) target = $region17
  $region16: #{_lambda_.48} parent=0 // pred_region
    _
  $region17: #{_lambda_.48} parent=0 // pred_fallthru
    _
  // Predicated region
  $region18: #{_lambda_.48} parent=0 // pred_check
    _
  $region19: #{_lambda_.48} parent=0 // pred_check_branch
    %39 = sbr.rel (0) target = $region21
  $region20: #{_lambda_.48} parent=0 // pred_region
    _
  $region21: #{_lambda_.48} parent=0 // pred_fallthru
    _

// kernel: _lambda_.47
$region0: #{_lambda_.47}
  #allocation0 [shape = 'u32[]', space=smem, size = 0x4, offset = 0x4, fixed_abs, tag = 'smem constant byte address 0x4 - core index']
  #allocation1 [shape = 'u32[72,128]{1,0:T(1,128)}', space=vmem, size = 0x9000, scoped, tag = 'internal scratch']
  %s0 = inlined_call_operand.vmem [shape: bf16[32,576], index: 0, kind: input, shape index: {}]
  %s1 = inlined_call_operand.vmem [shape: bf16[576,64], index: 1, kind: input, shape index: {}]
  %s2 = inlined_call_operand.vmem [shape: bf16[32,64], index: 2, kind: output, shape index: {0}]
  %s3 = inlined_call_operand.vmem [shape: f32[1,8,64], index: 3, kind: output, shape index: {1}]
  %s4 = inlined_call_operand.vmem [shape: f32[1,8,64], index: 4, kind: output, shape index: {2}]
  %5 = xla_tuple %s2, %s3, %s4
  %s6 = sld [smem:[#allocation0]]
  $region34: #{_lambda_.47} parent=0
    _
  %s8 = ssub.s32 1, %s6
  %s9 = scalar_select 0, %s8, %s6
  // Predicated region
  $region2: #{_lambda_.47} parent=0 // pred_check
    _
  $region3: #{_lambda_.47} parent=0 // pred_check_branch
    %11 = sbr.rel (0) target = $region5
  $region4: #{_lambda_.47} parent=0 // pred_region
    _
  $region5: #{_lambda_.47} parent=0 // pred_fallthru
    _
  // Predicated region
  $region6: #{_lambda_.47} parent=0 // pred_check
    _
  $region7: #{_lambda_.47} parent=0 // pred_check_branch
    %13 = sbr.rel (0) target = $region9
  $region8: #{_lambda_.47} parent=0 // pred_region
    _
  $region9: #{_lambda_.47} parent=0 // pred_fallthru
    _
  %v15 = vld [vmem:[%s0] sm:$0xff]
  %v16 = vld [vmem:[%s0 + $0x8] sm:$0xff]
  %v17 = vld [vmem:[%s0 + $0x10] sm:$0xf]
  %v18 = vld [vmem:[%s0 + $0x14] sm:$0xff]
  %v19 = vld [vmem:[%s0 + $0x1c] sm:$0xff]
  %v20 = vld [vmem:[%s0 + $0x24] sm:$0xf]
  %v21 = vld [vmem:[%s0 + $0x28] sm:$0xff]
  %v22 = vld [vmem:[%s0 + $0x30] sm:$0xff]
  %v23 = vld [vmem:[%s0 + $0x38] sm:$0xf]
  %v24 = vld [vmem:[%s0 + $0x3c] sm:$0xff]
  %v25 = vld [vmem:[%s0 + $0x44] sm:$0xff]
  %v26 = vld [vmem:[%s0 + $0x4c] sm:$0xf]
  %v27 = vld [vmem:[%s1] sm:$0xf]
  %v28 = vld [vmem:[%s1 + $0x4] sm:$0xf]
  %v29 = vld [vmem:[%s1 + $0x8] sm:$0xf]
  %v30 = vld [vmem:[%s1 + $0xc] sm:$0xf]
  %v31 = vld [vmem:[%s1 + $0x10] sm:$0xf]
  %v32 = vld [vmem:[%s1 + $0x14] sm:$0xf]
  %v33 = vld [vmem:[%s1 + $0x18] sm:$0xf]
  %v34 = vld [vmem:[%s1 + $0x1c] sm:$0xf]
  %v35 = vld [vmem:[%s1 + $0x20] sm:$0xf]
  %v36 = vld [vmem:[%s1 + $0x24] sm:$0xf]
  %v37 = vld [vmem:[%s1 + $0x28] sm:$0xf]
  %v38 = vld [vmem:[%s1 + $0x2c] sm:$0xf]
  %v39 = vld [vmem:[%s1 + $0x30] sm:$0xf]
  %v40 = vld [vmem:[%s1 + $0x34] sm:$0xf]
  %v41 = vld [vmem:[%s1 + $0x38] sm:$0xf]
  %v42 = vld [vmem:[%s1 + $0x3c] sm:$0xf]
  %v43 = vld [vmem:[%s1 + $0x40] sm:$0xf]
  %v44 = vld [vmem:[%s1 + $0x44] sm:$0xf]
  %v45 = vld [vmem:[%s1 + $0x48] sm:$0xf]
  %v46 = vld [vmem:[%s1 + $0x4c] sm:$0xf]
  %v47 = vld [vmem:[%s1 + $0x50] sm:$0xf]
  %v48 = vld [vmem:[%s1 + $0x54] sm:$0xf]
  %v49 = vld [vmem:[%s1 + $0x58] sm:$0xf]
  %v50 = vld [vmem:[%s1 + $0x5c] sm:$0xf]
  %v51 = vld [vmem:[%s1 + $0x60] sm:$0xf]
  %v52 = vld [vmem:[%s1 + $0x64] sm:$0xf]
  %v53 = vld [vmem:[%s1 + $0x68] sm:$0xf]
  %v54 = vld [vmem:[%s1 + $0x6c] sm:$0xf]
  %v55 = vld [vmem:[%s1 + $0x70] sm:$0xf]
  %v56 = vld [vmem:[%s1 + $0x74] sm:$0xf]
  %v57 = vld [vmem:[%s1 + $0x78] sm:$0xf]
  %v58 = vld [vmem:[%s1 + $0x7c] sm:$0xf]
  %v59 = vld [vmem:[%s1 + $0x80] sm:$0xf]
  %v60 = vld [vmem:[%s1 + $0x84] sm:$0xf]
  %v61 = vld [vmem:[%s1 + $0x88] sm:$0xf]
  %v62 = vld [vmem:[%s1 + $0x8c] sm:$0xf]
  %v63 = vld [vmem:[%s1 + $0x90] sm:$0xf]
  %v64 = vld [vmem:[%s1 + $0x94] sm:$0xf]
  %v65 = vld [vmem:[%s1 + $0x98] sm:$0xf]
  %v66 = vld [vmem:[%s1 + $0x9c] sm:$0xf]
  %v67 = vld [vmem:[%s1 + $0xa0] sm:$0xf]
  %v68 = vld [vmem:[%s1 + $0xa4] sm:$0xf]
  %v69 = vld [vmem:[%s1 + $0xa8] sm:$0xf]
  %v70 = vld [vmem:[%s1 + $0xac] sm:$0xf]
  %v71 = vld [vmem:[%s1 + $0xb0] sm:$0xf]
  %v72 = vld [vmem:[%s1 + $0xb4] sm:$0xf]
  %v73 = vld [vmem:[%s1 + $0xb8] sm:$0xf]
  %v74 = vld [vmem:[%s1 + $0xbc] sm:$0xf]
  %v75 = vld [vmem:[%s1 + $0xc0] sm:$0xf]
  %v76 = vld [vmem:[%s1 + $0xc4] sm:$0xf]
  %v77 = vld [vmem:[%s1 + $0xc8] sm:$0xf]
  %v78 = vld [vmem:[%s1 + $0xcc] sm:$0xf]
  %v79 = vld [vmem:[%s1 + $0xd0] sm:$0xf]
  %v80 = vld [vmem:[%s1 + $0xd4] sm:$0xf]
  %v81 = vld [vmem:[%s1 + $0xd8] sm:$0xf]
  %v82 = vld [vmem:[%s1 + $0xdc] sm:$0xf]
  %v83 = vld [vmem:[%s1 + $0xe0] sm:$0xf]
  %v84 = vld [vmem:[%s1 + $0xe4] sm:$0xf]
  %v85 = vld [vmem:[%s1 + $0xe8] sm:$0xf]
  %v86 = vld [vmem:[%s1 + $0xec] sm:$0xf]
  %v87 = vld [vmem:[%s1 + $0xf0] sm:$0xf]
  %v88 = vld [vmem:[%s1 + $0xf4] sm:$0xf]
  %v89 = vld [vmem:[%s1 + $0xf8] sm:$0xf]
  %v90 = vld [vmem:[%s1 + $0xfc] sm:$0xf]
  %v91 = vld [vmem:[%s1 + $0x100] sm:$0xf]
  %v92 = vld [vmem:[%s1 + $0x104] sm:$0xf]
  %v93 = vld [vmem:[%s1 + $0x108] sm:$0xf]
  %v94 = vld [vmem:[%s1 + $0x10c] sm:$0xf]
  %v95 = vld [vmem:[%s1 + $0x110] sm:$0xf]
  %v96 = vld [vmem:[%s1 + $0x114] sm:$0xf]
  %v97 = vld [vmem:[%s1 + $0x118] sm:$0xf]
  %v98 = vld [vmem:[%s1 + $0x11c] sm:$0xf]
  %v111 = vunpack.c.l.b16 %v15
  %v112 = vunpack.c.h.b16 %v15
  %v113 = vunpack.c.l.b16 %v16
  %v114 = vunpack.c.h.b16 %v16
  %v115 = vunpack.c.l.b16 %v17
  %v116 = vunpack.c.l.b16 %v18
  %v117 = vunpack.c.h.b16 %v18
  %v118 = vunpack.c.l.b16 %v19
  %v119 = vunpack.c.h.b16 %v19
  %v120 = vunpack.c.l.b16 %v20
  %v121 = vunpack.c.l.b16 %v21
  %v122 = vunpack.c.h.b16 %v21
  %v123 = vunpack.c.l.b16 %v22
  %v124 = vunpack.c.h.b16 %v22
  %v125 = vunpack.c.l.b16 %v23
  %v126 = vunpack.c.l.b16 %v24
  %v127 = vunpack.c.h.b16 %v24
  %v128 = vunpack.c.l.b16 %v25
  %v129 = vunpack.c.h.b16 %v25
  %v130 = vunpack.c.l.b16 %v26
  %v131 = vpack.c.b16 %v116, %v111
  %v132 = vpack.c.b16 %v117, %v112
  %v133 = vpack.c.b16 %v118, %v113
  %v134 = vpack.c.b16 %v119, %v114
  %v135 = vpack.c.b16 %v120, %v115
  %v136 = vpack.c.b16 %v126, %v121
  %v137 = vpack.c.b16 %v127, %v122
  %v138 = vpack.c.b16 %v128, %v123
  %v139 = vpack.c.b16 %v129, %v124
  %v140 = vpack.c.b16 %v130, %v125
  %v221 = vunpack.c.l.b16 %v27
  %v222 = vunpack.c.l.b16 %v28
  %v223 = vunpack.c.l.b16 %v29
  %v224 = vunpack.c.l.b16 %v30
  %v225 = vunpack.c.l.b16 %v31
  %v226 = vunpack.c.l.b16 %v32
  %v227 = vunpack.c.l.b16 %v33
  %v228 = vunpack.c.l.b16 %v34
  %v229 = vunpack.c.l.b16 %v35
  %v230 = vunpack.c.l.b16 %v36
  %v231 = vunpack.c.l.b16 %v37
  %v232 = vunpack.c.l.b16 %v38
  %v233 = vunpack.c.l.b16 %v39
  %v234 = vunpack.c.l.b16 %v40
  %v235 = vunpack.c.l.b16 %v41
  %v236 = vunpack.c.l.b16 %v42
  %v237 = vunpack.c.l.b16 %v43
  %v238 = vunpack.c.l.b16 %v44
  %v239 = vunpack.c.l.b16 %v45
  %v240 = vunpack.c.l.b16 %v46
  %v241 = vunpack.c.l.b16 %v47
  %v242 = vunpack.c.l.b16 %v48
  %v243 = vunpack.c.l.b16 %v49
  %v244 = vunpack.c.l.b16 %v50
  %v245 = vunpack.c.l.b16 %v51
  %v246 = vunpack.c.l.b16 %v52
  %v247 = vunpack.c.l.b16 %v53
  %v248 = vunpack.c.l.b16 %v54
  %v249 = vunpack.c.l.b16 %v55
  %v250 = vunpack.c.l.b16 %v56
  %v251 = vunpack.c.l.b16 %v57
  %v252 = vunpack.c.l.b16 %v58
  %v253 = vunpack.c.l.b16 %v59
  %v254 = vunpack.c.l.b16 %v60
  %v255 = vunpack.c.l.b16 %v61
  %v256 = vunpack.c.l.b16 %v62
  %v257 = vunpack.c.l.b16 %v63
  %v258 = vunpack.c.l.b16 %v64
  %v259 = vunpack.c.l.b16 %v65
  %v260 = vunpack.c.l.b16 %v66
  %v261 = vunpack.c.l.b16 %v67
  %v262 = vunpack.c.l.b16 %v68
  %v263 = vunpack.c.l.b16 %v69
  %v264 = vunpack.c.l.b16 %v70
  %v265 = vunpack.c.l.b16 %v71
  %v266 = vunpack.c.l.b16 %v72
  %v267 = vunpack.c.l.b16 %v73
  %v268 = vunpack.c.l.b16 %v74
  %v269 = vunpack.c.l.b16 %v75
  %v270 = vunpack.c.l.b16 %v76
  %v271 = vunpack.c.l.b16 %v77
  %v272 = vunpack.c.l.b16 %v78
  %v273 = vunpack.c.l.b16 %v79
  %v274 = vunpack.c.l.b16 %v80
  %v275 = vunpack.c.l.b16 %v81
  %v276 = vunpack.c.l.b16 %v82
  %v277 = vunpack.c.l.b16 %v83
  %v278 = vunpack.c.l.b16 %v84
  %v279 = vunpack.c.l.b16 %v85
  %v280 = vunpack.c.l.b16 %v86
  %v281 = vunpack.c.l.b16 %v87
  %v282 = vunpack.c.l.b16 %v88
  %v283 = vunpack.c.l.b16 %v89
  %v284 = vunpack.c.l.b16 %v90
  %v285 = vunpack.c.l.b16 %v91
  %v286 = vunpack.c.l.b16 %v92
  %v287 = vunpack.c.l.b16 %v93
  %v288 = vunpack.c.l.b16 %v94
  %v289 = vunpack.c.l.b16 %v95
  %v290 = vunpack.c.l.b16 %v96
  %v291 = vunpack.c.l.b16 %v97
  %v292 = vunpack.c.l.b16 %v98
  %v293 = vpack.c.b16 %v222, %v221
  %v294 = vpack.c.b16 %v224, %v223
  %v295 = vpack.c.b16 %v226, %v225
  %v296 = vpack.c.b16 %v228, %v227
  %v297 = vpack.c.b16 %v230, %v229
  %v298 = vpack.c.b16 %v232, %v231
  %v299 = vpack.c.b16 %v234, %v233
  %v300 = vpack.c.b16 %v236, %v235
  %v301 = vpack.c.b16 %v238, %v237
  %v302 = vpack.c.b16 %v240, %v239
  %v303 = vpack.c.b16 %v242, %v241
  %v304 = vpack.c.b16 %v244, %v243
  %v305 = vpack.c.b16 %v246, %v245
  %v306 = vpack.c.b16 %v248, %v247
  %v307 = vpack.c.b16 %v250, %v249
  %v308 = vpack.c.b16 %v252, %v251
  %v309 = vpack.c.b16 %v254, %v253
  %v310 = vpack.c.b16 %v256, %v255
  %v311 = vpack.c.b16 %v258, %v257
  %v312 = vpack.c.b16 %v260, %v259
  %v313 = vpack.c.b16 %v262, %v261
  %v314 = vpack.c.b16 %v264, %v263
  %v315 = vpack.c.b16 %v266, %v265
  %v316 = vpack.c.b16 %v268, %v267
  %v317 = vpack.c.b16 %v270, %v269
  %v318 = vpack.c.b16 %v272, %v271
  %v319 = vpack.c.b16 %v274, %v273
  %v320 = vpack.c.b16 %v276, %v275
  %v321 = vpack.c.b16 %v278, %v277
  %v322 = vpack.c.b16 %v280, %v279
  %v323 = vpack.c.b16 %v282, %v281
  %v324 = vpack.c.b16 %v284, %v283
  %v325 = vpack.c.b16 %v286, %v285
  %v326 = vpack.c.b16 %v288, %v287
  %v327 = vpack.c.b16 %v290, %v289
  %v328 = vpack.c.b16 %v292, %v291
  %vm365 = vcmask 523264
  %v367 = vsel %vm365, %v135, 0
  %v370 = vsel %vm365, %v140, 0
  %372 = vmatpush.bf16.msra.mxu0 %v300
  %373 = vmatpush.bf16.msra.mxu0 %v299
  %374 = vmatpush.bf16.msra.mxu0 %v298
  %375 = vmatpush.bf16.msra.mxu0 %v297
  %376 = vmatpush.bf16.msra.mxu0 %v296
  %377 = vmatpush.bf16.msra.mxu0 %v295
  %378 = vmatpush.bf16.msra.mxu0 %v294
  %379 = vmatpush.bf16.msra.mxu0 %v293
  %380 = vmatmul.bf16.gmra.mxu0 %v131
  %v381 = vpop.f32.mrf.mxu0
  %v382 = vadd.f32 0.0, %v381
  %v383 = vpop.f32.mrf.mxu0
  %v384 = vadd.f32 0.0, %v383
  %385 = vmatmul.bf16.gmra.mxu0 %v136
  %v386 = vpop.f32.mrf.mxu0
  %v387 = vadd.f32 0.0, %v386
  %v388 = vpop.f32.mrf.mxu0
  %v389 = vadd.f32 0.0, %v388
  %390 = vdwg.mxu0
  %391 = vmatpush.bf16.msra.mxu0 %v308
  %392 = vmatpush.bf16.msra.mxu0 %v307
  %393 = vmatpush.bf16.msra.mxu0 %v306
  %394 = vmatpush.bf16.msra.mxu0 %v305
  %395 = vmatpush.bf16.msra.mxu0 %v304
  %396 = vmatpush.bf16.msra.mxu0 %v303
  %397 = vmatpush.bf16.msra.mxu0 %v302
  %398 = vmatpush.bf16.msra.mxu0 %v301
  %399 = vmatmul.bf16.gmra.mxu0 %v132
  %v400 = vpop.f32.mrf.mxu0
  %v401 = vadd.f32 %v382, %v400
  %v402 = vpop.f32.mrf.mxu0
  %v403 = vadd.f32 %v384, %v402
  %404 = vmatmul.bf16.gmra.mxu0 %v137
  %v405 = vpop.f32.mrf.mxu0
  %v406 = vadd.f32 %v387, %v405
  %v407 = vpop.f32.mrf.mxu0
  %v408 = vadd.f32 %v389, %v407
  %409 = vdwg.mxu0
  %410 = vmatpush.bf16.msra.mxu0 %v316
  %411 = vmatpush.bf16.msra.mxu0 %v315
  %412 = vmatpush.bf16.msra.mxu0 %v314
  %413 = vmatpush.bf16.msra.mxu0 %v313
  %414 = vmatpush.bf16.msra.mxu0 %v312
  %415 = vmatpush.bf16.msra.mxu0 %v311
  %416 = vmatpush.bf16.msra.mxu0 %v310
  %417 = vmatpush.bf16.msra.mxu0 %v309
  %418 = vmatmul.bf16.gmra.mxu0 %v133
  %v419 = vpop.f32.mrf.mxu0
  %v420 = vadd.f32 %v401, %v419
  %v421 = vpop.f32.mrf.mxu0
  %v422 = vadd.f32 %v403, %v421
  %423 = vmatmul.bf16.gmra.mxu0 %v138
  %v424 = vpop.f32.mrf.mxu0
  %v425 = vadd.f32 %v406, %v424
  %v426 = vpop.f32.mrf.mxu0
  %v427 = vadd.f32 %v408, %v426
  %428 = vdwg.mxu0
  %429 = vmatpush.bf16.msra.mxu0 %v324
  %430 = vmatpush.bf16.msra.mxu0 %v323
  %431 = vmatpush.bf16.msra.mxu0 %v322
  %432 = vmatpush.bf16.msra.mxu0 %v321
  %433 = vmatpush.bf16.msra.mxu0 %v320
  %434 = vmatpush.bf16.msra.mxu0 %v319
  %435 = vmatpush.bf16.msra.mxu0 %v318
  %436 = vmatpush.bf16.msra.mxu0 %v317
  %437 = vmatmul.bf16.gmra.mxu0 %v134
  %v438 = vpop.f32.mrf.mxu0
  %v439 = vadd.f32 %v420, %v438
  %v440 = vpop.f32.mrf.mxu0
  %v441 = vadd.f32 %v422, %v440
  %442 = vmatmul.bf16.gmra.mxu0 %v139
  %v443 = vpop.f32.mrf.mxu0
  %v444 = vadd.f32 %v425, %v443
  %v445 = vpop.f32.mrf.mxu0
  %v446 = vadd.f32 %v427, %v445
  %447 = vdwg.mxu0
  %448 = vmatpush.bf16.msra.mxu0 0
  %449 = vmatpush.bf16.msra.mxu0 0
  %450 = vmatpush.bf16.msra.mxu0 0
  %451 = vmatpush.bf16.msra.mxu0 0
  %452 = vmatpush.bf16.msra.mxu0 %v328
  %453 = vmatpush.bf16.msra.mxu0 %v327
  %454 = vmatpush.bf16.msra.mxu0 %v326
  %455 = vmatpush.bf16.msra.mxu0 %v325
  %456 = vmatmul.bf16.gmra.mxu0 %v367
  %v457 = vpop.f32.mrf.mxu0
  %v458 = vadd.f32 %v439, %v457
  %v459 = vpop.f32.mrf.mxu0
  %v460 = vadd.f32 %v441, %v459
  %461 = vmatmul.bf16.gmra.mxu0 %v370
  %v462 = vpop.f32.mrf.mxu0
  %v463 = vadd.f32 %v444, %v462
  %v464 = vpop.f32.mrf.mxu0
  %v465 = vadd.f32 %v446, %v464
  %466 = vdwg.mxu0
  %v467 = vpack.c.bf16 %v458, %v458
  %v468 = vpack.c.bf16 %v460, %v460
  %v469 = vpack.c.bf16 %v463, %v463
  %v470 = vpack.c.bf16 %v465, %v465
  %vm471 = vcmask 519168
  %472 = vst.msk [vmem:[%s2] sm:$0xf] %vm471, %v467
  %473 = vst.msk [vmem:[%s2 + $0x4] sm:$0xf] %vm471, %v468
  %474 = vst.msk [vmem:[%s2 + $0x8] sm:$0xf] %vm471, %v469
  %475 = vst.msk [vmem:[%s2 + $0xc] sm:$0xf] %vm471, %v470
  %v476 = vsel %vm365, %v458, 0.0
  %v477 = vsel %vm365, %v460, 0.0
  %v478 = vadd.f32 %v476, %v477
  %v479 = vsel %vm365, %v463, 0.0
  %v480 = vadd.f32 %v478, %v479
  %v481 = vsel %vm365, %v465, 0.0
  %v482 = vadd.f32 %v480, %v481
  %v483 = vrot.slane %v482, 4
  %v484 = vadd.f32 %v482, %v483
  %v485 = vrot.slane %v484, 2
  %v486 = vadd.f32 %v484, %v485
  %v487 = vrot.slane %v486, 1
  %v488 = vadd.f32 %v486, %v487
  %v489 = vmul.f32 %v458, %v458
  %v490 = vmul.f32 %v460, %v460
  %v491 = vmul.f32 %v463, %v463
  %v492 = vmul.f32 %v465, %v465
  %v493 = vsel %vm365, %v489, 0.0
  %v494 = vsel %vm365, %v490, 0.0
  %v495 = vadd.f32 %v493, %v494
  %v496 = vsel %vm365, %v491, 0.0
  %v497 = vadd.f32 %v495, %v496
  %v498 = vsel %vm365, %v492, 0.0
  %v499 = vadd.f32 %v497, %v498
  %v500 = vrot.slane %v499, 4
  %v501 = vadd.f32 %v499, %v500
  %v502 = vrot.slane %v501, 2
  %v503 = vadd.f32 %v501, %v502
  %v504 = vrot.slane %v503, 1
  %v505 = vadd.f32 %v503, %v504
  %506 = vst.msk [vmem:[%s3] sm:$0xff] %vm365, %v488
  %507 = vst.msk [vmem:[%s4] sm:$0xff] %vm365, %v505
  // Predicated region
  $region10: #{_lambda_.47} parent=0 // pred_check
    _
  $region11: #{_lambda_.47} parent=0 // pred_check_branch
    %509 = sbr.rel (0) target = $region13
  $region12: #{_lambda_.47} parent=0 // pred_region
    _
  $region13: #{_lambda_.47} parent=0 // pred_fallthru
    _
  // Predicated region
  $region14: #{_lambda_.47} parent=0 // pred_check
    _
  $region15: #{_lambda_.47} parent=0 // pred_check_branch
    %511 = sbr.rel (0) target = $region17
  $region16: #{_lambda_.47} parent=0 // pred_region
    _
  $region17: #{_lambda_.47} parent=0 // pred_fallthru
    _
  // Predicated region
  $region18: #{_lambda_.47} parent=0 // pred_check
    _
  $region19: #{_lambda_.47} parent=0 // pred_check_branch
    %513 = sbr.rel (0) target = $region21
  $region20: #{_lambda_.47} parent=0 // pred_region
    _
  $region21: #{_lambda_.47} parent=0 // pred_fallthru
    _
  // Predicated region
  $region22: #{_lambda_.47} parent=0 // pred_check
    _
  $region23: #{_lambda_.47} parent=0 // pred_check_branch
    %515 = sbr.rel (0) target = $region25
  $region24: #{_lambda_.47} parent=0 // pred_region
    _
  $region25: #{_lambda_.47} parent=0 // pred_fallthru
    _
  // Predicated region
  $region26: #{_lambda_.47} parent=0 // pred_check
    _
  $region27: #{_lambda_.47} parent=0 // pred_check_branch
    %517 = sbr.rel (0) target = $region29
  $region28: #{_lambda_.47} parent=0 // pred_region
    _
  $region29: #{_lambda_.47} parent=0 // pred_fallthru
    _
  // Predicated region
  $region30: #{_lambda_.47} parent=0 // pred_check
    _
  $region31: #{_lambda_.47} parent=0 // pred_check_branch
    %519 = sbr.rel (0) target = $region33
  $region32: #{_lambda_.47} parent=0 // pred_region
    _
  $region33: #{_lambda_.47} parent=0 // pred_fallthru
    _

// kernel: _lambda_.52
$region0: #{_lambda_.52}
  #allocation0 [shape = 'u32[]', space=smem, size = 0x4, offset = 0x4, fixed_abs, tag = 'smem constant byte address 0x4 - core index']
  #allocation1 [shape = 'u32[72,128]{1,0:T(1,128)}', space=vmem, size = 0x9000, scoped, tag = 'internal scratch']
  %s0 = inlined_call_operand.vmem [shape: bf16[16,128], index: 0, kind: input, shape index: {}]
  %s1 = inlined_call_operand.vmem [shape: f32[1,128], index: 1, kind: input, shape index: {}]
  %s2 = inlined_call_operand.vmem [shape: f32[1,128], index: 2, kind: input, shape index: {}]
  %s3 = inlined_call_operand.vmem [shape: bf16[16,128], index: 3, kind: input, shape index: {}]
  %s4 = inlined_call_operand.vmem [shape: bf16[16,128], index: 4, kind: output, shape index: {}]
  %s5 = sld [smem:[#allocation0]]
  $region26: #{_lambda_.52} parent=0
    _
  %s7 = ssub.s32 1, %s5
  %s8 = scalar_select 0, %s7, %s5
  // Predicated region
  $region2: #{_lambda_.52} parent=0 // pred_check
    _
  $region3: #{_lambda_.52} parent=0 // pred_check_branch
    %10 = sbr.rel (0) target = $region5
  $region4: #{_lambda_.52} parent=0 // pred_region
    _
  $region5: #{_lambda_.52} parent=0 // pred_fallthru
    _
  // Predicated region
  $region6: #{_lambda_.52} parent=0 // pred_check
    _
  $region7: #{_lambda_.52} parent=0 // pred_check_branch
    %12 = sbr.rel (0) target = $region9
  $region8: #{_lambda_.52} parent=0 // pred_region
    _
  $region9: #{_lambda_.52} parent=0 // pred_fallthru
    _
  // Predicated region
  $region10: #{_lambda_.52} parent=0 // pred_check
    _
  $region11: #{_lambda_.52} parent=0 // pred_check_branch
    %14 = sbr.rel (0) target = $region13
  $region12: #{_lambda_.52} parent=0 // pred_region
    _
  $region13: #{_lambda_.52} parent=0 // pred_fallthru
    _
  // Predicated region
  $region14: #{_lambda_.52} parent=0 // pred_check
    _
  $region15: #{_lambda_.52} parent=0 // pred_check_branch
    %16 = sbr.rel (0) target = $region17
  $region16: #{_lambda_.52} parent=0 // pred_region
    _
  $region17: #{_lambda_.52} parent=0 // pred_fallthru
    _
  %v17 = vld [vmem:[%s0] sm:$0xf]
  %v18 = vld [vmem:[%s0 + $0x4] sm:$0xf]
  %v19 = vunpack.c.l.bf16 %v17
  %v20 = vunpack.c.l.bf16 %v18
  %v21 = vld [vmem:[%s1] sm:$0x1]
  %v23 = vperm.slane %v21, 0
  %v25 = vmul.f32 %v19, %v23
  %v26 = vmul.f32 %v20, %v23
  %v27 = vld [vmem:[%s2] sm:$0x1]
  %v29 = vperm.slane %v27, 0
  %v31 = vadd.f32 %v25, %v29
  %v32 = vadd.f32 %v26, %v29
  %v33 = vld [vmem:[%s3] sm:$0xf]
  %v34 = vld [vmem:[%s3 + $0x4] sm:$0xf]
  %v35 = vunpack.c.l.bf16 %v33
  %v36 = vunpack.c.l.bf16 %v34
  %v37 = vadd.f32 %v31, %v35
  %v38 = vadd.f32 %v32, %v36
  %v39 = vpack.c.bf16 %v37, %v37
  %v40 = vpack.c.bf16 %v38, %v38
  %41 = vst [vmem:[%s4] sm:$0xf] %v39
  %42 = vst [vmem:[%s4 + $0x4] sm:$0xf] %v40
  // Predicated region
  $region18: #{_lambda_.52} parent=0 // pred_check
    _
  $region19: #{_lambda_.52} parent=0 // pred_check_branch
    %44 = sbr.rel (0) target = $region21
  $region20: #{_lambda_.52} parent=0 // pred_region
    _
  $region21: #{_lambda_.52} parent=0 // pred_fallthru
    _
  // Predicated region
  $region22: #{_lambda_.52} parent=0 // pred_check
    _
  $region23: #{_lambda_.52} parent=0 // pred_check_branch
    %46 = sbr.rel (0) target = $region25
  $region24: #{_lambda_.52} parent=0 // pred_region
    _
  $region25: #{_lambda_.52} parent=0 // pred_fallthru
    _

// kernel: tile.407
$region0: #{tile.407}
  #allocation0 [shape = 's32[1]{0}', space=sflag, size = 0x4, scoped, tag = 'scoped memory for tile.407']
  %s0 = inlined_call_operand.vmem [shape: f32[64], index: 0, kind: input, shape index: {}]
  %s1 = inlined_call_operand.vmem [shape: f32[4,64], index: 1, kind: output, shape index: {}]
  // Predicated region
  $region2: #{tile.407} parent=0 // pred_check
    _
  $region3: #{tile.407} parent=0 // pred_check_branch
    %3 = sbr.rel (0) target = $region5
  $region4: #{tile.407} parent=0 // pred_region
    _
  $region5: #{tile.407} parent=0 // pred_fallthru
    _
  %v4 = vld [vmem:[%s0] ss:$0 sm:$0xff]
  %5 = vst [vmem:[%s1] sm:$0xf] %v4

// kernel: tile.409
$region0: #{tile.409}
  %s0 = inlined_call_operand.vmem [shape: f32[4,64], index: 0, kind: input, shape index: {}]
  %s1 = inlined_call_operand.vmem [shape: f32[1,256], index: 1, kind: output, shape index: {}]
  $region1: #{tile.409} parent=0
    #allocation0 [shape = 'u8[8192]{0}', space=vmem, size = 0x2000, scoped, tag = 'scoped mem for output reshape']
    #allocation1 [shape = 'u8[4096]{0}', space=vmem, size = 0x1000, scoped, tag = 'scoped mem for input reshape']
    %s3 = ssub.s32 16, 1
    %v4 = vld [vmem:[%s0] sm:%s3]
    %5 = vst [vmem:[#allocation1] sm:%s3] %v4
    %s6 = smov 3
    %v7 = vld [vmem:[#allocation1] ss:$2 sm:%s6]
    %vm8 = vcmask 523264
    %9 = vst.msk [vmem:[#allocation0] ss:$8 sm:$0x3] %vm8, %v7
    %s10 = scalar_lea.vmem [#allocation1], 1
    %s11 = smov 3
    %v12 = vld [vmem:[%s10] ss:$2 sm:%s11]
    %13 = vrot.lane.b32.xlu0 %v12, 64
    %v14 = vpop.permute.xlu0 %13
    %vm15 = vcmask 1048064
    %16 = vst.msk [vmem:[#allocation0] ss:$8 sm:$0x3] %vm15, %v14
    %s18 = ssub.s32 2, 1
    %v19 = vld [vmem:[#allocation0] sm:%s18]
    %s21 = ssub.s32 2, 1
    %22 = vst [vmem:[%s1] sm:%s21] %v19
    %s23 = scalar_lea.vmem [#allocation0], 8
    %v24 = vld [vmem:[%s23] sm:%s18]
    %s26 = ssub.s32 2, 1
    %s27 = scalar_lea.vmem %s1, 1
    %28 = vst [vmem:[%s27] sm:%s26] %v24

// kernel: _lambda_.81
$region0: #{_lambda_.81}
  #allocation0 [shape = 'u32[]', space=smem, size = 0x4, offset = 0x4, fixed_abs, tag = 'smem constant byte address 0x4 - core index']
  #allocation1 [shape = 'u32[72,128]{1,0:T(1,128)}', space=vmem, size = 0x9000, scoped, tag = 'internal scratch']
  %s0 = inlined_call_operand.vmem [shape: bf16[32,256], index: 0, kind: input, shape index: {}]
  %s1 = inlined_call_operand.vmem [shape: bf16[256,256], index: 1, kind: input, shape index: {}]
  %s2 = inlined_call_operand.vmem [shape: bf16[32,256], index: 2, kind: output, shape index: {0}]
  %s3 = inlined_call_operand.vmem [shape: f32[1,8,256], index: 3, kind: output, shape index: {1}]
  %s4 = inlined_call_operand.vmem [shape: f32[1,8,256], index: 4, kind: output, shape index: {2}]
  %5 = xla_tuple %s2, %s3, %s4
  %s6 = sld [smem:[#allocation0]]
  $region34: #{_lambda_.81} parent=0
    _
  %s8 = ssub.s32 1, %s6
  %s9 = scalar_select 0, %s8, %s6
  // Predicated region
  $region2: #{_lambda_.81} parent=0 // pred_check
    _
  $region3: #{_lambda_.81} parent=0 // pred_check_branch
    %11 = sbr.rel (0) target = $region5
  $region4: #{_lambda_.81} parent=0 // pred_region
    _
  $region5: #{_lambda_.81} parent=0 // pred_fallthru
    _
  // Predicated region
  $region6: #{_lambda_.81} parent=0 // pred_check
    _
  $region7: #{_lambda_.81} parent=0 // pred_check_branch
    %13 = sbr.rel (0) target = $region9
  $region8: #{_lambda_.81} parent=0 // pred_region
    _
  $region9: #{_lambda_.81} parent=0 // pred_fallthru
    _
  %v14 = vld [vmem:[%s0] sm:$0xff]
  %v15 = vld [vmem:[%s0 + $0x8] sm:$0xff]
  %v16 = vld [vmem:[%s0 + $0x10] sm:$0xff]
  %v17 = vld [vmem:[%s0 + $0x18] sm:$0xff]
  %v18 = vld [vmem:[%s1] sm:$0xff]
  %v19 = vld [vmem:[%s1 + $0x8] sm:$0xff]
  %v20 = vld [vmem:[%s1 + $0x10] sm:$0xff]
  %v21 = vld [vmem:[%s1 + $0x18] sm:$0xff]
  %v22 = vld [vmem:[%s1 + $0x20] sm:$0xff]
  %v23 = vld [vmem:[%s1 + $0x28] sm:$0xff]
  %v24 = vld [vmem:[%s1 + $0x30] sm:$0xff]
  %v25 = vld [vmem:[%s1 + $0x38] sm:$0xff]
  %v26 = vld [vmem:[%s1 + $0x40] sm:$0xff]
  %v27 = vld [vmem:[%s1 + $0x48] sm:$0xff]
  %v28 = vld [vmem:[%s1 + $0x50] sm:$0xff]
  %v29 = vld [vmem:[%s1 + $0x58] sm:$0xff]
  %v30 = vld [vmem:[%s1 + $0x60] sm:$0xff]
  %v31 = vld [vmem:[%s1 + $0x68] sm:$0xff]
  %v32 = vld [vmem:[%s1 + $0x70] sm:$0xff]
  %v33 = vld [vmem:[%s1 + $0x78] sm:$0xff]
  %v34 = vld [vmem:[%s1 + $0x80] sm:$0xff]
  %v35 = vld [vmem:[%s1 + $0x88] sm:$0xff]
  %v36 = vld [vmem:[%s1 + $0x90] sm:$0xff]
  %v37 = vld [vmem:[%s1 + $0x98] sm:$0xff]
  %v38 = vld [vmem:[%s1 + $0xa0] sm:$0xff]
  %v39 = vld [vmem:[%s1 + $0xa8] sm:$0xff]
  %v40 = vld [vmem:[%s1 + $0xb0] sm:$0xff]
  %v41 = vld [vmem:[%s1 + $0xb8] sm:$0xff]
  %v42 = vld [vmem:[%s1 + $0xc0] sm:$0xff]
  %v43 = vld [vmem:[%s1 + $0xc8] sm:$0xff]
  %v44 = vld [vmem:[%s1 + $0xd0] sm:$0xff]
  %v45 = vld [vmem:[%s1 + $0xd8] sm:$0xff]
  %v46 = vld [vmem:[%s1 + $0xe0] sm:$0xff]
  %v47 = vld [vmem:[%s1 + $0xe8] sm:$0xff]
  %v48 = vld [vmem:[%s1 + $0xf0] sm:$0xff]
  %v49 = vld [vmem:[%s1 + $0xf8] sm:$0xff]
  %v54 = vunpack.c.l.b16 %v14
  %v55 = vunpack.c.h.b16 %v14
  %v56 = vunpack.c.l.b16 %v15
  %v57 = vunpack.c.h.b16 %v15
  %v58 = vunpack.c.l.b16 %v16
  %v59 = vunpack.c.h.b16 %v16
  %v60 = vunpack.c.l.b16 %v17
  %v61 = vunpack.c.h.b16 %v17
  %v62 = vpack.c.b16 %v56, %v54
  %v63 = vpack.c.b16 %v57, %v55
  %v64 = vpack.c.b16 %v60, %v58
  %v65 = vpack.c.b16 %v61, %v59
  %v102 = vunpack.c.l.b16 %v18
  %v103 = vunpack.c.h.b16 %v18
  %v104 = vunpack.c.l.b16 %v19
  %v105 = vunpack.c.h.b16 %v19
  %v106 = vunpack.c.l.b16 %v20
  %v107 = vunpack.c.h.b16 %v20
  %v108 = vunpack.c.l.b16 %v21
  %v109 = vunpack.c.h.b16 %v21
  %v110 = vunpack.c.l.b16 %v22
  %v111 = vunpack.c.h.b16 %v22
  %v112 = vunpack.c.l.b16 %v23
  %v113 = vunpack.c.h.b16 %v23
  %v114 = vunpack.c.l.b16 %v24
  %v115 = vunpack.c.h.b16 %v24
  %v116 = vunpack.c.l.b16 %v25
  %v117 = vunpack.c.h.b16 %v25
  %v118 = vunpack.c.l.b16 %v26
  %v119 = vunpack.c.h.b16 %v26
  %v120 = vunpack.c.l.b16 %v27
  %v121 = vunpack.c.h.b16 %v27
  %v122 = vunpack.c.l.b16 %v28
  %v123 = vunpack.c.h.b16 %v28
  %v124 = vunpack.c.l.b16 %v29
  %v125 = vunpack.c.h.b16 %v29
  %v126 = vunpack.c.l.b16 %v30
  %v127 = vunpack.c.h.b16 %v30
  %v128 = vunpack.c.l.b16 %v31
  %v129 = vunpack.c.h.b16 %v31
  %v130 = vunpack.c.l.b16 %v32
  %v131 = vunpack.c.h.b16 %v32
  %v132 = vunpack.c.l.b16 %v33
  %v133 = vunpack.c.h.b16 %v33
  %v134 = vunpack.c.l.b16 %v34
  %v135 = vunpack.c.h.b16 %v34
  %v136 = vunpack.c.l.b16 %v35
  %v137 = vunpack.c.h.b16 %v35
  %v138 = vunpack.c.l.b16 %v36
  %v139 = vunpack.c.h.b16 %v36
  %v140 = vunpack.c.l.b16 %v37
  %v141 = vunpack.c.h.b16 %v37
  %v142 = vunpack.c.l.b16 %v38
  %v143 = vunpack.c.h.b16 %v38
  %v144 = vunpack.c.l.b16 %v39
  %v145 = vunpack.c.h.b16 %v39
  %v146 = vunpack.c.l.b16 %v40
  %v147 = vunpack.c.h.b16 %v40
  %v148 = vunpack.c.l.b16 %v41
  %v149 = vunpack.c.h.b16 %v41
  %v150 = vunpack.c.l.b16 %v42
  %v151 = vunpack.c.h.b16 %v42
  %v152 = vunpack.c.l.b16 %v43
  %v153 = vunpack.c.h.b16 %v43
  %v154 = vunpack.c.l.b16 %v44
  %v155 = vunpack.c.h.b16 %v44
  %v156 = vunpack.c.l.b16 %v45
  %v157 = vunpack.c.h.b16 %v45
  %v158 = vunpack.c.l.b16 %v46
  %v159 = vunpack.c.h.b16 %v46
  %v160 = vunpack.c.l.b16 %v47
  %v161 = vunpack.c.h.b16 %v47
  %v162 = vunpack.c.l.b16 %v48
  %v163 = vunpack.c.h.b16 %v48
  %v164 = vunpack.c.l.b16 %v49
  %v165 = vunpack.c.h.b16 %v49
  %v166 = vpack.c.b16 %v104, %v102
  %v167 = vpack.c.b16 %v105, %v103
  %v168 = vpack.c.b16 %v108, %v106
  %v169 = vpack.c.b16 %v109, %v107
  %v170 = vpack.c.b16 %v112, %v110
  %v171 = vpack.c.b16 %v113, %v111
  %v172 = vpack.c.b16 %v116, %v114
  %v173 = vpack.c.b16 %v117, %v115
  %v174 = vpack.c.b16 %v120, %v118
  %v175 = vpack.c.b16 %v121, %v119
  %v176 = vpack.c.b16 %v124, %v122
  %v177 = vpack.c.b16 %v125, %v123
  %v178 = vpack.c.b16 %v128, %v126
  %v179 = vpack.c.b16 %v129, %v127
  %v180 = vpack.c.b16 %v132, %v130
  %v181 = vpack.c.b16 %v133, %v131
  %v182 = vpack.c.b16 %v136, %v134
  %v183 = vpack.c.b16 %v137, %v135
  %v184 = vpack.c.b16 %v140, %v138
  %v185 = vpack.c.b16 %v141, %v139
  %v186 = vpack.c.b16 %v144, %v142
  %v187 = vpack.c.b16 %v145, %v143
  %v188 = vpack.c.b16 %v148, %v146
  %v189 = vpack.c.b16 %v149, %v147
  %v190 = vpack.c.b16 %v152, %v150
  %v191 = vpack.c.b16 %v153, %v151
  %v192 = vpack.c.b16 %v156, %v154
  %v193 = vpack.c.b16 %v157, %v155
  %v194 = vpack.c.b16 %v160, %v158
  %v195 = vpack.c.b16 %v161, %v159
  %v196 = vpack.c.b16 %v164, %v162
  %v197 = vpack.c.b16 %v165, %v163
  %230 = vmatpush.bf16.msra.mxu0 %v180
  %231 = vmatpush.bf16.msra.mxu0 %v178
  %232 = vmatpush.bf16.msra.mxu0 %v176
  %233 = vmatpush.bf16.msra.mxu0 %v174
  %234 = vmatpush.bf16.msra.mxu0 %v172
  %235 = vmatpush.bf16.msra.mxu0 %v170
  %236 = vmatpush.bf16.msra.mxu0 %v168
  %237 = vmatpush.bf16.msra.mxu0 %v166
  %238 = vmatmul.bf16.gmra.mxu0 %v62
  %v239 = vpop.f32.mrf.mxu0
  %v240 = vadd.f32 0.0, %v239
  %v241 = vpop.f32.mrf.mxu0
  %v242 = vadd.f32 0.0, %v241
  %243 = vmatmul.bf16.gmra.mxu0 %v64
  %v244 = vpop.f32.mrf.mxu0
  %v245 = vadd.f32 0.0, %v244
  %v246 = vpop.f32.mrf.mxu0
  %v247 = vadd.f32 0.0, %v246
  %248 = vdwg.mxu0
  %249 = vmatpush.bf16.msra.mxu0 %v196
  %250 = vmatpush.bf16.msra.mxu0 %v194
  %251 = vmatpush.bf16.msra.mxu0 %v192
  %252 = vmatpush.bf16.msra.mxu0 %v190
  %253 = vmatpush.bf16.msra.mxu0 %v188
  %254 = vmatpush.bf16.msra.mxu0 %v186
  %255 = vmatpush.bf16.msra.mxu0 %v184
  %256 = vmatpush.bf16.msra.mxu0 %v182
  %257 = vmatmul.bf16.gmra.mxu0 %v63
  %v258 = vpop.f32.mrf.mxu0
  %v259 = vadd.f32 %v240, %v258
  %v260 = vpop.f32.mrf.mxu0
  %v261 = vadd.f32 %v242, %v260
  %262 = vmatmul.bf16.gmra.mxu0 %v65
  %v263 = vpop.f32.mrf.mxu0
  %v264 = vadd.f32 %v245, %v263
  %v265 = vpop.f32.mrf.mxu0
  %v266 = vadd.f32 %v247, %v265
  %267 = vdwg.mxu0
  %268 = vmatpush.bf16.msra.mxu0 %v181
  %269 = vmatpush.bf16.msra.mxu0 %v179
  %270 = vmatpush.bf16.msra.mxu0 %v177
  %271 = vmatpush.bf16.msra.mxu0 %v175
  %272 = vmatpush.bf16.msra.mxu0 %v173
  %273 = vmatpush.bf16.msra.mxu0 %v171
  %274 = vmatpush.bf16.msra.mxu0 %v169
  %275 = vmatpush.bf16.msra.mxu0 %v167
  %276 = vmatmul.bf16.gmra.mxu0 %v62
  %v277 = vpop.f32.mrf.mxu0
  %v278 = vadd.f32 0.0, %v277
  %v279 = vpop.f32.mrf.mxu0
  %v280 = vadd.f32 0.0, %v279
  %281 = vmatmul.bf16.gmra.mxu0 %v64
  %v282 = vpop.f32.mrf.mxu0
  %v283 = vadd.f32 0.0, %v282
  %v284 = vpop.f32.mrf.mxu0
  %v285 = vadd.f32 0.0, %v284
  %286 = vdwg.mxu0
  %287 = vmatpush.bf16.msra.mxu0 %v197
  %288 = vmatpush.bf16.msra.mxu0 %v195
  %289 = vmatpush.bf16.msra.mxu0 %v193
  %290 = vmatpush.bf16.msra.mxu0 %v191
  %291 = vmatpush.bf16.msra.mxu0 %v189
  %292 = vmatpush.bf16.msra.mxu0 %v187
  %293 = vmatpush.bf16.msra.mxu0 %v185
  %294 = vmatpush.bf16.msra.mxu0 %v183
  %295 = vmatmul.bf16.gmra.mxu0 %v63
  %v296 = vpop.f32.mrf.mxu0
  %v297 = vadd.f32 %v278, %v296
  %v298 = vpop.f32.mrf.mxu0
  %v299 = vadd.f32 %v280, %v298
  %300 = vmatmul.bf16.gmra.mxu0 %v65
  %v301 = vpop.f32.mrf.mxu0
  %v302 = vadd.f32 %v283, %v301
  %v303 = vpop.f32.mrf.mxu0
  %v304 = vadd.f32 %v285, %v303
  %305 = vdwg.mxu0
  %v306 = vpack.c.bf16 %v297, %v259
  %v307 = vpack.c.bf16 %v299, %v261
  %v308 = vpack.c.bf16 %v302, %v264
  %v309 = vpack.c.bf16 %v304, %v266
  %310 = vst [vmem:[%s2] sm:$0xff] %v306
  %311 = vst [vmem:[%s2 + $0x8] sm:$0xff] %v307
  %312 = vst [vmem:[%s2 + $0x10] sm:$0xff] %v308
  %313 = vst [vmem:[%s2 + $0x18] sm:$0xff] %v309
  %v314 = vadd.f32 %v259, %v261
  %v315 = vadd.f32 %v314, %v264
  %v316 = vadd.f32 %v315, %v266
  %v317 = vrot.slane %v316, 4
  %v318 = vadd.f32 %v316, %v317
  %v319 = vrot.slane %v318, 2
  %v320 = vadd.f32 %v318, %v319
  %v321 = vrot.slane %v320, 1
  %v322 = vadd.f32 %v320, %v321
  %v323 = vadd.f32 %v297, %v299
  %v324 = vadd.f32 %v323, %v302
  %v325 = vadd.f32 %v324, %v304
  %v326 = vrot.slane %v325, 4
  %v327 = vadd.f32 %v325, %v326
  %v328 = vrot.slane %v327, 2
  %v329 = vadd.f32 %v327, %v328
  %v330 = vrot.slane %v329, 1
  %v331 = vadd.f32 %v329, %v330
  %v332 = vmul.f32 %v259, %v259
  %v333 = vmul.f32 %v297, %v297
  %v334 = vmul.f32 %v261, %v261
  %v335 = vmul.f32 %v299, %v299
  %v336 = vmul.f32 %v264, %v264
  %v337 = vmul.f32 %v302, %v302
  %v338 = vmul.f32 %v266, %v266
  %v339 = vmul.f32 %v304, %v304
  %v340 = vadd.f32 %v332, %v334
  %v341 = vadd.f32 %v340, %v336
  %v342 = vadd.f32 %v341, %v338
  %v343 = vrot.slane %v342, 4
  %v344 = vadd.f32 %v342, %v343
  %v345 = vrot.slane %v344, 2
  %v346 = vadd.f32 %v344, %v345
  %v347 = vrot.slane %v346, 1
  %v348 = vadd.f32 %v346, %v347
  %v349 = vadd.f32 %v333, %v335
  %v350 = vadd.f32 %v349, %v337
  %v351 = vadd.f32 %v350, %v339
  %v352 = vrot.slane %v351, 4
  %v353 = vadd.f32 %v351, %v352
  %v354 = vrot.slane %v353, 2
  %v355 = vadd.f32 %v353, %v354
  %v356 = vrot.slane %v355, 1
  %v357 = vadd.f32 %v355, %v356
  %358 = vst [vmem:[%s3] sm:$0xff] %v322
  %359 = vst [vmem:[%s3 + $0x8] sm:$0xff] %v331
  %360 = vst [vmem:[%s4] sm:$0xff] %v348
  %361 = vst [vmem:[%s4 + $0x8] sm:$0xff] %v357
  // Predicated region
  $region10: #{_lambda_.81} parent=0 // pred_check
    _
  $region11: #{_lambda_.81} parent=0 // pred_check_branch
    %363 = sbr.rel (0) target = $region13
  $region12: #{_lambda_.81} parent=0 // pred_region
    _
  $region13: #{_lambda_.81} parent=0 // pred_fallthru
    _
  // Predicated region
  $region14: #{_lambda_.81} parent=0 // pred_check
    _
  $region15: #{_lambda_.81} parent=0 // pred_check_branch
    %365 = sbr.rel (0) target = $region17
  $region16: #{_lambda_.81} parent=0 // pred_region
    _
  $region17: #{_lambda_.81} parent=0 // pred_fallthru
    _
  // Predicated region
  $region18: #{_lambda_.81} parent=0 // pred_check
    _
  $region19: #{_lambda_.81} parent=0 // pred_check_branch
    %367 = sbr.rel (0) target = $region21
  $region20: #{_lambda_.81} parent=0 // pred_region
    _
  $region21: #{_lambda_.81} parent=0 // pred_fallthru
    _
  // Predicated region
  $region22: #{_lambda_.81} parent=0 // pred_check
    _
  $region23: #{_lambda_.81} parent=0 // pred_check_branch
    %369 = sbr.rel (0) target = $region25
  $region24: #{_lambda_.81} parent=0 // pred_region
    _
  $region25: #{_lambda_.81} parent=0 // pred_fallthru
    _
  // Predicated region
  $region26: #{_lambda_.81} parent=0 // pred_check
    _
  $region27: #{_lambda_.81} parent=0 // pred_check_branch
    %371 = sbr.rel (0) target = $region29
  $region28: #{_lambda_.81} parent=0 // pred_region
    _
  $region29: #{_lambda_.81} parent=0 // pred_fallthru
    _
  // Predicated region
  $region30: #{_lambda_.81} parent=0 // pred_check
    _
  $region31: #{_lambda_.81} parent=0 // pred_check_branch
    %373 = sbr.rel (0) target = $region33
  $region32: #{_lambda_.81} parent=0 // pred_region
    _
  $region33: #{_lambda_.81} parent=0 // pred_fallthru
    _

// kernel: _lambda_.82
$region0: #{_lambda_.82}
  #allocation0 [shape = 'u32[]', space=smem, size = 0x4, offset = 0x4, fixed_abs, tag = 'smem constant byte address 0x4 - core index']
  #allocation1 [shape = 'u32[72,128]{1,0:T(1,128)}', space=vmem, size = 0x9000, scoped, tag = 'internal scratch']
  %s0 = inlined_call_operand.vmem [shape: bf16[32,256], index: 0, kind: input, shape index: {}]
  %s1 = inlined_call_operand.vmem [shape: f32[1,256], index: 1, kind: input, shape index: {}]
  %s2 = inlined_call_operand.vmem [shape: f32[1,256], index: 2, kind: input, shape index: {}]
  %s3 = inlined_call_operand.vmem [shape: bf16[32,256], index: 3, kind: output, shape index: {}]
  %s4 = sld [smem:[#allocation0]]
  $region22: #{_lambda_.82} parent=0
    _
  %s6 = ssub.s32 1, %s4
  %s7 = scalar_select 0, %s6, %s4
  // Predicated region
  $region2: #{_lambda_.82} parent=0 // pred_check
    _
  $region3: #{_lambda_.82} parent=0 // pred_check_branch
    %9 = sbr.rel (0) target = $region5
  $region4: #{_lambda_.82} parent=0 // pred_region
    _
  $region5: #{_lambda_.82} parent=0 // pred_fallthru
    _
  // Predicated region
  $region6: #{_lambda_.82} parent=0 // pred_check
    _
  $region7: #{_lambda_.82} parent=0 // pred_check_branch
    %11 = sbr.rel (0) target = $region9
  $region8: #{_lambda_.82} parent=0 // pred_region
    _
  $region9: #{_lambda_.82} parent=0 // pred_fallthru
    _
  // Predicated region
  $region10: #{_lambda_.82} parent=0 // pred_check
    _
  $region11: #{_lambda_.82} parent=0 // pred_check_branch
    %13 = sbr.rel (0) target = $region13
  $region12: #{_lambda_.82} parent=0 // pred_region
    _
  $region13: #{_lambda_.82} parent=0 // pred_fallthru
    _
  %v14 = vld [vmem:[%s0] sm:$0xff]
  %v15 = vld [vmem:[%s0 + $0x8] sm:$0xff]
  %v16 = vld [vmem:[%s0 + $0x10] sm:$0xff]
  %v17 = vld [vmem:[%s0 + $0x18] sm:$0xff]
  %v18 = vunpack.c.l.bf16 %v14
  %v19 = vunpack.c.h.bf16 %v14
  %v20 = vunpack.c.l.bf16 %v15
  %v21 = vunpack.c.h.bf16 %v15
  %v22 = vunpack.c.l.bf16 %v16
  %v23 = vunpack.c.h.bf16 %v16
  %v24 = vunpack.c.l.bf16 %v17
  %v25 = vunpack.c.h.bf16 %v17
  %v26 = vld [vmem:[%s1] sm:$0x3]
  %v28 = vperm.slane %v26, 0
  %v29 = vperm.slane %v26, 1
  %v32 = vmul.f32 %v18, %v28
  %v33 = vmul.f32 %v19, %v29
  %v34 = vmul.f32 %v20, %v28
  %v35 = vmul.f32 %v21, %v29
  %v36 = vmul.f32 %v22, %v28
  %v37 = vmul.f32 %v23, %v29
  %v38 = vmul.f32 %v24, %v28
  %v39 = vmul.f32 %v25, %v29
  %v40 = vld [vmem:[%s2] sm:$0x3]
  %v42 = vperm.slane %v40, 0
  %v43 = vperm.slane %v40, 1
  %v46 = vadd.f32 %v32, %v42
  %v47 = vadd.f32 %v33, %v43
  %v48 = vadd.f32 %v34, %v42
  %v49 = vadd.f32 %v35, %v43
  %v50 = vadd.f32 %v36, %v42
  %v51 = vadd.f32 %v37, %v43
  %v52 = vadd.f32 %v38, %v42
  %v53 = vadd.f32 %v39, %v43
  %v54 = vmax.f32 %v46, 0.0
  %v55 = vmax.f32 %v47, 0.0
  %v56 = vmax.f32 %v48, 0.0
  %v57 = vmax.f32 %v49, 0.0
  %v58 = vmax.f32 %v50, 0.0
  %v59 = vmax.f32 %v51, 0.0
  %v60 = vmax.f32 %v52, 0.0
  %v61 = vmax.f32 %v53, 0.0
  %v62 = vpack.c.bf16 %v55, %v54
  %v63 = vpack.c.bf16 %v57, %v56
  %v64 = vpack.c.bf16 %v59, %v58
  %v65 = vpack.c.bf16 %v61, %v60
  %66 = vst [vmem:[%s3] sm:$0xff] %v62
  %67 = vst [vmem:[%s3 + $0x8] sm:$0xff] %v63
  %68 = vst [vmem:[%s3 + $0x10] sm:$0xff] %v64
  %69 = vst [vmem:[%s3 + $0x18] sm:$0xff] %v65
  // Predicated region
  $region14: #{_lambda_.82} parent=0 // pred_check
    _
  $region15: #{_lambda_.82} parent=0 // pred_check_branch
    %71 = sbr.rel (0) target = $region17
  $region16: #{_lambda_.82} parent=0 // pred_region
    _
  $region17: #{_lambda_.82} parent=0 // pred_fallthru
    _
  // Predicated region
  $region18: #{_lambda_.82} parent=0 // pred_check
    _
  $region19: #{_lambda_.82} parent=0 // pred_check_branch
    %73 = sbr.rel (0) target = $region21
  $region20: #{_lambda_.82} parent=0 // pred_region
    _
  $region21: #{_lambda_.82} parent=0 // pred_fallthru
    _

// kernel: _lambda_.83
$region0: #{_lambda_.83}
  #allocation0 [shape = 'u32[]', space=smem, size = 0x4, offset = 0x4, fixed_abs, tag = 'smem constant byte address 0x4 - core index']
  #allocation1 [shape = 'u32[72,128]{1,0:T(1,128)}', space=vmem, size = 0x9000, scoped, tag = 'internal scratch']
  %s0 = inlined_call_operand.vmem [shape: bf16[128,256], index: 0, kind: input, shape index: {}]
  %s1 = inlined_call_operand.vmem [shape: bf16[256,128], index: 1, kind: input, shape index: {}]
  %s2 = inlined_call_operand.vmem [shape: bf16[128,128], index: 2, kind: output, shape index: {0}]
  %s3 = inlined_call_operand.vmem [shape: f32[1,8,128], index: 3, kind: output, shape index: {1}]
  %s4 = inlined_call_operand.vmem [shape: f32[1,8,128], index: 4, kind: output, shape index: {2}]
  %5 = xla_tuple %s2, %s3, %s4
  %s6 = sld [smem:[#allocation0]]
  $region34: #{_lambda_.83} parent=0
    _
  %s8 = ssub.s32 1, %s6
  %s9 = scalar_select 0, %s8, %s6
  // Predicated region
  $region2: #{_lambda_.83} parent=0 // pred_check
    _
  $region3: #{_lambda_.83} parent=0 // pred_check_branch
    %11 = sbr.rel (0) target = $region5
  $region4: #{_lambda_.83} parent=0 // pred_region
    _
  $region5: #{_lambda_.83} parent=0 // pred_fallthru
    _
  // Predicated region
  $region6: #{_lambda_.83} parent=0 // pred_check
    _
  $region7: #{_lambda_.83} parent=0 // pred_check_branch
    %13 = sbr.rel (0) target = $region9
  $region8: #{_lambda_.83} parent=0 // pred_region
    _
  $region9: #{_lambda_.83} parent=0 // pred_fallthru
    _
  %v14 = vld [vmem:[%s0] sm:$0xff]
  %v15 = vld [vmem:[%s0 + $0x8] sm:$0xff]
  %v16 = vld [vmem:[%s0 + $0x10] sm:$0xff]
  %v17 = vld [vmem:[%s0 + $0x18] sm:$0xff]
  %v18 = vld [vmem:[%s0 + $0x20] sm:$0xff]
  %v19 = vld [vmem:[%s0 + $0x28] sm:$0xff]
  %v20 = vld [vmem:[%s0 + $0x30] sm:$0xff]
  %v21 = vld [vmem:[%s0 + $0x38] sm:$0xff]
  %v22 = vld [vmem:[%s0 + $0x40] sm:$0xff]
  %v23 = vld [vmem:[%s0 + $0x48] sm:$0xff]
  %v24 = vld [vmem:[%s0 + $0x50] sm:$0xff]
  %v25 = vld [vmem:[%s0 + $0x58] sm:$0xff]
  %v26 = vld [vmem:[%s0 + $0x60] sm:$0xff]
  %v27 = vld [vmem:[%s0 + $0x68] sm:$0xff]
  %v28 = vld [vmem:[%s0 + $0x70] sm:$0xff]
  %v29 = vld [vmem:[%s0 + $0x78] sm:$0xff]
  %v30 = vld [vmem:[%s1] sm:$0xf]
  %v31 = vld [vmem:[%s1 + $0x4] sm:$0xf]
  %v32 = vld [vmem:[%s1 + $0x8] sm:$0xf]
  %v33 = vld [vmem:[%s1 + $0xc] sm:$0xf]
  %v34 = vld [vmem:[%s1 + $0x10] sm:$0xf]
  %v35 = vld [vmem:[%s1 + $0x14] sm:$0xf]
  %v36 = vld [vmem:[%s1 + $0x18] sm:$0xf]
  %v37 = vld [vmem:[%s1 + $0x1c] sm:$0xf]
  %v38 = vld [vmem:[%s1 + $0x20] sm:$0xf]
  %v39 = vld [vmem:[%s1 + $0x24] sm:$0xf]
  %v40 = vld [vmem:[%s1 + $0x28] sm:$0xf]
  %v41 = vld [vmem:[%s1 + $0x2c] sm:$0xf]
  %v42 = vld [vmem:[%s1 + $0x30] sm:$0xf]
  %v43 = vld [vmem:[%s1 + $0x34] sm:$0xf]
  %v44 = vld [vmem:[%s1 + $0x38] sm:$0xf]
  %v45 = vld [vmem:[%s1 + $0x3c] sm:$0xf]
  %v46 = vld [vmem:[%s1 + $0x40] sm:$0xf]
  %v47 = vld [vmem:[%s1 + $0x44] sm:$0xf]
  %v48 = vld [vmem:[%s1 + $0x48] sm:$0xf]
  %v49 = vld [vmem:[%s1 + $0x4c] sm:$0xf]
  %v50 = vld [vmem:[%s1 + $0x50] sm:$0xf]
  %v51 = vld [vmem:[%s1 + $0x54] sm:$0xf]
  %v52 = vld [vmem:[%s1 + $0x58] sm:$0xf]
  %v53 = vld [vmem:[%s1 + $0x5c] sm:$0xf]
  %v54 = vld [vmem:[%s1 + $0x60] sm:$0xf]
  %v55 = vld [vmem:[%s1 + $0x64] sm:$0xf]
  %v56 = vld [vmem:[%s1 + $0x68] sm:$0xf]
  %v57 = vld [vmem:[%s1 + $0x6c] sm:$0xf]
  %v58 = vld [vmem:[%s1 + $0x70] sm:$0xf]
  %v59 = vld [vmem:[%s1 + $0x74] sm:$0xf]
  %v60 = vld [vmem:[%s1 + $0x78] sm:$0xf]
  %v61 = vld [vmem:[%s1 + $0x7c] sm:$0xf]
  %v78 = vunpack.c.l.b16 %v14
  %v79 = vunpack.c.h.b16 %v14
  %v80 = vunpack.c.l.b16 %v15
  %v81 = vunpack.c.h.b16 %v15
  %v82 = vunpack.c.l.b16 %v16
  %v83 = vunpack.c.h.b16 %v16
  %v84 = vunpack.c.l.b16 %v17
  %v85 = vunpack.c.h.b16 %v17
  %v86 = vunpack.c.l.b16 %v18
  %v87 = vunpack.c.h.b16 %v18
  %v88 = vunpack.c.l.b16 %v19
  %v89 = vunpack.c.h.b16 %v19
  %v90 = vunpack.c.l.b16 %v20
  %v91 = vunpack.c.h.b16 %v20
  %v92 = vunpack.c.l.b16 %v21
  %v93 = vunpack.c.h.b16 %v21
  %v94 = vunpack.c.l.b16 %v22
  %v95 = vunpack.c.h.b16 %v22
  %v96 = vunpack.c.l.b16 %v23
  %v97 = vunpack.c.h.b16 %v23
  %v98 = vunpack.c.l.b16 %v24
  %v99 = vunpack.c.h.b16 %v24
  %v100 = vunpack.c.l.b16 %v25
  %v101 = vunpack.c.h.b16 %v25
  %v102 = vunpack.c.l.b16 %v26
  %v103 = vunpack.c.h.b16 %v26
  %v104 = vunpack.c.l.b16 %v27
  %v105 = vunpack.c.h.b16 %v27
  %v106 = vunpack.c.l.b16 %v28
  %v107 = vunpack.c.h.b16 %v28
  %v108 = vunpack.c.l.b16 %v29
  %v109 = vunpack.c.h.b16 %v29
  %v110 = vpack.c.b16 %v80, %v78
  %v111 = vpack.c.b16 %v81, %v79
  %v112 = vpack.c.b16 %v84, %v82
  %v113 = vpack.c.b16 %v85, %v83
  %v114 = vpack.c.b16 %v88, %v86
  %v115 = vpack.c.b16 %v89, %v87
  %v116 = vpack.c.b16 %v92, %v90
  %v117 = vpack.c.b16 %v93, %v91
  %v118 = vpack.c.b16 %v96, %v94
  %v119 = vpack.c.b16 %v97, %v95
  %v120 = vpack.c.b16 %v100, %v98
  %v121 = vpack.c.b16 %v101, %v99
  %v122 = vpack.c.b16 %v104, %v102
  %v123 = vpack.c.b16 %v105, %v103
  %v124 = vpack.c.b16 %v108, %v106
  %v125 = vpack.c.b16 %v109, %v107
  %v174 = vunpack.c.l.b16 %v30
  %v175 = vunpack.c.l.b16 %v31
  %v176 = vunpack.c.l.b16 %v32
  %v177 = vunpack.c.l.b16 %v33
  %v178 = vunpack.c.l.b16 %v34
  %v179 = vunpack.c.l.b16 %v35
  %v180 = vunpack.c.l.b16 %v36
  %v181 = vunpack.c.l.b16 %v37
  %v182 = vunpack.c.l.b16 %v38
  %v183 = vunpack.c.l.b16 %v39
  %v184 = vunpack.c.l.b16 %v40
  %v185 = vunpack.c.l.b16 %v41
  %v186 = vunpack.c.l.b16 %v42
  %v187 = vunpack.c.l.b16 %v43
  %v188 = vunpack.c.l.b16 %v44
  %v189 = vunpack.c.l.b16 %v45
  %v190 = vunpack.c.l.b16 %v46
  %v191 = vunpack.c.l.b16 %v47
  %v192 = vunpack.c.l.b16 %v48
  %v193 = vunpack.c.l.b16 %v49
  %v194 = vunpack.c.l.b16 %v50
  %v195 = vunpack.c.l.b16 %v51
  %v196 = vunpack.c.l.b16 %v52
  %v197 = vunpack.c.l.b16 %v53
  %v198 = vunpack.c.l.b16 %v54
  %v199 = vunpack.c.l.b16 %v55
  %v200 = vunpack.c.l.b16 %v56
  %v201 = vunpack.c.l.b16 %v57
  %v202 = vunpack.c.l.b16 %v58
  %v203 = vunpack.c.l.b16 %v59
  %v204 = vunpack.c.l.b16 %v60
  %v205 = vunpack.c.l.b16 %v61
  %v206 = vpack.c.b16 %v175, %v174
  %v207 = vpack.c.b16 %v177, %v176
  %v208 = vpack.c.b16 %v179, %v178
  %v209 = vpack.c.b16 %v181, %v180
  %v210 = vpack.c.b16 %v183, %v182
  %v211 = vpack.c.b16 %v185, %v184
  %v212 = vpack.c.b16 %v187, %v186
  %v213 = vpack.c.b16 %v189, %v188
  %v214 = vpack.c.b16 %v191, %v190
  %v215 = vpack.c.b16 %v193, %v192
  %v216 = vpack.c.b16 %v195, %v194
  %v217 = vpack.c.b16 %v197, %v196
  %v218 = vpack.c.b16 %v199, %v198
  %v219 = vpack.c.b16 %v201, %v200
  %v220 = vpack.c.b16 %v203, %v202
  %v221 = vpack.c.b16 %v205, %v204
  %238 = vmatpush.bf16.msra.mxu0 %v213
  %239 = vmatpush.bf16.msra.mxu0 %v212
  %240 = vmatpush.bf16.msra.mxu0 %v211
  %241 = vmatpush.bf16.msra.mxu0 %v210
  %242 = vmatpush.bf16.msra.mxu0 %v209
  %243 = vmatpush.bf16.msra.mxu0 %v208
  %244 = vmatpush.bf16.msra.mxu0 %v207
  %245 = vmatpush.bf16.msra.mxu0 %v206
  %246 = vmatmul.bf16.gmra.mxu0 %v110
  %v247 = vpop.f32.mrf.mxu0
  %v248 = vadd.f32 0.0, %v247
  %v249 = vpop.f32.mrf.mxu0
  %v250 = vadd.f32 0.0, %v249
  %251 = vmatmul.bf16.gmra.mxu0 %v112
  %v252 = vpop.f32.mrf.mxu0
  %v253 = vadd.f32 0.0, %v252
  %v254 = vpop.f32.mrf.mxu0
  %v255 = vadd.f32 0.0, %v254
  %256 = vmatmul.bf16.gmra.mxu0 %v114
  %v257 = vpop.f32.mrf.mxu0
  %v258 = vadd.f32 0.0, %v257
  %v259 = vpop.f32.mrf.mxu0
  %v260 = vadd.f32 0.0, %v259
  %261 = vmatmul.bf16.gmra.mxu0 %v116
  %v262 = vpop.f32.mrf.mxu0
  %v263 = vadd.f32 0.0, %v262
  %v264 = vpop.f32.mrf.mxu0
  %v265 = vadd.f32 0.0, %v264
  %266 = vmatmul.bf16.gmra.mxu0 %v118
  %v267 = vpop.f32.mrf.mxu0
  %v268 = vadd.f32 0.0, %v267
  %v269 = vpop.f32.mrf.mxu0
  %v270 = vadd.f32 0.0, %v269
  %271 = vmatmul.bf16.gmra.mxu0 %v120
  %v272 = vpop.f32.mrf.mxu0
  %v273 = vadd.f32 0.0, %v272
  %v274 = vpop.f32.mrf.mxu0
  %v275 = vadd.f32 0.0, %v274
  %276 = vmatmul.bf16.gmra.mxu0 %v122
  %v277 = vpop.f32.mrf.mxu0
  %v278 = vadd.f32 0.0, %v277
  %v279 = vpop.f32.mrf.mxu0
  %v280 = vadd.f32 0.0, %v279
  %281 = vmatmul.bf16.gmra.mxu0 %v124
  %v282 = vpop.f32.mrf.mxu0
  %v283 = vadd.f32 0.0, %v282
  %v284 = vpop.f32.mrf.mxu0
  %v285 = vadd.f32 0.0, %v284
  %286 = vdwg.mxu0
  %287 = vmatpush.bf16.msra.mxu0 %v221
  %288 = vmatpush.bf16.msra.mxu0 %v220
  %289 = vmatpush.bf16.msra.mxu0 %v219
  %290 = vmatpush.bf16.msra.mxu0 %v218
  %291 = vmatpush.bf16.msra.mxu0 %v217
  %292 = vmatpush.bf16.msra.mxu0 %v216
  %293 = vmatpush.bf16.msra.mxu0 %v215
  %294 = vmatpush.bf16.msra.mxu0 %v214
  %295 = vmatmul.bf16.gmra.mxu0 %v111
  %v296 = vpop.f32.mrf.mxu0
  %v297 = vadd.f32 %v248, %v296
  %v298 = vpop.f32.mrf.mxu0
  %v299 = vadd.f32 %v250, %v298
  %300 = vmatmul.bf16.gmra.mxu0 %v113
  %v301 = vpop.f32.mrf.mxu0
  %v302 = vadd.f32 %v253, %v301
  %v303 = vpop.f32.mrf.mxu0
  %v304 = vadd.f32 %v255, %v303
  %305 = vmatmul.bf16.gmra.mxu0 %v115
  %v306 = vpop.f32.mrf.mxu0
  %v307 = vadd.f32 %v258, %v306
  %v308 = vpop.f32.mrf.mxu0
  %v309 = vadd.f32 %v260, %v308
  %310 = vmatmul.bf16.gmra.mxu0 %v117
  %v311 = vpop.f32.mrf.mxu0
  %v312 = vadd.f32 %v263, %v311
  %v313 = vpop.f32.mrf.mxu0
  %v314 = vadd.f32 %v265, %v313
  %315 = vmatmul.bf16.gmra.mxu0 %v119
  %v316 = vpop.f32.mrf.mxu0
  %v317 = vadd.f32 %v268, %v316
  %v318 = vpop.f32.mrf.mxu0
  %v319 = vadd.f32 %v270, %v318
  %320 = vmatmul.bf16.gmra.mxu0 %v121
  %v321 = vpop.f32.mrf.mxu0
  %v322 = vadd.f32 %v273, %v321
  %v323 = vpop.f32.mrf.mxu0
  %v324 = vadd.f32 %v275, %v323
  %325 = vmatmul.bf16.gmra.mxu0 %v123
  %v326 = vpop.f32.mrf.mxu0
  %v327 = vadd.f32 %v278, %v326
  %v328 = vpop.f32.mrf.mxu0
  %v329 = vadd.f32 %v280, %v328
  %330 = vmatmul.bf16.gmra.mxu0 %v125
  %v331 = vpop.f32.mrf.mxu0
  %v332 = vadd.f32 %v283, %v331
  %v333 = vpop.f32.mrf.mxu0
  %v334 = vadd.f32 %v285, %v333
  %335 = vdwg.mxu0
  %v336 = vpack.c.bf16 %v297, %v297
  %v337 = vpack.c.bf16 %v299, %v299
  %v338 = vpack.c.bf16 %v302, %v302
  %v339 = vpack.c.bf16 %v304, %v304
  %v340 = vpack.c.bf16 %v307, %v307
  %v341 = vpack.c.bf16 %v309, %v309
  %v342 = vpack.c.bf16 %v312, %v312
  %v343 = vpack.c.bf16 %v314, %v314
  %v344 = vpack.c.bf16 %v317, %v317
  %v345 = vpack.c.bf16 %v319, %v319
  %v346 = vpack.c.bf16 %v322, %v322
  %v347 = vpack.c.bf16 %v324, %v324
  %v348 = vpack.c.bf16 %v327, %v327
  %v349 = vpack.c.bf16 %v329, %v329
  %v350 = vpack.c.bf16 %v332, %v332
  %v351 = vpack.c.bf16 %v334, %v334
  %352 = vst [vmem:[%s2] sm:$0xf] %v336
  %353 = vst [vmem:[%s2 + $0x4] sm:$0xf] %v337
  %354 = vst [vmem:[%s2 + $0x8] sm:$0xf] %v338
  %355 = vst [vmem:[%s2 + $0xc] sm:$0xf] %v339
  %356 = vst [vmem:[%s2 + $0x10] sm:$0xf] %v340
  %357 = vst [vmem:[%s2 + $0x14] sm:$0xf] %v341
  %358 = vst [vmem:[%s2 + $0x18] sm:$0xf] %v342
  %359 = vst [vmem:[%s2 + $0x1c] sm:$0xf] %v343
  %360 = vst [vmem:[%s2 + $0x20] sm:$0xf] %v344
  %361 = vst [vmem:[%s2 + $0x24] sm:$0xf] %v345
  %362 = vst [vmem:[%s2 + $0x28] sm:$0xf] %v346
  %363 = vst [vmem:[%s2 + $0x2c] sm:$0xf] %v347
  %364 = vst [vmem:[%s2 + $0x30] sm:$0xf] %v348
  %365 = vst [vmem:[%s2 + $0x34] sm:$0xf] %v349
  %366 = vst [vmem:[%s2 + $0x38] sm:$0xf] %v350
  %367 = vst [vmem:[%s2 + $0x3c] sm:$0xf] %v351
  %v368 = vadd.f32 %v297, %v299
  %v369 = vadd.f32 %v368, %v302
  %v370 = vadd.f32 %v369, %v304
  %v371 = vadd.f32 %v370, %v307
  %v372 = vadd.f32 %v371, %v309
  %v373 = vadd.f32 %v372, %v312
  %v374 = vadd.f32 %v373, %v314
  %v375 = vadd.f32 %v374, %v317
  %v376 = vadd.f32 %v375, %v319
  %v377 = vadd.f32 %v376, %v322
  %v378 = vadd.f32 %v377, %v324
  %v379 = vadd.f32 %v378, %v327
  %v380 = vadd.f32 %v379, %v329
  %v381 = vadd.f32 %v380, %v332
  %v382 = vadd.f32 %v381, %v334
  %v383 = vrot.slane %v382, 4
  %v384 = vadd.f32 %v382, %v383
  %v385 = vrot.slane %v384, 2
  %v386 = vadd.f32 %v384, %v385
  %v387 = vrot.slane %v386, 1
  %v388 = vadd.f32 %v386, %v387
  %v389 = vmul.f32 %v297, %v297
  %v390 = vmul.f32 %v299, %v299
  %v391 = vmul.f32 %v302, %v302
  %v392 = vmul.f32 %v304, %v304
  %v393 = vmul.f32 %v307, %v307
  %v394 = vmul.f32 %v309, %v309
  %v395 = vmul.f32 %v312, %v312
  %v396 = vmul.f32 %v314, %v314
  %v397 = vmul.f32 %v317, %v317
  %v398 = vmul.f32 %v319, %v319
  %v399 = vmul.f32 %v322, %v322
  %v400 = vmul.f32 %v324, %v324
  %v401 = vmul.f32 %v327, %v327
  %v402 = vmul.f32 %v329, %v329
  %v403 = vmul.f32 %v332, %v332
  %v404 = vmul.f32 %v334, %v334
  %v405 = vadd.f32 %v389, %v390
  %v406 = vadd.f32 %v405, %v391
  %v407 = vadd.f32 %v406, %v392
  %v408 = vadd.f32 %v407, %v393
  %v409 = vadd.f32 %v408, %v394
  %v410 = vadd.f32 %v409, %v395
  %v411 = vadd.f32 %v410, %v396
  %v412 = vadd.f32 %v411, %v397
  %v413 = vadd.f32 %v412, %v398
  %v414 = vadd.f32 %v413, %v399
  %v415 = vadd.f32 %v414, %v400
  %v416 = vadd.f32 %v415, %v401
  %v417 = vadd.f32 %v416, %v402
  %v418 = vadd.f32 %v417, %v403
  %v419 = vadd.f32 %v418, %v404
  %v420 = vrot.slane %v419, 4
  %v421 = vadd.f32 %v419, %v420
  %v422 = vrot.slane %v421, 2
  %v423 = vadd.f32 %v421, %v422
  %v424 = vrot.slane %v423, 1
  %v425 = vadd.f32 %v423, %v424
  %426 = vst [vmem:[%s3] sm:$0xff] %v388
  %427 = vst [vmem:[%s4] sm:$0xff] %v425
  // Predicated region
  $region10: #{_lambda_.83} parent=0 // pred_check
    _
  $region11: #{_lambda_.83} parent=0 // pred_check_branch
    %429 = sbr.rel (0) target = $region13
  $region12: #{_lambda_.83} parent=0 // pred_region
    _
  $region13: #{_lambda_.83} parent=0 // pred_fallthru
    _
  // Predicated region
  $region14: #{_lambda_.83} parent=0 // pred_check
    _
  $region15: #{_lambda_.83} parent=0 // pred_check_branch
    %431 = sbr.rel (0) target = $region17
  $region16: #{_lambda_.83} parent=0 // pred_region
    _
  $region17: #{_lambda_.83} parent=0 // pred_fallthru
    _
  // Predicated region
  $region18: #{_lambda_.83} parent=0 // pred_check
    _
  $region19: #{_lambda_.83} parent=0 // pred_check_branch
    %433 = sbr.rel (0) target = $region21
  $region20: #{_lambda_.83} parent=0 // pred_region
    _
  $region21: #{_lambda_.83} parent=0 // pred_fallthru
    _
  // Predicated region
  $region22: #{_lambda_.83} parent=0 // pred_check
    _
  $region23: #{_lambda_.83} parent=0 // pred_check_branch
    %435 = sbr.rel (0) target = $region25
  $region24: #{_lambda_.83} parent=0 // pred_region
    _
  $region25: #{_lambda_.83} parent=0 // pred_fallthru
    _
  // Predicated region
  $region26: #{_lambda_.83} parent=0 // pred_check
    _
  $region27: #{_lambda_.83} parent=0 // pred_check_branch
    %437 = sbr.rel (0) target = $region29
  $region28: #{_lambda_.83} parent=0 // pred_region
    _
  $region29: #{_lambda_.83} parent=0 // pred_fallthru
    _
  // Predicated region
  $region30: #{_lambda_.83} parent=0 // pred_check
    _
  $region31: #{_lambda_.83} parent=0 // pred_check_branch
    %439 = sbr.rel (0) target = $region33
  $region32: #{_lambda_.83} parent=0 // pred_region
    _
  $region33: #{_lambda_.83} parent=0 // pred_fallthru
    _

// kernel: _lambda_.85
$region0: #{_lambda_.85}
  #allocation0 [shape = 'u32[]', space=smem, size = 0x4, offset = 0x4, fixed_abs, tag = 'smem constant byte address 0x4 - core index']
  #allocation1 [shape = 'u32[72,128]{1,0:T(1,128)}', space=vmem, size = 0x9000, scoped, tag = 'internal scratch']
  %s0 = inlined_call_operand.vmem [shape: bf16[512,1568], index: 0, kind: input, shape index: {}]
  %s1 = inlined_call_operand.vmem [shape: bf16[1568,128], index: 1, kind: input, shape index: {}]
  %s2 = inlined_call_operand.vmem [shape: f32[1,128], index: 2, kind: input, shape index: {}]
  %s3 = inlined_call_operand.vmem [shape: bf16[512,128], index: 3, kind: output, shape index: {}]
  %s4 = sld [smem:[#allocation0]]
  $region22: #{_lambda_.85} parent=0
    _
  %s6 = ssub.s32 1, %s4
  %s7 = scalar_select 0, %s6, %s4
  // Predicated region
  $region2: #{_lambda_.85} parent=0 // pred_check
    _
  $region3: #{_lambda_.85} parent=0 // pred_check_branch
    %9 = sbr.rel (0) target = $region5
  $region4: #{_lambda_.85} parent=0 // pred_region
    _
  $region5: #{_lambda_.85} parent=0 // pred_fallthru
    _
  // Predicated region
  $region6: #{_lambda_.85} parent=0 // pred_check
    _
  $region7: #{_lambda_.85} parent=0 // pred_check_branch
    %11 = sbr.rel (0) target = $region9
  $region8: #{_lambda_.85} parent=0 // pred_region
    _
  $region9: #{_lambda_.85} parent=0 // pred_fallthru
    _
  // Predicated region
  $region10: #{_lambda_.85} parent=0 // pred_check
    _
  $region11: #{_lambda_.85} parent=0 // pred_check_branch
    %13 = sbr.rel (0) target = $region13
  $region12: #{_lambda_.85} parent=0 // pred_region
    _
  $region13: #{_lambda_.85} parent=0 // pred_fallthru
    _
  %v15 = vld [vmem:[%s0] sm:$0xff]
  %v16 = vld [vmem:[%s0 + $0x8] sm:$0xff]
  %v17 = vld [vmem:[%s0 + $0x10] sm:$0xff]
  %v18 = vld [vmem:[%s0 + $0x18] sm:$0xff]
  %v19 = vld [vmem:[%s0 + $0x20] sm:$0xff]
  %v20 = vld [vmem:[%s0 + $0x28] sm:$0xff]
  %v21 = vld [vmem:[%s0 + $0x30] sm:$0xf]
  %v22 = vld [vmem:[%s0 + $0x34] sm:$0xff]
  %v23 = vld [vmem:[%s0 + $0x3c] sm:$0xff]
  %v24 = vld [vmem:[%s0 + $0x44] sm:$0xff]
  %v25 = vld [vmem:[%s0 + $0x4c] sm:$0xff]
  %v26 = vld [vmem:[%s0 + $0x54] sm:$0xff]
  %v27 = vld [vmem:[%s0 + $0x5c] sm:$0xff]
  %v28 = vld [vmem:[%s0 + $0x64] sm:$0xf]
  %v29 = vld [vmem:[%s0 + $0x68] sm:$0xff]
  %v30 = vld [vmem:[%s0 + $0x70] sm:$0xff]
  %v31 = vld [vmem:[%s0 + $0x78] sm:$0xff]
  %v32 = vld [vmem:[%s0 + $0x80] sm:$0xff]
  %v33 = vld [vmem:[%s0 + $0x88] sm:$0xff]
  %v34 = vld [vmem:[%s0 + $0x90] sm:$0xff]
  %v35 = vld [vmem:[%s0 + $0x98] sm:$0xf]
  %v36 = vld [vmem:[%s0 + $0x9c] sm:$0xff]
  %v37 = vld [vmem:[%s0 + $0xa4] sm:$0xff]
  %v38 = vld [vmem:[%s0 + $0xac] sm:$0xff]
  %v39 = vld [vmem:[%s0 + $0xb4] sm:$0xff]
  %v40 = vld [vmem:[%s0 + $0xbc] sm:$0xff]
  %v41 = vld [vmem:[%s0 + $0xc4] sm:$0xff]
  %v42 = vld [vmem:[%s0 + $0xcc] sm:$0xf]
  %v43 = vld [vmem:[%s0 + $0xd0] sm:$0xff]
  %v44 = vld [vmem:[%s0 + $0xd8] sm:$0xff]
  %v45 = vld [vmem:[%s0 + $0xe0] sm:$0xff]
  %v46 = vld [vmem:[%s0 + $0xe8] sm:$0xff]
  %v47 = vld [vmem:[%s0 + $0xf0] sm:$0xff]
  %v48 = vld [vmem:[%s0 + $0xf8] sm:$0xff]
  %v49 = vld [vmem:[%s0 + $0x100] sm:$0xf]
  %v50 = vld [vmem:[%s0 + $0x104] sm:$0xff]
  %v51 = vld [vmem:[%s0 + $0x10c] sm:$0xff]
  %v52 = vld [vmem:[%s0 + $0x114] sm:$0xff]
  %v53 = vld [vmem:[%s0 + $0x11c] sm:$0xff]
  %v54 = vld [vmem:[%s0 + $0x124] sm:$0xff]
  %v55 = vld [vmem:[%s0 + $0x12c] sm:$0xff]
  %v56 = vld [vmem:[%s0 + $0x134] sm:$0xf]
  %v57 = vld [vmem:[%s0 + $0x138] sm:$0xff]
  %v58 = vld [vmem:[%s0 + $0x140] sm:$0xff]
  %v59 = vld [vmem:[%s0 + $0x148] sm:$0xff]
  %v60 = vld [vmem:[%s0 + $0x150] sm:$0xff]
  %v61 = vld [vmem:[%s0 + $0x158] sm:$0xff]
  %v62 = vld [vmem:[%s0 + $0x160] sm:$0xff]
  %v63 = vld [vmem:[%s0 + $0x168] sm:$0xf]
  %v64 = vld [vmem:[%s0 + $0x16c] sm:$0xff]
  %v65 = vld [vmem:[%s0 + $0x174] sm:$0xff]
  %v66 = vld [vmem:[%s0 + $0x17c] sm:$0xff]
  %v67 = vld [vmem:[%s0 + $0x184] sm:$0xff]
  %v68 = vld [vmem:[%s0 + $0x18c] sm:$0xff]
  %v69 = vld [vmem:[%s0 + $0x194] sm:$0xff]
  %v70 = vld [vmem:[%s0 + $0x19c] sm:$0xf]
  %v71 = vld [vmem:[%s0 + $0x1a0] sm:$0xff]
  %v72 = vld [vmem:[%s0 + $0x1a8] sm:$0xff]
  %v73 = vld [vmem:[%s0 + $0x1b0] sm:$0xff]
  %v74 = vld [vmem:[%s0 + $0x1b8] sm:$0xff]
  %v75 = vld [vmem:[%s0 + $0x1c0] sm:$0xff]
  %v76 = vld [vmem:[%s0 + $0x1c8] sm:$0xff]
  %v77 = vld [vmem:[%s0 + $0x1d0] sm:$0xf]
  %v78 = vld [vmem:[%s0 + $0x1d4] sm:$0xff]
  %v79 = vld [vmem:[%s0 + $0x1dc] sm:$0xff]
  %v80 = vld [vmem:[%s0 + $0x1e4] sm:$0xff]
  %v81 = vld [vmem:[%s0 + $0x1ec] sm:$0xff]
  %v82 = vld [vmem:[%s0 + $0x1f4] sm:$0xff]
  %v83 = vld [vmem:[%s0 + $0x1fc] sm:$0xff]
  %v84 = vld [vmem:[%s0 + $0x204] sm:$0xf]
  %v85 = vld [vmem:[%s0 + $0x208] sm:$0xff]
  %v86 = vld [vmem:[%s0 + $0x210] sm:$0xff]
  %v87 = vld [vmem:[%s0 + $0x218] sm:$0xff]
  %v88 = vld [vmem:[%s0 + $0x220] sm:$0xff]
  %v89 = vld [vmem:[%s0 + $0x228] sm:$0xff]
  %v90 = vld [vmem:[%s0 + $0x230] sm:$0xff]
  %v91 = vld [vmem:[%s0 + $0x238] sm:$0xf]
  %v92 = vld [vmem:[%s0 + $0x23c] sm:$0xff]
  %v93 = vld [vmem:[%s0 + $0x244] sm:$0xff]
  %v94 = vld [vmem:[%s0 + $0x24c] sm:$0xff]
  %v95 = vld [vmem:[%s0 + $0x254] sm:$0xff]
  %v96 = vld [vmem:[%s0 + $0x25c] sm:$0xff]
  %v97 = vld [vmem:[%s0 + $0x264] sm:$0xff]
  %v98 = vld [vmem:[%s0 + $0x26c] sm:$0xf]
  %v99 = vld [vmem:[%s0 + $0x270] sm:$0xff]
  %v100 = vld [vmem:[%s0 + $0x278] sm:$0xff]
  %v101 = vld [vmem:[%s0 + $0x280] sm:$0xff]
  %v102 = vld [vmem:[%s0 + $0x288] sm:$0xff]
  %v103 = vld [vmem:[%s0 + $0x290] sm:$0xff]
  %v104 = vld [vmem:[%s0 + $0x298] sm:$0xff]
  %v105 = vld [vmem:[%s0 + $0x2a0] sm:$0xf]
  %v106 = vld [vmem:[%s0 + $0x2a4] sm:$0xff]
  %v107 = vld [vmem:[%s0 + $0x2ac] sm:$0xff]
  %v108 = vld [vmem:[%s0 + $0x2b4] sm:$0xff]
  %v109 = vld [vmem:[%s0 + $0x2bc] sm:$0xff]
  %v110 = vld [vmem:[%s0 + $0x2c4] sm:$0xff]
  %v111 = vld [vmem:[%s0 + $0x2cc] sm:$0xff]
  %v112 = vld [vmem:[%s0 + $0x2d4] sm:$0xf]
  %v113 = vld [vmem:[%s0 + $0x2d8] sm:$0xff]
  %v114 = vld [vmem:[%s0 + $0x2e0] sm:$0xff]
  %v115 = vld [vmem:[%s0 + $0x2e8] sm:$0xff]
  %v116 = vld [vmem:[%s0 + $0x2f0] sm:$0xff]
  %v117 = vld [vmem:[%s0 + $0x2f8] sm:$0xff]
  %v118 = vld [vmem:[%s0 + $0x300] sm:$0xff]
  %v119 = vld [vmem:[%s0 + $0x308] sm:$0xf]
  %v120 = vld [vmem:[%s0 + $0x30c] sm:$0xff]
  %v121 = vld [vmem:[%s0 + $0x314] sm:$0xff]
  %v122 = vld [vmem:[%s0 + $0x31c] sm:$0xff]
  %v123 = vld [vmem:[%s0 + $0x324] sm:$0xff]
  %v124 = vld [vmem:[%s0 + $0x32c] sm:$0xff]
  %v125 = vld [vmem:[%s0 + $0x334] sm:$0xff]
  %v126 = vld [vmem:[%s0 + $0x33c] sm:$0xf]
  %v127 = vld [vmem:[%s0 + $0x340] sm:$0xff]
  %v128 = vld [vmem:[%s0 + $0x348] sm:$0xff]
  %v129 = vld [vmem:[%s0 + $0x350] sm:$0xff]
  %v130 = vld [vmem:[%s0 + $0x358] sm:$0xff]
  %v131 = vld [vmem:[%s0 + $0x360] sm:$0xff]
  %v132 = vld [vmem:[%s0 + $0x368] sm:$0xff]
  %v133 = vld [vmem:[%s0 + $0x370] sm:$0xf]
  %v134 = vld [vmem:[%s0 + $0x374] sm:$0xff]
  %v135 = vld [vmem:[%s0 + $0x37c] sm:$0xff]
  %v136 = vld [vmem:[%s0 + $0x384] sm:$0xff]
  %v137 = vld [vmem:[%s0 + $0x38c] sm:$0xff]
  %v138 = vld [vmem:[%s0 + $0x394] sm:$0xff]
  %v139 = vld [vmem:[%s0 + $0x39c] sm:$0xff]
  %v140 = vld [vmem:[%s0 + $0x3a4] sm:$0xf]
  %v141 = vld [vmem:[%s0 + $0x3a8] sm:$0xff]
  %v142 = vld [vmem:[%s0 + $0x3b0] sm:$0xff]
  %v143 = vld [vmem:[%s0 + $0x3b8] sm:$0xff]
  %v144 = vld [vmem:[%s0 + $0x3c0] sm:$0xff]
  %v145 = vld [vmem:[%s0 + $0x3c8] sm:$0xff]
  %v146 = vld [vmem:[%s0 + $0x3d0] sm:$0xff]
  %v147 = vld [vmem:[%s0 + $0x3d8] sm:$0xf]
  %v148 = vld [vmem:[%s0 + $0x3dc] sm:$0xff]
  %v149 = vld [vmem:[%s0 + $0x3e4] sm:$0xff]
  %v150 = vld [vmem:[%s0 + $0x3ec] sm:$0xff]
  %v151 = vld [vmem:[%s0 + $0x3f4] sm:$0xff]
  %v152 = vld [vmem:[%s0 + $0x3fc] sm:$0xff]
  %v153 = vld [vmem:[%s0 + $0x404] sm:$0xff]
  %v154 = vld [vmem:[%s0 + $0x40c] sm:$0xf]
  %v155 = vld [vmem:[%s0 + $0x410] sm:$0xff]
  %v156 = vld [vmem:[%s0 + $0x418] sm:$0xff]
  %v157 = vld [vmem:[%s0 + $0x420] sm:$0xff]
  %v158 = vld [vmem:[%s0 + $0x428] sm:$0xff]
  %v159 = vld [vmem:[%s0 + $0x430] sm:$0xff]
  %v160 = vld [vmem:[%s0 + $0x438] sm:$0xff]
  %v161 = vld [vmem:[%s0 + $0x440] sm:$0xf]
  %v162 = vld [vmem:[%s0 + $0x444] sm:$0xff]
  %v163 = vld [vmem:[%s0 + $0x44c] sm:$0xff]
  %v164 = vld [vmem:[%s0 + $0x454] sm:$0xff]
  %v165 = vld [vmem:[%s0 + $0x45c] sm:$0xff]
  %v166 = vld [vmem:[%s0 + $0x464] sm:$0xff]
  %v167 = vld [vmem:[%s0 + $0x46c] sm:$0xff]
  %v168 = vld [vmem:[%s0 + $0x474] sm:$0xf]
  %v169 = vld [vmem:[%s0 + $0x478] sm:$0xff]
  %v170 = vld [vmem:[%s0 + $0x480] sm:$0xff]
  %v171 = vld [vmem:[%s0 + $0x488] sm:$0xff]
  %v172 = vld [vmem:[%s0 + $0x490] sm:$0xff]
  %v173 = vld [vmem:[%s0 + $0x498] sm:$0xff]
  %v174 = vld [vmem:[%s0 + $0x4a0] sm:$0xff]
  %v175 = vld [vmem:[%s0 + $0x4a8] sm:$0xf]
  %v176 = vld [vmem:[%s0 + $0x4ac] sm:$0xff]
  %v177 = vld [vmem:[%s0 + $0x4b4] sm:$0xff]
  %v178 = vld [vmem:[%s0 + $0x4bc] sm:$0xff]
  %v179 = vld [vmem:[%s0 + $0x4c4] sm:$0xff]
  %v180 = vld [vmem:[%s0 + $0x4cc] sm:$0xff]
  %v181 = vld [vmem:[%s0 + $0x4d4] sm:$0xff]
  %v182 = vld [vmem:[%s0 + $0x4dc] sm:$0xf]
  %v183 = vld [vmem:[%s0 + $0x4e0] sm:$0xff]
  %v184 = vld [vmem:[%s0 + $0x4e8] sm:$0xff]
  %v185 = vld [vmem:[%s0 + $0x4f0] sm:$0xff]
  %v186 = vld [vmem:[%s0 + $0x4f8] sm:$0xff]
  %v187 = vld [vmem:[%s0 + $0x500] sm:$0xff]
  %v188 = vld [vmem:[%s0 + $0x508] sm:$0xff]
  %v189 = vld [vmem:[%s0 + $0x510] sm:$0xf]
  %v190 = vld [vmem:[%s0 + $0x514] sm:$0xff]
  %v191 = vld [vmem:[%s0 + $0x51c] sm:$0xff]
  %v192 = vld [vmem:[%s0 + $0x524] sm:$0xff]
  %v193 = vld [vmem:[%s0 + $0x52c] sm:$0xff]
  %v194 = vld [vmem:[%s0 + $0x534] sm:$0xff]
  %v195 = vld [vmem:[%s0 + $0x53c] sm:$0xff]
  %v196 = vld [vmem:[%s0 + $0x544] sm:$0xf]
  %v197 = vld [vmem:[%s0 + $0x548] sm:$0xff]
  %v198 = vld [vmem:[%s0 + $0x550] sm:$0xff]
  %v199 = vld [vmem:[%s0 + $0x558] sm:$0xff]
  %v200 = vld [vmem:[%s0 + $0x560] sm:$0xff]
  %v201 = vld [vmem:[%s0 + $0x568] sm:$0xff]
  %v202 = vld [vmem:[%s0 + $0x570] sm:$0xff]
  %v203 = vld [vmem:[%s0 + $0x578] sm:$0xf]
  %v204 = vld [vmem:[%s0 + $0x57c] sm:$0xff]
  %v205 = vld [vmem:[%s0 + $0x584] sm:$0xff]
  %v206 = vld [vmem:[%s0 + $0x58c] sm:$0xff]
  %v207 = vld [vmem:[%s0 + $0x594] sm:$0xff]
  %v208 = vld [vmem:[%s0 + $0x59c] sm:$0xff]
  %v209 = vld [vmem:[%s0 + $0x5a4] sm:$0xff]
  %v210 = vld [vmem:[%s0 + $0x5ac] sm:$0xf]
  %v211 = vld [vmem:[%s0 + $0x5b0] sm:$0xff]
  %v212 = vld [vmem:[%s0 + $0x5b8] sm:$0xff]
  %v213 = vld [vmem:[%s0 + $0x5c0] sm:$0xff]
  %v214 = vld [vmem:[%s0 + $0x5c8] sm:$0xff]
  %v215 = vld [vmem:[%s0 + $0x5d0] sm:$0xff]
  %v216 = vld [vmem:[%s0 + $0x5d8] sm:$0xff]
  %v217 = vld [vmem:[%s0 + $0x5e0] sm:$0xf]
  %v218 = vld [vmem:[%s0 + $0x5e4] sm:$0xff]
  %v219 = vld [vmem:[%s0 + $0x5ec] sm:$0xff]
  %v220 = vld [vmem:[%s0 + $0x5f4] sm:$0xff]
  %v221 = vld [vmem:[%s0 + $0x5fc] sm:$0xff]
  %v222 = vld [vmem:[%s0 + $0x604] sm:$0xff]
  %v223 = vld [vmem:[%s0 + $0x60c] sm:$0xff]
  %v224 = vld [vmem:[%s0 + $0x614] sm:$0xf]
  %v225 = vld [vmem:[%s0 + $0x618] sm:$0xff]
  %v226 = vld [vmem:[%s0 + $0x620] sm:$0xff]
  %v227 = vld [vmem:[%s0 + $0x628] sm:$0xff]
  %v228 = vld [vmem:[%s0 + $0x630] sm:$0xff]
  %v229 = vld [vmem:[%s0 + $0x638] sm:$0xff]
  %v230 = vld [vmem:[%s0 + $0x640] sm:$0xff]
  %v231 = vld [vmem:[%s0 + $0x648] sm:$0xf]
  %v232 = vld [vmem:[%s0 + $0x64c] sm:$0xff]
  %v233 = vld [vmem:[%s0 + $0x654] sm:$0xff]
  %v234 = vld [vmem:[%s0 + $0x65c] sm:$0xff]
  %v235 = vld [vmem:[%s0 + $0x664] sm:$0xff]
  %v236 = vld [vmem:[%s0 + $0x66c] sm:$0xff]
  %v237 = vld [vmem:[%s0 + $0x674] sm:$0xff]
  %v238 = vld [vmem:[%s0 + $0x67c] sm:$0xf]
  %v239 = vld [vmem:[%s0 + $0x680] sm:$0xff]
  %v240 = vld [vmem:[%s0 + $0x688] sm:$0xff]
  %v241 = vld [vmem:[%s0 + $0x690] sm:$0xff]
  %v242 = vld [vmem:[%s0 + $0x698] sm:$0xff]
  %v243 = vld [vmem:[%s0 + $0x6a0] sm:$0xff]
  %v244 = vld [vmem:[%s0 + $0x6a8] sm:$0xff]
  %v245 = vld [vmem:[%s0 + $0x6b0] sm:$0xf]
  %v246 = vld [vmem:[%s0 + $0x6b4] sm:$0xff]
  %v247 = vld [vmem:[%s0 + $0x6bc] sm:$0xff]
  %v248 = vld [vmem:[%s0 + $0x6c4] sm:$0xff]
  %v249 = vld [vmem:[%s0 + $0x6cc] sm:$0xff]
  %v250 = vld [vmem:[%s0 + $0x6d4] sm:$0xff]
  %v251 = vld [vmem:[%s0 + $0x6dc] sm:$0xff]
  %v252 = vld [vmem:[%s0 + $0x6e4] sm:$0xf]
  %v253 = vld [vmem:[%s0 + $0x6e8] sm:$0xff]
  %v254 = vld [vmem:[%s0 + $0x6f0] sm:$0xff]
  %v255 = vld [vmem:[%s0 + $0x6f8] sm:$0xff]
  %v256 = vld [vmem:[%s0 + $0x700] sm:$0xff]
  %v257 = vld [vmem:[%s0 + $0x708] sm:$0xff]
  %v258 = vld [vmem:[%s0 + $0x710] sm:$0xff]
  %v259 = vld [vmem:[%s0 + $0x718] sm:$0xf]
  %v260 = vld [vmem:[%s0 + $0x71c] sm:$0xff]
  %v261 = vld [vmem:[%s0 + $0x724] sm:$0xff]
  %v262 = vld [vmem:[%s0 + $0x72c] sm:$0xff]
  %v263 = vld [vmem:[%s0 + $0x734] sm:$0xff]
  %v264 = vld [vmem:[%s0 + $0x73c] sm:$0xff]
  %v265 = vld [vmem:[%s0 + $0x744] sm:$0xff]
  %v266 = vld [vmem:[%s0 + $0x74c] sm:$0xf]
  %v267 = vld [vmem:[%s0 + $0x750] sm:$0xff]
  %v268 = vld [vmem:[%s0 + $0x758] sm:$0xff]
  %v269 = vld [vmem:[%s0 + $0x760] sm:$0xff]
  %v270 = vld [vmem:[%s0 + $0x768] sm:$0xff]
  %v271 = vld [vmem:[%s0 + $0x770] sm:$0xff]
  %v272 = vld [vmem:[%s0 + $0x778] sm:$0xff]
  %v273 = vld [vmem:[%s0 + $0x780] sm:$0xf]
  %v274 = vld [vmem:[%s0 + $0x784] sm:$0xff]
  %v275 = vld [vmem:[%s0 + $0x78c] sm:$0xff]
  %v276 = vld [vmem:[%s0 + $0x794] sm:$0xff]
  %v277 = vld [vmem:[%s0 + $0x79c] sm:$0xff]
  %v278 = vld [vmem:[%s0 + $0x7a4] sm:$0xff]
  %v279 = vld [vmem:[%s0 + $0x7ac] sm:$0xff]
  %v280 = vld [vmem:[%s0 + $0x7b4] sm:$0xf]
  %v281 = vld [vmem:[%s0 + $0x7b8] sm:$0xff]
  %v282 = vld [vmem:[%s0 + $0x7c0] sm:$0xff]
  %v283 = vld [vmem:[%s0 + $0x7c8] sm:$0xff]
  %v284 = vld [vmem:[%s0 + $0x7d0] sm:$0xff]
  %v285 = vld [vmem:[%s0 + $0x7d8] sm:$0xff]
  %v286 = vld [vmem:[%s0 + $0x7e0] sm:$0xff]
  %v287 = vld [vmem:[%s0 + $0x7e8] sm:$0xf]
  %v288 = vld [vmem:[%s0 + $0x7ec] sm:$0xff]
  %v289 = vld [vmem:[%s0 + $0x7f4] sm:$0xff]
  %v290 = vld [vmem:[%s0 + $0x7fc] sm:$0xff]
  %v291 = vld [vmem:[%s0 + $0x804] sm:$0xff]
  %v292 = vld [vmem:[%s0 + $0x80c] sm:$0xff]
  %v293 = vld [vmem:[%s0 + $0x814] sm:$0xff]
  %v294 = vld [vmem:[%s0 + $0x81c] sm:$0xf]
  %v295 = vld [vmem:[%s0 + $0x820] sm:$0xff]
  %v296 = vld [vmem:[%s0 + $0x828] sm:$0xff]
  %v297 = vld [vmem:[%s0 + $0x830] sm:$0xff]
  %v298 = vld [vmem:[%s0 + $0x838] sm:$0xff]
  %v299 = vld [vmem:[%s0 + $0x840] sm:$0xff]
  %v300 = vld [vmem:[%s0 + $0x848] sm:$0xff]
  %v301 = vld [vmem:[%s0 + $0x850] sm:$0xf]
  %v302 = vld [vmem:[%s0 + $0x854] sm:$0xff]
  %v303 = vld [vmem:[%s0 + $0x85c] sm:$0xff]
  %v304 = vld [vmem:[%s0 + $0x864] sm:$0xff]
  %v305 = vld [vmem:[%s0 + $0x86c] sm:$0xff]
  %v306 = vld [vmem:[%s0 + $0x874] sm:$0xff]
  %v307 = vld [vmem:[%s0 + $0x87c] sm:$0xff]
  %v308 = vld [vmem:[%s0 + $0x884] sm:$0xf]
  %v309 = vld [vmem:[%s0 + $0x888] sm:$0xff]
  %v310 = vld [vmem:[%s0 + $0x890] sm:$0xff]
  %v311 = vld [vmem:[%s0 + $0x898] sm:$0xff]
  %v312 = vld [vmem:[%s0 + $0x8a0] sm:$0xff]
  %v313 = vld [vmem:[%s0 + $0x8a8] sm:$0xff]
  %v314 = vld [vmem:[%s0 + $0x8b0] sm:$0xff]
  %v315 = vld [vmem:[%s0 + $0x8b8] sm:$0xf]
  %v316 = vld [vmem:[%s0 + $0x8bc] sm:$0xff]
  %v317 = vld [vmem:[%s0 + $0x8c4] sm:$0xff]
  %v318 = vld [vmem:[%s0 + $0x8cc] sm:$0xff]
  %v319 = vld [vmem:[%s0 + $0x8d4] sm:$0xff]
  %v320 = vld [vmem:[%s0 + $0x8dc] sm:$0xff]
  %v321 = vld [vmem:[%s0 + $0x8e4] sm:$0xff]
  %v322 = vld [vmem:[%s0 + $0x8ec] sm:$0xf]
  %v323 = vld [vmem:[%s0 + $0x8f0] sm:$0xff]
  %v324 = vld [vmem:[%s0 + $0x8f8] sm:$0xff]
  %v325 = vld [vmem:[%s0 + $0x900] sm:$0xff]
  %v326 = vld [vmem:[%s0 + $0x908] sm:$0xff]
  %v327 = vld [vmem:[%s0 + $0x910] sm:$0xff]
  %v328 = vld [vmem:[%s0 + $0x918] sm:$0xff]
  %v329 = vld [vmem:[%s0 + $0x920] sm:$0xf]
  %v330 = vld [vmem:[%s0 + $0x924] sm:$0xff]
  %v331 = vld [vmem:[%s0 + $0x92c] sm:$0xff]
  %v332 = vld [vmem:[%s0 + $0x934] sm:$0xff]
  %v333 = vld [vmem:[%s0 + $0x93c] sm:$0xff]
  %v334 = vld [vmem:[%s0 + $0x944] sm:$0xff]
  %v335 = vld [vmem:[%s0 + $0x94c] sm:$0xff]
  %v336 = vld [vmem:[%s0 + $0x954] sm:$0xf]
  %v337 = vld [vmem:[%s0 + $0x958] sm:$0xff]
  %v338 = vld [vmem:[%s0 + $0x960] sm:$0xff]
  %v339 = vld [vmem:[%s0 + $0x968] sm:$0xff]
  %v340 = vld [vmem:[%s0 + $0x970] sm:$0xff]
  %v341 = vld [vmem:[%s0 + $0x978] sm:$0xff]
  %v342 = vld [vmem:[%s0 + $0x980] sm:$0xff]
  %v343 = vld [vmem:[%s0 + $0x988] sm:$0xf]
  %v344 = vld [vmem:[%s0 + $0x98c] sm:$0xff]
  %v345 = vld [vmem:[%s0 + $0x994] sm:$0xff]
  %v346 = vld [vmem:[%s0 + $0x99c] sm:$0xff]
  %v347 = vld [vmem:[%s0 + $0x9a4] sm:$0xff]
  %v348 = vld [vmem:[%s0 + $0x9ac] sm:$0xff]
  %v349 = vld [vmem:[%s0 + $0x9b4] sm:$0xff]
  %v350 = vld [vmem:[%s0 + $0x9bc] sm:$0xf]
  %v351 = vld [vmem:[%s0 + $0x9c0] sm:$0xff]
  %v352 = vld [vmem:[%s0 + $0x9c8] sm:$0xff]
  %v353 = vld [vmem:[%s0 + $0x9d0] sm:$0xff]
  %v354 = vld [vmem:[%s0 + $0x9d8] sm:$0xff]
  %v355 = vld [vmem:[%s0 + $0x9e0] sm:$0xff]
  %v356 = vld [vmem:[%s0 + $0x9e8] sm:$0xff]
  %v357 = vld [vmem:[%s0 + $0x9f0] sm:$0xf]
  %v358 = vld [vmem:[%s0 + $0x9f4] sm:$0xff]
  %v359 = vld [vmem:[%s0 + $0x9fc] sm:$0xff]
  %v360 = vld [vmem:[%s0 + $0xa04] sm:$0xff]
  %v361 = vld [vmem:[%s0 + $0xa0c] sm:$0xff]
  %v362 = vld [vmem:[%s0 + $0xa14] sm:$0xff]
  %v363 = vld [vmem:[%s0 + $0xa1c] sm:$0xff]
  %v364 = vld [vmem:[%s0 + $0xa24] sm:$0xf]
  %v365 = vld [vmem:[%s0 + $0xa28] sm:$0xff]
  %v366 = vld [vmem:[%s0 + $0xa30] sm:$0xff]
  %v367 = vld [vmem:[%s0 + $0xa38] sm:$0xff]
  %v368 = vld [vmem:[%s0 + $0xa40] sm:$0xff]
  %v369 = vld [vmem:[%s0 + $0xa48] sm:$0xff]
  %v370 = vld [vmem:[%s0 + $0xa50] sm:$0xff]
  %v371 = vld [vmem:[%s0 + $0xa58] sm:$0xf]
  %v372 = vld [vmem:[%s0 + $0xa5c] sm:$0xff]
  %v373 = vld [vmem:[%s0 + $0xa64] sm:$0xff]
  %v374 = vld [vmem:[%s0 + $0xa6c] sm:$0xff]
  %v375 = vld [vmem:[%s0 + $0xa74] sm:$0xff]
  %v376 = vld [vmem:[%s0 + $0xa7c] sm:$0xff]
  %v377 = vld [vmem:[%s0 + $0xa84] sm:$0xff]
  %v378 = vld [vmem:[%s0 + $0xa8c] sm:$0xf]
  %v379 = vld [vmem:[%s0 + $0xa90] sm:$0xff]
  %v380 = vld [vmem:[%s0 + $0xa98] sm:$0xff]
  %v381 = vld [vmem:[%s0 + $0xaa0] sm:$0xff]
  %v382 = vld [vmem:[%s0 + $0xaa8] sm:$0xff]
  %v383 = vld [vmem:[%s0 + $0xab0] sm:$0xff]
  %v384 = vld [vmem:[%s0 + $0xab8] sm:$0xff]
  %v385 = vld [vmem:[%s0 + $0xac0] sm:$0xf]
  %v386 = vld [vmem:[%s0 + $0xac4] sm:$0xff]
  %v387 = vld [vmem:[%s0 + $0xacc] sm:$0xff]
  %v388 = vld [vmem:[%s0 + $0xad4] sm:$0xff]
  %v389 = vld [vmem:[%s0 + $0xadc] sm:$0xff]
  %v390 = vld [vmem:[%s0 + $0xae4] sm:$0xff]
  %v391 = vld [vmem:[%s0 + $0xaec] sm:$0xff]
  %v392 = vld [vmem:[%s0 + $0xaf4] sm:$0xf]
  %v393 = vld [vmem:[%s0 + $0xaf8] sm:$0xff]
  %v394 = vld [vmem:[%s0 + $0xb00] sm:$0xff]
  %v395 = vld [vmem:[%s0 + $0xb08] sm:$0xff]
  %v396 = vld [vmem:[%s0 + $0xb10] sm:$0xff]
  %v397 = vld [vmem:[%s0 + $0xb18] sm:$0xff]
  %v398 = vld [vmem:[%s0 + $0xb20] sm:$0xff]
  %v399 = vld [vmem:[%s0 + $0xb28] sm:$0xf]
  %v400 = vld [vmem:[%s0 + $0xb2c] sm:$0xff]
  %v401 = vld [vmem:[%s0 + $0xb34] sm:$0xff]
  %v402 = vld [vmem:[%s0 + $0xb3c] sm:$0xff]
  %v403 = vld [vmem:[%s0 + $0xb44] sm:$0xff]
  %v404 = vld [vmem:[%s0 + $0xb4c] sm:$0xff]
  %v405 = vld [vmem:[%s0 + $0xb54] sm:$0xff]
  %v406 = vld [vmem:[%s0 + $0xb5c] sm:$0xf]
  %v407 = vld [vmem:[%s0 + $0xb60] sm:$0xff]
  %v408 = vld [vmem:[%s0 + $0xb68] sm:$0xff]
  %v409 = vld [vmem:[%s0 + $0xb70] sm:$0xff]
  %v410 = vld [vmem:[%s0 + $0xb78] sm:$0xff]
  %v411 = vld [vmem:[%s0 + $0xb80] sm:$0xff]
  %v412 = vld [vmem:[%s0 + $0xb88] sm:$0xff]
  %v413 = vld [vmem:[%s0 + $0xb90] sm:$0xf]
  %v414 = vld [vmem:[%s0 + $0xb94] sm:$0xff]
  %v415 = vld [vmem:[%s0 + $0xb9c] sm:$0xff]
  %v416 = vld [vmem:[%s0 + $0xba4] sm:$0xff]
  %v417 = vld [vmem:[%s0 + $0xbac] sm:$0xff]
  %v418 = vld [vmem:[%s0 + $0xbb4] sm:$0xff]
  %v419 = vld [vmem:[%s0 + $0xbbc] sm:$0xff]
  %v420 = vld [vmem:[%s0 + $0xbc4] sm:$0xf]
  %v421 = vld [vmem:[%s0 + $0xbc8] sm:$0xff]
  %v422 = vld [vmem:[%s0 + $0xbd0] sm:$0xff]
  %v423 = vld [vmem:[%s0 + $0xbd8] sm:$0xff]
  %v424 = vld [vmem:[%s0 + $0xbe0] sm:$0xff]
  %v425 = vld [vmem:[%s0 + $0xbe8] sm:$0xff]
  %v426 = vld [vmem:[%s0 + $0xbf0] sm:$0xff]
  %v427 = vld [vmem:[%s0 + $0xbf8] sm:$0xf]
  %v428 = vld [vmem:[%s0 + $0xbfc] sm:$0xff]
  %v429 = vld [vmem:[%s0 + $0xc04] sm:$0xff]
  %v430 = vld [vmem:[%s0 + $0xc0c] sm:$0xff]
  %v431 = vld [vmem:[%s0 + $0xc14] sm:$0xff]
  %v432 = vld [vmem:[%s0 + $0xc1c] sm:$0xff]
  %v433 = vld [vmem:[%s0 + $0xc24] sm:$0xff]
  %v434 = vld [vmem:[%s0 + $0xc2c] sm:$0xf]
  %v435 = vld [vmem:[%s0 + $0xc30] sm:$0xff]
  %v436 = vld [vmem:[%s0 + $0xc38] sm:$0xff]
  %v437 = vld [vmem:[%s0 + $0xc40] sm:$0xff]
  %v438 = vld [vmem:[%s0 + $0xc48] sm:$0xff]
  %v439 = vld [vmem:[%s0 + $0xc50] sm:$0xff]
  %v440 = vld [vmem:[%s0 + $0xc58] sm:$0xff]
  %v441 = vld [vmem:[%s0 + $0xc60] sm:$0xf]
  %v442 = vld [vmem:[%s0 + $0xc64] sm:$0xff]
  %v443 = vld [vmem:[%s0 + $0xc6c] sm:$0xff]
  %v444 = vld [vmem:[%s0 + $0xc74] sm:$0xff]
  %v445 = vld [vmem:[%s0 + $0xc7c] sm:$0xff]
  %v446 = vld [vmem:[%s0 + $0xc84] sm:$0xff]
  %v447 = vld [vmem:[%s0 + $0xc8c] sm:$0xff]
  %v448 = vld [vmem:[%s0 + $0xc94] sm:$0xf]
  %v449 = vld [vmem:[%s0 + $0xc98] sm:$0xff]
  %v450 = vld [vmem:[%s0 + $0xca0] sm:$0xff]
  %v451 = vld [vmem:[%s0 + $0xca8] sm:$0xff]
  %v452 = vld [vmem:[%s0 + $0xcb0] sm:$0xff]
  %v453 = vld [vmem:[%s0 + $0xcb8] sm:$0xff]
  %v454 = vld [vmem:[%s0 + $0xcc0] sm:$0xff]
  %v455 = vld [vmem:[%s0 + $0xcc8] sm:$0xf]
  %v456 = vld [vmem:[%s0 + $0xccc] sm:$0xff]
  %v457 = vld [vmem:[%s0 + $0xcd4] sm:$0xff]
  %v458 = vld [vmem:[%s0 + $0xcdc] sm:$0xff]
  %v459 = vld [vmem:[%s0 + $0xce4] sm:$0xff]
  %v460 = vld [vmem:[%s0 + $0xcec] sm:$0xff]
  %v461 = vld [vmem:[%s0 + $0xcf4] sm:$0xff]
  %v462 = vld [vmem:[%s0 + $0xcfc] sm:$0xf]
  %v463 = vld [vmem:[%s1] sm:$0xf]
  %v464 = vld [vmem:[%s1 + $0x4] sm:$0xf]
  %v465 = vld [vmem:[%s1 + $0x8] sm:$0xf]
  %v466 = vld [vmem:[%s1 + $0xc] sm:$0xf]
  %v467 = vld [vmem:[%s1 + $0x10] sm:$0xf]
  %v468 = vld [vmem:[%s1 + $0x14] sm:$0xf]
  %v469 = vld [vmem:[%s1 + $0x18] sm:$0xf]
  %v470 = vld [vmem:[%s1 + $0x1c] sm:$0xf]
  %v471 = vld [vmem:[%s1 + $0x20] sm:$0xf]
  %v472 = vld [vmem:[%s1 + $0x24] sm:$0xf]
  %v473 = vld [vmem:[%s1 + $0x28] sm:$0xf]
  %v474 = vld [vmem:[%s1 + $0x2c] sm:$0xf]
  %v475 = vld [vmem:[%s1 + $0x30] sm:$0xf]
  %v476 = vld [vmem:[%s1 + $0x34] sm:$0xf]
  %v477 = vld [vmem:[%s1 + $0x38] sm:$0xf]
  %v478 = vld [vmem:[%s1 + $0x3c] sm:$0xf]
  %v479 = vld [vmem:[%s1 + $0x40] sm:$0xf]
  %v480 = vld [vmem:[%s1 + $0x44] sm:$0xf]
  %v481 = vld [vmem:[%s1 + $0x48] sm:$0xf]
  %v482 = vld [vmem:[%s1 + $0x4c] sm:$0xf]
  %v483 = vld [vmem:[%s1 + $0x50] sm:$0xf]
  %v484 = vld [vmem:[%s1 + $0x54] sm:$0xf]
  %v485 = vld [vmem:[%s1 + $0x58] sm:$0xf]
  %v486 = vld [vmem:[%s1 + $0x5c] sm:$0xf]
  %v487 = vld [vmem:[%s1 + $0x60] sm:$0xf]
  %v488 = vld [vmem:[%s1 + $0x64] sm:$0xf]
  %v489 = vld [vmem:[%s1 + $0x68] sm:$0xf]
  %v490 = vld [vmem:[%s1 + $0x6c] sm:$0xf]
  %v491 = vld [vmem:[%s1 + $0x70] sm:$0xf]
  %v492 = vld [vmem:[%s1 + $0x74] sm:$0xf]
  %v493 = vld [vmem:[%s1 + $0x78] sm:$0xf]
  %v494 = vld [vmem:[%s1 + $0x7c] sm:$0xf]
  %v495 = vld [vmem:[%s1 + $0x80] sm:$0xf]
  %v496 = vld [vmem:[%s1 + $0x84] sm:$0xf]
  %v497 = vld [vmem:[%s1 + $0x88] sm:$0xf]
  %v498 = vld [vmem:[%s1 + $0x8c] sm:$0xf]
  %v499 = vld [vmem:[%s1 + $0x90] sm:$0xf]
  %v500 = vld [vmem:[%s1 + $0x94] sm:$0xf]
  %v501 = vld [vmem:[%s1 + $0x98] sm:$0xf]
  %v502 = vld [vmem:[%s1 + $0x9c] sm:$0xf]
  %v503 = vld [vmem:[%s1 + $0xa0] sm:$0xf]
  %v504 = vld [vmem:[%s1 + $0xa4] sm:$0xf]
  %v505 = vld [vmem:[%s1 + $0xa8] sm:$0xf]
  %v506 = vld [vmem:[%s1 + $0xac] sm:$0xf]
  %v507 = vld [vmem:[%s1 + $0xb0] sm:$0xf]
  %v508 = vld [vmem:[%s1 + $0xb4] sm:$0xf]
  %v509 = vld [vmem:[%s1 + $0xb8] sm:$0xf]
  %v510 = vld [vmem:[%s1 + $0xbc] sm:$0xf]
  %v511 = vld [vmem:[%s1 + $0xc0] sm:$0xf]
  %v512 = vld [vmem:[%s1 + $0xc4] sm:$0xf]
  %v513 = vld [vmem:[%s1 + $0xc8] sm:$0xf]
  %v514 = vld [vmem:[%s1 + $0xcc] sm:$0xf]
  %v515 = vld [vmem:[%s1 + $0xd0] sm:$0xf]
  %v516 = vld [vmem:[%s1 + $0xd4] sm:$0xf]
  %v517 = vld [vmem:[%s1 + $0xd8] sm:$0xf]
  %v518 = vld [vmem:[%s1 + $0xdc] sm:$0xf]
  %v519 = vld [vmem:[%s1 + $0xe0] sm:$0xf]
  %v520 = vld [vmem:[%s1 + $0xe4] sm:$0xf]
  %v521 = vld [vmem:[%s1 + $0xe8] sm:$0xf]
  %v522 = vld [vmem:[%s1 + $0xec] sm:$0xf]
  %v523 = vld [vmem:[%s1 + $0xf0] sm:$0xf]
  %v524 = vld [vmem:[%s1 + $0xf4] sm:$0xf]
  %v525 = vld [vmem:[%s1 + $0xf8] sm:$0xf]
  %v526 = vld [vmem:[%s1 + $0xfc] sm:$0xf]
  %v527 = vld [vmem:[%s1 + $0x100] sm:$0xf]
  %v528 = vld [vmem:[%s1 + $0x104] sm:$0xf]
  %v529 = vld [vmem:[%s1 + $0x108] sm:$0xf]
  %v530 = vld [vmem:[%s1 + $0x10c] sm:$0xf]
  %v531 = vld [vmem:[%s1 + $0x110] sm:$0xf]
  %v532 = vld [vmem:[%s1 + $0x114] sm:$0xf]
  %v533 = vld [vmem:[%s1 + $0x118] sm:$0xf]
  %v534 = vld [vmem:[%s1 + $0x11c] sm:$0xf]
  %v535 = vld [vmem:[%s1 + $0x120] sm:$0xf]
  %v536 = vld [vmem:[%s1 + $0x124] sm:$0xf]
  %v537 = vld [vmem:[%s1 + $0x128] sm:$0xf]
  %v538 = vld [vmem:[%s1 + $0x12c] sm:$0xf]
  %v539 = vld [vmem:[%s1 + $0x130] sm:$0xf]
  %v540 = vld [vmem:[%s1 + $0x134] sm:$0xf]
  %v541 = vld [vmem:[%s1 + $0x138] sm:$0xf]
  %v542 = vld [vmem:[%s1 + $0x13c] sm:$0xf]
  %v543 = vld [vmem:[%s1 + $0x140] sm:$0xf]
  %v544 = vld [vmem:[%s1 + $0x144] sm:$0xf]
  %v545 = vld [vmem:[%s1 + $0x148] sm:$0xf]
  %v546 = vld [vmem:[%s1 + $0x14c] sm:$0xf]
  %v547 = vld [vmem:[%s1 + $0x150] sm:$0xf]
  %v548 = vld [vmem:[%s1 + $0x154] sm:$0xf]
  %v549 = vld [vmem:[%s1 + $0x158] sm:$0xf]
  %v550 = vld [vmem:[%s1 + $0x15c] sm:$0xf]
  %v551 = vld [vmem:[%s1 + $0x160] sm:$0xf]
  %v552 = vld [vmem:[%s1 + $0x164] sm:$0xf]
  %v553 = vld [vmem:[%s1 + $0x168] sm:$0xf]
  %v554 = vld [vmem:[%s1 + $0x16c] sm:$0xf]
  %v555 = vld [vmem:[%s1 + $0x170] sm:$0xf]
  %v556 = vld [vmem:[%s1 + $0x174] sm:$0xf]
  %v557 = vld [vmem:[%s1 + $0x178] sm:$0xf]
  %v558 = vld [vmem:[%s1 + $0x17c] sm:$0xf]
  %v559 = vld [vmem:[%s1 + $0x180] sm:$0xf]
  %v560 = vld [vmem:[%s1 + $0x184] sm:$0xf]
  %v561 = vld [vmem:[%s1 + $0x188] sm:$0xf]
  %v562 = vld [vmem:[%s1 + $0x18c] sm:$0xf]
  %v563 = vld [vmem:[%s1 + $0x190] sm:$0xf]
  %v564 = vld [vmem:[%s1 + $0x194] sm:$0xf]
  %v565 = vld [vmem:[%s1 + $0x198] sm:$0xf]
  %v566 = vld [vmem:[%s1 + $0x19c] sm:$0xf]
  %v567 = vld [vmem:[%s1 + $0x1a0] sm:$0xf]
  %v568 = vld [vmem:[%s1 + $0x1a4] sm:$0xf]
  %v569 = vld [vmem:[%s1 + $0x1a8] sm:$0xf]
  %v570 = vld [vmem:[%s1 + $0x1ac] sm:$0xf]
  %v571 = vld [vmem:[%s1 + $0x1b0] sm:$0xf]
  %v572 = vld [vmem:[%s1 + $0x1b4] sm:$0xf]
  %v573 = vld [vmem:[%s1 + $0x1b8] sm:$0xf]
  %v574 = vld [vmem:[%s1 + $0x1bc] sm:$0xf]
  %v575 = vld [vmem:[%s1 + $0x1c0] sm:$0xf]
  %v576 = vld [vmem:[%s1 + $0x1c4] sm:$0xf]
  %v577 = vld [vmem:[%s1 + $0x1c8] sm:$0xf]
  %v578 = vld [vmem:[%s1 + $0x1cc] sm:$0xf]
  %v579 = vld [vmem:[%s1 + $0x1d0] sm:$0xf]
  %v580 = vld [vmem:[%s1 + $0x1d4] sm:$0xf]
  %v581 = vld [vmem:[%s1 + $0x1d8] sm:$0xf]
  %v582 = vld [vmem:[%s1 + $0x1dc] sm:$0xf]
  %v583 = vld [vmem:[%s1 + $0x1e0] sm:$0xf]
  %v584 = vld [vmem:[%s1 + $0x1e4] sm:$0xf]
  %v585 = vld [vmem:[%s1 + $0x1e8] sm:$0xf]
  %v586 = vld [vmem:[%s1 + $0x1ec] sm:$0xf]
  %v587 = vld [vmem:[%s1 + $0x1f0] sm:$0xf]
  %v588 = vld [vmem:[%s1 + $0x1f4] sm:$0xf]
  %v589 = vld [vmem:[%s1 + $0x1f8] sm:$0xf]
  %v590 = vld [vmem:[%s1 + $0x1fc] sm:$0xf]
  %v591 = vld [vmem:[%s1 + $0x200] sm:$0xf]
  %v592 = vld [vmem:[%s1 + $0x204] sm:$0xf]
  %v593 = vld [vmem:[%s1 + $0x208] sm:$0xf]
  %v594 = vld [vmem:[%s1 + $0x20c] sm:$0xf]
  %v595 = vld [vmem:[%s1 + $0x210] sm:$0xf]
  %v596 = vld [vmem:[%s1 + $0x214] sm:$0xf]
  %v597 = vld [vmem:[%s1 + $0x218] sm:$0xf]
  %v598 = vld [vmem:[%s1 + $0x21c] sm:$0xf]
  %v599 = vld [vmem:[%s1 + $0x220] sm:$0xf]
  %v600 = vld [vmem:[%s1 + $0x224] sm:$0xf]
  %v601 = vld [vmem:[%s1 + $0x228] sm:$0xf]
  %v602 = vld [vmem:[%s1 + $0x22c] sm:$0xf]
  %v603 = vld [vmem:[%s1 + $0x230] sm:$0xf]
  %v604 = vld [vmem:[%s1 + $0x234] sm:$0xf]
  %v605 = vld [vmem:[%s1 + $0x238] sm:$0xf]
  %v606 = vld [vmem:[%s1 + $0x23c] sm:$0xf]
  %v607 = vld [vmem:[%s1 + $0x240] sm:$0xf]
  %v608 = vld [vmem:[%s1 + $0x244] sm:$0xf]
  %v609 = vld [vmem:[%s1 + $0x248] sm:$0xf]
  %v610 = vld [vmem:[%s1 + $0x24c] sm:$0xf]
  %v611 = vld [vmem:[%s1 + $0x250] sm:$0xf]
  %v612 = vld [vmem:[%s1 + $0x254] sm:$0xf]
  %v613 = vld [vmem:[%s1 + $0x258] sm:$0xf]
  %v614 = vld [vmem:[%s1 + $0x25c] sm:$0xf]
  %v615 = vld [vmem:[%s1 + $0x260] sm:$0xf]
  %v616 = vld [vmem:[%s1 + $0x264] sm:$0xf]
  %v617 = vld [vmem:[%s1 + $0x268] sm:$0xf]
  %v618 = vld [vmem:[%s1 + $0x26c] sm:$0xf]
  %v619 = vld [vmem:[%s1 + $0x270] sm:$0xf]
  %v620 = vld [vmem:[%s1 + $0x274] sm:$0xf]
  %v621 = vld [vmem:[%s1 + $0x278] sm:$0xf]
  %v622 = vld [vmem:[%s1 + $0x27c] sm:$0xf]
  %v623 = vld [vmem:[%s1 + $0x280] sm:$0xf]
  %v624 = vld [vmem:[%s1 + $0x284] sm:$0xf]
  %v625 = vld [vmem:[%s1 + $0x288] sm:$0xf]
  %v626 = vld [vmem:[%s1 + $0x28c] sm:$0xf]
  %v627 = vld [vmem:[%s1 + $0x290] sm:$0xf]
  %v628 = vld [vmem:[%s1 + $0x294] sm:$0xf]
  %v629 = vld [vmem:[%s1 + $0x298] sm:$0xf]
  %v630 = vld [vmem:[%s1 + $0x29c] sm:$0xf]
  %v631 = vld [vmem:[%s1 + $0x2a0] sm:$0xf]
  %v632 = vld [vmem:[%s1 + $0x2a4] sm:$0xf]
  %v633 = vld [vmem:[%s1 + $0x2a8] sm:$0xf]
  %v634 = vld [vmem:[%s1 + $0x2ac] sm:$0xf]
  %v635 = vld [vmem:[%s1 + $0x2b0] sm:$0xf]
  %v636 = vld [vmem:[%s1 + $0x2b4] sm:$0xf]
  %v637 = vld [vmem:[%s1 + $0x2b8] sm:$0xf]
  %v638 = vld [vmem:[%s1 + $0x2bc] sm:$0xf]
  %v639 = vld [vmem:[%s1 + $0x2c0] sm:$0xf]
  %v640 = vld [vmem:[%s1 + $0x2c4] sm:$0xf]
  %v641 = vld [vmem:[%s1 + $0x2c8] sm:$0xf]
  %v642 = vld [vmem:[%s1 + $0x2cc] sm:$0xf]
  %v643 = vld [vmem:[%s1 + $0x2d0] sm:$0xf]
  %v644 = vld [vmem:[%s1 + $0x2d4] sm:$0xf]
  %v645 = vld [vmem:[%s1 + $0x2d8] sm:$0xf]
  %v646 = vld [vmem:[%s1 + $0x2dc] sm:$0xf]
  %v647 = vld [vmem:[%s1 + $0x2e0] sm:$0xf]
  %v648 = vld [vmem:[%s1 + $0x2e4] sm:$0xf]
  %v649 = vld [vmem:[%s1 + $0x2e8] sm:$0xf]
  %v650 = vld [vmem:[%s1 + $0x2ec] sm:$0xf]
  %v651 = vld [vmem:[%s1 + $0x2f0] sm:$0xf]
  %v652 = vld [vmem:[%s1 + $0x2f4] sm:$0xf]
  %v653 = vld [vmem:[%s1 + $0x2f8] sm:$0xf]
  %v654 = vld [vmem:[%s1 + $0x2fc] sm:$0xf]
  %v655 = vld [vmem:[%s1 + $0x300] sm:$0xf]
  %v656 = vld [vmem:[%s1 + $0x304] sm:$0xf]
  %v657 = vld [vmem:[%s1 + $0x308] sm:$0xf]
  %v658 = vld [vmem:[%s1 + $0x30c] sm:$0xf]
  %v659 = vld [vmem:[%s2] sm:$0x1]
  %v661 = vperm.slane %v659, 0
  %v1111 = vunpack.c.l.b16 %v15
  %v1112 = vunpack.c.h.b16 %v15
  %v1113 = vunpack.c.l.b16 %v16
  %v1114 = vunpack.c.h.b16 %v16
  %v1115 = vunpack.c.l.b16 %v17
  %v1116 = vunpack.c.h.b16 %v17
  %v1117 = vunpack.c.l.b16 %v18
  %v1118 = vunpack.c.h.b16 %v18
  %v1119 = vunpack.c.l.b16 %v19
  %v1120 = vunpack.c.h.b16 %v19
  %v1121 = vunpack.c.l.b16 %v20
  %v1122 = vunpack.c.h.b16 %v20
  %v1123 = vunpack.c.l.b16 %v21
  %v1124 = vunpack.c.l.b16 %v22
  %v1125 = vunpack.c.h.b16 %v22
  %v1126 = vunpack.c.l.b16 %v23
  %v1127 = vunpack.c.h.b16 %v23
  %v1128 = vunpack.c.l.b16 %v24
  %v1129 = vunpack.c.h.b16 %v24
  %v1130 = vunpack.c.l.b16 %v25
  %v1131 = vunpack.c.h.b16 %v25
  %v1132 = vunpack.c.l.b16 %v26
  %v1133 = vunpack.c.h.b16 %v26
  %v1134 = vunpack.c.l.b16 %v27
  %v1135 = vunpack.c.h.b16 %v27
  %v1136 = vunpack.c.l.b16 %v28
  %v1137 = vunpack.c.l.b16 %v29
  %v1138 = vunpack.c.h.b16 %v29
  %v1139 = vunpack.c.l.b16 %v30
  %v1140 = vunpack.c.h.b16 %v30
  %v1141 = vunpack.c.l.b16 %v31
  %v1142 = vunpack.c.h.b16 %v31
  %v1143 = vunpack.c.l.b16 %v32
  %v1144 = vunpack.c.h.b16 %v32
  %v1145 = vunpack.c.l.b16 %v33
  %v1146 = vunpack.c.h.b16 %v33
  %v1147 = vunpack.c.l.b16 %v34
  %v1148 = vunpack.c.h.b16 %v34
  %v1149 = vunpack.c.l.b16 %v35
  %v1150 = vunpack.c.l.b16 %v36
  %v1151 = vunpack.c.h.b16 %v36
  %v1152 = vunpack.c.l.b16 %v37
  %v1153 = vunpack.c.h.b16 %v37
  %v1154 = vunpack.c.l.b16 %v38
  %v1155 = vunpack.c.h.b16 %v38
  %v1156 = vunpack.c.l.b16 %v39
  %v1157 = vunpack.c.h.b16 %v39
  %v1158 = vunpack.c.l.b16 %v40
  %v1159 = vunpack.c.h.b16 %v40
  %v1160 = vunpack.c.l.b16 %v41
  %v1161 = vunpack.c.h.b16 %v41
  %v1162 = vunpack.c.l.b16 %v42
  %v1163 = vunpack.c.l.b16 %v43
  %v1164 = vunpack.c.h.b16 %v43
  %v1165 = vunpack.c.l.b16 %v44
  %v1166 = vunpack.c.h.b16 %v44
  %v1167 = vunpack.c.l.b16 %v45
  %v1168 = vunpack.c.h.b16 %v45
  %v1169 = vunpack.c.l.b16 %v46
  %v1170 = vunpack.c.h.b16 %v46
  %v1171 = vunpack.c.l.b16 %v47
  %v1172 = vunpack.c.h.b16 %v47
  %v1173 = vunpack.c.l.b16 %v48
  %v1174 = vunpack.c.h.b16 %v48
  %v1175 = vunpack.c.l.b16 %v49
  %v1176 = vunpack.c.l.b16 %v50
  %v1177 = vunpack.c.h.b16 %v50
  %v1178 = vunpack.c.l.b16 %v51
  %v1179 = vunpack.c.h.b16 %v51
  %v1180 = vunpack.c.l.b16 %v52
  %v1181 = vunpack.c.h.b16 %v52
  %v1182 = vunpack.c.l.b16 %v53
  %v1183 = vunpack.c.h.b16 %v53
  %v1184 = vunpack.c.l.b16 %v54
  %v1185 = vunpack.c.h.b16 %v54
  %v1186 = vunpack.c.l.b16 %v55
  %v1187 = vunpack.c.h.b16 %v55
  %v1188 = vunpack.c.l.b16 %v56
  %v1189 = vunpack.c.l.b16 %v57
  %v1190 = vunpack.c.h.b16 %v57
  %v1191 = vunpack.c.l.b16 %v58
  %v1192 = vunpack.c.h.b16 %v58
  %v1193 = vunpack.c.l.b16 %v59
  %v1194 = vunpack.c.h.b16 %v59
  %v1195 = vunpack.c.l.b16 %v60
  %v1196 = vunpack.c.h.b16 %v60
  %v1197 = vunpack.c.l.b16 %v61
  %v1198 = vunpack.c.h.b16 %v61
  %v1199 = vunpack.c.l.b16 %v62
  %v1200 = vunpack.c.h.b16 %v62
  %v1201 = vunpack.c.l.b16 %v63
  %v1202 = vunpack.c.l.b16 %v64
  %v1203 = vunpack.c.h.b16 %v64
  %v1204 = vunpack.c.l.b16 %v65
  %v1205 = vunpack.c.h.b16 %v65
  %v1206 = vunpack.c.l.b16 %v66
  %v1207 = vunpack.c.h.b16 %v66
  %v1208 = vunpack.c.l.b16 %v67
  %v1209 = vunpack.c.h.b16 %v67
  %v1210 = vunpack.c.l.b16 %v68
  %v1211 = vunpack.c.h.b16 %v68
  %v1212 = vunpack.c.l.b16 %v69
  %v1213 = vunpack.c.h.b16 %v69
  %v1214 = vunpack.c.l.b16 %v70
  %v1215 = vunpack.c.l.b16 %v71
  %v1216 = vunpack.c.h.b16 %v71
  %v1217 = vunpack.c.l.b16 %v72
  %v1218 = vunpack.c.h.b16 %v72
  %v1219 = vunpack.c.l.b16 %v73
  %v1220 = vunpack.c.h.b16 %v73
  %v1221 = vunpack.c.l.b16 %v74
  %v1222 = vunpack.c.h.b16 %v74
  %v1223 = vunpack.c.l.b16 %v75
  %v1224 = vunpack.c.h.b16 %v75
  %v1225 = vunpack.c.l.b16 %v76
  %v1226 = vunpack.c.h.b16 %v76
  %v1227 = vunpack.c.l.b16 %v77
  %v1228 = vunpack.c.l.b16 %v78
  %v1229 = vunpack.c.h.b16 %v78
  %v1230 = vunpack.c.l.b16 %v79
  %v1231 = vunpack.c.h.b16 %v79
  %v1232 = vunpack.c.l.b16 %v80
  %v1233 = vunpack.c.h.b16 %v80
  %v1234 = vunpack.c.l.b16 %v81
  %v1235 = vunpack.c.h.b16 %v81
  %v1236 = vunpack.c.l.b16 %v82
  %v1237 = vunpack.c.h.b16 %v82
  %v1238 = vunpack.c.l.b16 %v83
  %v1239 = vunpack.c.h.b16 %v83
  %v1240 = vunpack.c.l.b16 %v84
  %v1241 = vunpack.c.l.b16 %v85
  %v1242 = vunpack.c.h.b16 %v85
  %v1243 = vunpack.c.l.b16 %v86
  %v1244 = vunpack.c.h.b16 %v86
  %v1245 = vunpack.c.l.b16 %v87
  %v1246 = vunpack.c.h.b16 %v87
  %v1247 = vunpack.c.l.b16 %v88
  %v1248 = vunpack.c.h.b16 %v88
  %v1249 = vunpack.c.l.b16 %v89
  %v1250 = vunpack.c.h.b16 %v89
  %v1251 = vunpack.c.l.b16 %v90
  %v1252 = vunpack.c.h.b16 %v90
  %v1253 = vunpack.c.l.b16 %v91
  %v1254 = vunpack.c.l.b16 %v92
  %v1255 = vunpack.c.h.b16 %v92
  %v1256 = vunpack.c.l.b16 %v93
  %v1257 = vunpack.c.h.b16 %v93
  %v1258 = vunpack.c.l.b16 %v94
  %v1259 = vunpack.c.h.b16 %v94
  %v1260 = vunpack.c.l.b16 %v95
  %v1261 = vunpack.c.h.b16 %v95
  %v1262 = vunpack.c.l.b16 %v96
  %v1263 = vunpack.c.h.b16 %v96
  %v1264 = vunpack.c.l.b16 %v97
  %v1265 = vunpack.c.h.b16 %v97
  %v1266 = vunpack.c.l.b16 %v98
  %v1267 = vunpack.c.l.b16 %v99
  %v1268 = vunpack.c.h.b16 %v99
  %v1269 = vunpack.c.l.b16 %v100
  %v1270 = vunpack.c.h.b16 %v100
  %v1271 = vunpack.c.l.b16 %v101
  %v1272 = vunpack.c.h.b16 %v101
  %v1273 = vunpack.c.l.b16 %v102
  %v1274 = vunpack.c.h.b16 %v102
  %v1275 = vunpack.c.l.b16 %v103
  %v1276 = vunpack.c.h.b16 %v103
  %v1277 = vunpack.c.l.b16 %v104
  %v1278 = vunpack.c.h.b16 %v104
  %v1279 = vunpack.c.l.b16 %v105
  %v1280 = vunpack.c.l.b16 %v106
  %v1281 = vunpack.c.h.b16 %v106
  %v1282 = vunpack.c.l.b16 %v107
  %v1283 = vunpack.c.h.b16 %v107
  %v1284 = vunpack.c.l.b16 %v108
  %v1285 = vunpack.c.h.b16 %v108
  %v1286 = vunpack.c.l.b16 %v109
  %v1287 = vunpack.c.h.b16 %v109
  %v1288 = vunpack.c.l.b16 %v110
  %v1289 = vunpack.c.h.b16 %v110
  %v1290 = vunpack.c.l.b16 %v111
  %v1291 = vunpack.c.h.b16 %v111
  %v1292 = vunpack.c.l.b16 %v112
  %v1293 = vunpack.c.l.b16 %v113
  %v1294 = vunpack.c.h.b16 %v113
  %v1295 = vunpack.c.l.b16 %v114
  %v1296 = vunpack.c.h.b16 %v114
  %v1297 = vunpack.c.l.b16 %v115
  %v1298 = vunpack.c.h.b16 %v115
  %v1299 = vunpack.c.l.b16 %v116
  %v1300 = vunpack.c.h.b16 %v116
  %v1301 = vunpack.c.l.b16 %v117
  %v1302 = vunpack.c.h.b16 %v117
  %v1303 = vunpack.c.l.b16 %v118
  %v1304 = vunpack.c.h.b16 %v118
  %v1305 = vunpack.c.l.b16 %v119
  %v1306 = vunpack.c.l.b16 %v120
  %v1307 = vunpack.c.h.b16 %v120
  %v1308 = vunpack.c.l.b16 %v121
  %v1309 = vunpack.c.h.b16 %v121
  %v1310 = vunpack.c.l.b16 %v122
  %v1311 = vunpack.c.h.b16 %v122
  %v1312 = vunpack.c.l.b16 %v123
  %v1313 = vunpack.c.h.b16 %v123
  %v1314 = vunpack.c.l.b16 %v124
  %v1315 = vunpack.c.h.b16 %v124
  %v1316 = vunpack.c.l.b16 %v125
  %v1317 = vunpack.c.h.b16 %v125
  %v1318 = vunpack.c.l.b16 %v126
  %v1319 = vunpack.c.l.b16 %v127
  %v1320 = vunpack.c.h.b16 %v127
  %v1321 = vunpack.c.l.b16 %v128
  %v1322 = vunpack.c.h.b16 %v128
  %v1323 = vunpack.c.l.b16 %v129
  %v1324 = vunpack.c.h.b16 %v129
  %v1325 = vunpack.c.l.b16 %v130
  %v1326 = vunpack.c.h.b16 %v130
  %v1327 = vunpack.c.l.b16 %v131
  %v1328 = vunpack.c.h.b16 %v131
  %v1329 = vunpack.c.l.b16 %v132
  %v1330 = vunpack.c.h.b16 %v132
  %v1331 = vunpack.c.l.b16 %v133
  %v1332 = vunpack.c.l.b16 %v134
  %v1333 = vunpack.c.h.b16 %v134
  %v1334 = vunpack.c.l.b16 %v135
  %v1335 = vunpack.c.h.b16 %v135
  %v1336 = vunpack.c.l.b16 %v136
  %v1337 = vunpack.c.h.b16 %v136
  %v1338 = vunpack.c.l.b16 %v137
  %v1339 = vunpack.c.h.b16 %v137
  %v1340 = vunpack.c.l.b16 %v138
  %v1341 = vunpack.c.h.b16 %v138
  %v1342 = vunpack.c.l.b16 %v139
  %v1343 = vunpack.c.h.b16 %v139
  %v1344 = vunpack.c.l.b16 %v140
  %v1345 = vunpack.c.l.b16 %v141
  %v1346 = vunpack.c.h.b16 %v141
  %v1347 = vunpack.c.l.b16 %v142
  %v1348 = vunpack.c.h.b16 %v142
  %v1349 = vunpack.c.l.b16 %v143
  %v1350 = vunpack.c.h.b16 %v143
  %v1351 = vunpack.c.l.b16 %v144
  %v1352 = vunpack.c.h.b16 %v144
  %v1353 = vunpack.c.l.b16 %v145
  %v1354 = vunpack.c.h.b16 %v145
  %v1355 = vunpack.c.l.b16 %v146
  %v1356 = vunpack.c.h.b16 %v146
  %v1357 = vunpack.c.l.b16 %v147
  %v1358 = vunpack.c.l.b16 %v148
  %v1359 = vunpack.c.h.b16 %v148
  %v1360 = vunpack.c.l.b16 %v149
  %v1361 = vunpack.c.h.b16 %v149
  %v1362 = vunpack.c.l.b16 %v150
  %v1363 = vunpack.c.h.b16 %v150
  %v1364 = vunpack.c.l.b16 %v151
  %v1365 = vunpack.c.h.b16 %v151
  %v1366 = vunpack.c.l.b16 %v152
  %v1367 = vunpack.c.h.b16 %v152
  %v1368 = vunpack.c.l.b16 %v153
  %v1369 = vunpack.c.h.b16 %v153
  %v1370 = vunpack.c.l.b16 %v154
  %v1371 = vunpack.c.l.b16 %v155
  %v1372 = vunpack.c.h.b16 %v155
  %v1373 = vunpack.c.l.b16 %v156
  %v1374 = vunpack.c.h.b16 %v156
  %v1375 = vunpack.c.l.b16 %v157
  %v1376 = vunpack.c.h.b16 %v157
  %v1377 = vunpack.c.l.b16 %v158
  %v1378 = vunpack.c.h.b16 %v158
  %v1379 = vunpack.c.l.b16 %v159
  %v1380 = vunpack.c.h.b16 %v159
  %v1381 = vunpack.c.l.b16 %v160
  %v1382 = vunpack.c.h.b16 %v160
  %v1383 = vunpack.c.l.b16 %v161
  %v1384 = vunpack.c.l.b16 %v162
  %v1385 = vunpack.c.h.b16 %v162
  %v1386 = vunpack.c.l.b16 %v163
  %v1387 = vunpack.c.h.b16 %v163
  %v1388 = vunpack.c.l.b16 %v164
  %v1389 = vunpack.c.h.b16 %v164
  %v1390 = vunpack.c.l.b16 %v165
  %v1391 = vunpack.c.h.b16 %v165
  %v1392 = vunpack.c.l.b16 %v166
  %v1393 = vunpack.c.h.b16 %v166
  %v1394 = vunpack.c.l.b16 %v167
  %v1395 = vunpack.c.h.b16 %v167
  %v1396 = vunpack.c.l.b16 %v168
  %v1397 = vunpack.c.l.b16 %v169
  %v1398 = vunpack.c.h.b16 %v169
  %v1399 = vunpack.c.l.b16 %v170
  %v1400 = vunpack.c.h.b16 %v170
  %v1401 = vunpack.c.l.b16 %v171
  %v1402 = vunpack.c.h.b16 %v171
  %v1403 = vunpack.c.l.b16 %v172
  %v1404 = vunpack.c.h.b16 %v172
  %v1405 = vunpack.c.l.b16 %v173
  %v1406 = vunpack.c.h.b16 %v173
  %v1407 = vunpack.c.l.b16 %v174
  %v1408 = vunpack.c.h.b16 %v174
  %v1409 = vunpack.c.l.b16 %v175
  %v1410 = vunpack.c.l.b16 %v176
  %v1411 = vunpack.c.h.b16 %v176
  %v1412 = vunpack.c.l.b16 %v177
  %v1413 = vunpack.c.h.b16 %v177
  %v1414 = vunpack.c.l.b16 %v178
  %v1415 = vunpack.c.h.b16 %v178
  %v1416 = vunpack.c.l.b16 %v179
  %v1417 = vunpack.c.h.b16 %v179
  %v1418 = vunpack.c.l.b16 %v180
  %v1419 = vunpack.c.h.b16 %v180
  %v1420 = vunpack.c.l.b16 %v181
  %v1421 = vunpack.c.h.b16 %v181
  %v1422 = vunpack.c.l.b16 %v182
  %v1423 = vunpack.c.l.b16 %v183
  %v1424 = vunpack.c.h.b16 %v183
  %v1425 = vunpack.c.l.b16 %v184
  %v1426 = vunpack.c.h.b16 %v184
  %v1427 = vunpack.c.l.b16 %v185
  %v1428 = vunpack.c.h.b16 %v185
  %v1429 = vunpack.c.l.b16 %v186
  %v1430 = vunpack.c.h.b16 %v186
  %v1431 = vunpack.c.l.b16 %v187
  %v1432 = vunpack.c.h.b16 %v187
  %v1433 = vunpack.c.l.b16 %v188
  %v1434 = vunpack.c.h.b16 %v188
  %v1435 = vunpack.c.l.b16 %v189
  %v1436 = vunpack.c.l.b16 %v190
  %v1437 = vunpack.c.h.b16 %v190
  %v1438 = vunpack.c.l.b16 %v191
  %v1439 = vunpack.c.h.b16 %v191
  %v1440 = vunpack.c.l.b16 %v192
  %v1441 = vunpack.c.h.b16 %v192
  %v1442 = vunpack.c.l.b16 %v193
  %v1443 = vunpack.c.h.b16 %v193
  %v1444 = vunpack.c.l.b16 %v194
  %v1445 = vunpack.c.h.b16 %v194
  %v1446 = vunpack.c.l.b16 %v195
  %v1447 = vunpack.c.h.b16 %v195
  %v1448 = vunpack.c.l.b16 %v196
  %v1449 = vunpack.c.l.b16 %v197
  %v1450 = vunpack.c.h.b16 %v197
  %v1451 = vunpack.c.l.b16 %v198
  %v1452 = vunpack.c.h.b16 %v198
  %v1453 = vunpack.c.l.b16 %v199
  %v1454 = vunpack.c.h.b16 %v199
  %v1455 = vunpack.c.l.b16 %v200
  %v1456 = vunpack.c.h.b16 %v200
  %v1457 = vunpack.c.l.b16 %v201
  %v1458 = vunpack.c.h.b16 %v201
  %v1459 = vunpack.c.l.b16 %v202
  %v1460 = vunpack.c.h.b16 %v202
  %v1461 = vunpack.c.l.b16 %v203
  %v1462 = vunpack.c.l.b16 %v204
  %v1463 = vunpack.c.h.b16 %v204
  %v1464 = vunpack.c.l.b16 %v205
  %v1465 = vunpack.c.h.b16 %v205
  %v1466 = vunpack.c.l.b16 %v206
  %v1467 = vunpack.c.h.b16 %v206
  %v1468 = vunpack.c.l.b16 %v207
  %v1469 = vunpack.c.h.b16 %v207
  %v1470 = vunpack.c.l.b16 %v208
  %v1471 = vunpack.c.h.b16 %v208
  %v1472 = vunpack.c.l.b16 %v209
  %v1473 = vunpack.c.h.b16 %v209
  %v1474 = vunpack.c.l.b16 %v210
  %v1475 = vunpack.c.l.b16 %v211
  %v1476 = vunpack.c.h.b16 %v211
  %v1477 = vunpack.c.l.b16 %v212
  %v1478 = vunpack.c.h.b16 %v212
  %v1479 = vunpack.c.l.b16 %v213
  %v1480 = vunpack.c.h.b16 %v213
  %v1481 = vunpack.c.l.b16 %v214
  %v1482 = vunpack.c.h.b16 %v214
  %v1483 = vunpack.c.l.b16 %v215
  %v1484 = vunpack.c.h.b16 %v215
  %v1485 = vunpack.c.l.b16 %v216
  %v1486 = vunpack.c.h.b16 %v216
  %v1487 = vunpack.c.l.b16 %v217
  %v1488 = vunpack.c.l.b16 %v218
  %v1489 = vunpack.c.h.b16 %v218
  %v1490 = vunpack.c.l.b16 %v219
  %v1491 = vunpack.c.h.b16 %v219
  %v1492 = vunpack.c.l.b16 %v220
  %v1493 = vunpack.c.h.b16 %v220
  %v1494 = vunpack.c.l.b16 %v221
  %v1495 = vunpack.c.h.b16 %v221
  %v1496 = vunpack.c.l.b16 %v222
  %v1497 = vunpack.c.h.b16 %v222
  %v1498 = vunpack.c.l.b16 %v223
  %v1499 = vunpack.c.h.b16 %v223
  %v1500 = vunpack.c.l.b16 %v224
  %v1501 = vunpack.c.l.b16 %v225
  %v1502 = vunpack.c.h.b16 %v225
  %v1503 = vunpack.c.l.b16 %v226
  %v1504 = vunpack.c.h.b16 %v226
  %v1505 = vunpack.c.l.b16 %v227
  %v1506 = vunpack.c.h.b16 %v227
  %v1507 = vunpack.c.l.b16 %v228
  %v1508 = vunpack.c.h.b16 %v228
  %v1509 = vunpack.c.l.b16 %v229
  %v1510 = vunpack.c.h.b16 %v229
  %v1511 = vunpack.c.l.b16 %v230
  %v1512 = vunpack.c.h.b16 %v230
  %v1513 = vunpack.c.l.b16 %v231
  %v1514 = vunpack.c.l.b16 %v232
  %v1515 = vunpack.c.h.b16 %v232
  %v1516 = vunpack.c.l.b16 %v233
  %v1517 = vunpack.c.h.b16 %v233
  %v1518 = vunpack.c.l.b16 %v234
  %v1519 = vunpack.c.h.b16 %v234
  %v1520 = vunpack.c.l.b16 %v235
  %v1521 = vunpack.c.h.b16 %v235
  %v1522 = vunpack.c.l.b16 %v236
  %v1523 = vunpack.c.h.b16 %v236
  %v1524 = vunpack.c.l.b16 %v237
  %v1525 = vunpack.c.h.b16 %v237
  %v1526 = vunpack.c.l.b16 %v238
  %v1527 = vunpack.c.l.b16 %v239
  %v1528 = vunpack.c.h.b16 %v239
  %v1529 = vunpack.c.l.b16 %v240
  %v1530 = vunpack.c.h.b16 %v240
  %v1531 = vunpack.c.l.b16 %v241
  %v1532 = vunpack.c.h.b16 %v241
  %v1533 = vunpack.c.l.b16 %v242
  %v1534 = vunpack.c.h.b16 %v242
  %v1535 = vunpack.c.l.b16 %v243
  %v1536 = vunpack.c.h.b16 %v243
  %v1537 = vunpack.c.l.b16 %v244
  %v1538 = vunpack.c.h.b16 %v244
  %v1539 = vunpack.c.l.b16 %v245
  %v1540 = vunpack.c.l.b16 %v246
  %v1541 = vunpack.c.h.b16 %v246
  %v1542 = vunpack.c.l.b16 %v247
  %v1543 = vunpack.c.h.b16 %v247
  %v1544 = vunpack.c.l.b16 %v248
  %v1545 = vunpack.c.h.b16 %v248
  %v1546 = vunpack.c.l.b16 %v249
  %v1547 = vunpack.c.h.b16 %v249
  %v1548 = vunpack.c.l.b16 %v250
  %v1549 = vunpack.c.h.b16 %v250
  %v1550 = vunpack.c.l.b16 %v251
  %v1551 = vunpack.c.h.b16 %v251
  %v1552 = vunpack.c.l.b16 %v252
  %v1553 = vunpack.c.l.b16 %v253
  %v1554 = vunpack.c.h.b16 %v253
  %v1555 = vunpack.c.l.b16 %v254
  %v1556 = vunpack.c.h.b16 %v254
  %v1557 = vunpack.c.l.b16 %v255
  %v1558 = vunpack.c.h.b16 %v255
  %v1559 = vunpack.c.l.b16 %v256
  %v1560 = vunpack.c.h.b16 %v256
  %v1561 = vunpack.c.l.b16 %v257
  %v1562 = vunpack.c.h.b16 %v257
  %v1563 = vunpack.c.l.b16 %v258
  %v1564 = vunpack.c.h.b16 %v258
  %v1565 = vunpack.c.l.b16 %v259
  %v1566 = vunpack.c.l.b16 %v260
  %v1567 = vunpack.c.h.b16 %v260
  %v1568 = vunpack.c.l.b16 %v261
  %v1569 = vunpack.c.h.b16 %v261
  %v1570 = vunpack.c.l.b16 %v262
  %v1571 = vunpack.c.h.b16 %v262
  %v1572 = vunpack.c.l.b16 %v263
  %v1573 = vunpack.c.h.b16 %v263
  %v1574 = vunpack.c.l.b16 %v264
  %v1575 = vunpack.c.h.b16 %v264
  %v1576 = vunpack.c.l.b16 %v265
  %v1577 = vunpack.c.h.b16 %v265
  %v1578 = vunpack.c.l.b16 %v266
  %v1579 = vunpack.c.l.b16 %v267
  %v1580 = vunpack.c.h.b16 %v267
  %v1581 = vunpack.c.l.b16 %v268
  %v1582 = vunpack.c.h.b16 %v268
  %v1583 = vunpack.c.l.b16 %v269
  %v1584 = vunpack.c.h.b16 %v269
  %v1585 = vunpack.c.l.b16 %v270
  %v1586 = vunpack.c.h.b16 %v270
  %v1587 = vunpack.c.l.b16 %v271
  %v1588 = vunpack.c.h.b16 %v271
  %v1589 = vunpack.c.l.b16 %v272
  %v1590 = vunpack.c.h.b16 %v272
  %v1591 = vunpack.c.l.b16 %v273
  %v1592 = vunpack.c.l.b16 %v274
  %v1593 = vunpack.c.h.b16 %v274
  %v1594 = vunpack.c.l.b16 %v275
  %v1595 = vunpack.c.h.b16 %v275
  %v1596 = vunpack.c.l.b16 %v276
  %v1597 = vunpack.c.h.b16 %v276
  %v1598 = vunpack.c.l.b16 %v277
  %v1599 = vunpack.c.h.b16 %v277
  %v1600 = vunpack.c.l.b16 %v278
  %v1601 = vunpack.c.h.b16 %v278
  %v1602 = vunpack.c.l.b16 %v279
  %v1603 = vunpack.c.h.b16 %v279
  %v1604 = vunpack.c.l.b16 %v280
  %v1605 = vunpack.c.l.b16 %v281
  %v1606 = vunpack.c.h.b16 %v281
  %v1607 = vunpack.c.l.b16 %v282
  %v1608 = vunpack.c.h.b16 %v282
  %v1609 = vunpack.c.l.b16 %v283
  %v1610 = vunpack.c.h.b16 %v283
  %v1611 = vunpack.c.l.b16 %v284
  %v1612 = vunpack.c.h.b16 %v284
  %v1613 = vunpack.c.l.b16 %v285
  %v1614 = vunpack.c.h.b16 %v285
  %v1615 = vunpack.c.l.b16 %v286
  %v1616 = vunpack.c.h.b16 %v286
  %v1617 = vunpack.c.l.b16 %v287
  %v1618 = vunpack.c.l.b16 %v288
  %v1619 = vunpack.c.h.b16 %v288
  %v1620 = vunpack.c.l.b16 %v289
  %v1621 = vunpack.c.h.b16 %v289
  %v1622 = vunpack.c.l.b16 %v290
  %v1623 = vunpack.c.h.b16 %v290
  %v1624 = vunpack.c.l.b16 %v291
  %v1625 = vunpack.c.h.b16 %v291
  %v1626 = vunpack.c.l.b16 %v292
  %v1627 = vunpack.c.h.b16 %v292
  %v1628 = vunpack.c.l.b16 %v293
  %v1629 = vunpack.c.h.b16 %v293
  %v1630 = vunpack.c.l.b16 %v294
  %v1631 = vunpack.c.l.b16 %v295
  %v1632 = vunpack.c.h.b16 %v295
  %v1633 = vunpack.c.l.b16 %v296
  %v1634 = vunpack.c.h.b16 %v296
  %v1635 = vunpack.c.l.b16 %v297
  %v1636 = vunpack.c.h.b16 %v297
  %v1637 = vunpack.c.l.b16 %v298
  %v1638 = vunpack.c.h.b16 %v298
  %v1639 = vunpack.c.l.b16 %v299
  %v1640 = vunpack.c.h.b16 %v299
  %v1641 = vunpack.c.l.b16 %v300
  %v1642 = vunpack.c.h.b16 %v300
  %v1643 = vunpack.c.l.b16 %v301
  %v1644 = vunpack.c.l.b16 %v302
  %v1645 = vunpack.c.h.b16 %v302
  %v1646 = vunpack.c.l.b16 %v303
  %v1647 = vunpack.c.h.b16 %v303
  %v1648 = vunpack.c.l.b16 %v304
  %v1649 = vunpack.c.h.b16 %v304
  %v1650 = vunpack.c.l.b16 %v305
  %v1651 = vunpack.c.h.b16 %v305
  %v1652 = vunpack.c.l.b16 %v306
  %v1653 = vunpack.c.h.b16 %v306
  %v1654 = vunpack.c.l.b16 %v307
  %v1655 = vunpack.c.h.b16 %v307
  %v1656 = vunpack.c.l.b16 %v308
  %v1657 = vunpack.c.l.b16 %v309
  %v1658 = vunpack.c.h.b16 %v309
  %v1659 = vunpack.c.l.b16 %v310
  %v1660 = vunpack.c.h.b16 %v310
  %v1661 = vunpack.c.l.b16 %v311
  %v1662 = vunpack.c.h.b16 %v311
  %v1663 = vunpack.c.l.b16 %v312
  %v1664 = vunpack.c.h.b16 %v312
  %v1665 = vunpack.c.l.b16 %v313
  %v1666 = vunpack.c.h.b16 %v313
  %v1667 = vunpack.c.l.b16 %v314
  %v1668 = vunpack.c.h.b16 %v314
  %v1669 = vunpack.c.l.b16 %v315
  %v1670 = vunpack.c.l.b16 %v316
  %v1671 = vunpack.c.h.b16 %v316
  %v1672 = vunpack.c.l.b16 %v317
  %v1673 = vunpack.c.h.b16 %v317
  %v1674 = vunpack.c.l.b16 %v318
  %v1675 = vunpack.c.h.b16 %v318
  %v1676 = vunpack.c.l.b16 %v319
  %v1677 = vunpack.c.h.b16 %v319
  %v1678 = vunpack.c.l.b16 %v320
  %v1679 = vunpack.c.h.b16 %v320
  %v1680 = vunpack.c.l.b16 %v321
  %v1681 = vunpack.c.h.b16 %v321
  %v1682 = vunpack.c.l.b16 %v322
  %v1683 = vunpack.c.l.b16 %v323
  %v1684 = vunpack.c.h.b16 %v323
  %v1685 = vunpack.c.l.b16 %v324
  %v1686 = vunpack.c.h.b16 %v324
  %v1687 = vunpack.c.l.b16 %v325
  %v1688 = vunpack.c.h.b16 %v325
  %v1689 = vunpack.c.l.b16 %v326
  %v1690 = vunpack.c.h.b16 %v326
  %v1691 = vunpack.c.l.b16 %v327
  %v1692 = vunpack.c.h.b16 %v327
  %v1693 = vunpack.c.l.b16 %v328
  %v1694 = vunpack.c.h.b16 %v328
  %v1695 = vunpack.c.l.b16 %v329
  %v1696 = vunpack.c.l.b16 %v330
  %v1697 = vunpack.c.h.b16 %v330
  %v1698 = vunpack.c.l.b16 %v331
  %v1699 = vunpack.c.h.b16 %v331
  %v1700 = vunpack.c.l.b16 %v332
  %v1701 = vunpack.c.h.b16 %v332
  %v1702 = vunpack.c.l.b16 %v333
  %v1703 = vunpack.c.h.b16 %v333
  %v1704 = vunpack.c.l.b16 %v334
  %v1705 = vunpack.c.h.b16 %v334
  %v1706 = vunpack.c.l.b16 %v335
  %v1707 = vunpack.c.h.b16 %v335
  %v1708 = vunpack.c.l.b16 %v336
  %v1709 = vunpack.c.l.b16 %v337
  %v1710 = vunpack.c.h.b16 %v337
  %v1711 = vunpack.c.l.b16 %v338
  %v1712 = vunpack.c.h.b16 %v338
  %v1713 = vunpack.c.l.b16 %v339
  %v1714 = vunpack.c.h.b16 %v339
  %v1715 = vunpack.c.l.b16 %v340
  %v1716 = vunpack.c.h.b16 %v340
  %v1717 = vunpack.c.l.b16 %v341
  %v1718 = vunpack.c.h.b16 %v341
  %v1719 = vunpack.c.l.b16 %v342
  %v1720 = vunpack.c.h.b16 %v342
  %v1721 = vunpack.c.l.b16 %v343
  %v1722 = vunpack.c.l.b16 %v344
  %v1723 = vunpack.c.h.b16 %v344
  %v1724 = vunpack.c.l.b16 %v345
  %v1725 = vunpack.c.h.b16 %v345
  %v1726 = vunpack.c.l.b16 %v346
  %v1727 = vunpack.c.h.b16 %v346
  %v1728 = vunpack.c.l.b16 %v347
  %v1729 = vunpack.c.h.b16 %v347
  %v1730 = vunpack.c.l.b16 %v348
  %v1731 = vunpack.c.h.b16 %v348
  %v1732 = vunpack.c.l.b16 %v349
  %v1733 = vunpack.c.h.b16 %v349
  %v1734 = vunpack.c.l.b16 %v350
  %v1735 = vunpack.c.l.b16 %v351
  %v1736 = vunpack.c.h.b16 %v351
  %v1737 = vunpack.c.l.b16 %v352
  %v1738 = vunpack.c.h.b16 %v352
  %v1739 = vunpack.c.l.b16 %v353
  %v1740 = vunpack.c.h.b16 %v353
  %v1741 = vunpack.c.l.b16 %v354
  %v1742 = vunpack.c.h.b16 %v354
  %v1743 = vunpack.c.l.b16 %v355
  %v1744 = vunpack.c.h.b16 %v355
  %v1745 = vunpack.c.l.b16 %v356
  %v1746 = vunpack.c.h.b16 %v356
  %v1747 = vunpack.c.l.b16 %v357
  %v1748 = vunpack.c.l.b16 %v358
  %v1749 = vunpack.c.h.b16 %v358
  %v1750 = vunpack.c.l.b16 %v359
  %v1751 = vunpack.c.h.b16 %v359
  %v1752 = vunpack.c.l.b16 %v360
  %v1753 = vunpack.c.h.b16 %v360
  %v1754 = vunpack.c.l.b16 %v361
  %v1755 = vunpack.c.h.b16 %v361
  %v1756 = vunpack.c.l.b16 %v362
  %v1757 = vunpack.c.h.b16 %v362
  %v1758 = vunpack.c.l.b16 %v363
  %v1759 = vunpack.c.h.b16 %v363
  %v1760 = vunpack.c.l.b16 %v364
  %v1761 = vunpack.c.l.b16 %v365
  %v1762 = vunpack.c.h.b16 %v365
  %v1763 = vunpack.c.l.b16 %v366
  %v1764 = vunpack.c.h.b16 %v366
  %v1765 = vunpack.c.l.b16 %v367
  %v1766 = vunpack.c.h.b16 %v367
  %v1767 = vunpack.c.l.b16 %v368
  %v1768 = vunpack.c.h.b16 %v368
  %v1769 = vunpack.c.l.b16 %v369
  %v1770 = vunpack.c.h.b16 %v369
  %v1771 = vunpack.c.l.b16 %v370
  %v1772 = vunpack.c.h.b16 %v370
  %v1773 = vunpack.c.l.b16 %v371
  %v1774 = vunpack.c.l.b16 %v372
  %v1775 = vunpack.c.h.b16 %v372
  %v1776 = vunpack.c.l.b16 %v373
  %v1777 = vunpack.c.h.b16 %v373
  %v1778 = vunpack.c.l.b16 %v374
  %v1779 = vunpack.c.h.b16 %v374
  %v1780 = vunpack.c.l.b16 %v375
  %v1781 = vunpack.c.h.b16 %v375
  %v1782 = vunpack.c.l.b16 %v376
  %v1783 = vunpack.c.h.b16 %v376
  %v1784 = vunpack.c.l.b16 %v377
  %v1785 = vunpack.c.h.b16 %v377
  %v1786 = vunpack.c.l.b16 %v378
  %v1787 = vunpack.c.l.b16 %v379
  %v1788 = vunpack.c.h.b16 %v379
  %v1789 = vunpack.c.l.b16 %v380
  %v1790 = vunpack.c.h.b16 %v380
  %v1791 = vunpack.c.l.b16 %v381
  %v1792 = vunpack.c.h.b16 %v381
  %v1793 = vunpack.c.l.b16 %v382
  %v1794 = vunpack.c.h.b16 %v382
  %v1795 = vunpack.c.l.b16 %v383
  %v1796 = vunpack.c.h.b16 %v383
  %v1797 = vunpack.c.l.b16 %v384
  %v1798 = vunpack.c.h.b16 %v384
  %v1799 = vunpack.c.l.b16 %v385
  %v1800 = vunpack.c.l.b16 %v386
  %v1801 = vunpack.c.h.b16 %v386
  %v1802 = vunpack.c.l.b16 %v387
  %v1803 = vunpack.c.h.b16 %v387
  %v1804 = vunpack.c.l.b16 %v388
  %v1805 = vunpack.c.h.b16 %v388
  %v1806 = vunpack.c.l.b16 %v389
  %v1807 = vunpack.c.h.b16 %v389
  %v1808 = vunpack.c.l.b16 %v390
  %v1809 = vunpack.c.h.b16 %v390
  %v1810 = vunpack.c.l.b16 %v391
  %v1811 = vunpack.c.h.b16 %v391
  %v1812 = vunpack.c.l.b16 %v392
  %v1813 = vunpack.c.l.b16 %v393
  %v1814 = vunpack.c.h.b16 %v393
  %v1815 = vunpack.c.l.b16 %v394
  %v1816 = vunpack.c.h.b16 %v394
  %v1817 = vunpack.c.l.b16 %v395
  %v1818 = vunpack.c.h.b16 %v395
  %v1819 = vunpack.c.l.b16 %v396
  %v1820 = vunpack.c.h.b16 %v396
  %v1821 = vunpack.c.l.b16 %v397
  %v1822 = vunpack.c.h.b16 %v397
  %v1823 = vunpack.c.l.b16 %v398
  %v1824 = vunpack.c.h.b16 %v398
  %v1825 = vunpack.c.l.b16 %v399
  %v1826 = vunpack.c.l.b16 %v400
  %v1827 = vunpack.c.h.b16 %v400
  %v1828 = vunpack.c.l.b16 %v401
  %v1829 = vunpack.c.h.b16 %v401
  %v1830 = vunpack.c.l.b16 %v402
  %v1831 = vunpack.c.h.b16 %v402
  %v1832 = vunpack.c.l.b16 %v403
  %v1833 = vunpack.c.h.b16 %v403
  %v1834 = vunpack.c.l.b16 %v404
  %v1835 = vunpack.c.h.b16 %v404
  %v1836 = vunpack.c.l.b16 %v405
  %v1837 = vunpack.c.h.b16 %v405
  %v1838 = vunpack.c.l.b16 %v406
  %v1839 = vunpack.c.l.b16 %v407
  %v1840 = vunpack.c.h.b16 %v407
  %v1841 = vunpack.c.l.b16 %v408
  %v1842 = vunpack.c.h.b16 %v408
  %v1843 = vunpack.c.l.b16 %v409
  %v1844 = vunpack.c.h.b16 %v409
  %v1845 = vunpack.c.l.b16 %v410
  %v1846 = vunpack.c.h.b16 %v410
  %v1847 = vunpack.c.l.b16 %v411
  %v1848 = vunpack.c.h.b16 %v411
  %v1849 = vunpack.c.l.b16 %v412
  %v1850 = vunpack.c.h.b16 %v412
  %v1851 = vunpack.c.l.b16 %v413
  %v1852 = vunpack.c.l.b16 %v414
  %v1853 = vunpack.c.h.b16 %v414
  %v1854 = vunpack.c.l.b16 %v415
  %v1855 = vunpack.c.h.b16 %v415
  %v1856 = vunpack.c.l.b16 %v416
  %v1857 = vunpack.c.h.b16 %v416
  %v1858 = vunpack.c.l.b16 %v417
  %v1859 = vunpack.c.h.b16 %v417
  %v1860 = vunpack.c.l.b16 %v418
  %v1861 = vunpack.c.h.b16 %v418
  %v1862 = vunpack.c.l.b16 %v419
  %v1863 = vunpack.c.h.b16 %v419
  %v1864 = vunpack.c.l.b16 %v420
  %v1865 = vunpack.c.l.b16 %v421
  %v1866 = vunpack.c.h.b16 %v421
  %v1867 = vunpack.c.l.b16 %v422
  %v1868 = vunpack.c.h.b16 %v422
  %v1869 = vunpack.c.l.b16 %v423
  %v1870 = vunpack.c.h.b16 %v423
  %v1871 = vunpack.c.l.b16 %v424
  %v1872 = vunpack.c.h.b16 %v424
  %v1873 = vunpack.c.l.b16 %v425
  %v1874 = vunpack.c.h.b16 %v425
  %v1875 = vunpack.c.l.b16 %v426
  %v1876 = vunpack.c.h.b16 %v426
  %v1877 = vunpack.c.l.b16 %v427
  %v1878 = vunpack.c.l.b16 %v428
  %v1879 = vunpack.c.h.b16 %v428
  %v1880 = vunpack.c.l.b16 %v429
  %v1881 = vunpack.c.h.b16 %v429
  %v1882 = vunpack.c.l.b16 %v430
  %v1883 = vunpack.c.h.b16 %v430
  %v1884 = vunpack.c.l.b16 %v431
  %v1885 = vunpack.c.h.b16 %v431
  %v1886 = vunpack.c.l.b16 %v432
  %v1887 = vunpack.c.h.b16 %v432
  %v1888 = vunpack.c.l.b16 %v433
  %v1889 = vunpack.c.h.b16 %v433
  %v1890 = vunpack.c.l.b16 %v434
  %v1891 = vunpack.c.l.b16 %v435
  %v1892 = vunpack.c.h.b16 %v435
  %v1893 = vunpack.c.l.b16 %v436
  %v1894 = vunpack.c.h.b16 %v436
  %v1895 = vunpack.c.l.b16 %v437
  %v1896 = vunpack.c.h.b16 %v437
  %v1897 = vunpack.c.l.b16 %v438
  %v1898 = vunpack.c.h.b16 %v438
  %v1899 = vunpack.c.l.b16 %v439
  %v1900 = vunpack.c.h.b16 %v439
  %v1901 = vunpack.c.l.b16 %v440
  %v1902 = vunpack.c.h.b16 %v440
  %v1903 = vunpack.c.l.b16 %v441
  %v1904 = vunpack.c.l.b16 %v442
  %v1905 = vunpack.c.h.b16 %v442
  %v1906 = vunpack.c.l.b16 %v443
  %v1907 = vunpack.c.h.b16 %v443
  %v1908 = vunpack.c.l.b16 %v444
  %v1909 = vunpack.c.h.b16 %v444
  %v1910 = vunpack.c.l.b16 %v445
  %v1911 = vunpack.c.h.b16 %v445
  %v1912 = vunpack.c.l.b16 %v446
  %v1913 = vunpack.c.h.b16 %v446
  %v1914 = vunpack.c.l.b16 %v447
  %v1915 = vunpack.c.h.b16 %v447
  %v1916 = vunpack.c.l.b16 %v448
  %v1917 = vunpack.c.l.b16 %v449
  %v1918 = vunpack.c.h.b16 %v449
  %v1919 = vunpack.c.l.b16 %v450
  %v1920 = vunpack.c.h.b16 %v450
  %v1921 = vunpack.c.l.b16 %v451
  %v1922 = vunpack.c.h.b16 %v451
  %v1923 = vunpack.c.l.b16 %v452
  %v1924 = vunpack.c.h.b16 %v452
  %v1925 = vunpack.c.l.b16 %v453
  %v1926 = vunpack.c.h.b16 %v453
  %v1927 = vunpack.c.l.b16 %v454
  %v1928 = vunpack.c.h.b16 %v454
  %v1929 = vunpack.c.l.b16 %v455
  %v1930 = vunpack.c.l.b16 %v456
  %v1931 = vunpack.c.h.b16 %v456
  %v1932 = vunpack.c.l.b16 %v457
  %v1933 = vunpack.c.h.b16 %v457
  %v1934 = vunpack.c.l.b16 %v458
  %v1935 = vunpack.c.h.b16 %v458
  %v1936 = vunpack.c.l.b16 %v459
  %v1937 = vunpack.c.h.b16 %v459
  %v1938 = vunpack.c.l.b16 %v460
  %v1939 = vunpack.c.h.b16 %v460
  %v1940 = vunpack.c.l.b16 %v461
  %v1941 = vunpack.c.h.b16 %v461
  %v1942 = vunpack.c.l.b16 %v462
  %v1943 = vpack.c.b16 %v1124, %v1111
  %v1944 = vpack.c.b16 %v1125, %v1112
  %v1945 = vpack.c.b16 %v1126, %v1113
  %v1946 = vpack.c.b16 %v1127, %v1114
  %v1947 = vpack.c.b16 %v1128, %v1115
  %v1948 = vpack.c.b16 %v1129, %v1116
  %v1949 = vpack.c.b16 %v1130, %v1117
  %v1950 = vpack.c.b16 %v1131, %v1118
  %v1951 = vpack.c.b16 %v1132, %v1119
  %v1952 = vpack.c.b16 %v1133, %v1120
  %v1953 = vpack.c.b16 %v1134, %v1121
  %v1954 = vpack.c.b16 %v1135, %v1122
  %v1955 = vpack.c.b16 %v1136, %v1123
  %v1956 = vpack.c.b16 %v1150, %v1137
  %v1957 = vpack.c.b16 %v1151, %v1138
  %v1958 = vpack.c.b16 %v1152, %v1139
  %v1959 = vpack.c.b16 %v1153, %v1140
  %v1960 = vpack.c.b16 %v1154, %v1141
  %v1961 = vpack.c.b16 %v1155, %v1142
  %v1962 = vpack.c.b16 %v1156, %v1143
  %v1963 = vpack.c.b16 %v1157, %v1144
  %v1964 = vpack.c.b16 %v1158, %v1145
  %v1965 = vpack.c.b16 %v1159, %v1146
  %v1966 = vpack.c.b16 %v1160, %v1147
  %v1967 = vpack.c.b16 %v1161, %v1148
  %v1968 = vpack.c.b16 %v1162, %v1149
  %v1969 = vpack.c.b16 %v1176, %v1163
  %v1970 = vpack.c.b16 %v1177, %v1164
  %v1971 = vpack.c.b16 %v1178, %v1165
  %v1972 = vpack.c.b16 %v1179, %v1166
  %v1973 = vpack.c.b16 %v1180, %v1167
  %v1974 = vpack.c.b16 %v1181, %v1168
  %v1975 = vpack.c.b16 %v1182, %v1169
  %v1976 = vpack.c.b16 %v1183, %v1170
  %v1977 = vpack.c.b16 %v1184, %v1171
  %v1978 = vpack.c.b16 %v1185, %v1172
  %v1979 = vpack.c.b16 %v1186, %v1173
  %v1980 = vpack.c.b16 %v1187, %v1174
  %v1981 = vpack.c.b16 %v1188, %v1175
  %v1982 = vpack.c.b16 %v1202, %v1189
  %v1983 = vpack.c.b16 %v1203, %v1190
  %v1984 = vpack.c.b16 %v1204, %v1191
  %v1985 = vpack.c.b16 %v1205, %v1192
  %v1986 = vpack.c.b16 %v1206, %v1193
  %v1987 = vpack.c.b16 %v1207, %v1194
  %v1988 = vpack.c.b16 %v1208, %v1195
  %v1989 = vpack.c.b16 %v1209, %v1196
  %v1990 = vpack.c.b16 %v1210, %v1197
  %v1991 = vpack.c.b16 %v1211, %v1198
  %v1992 = vpack.c.b16 %v1212, %v1199
  %v1993 = vpack.c.b16 %v1213, %v1200
  %v1994 = vpack.c.b16 %v1214, %v1201
  %v1995 = vpack.c.b16 %v1228, %v1215
  %v1996 = vpack.c.b16 %v1229, %v1216
  %v1997 = vpack.c.b16 %v1230, %v1217
  %v1998 = vpack.c.b16 %v1231, %v1218
  %v1999 = vpack.c.b16 %v1232, %v1219
  %v2000 = vpack.c.b16 %v1233, %v1220
  %v2001 = vpack.c.b16 %v1234, %v1221
  %v2002 = vpack.c.b16 %v1235, %v1222
  %v2003 = vpack.c.b16 %v1236, %v1223
  %v2004 = vpack.c.b16 %v1237, %v1224
  %v2005 = vpack.c.b16 %v1238, %v1225
  %v2006 = vpack.c.b16 %v1239, %v1226
  %v2007 = vpack.c.b16 %v1240, %v1227
  %v2008 = vpack.c.b16 %v1254, %v1241
  %v2009 = vpack.c.b16 %v1255, %v1242
  %v2010 = vpack.c.b16 %v1256, %v1243
  %v2011 = vpack.c.b16 %v1257, %v1244
  %v2012 = vpack.c.b16 %v1258, %v1245
  %v2013 = vpack.c.b16 %v1259, %v1246
  %v2014 = vpack.c.b16 %v1260, %v1247
  %v2015 = vpack.c.b16 %v1261, %v1248
  %v2016 = vpack.c.b16 %v1262, %v1249
  %v2017 = vpack.c.b16 %v1263, %v1250
  %v2018 = vpack.c.b16 %v1264, %v1251
  %v2019 = vpack.c.b16 %v1265, %v1252
  %v2020 = vpack.c.b16 %v1266, %v1253
  %v2021 = vpack.c.b16 %v1280, %v1267
  %v2022 = vpack.c.b16 %v1281, %v1268
  %v2023 = vpack.c.b16 %v1282, %v1269
  %v2024 = vpack.c.b16 %v1283, %v1270
  %v2025 = vpack.c.b16 %v1284, %v1271
  %v2026 = vpack.c.b16 %v1285, %v1272
  %v2027 = vpack.c.b16 %v1286, %v1273
  %v2028 = vpack.c.b16 %v1287, %v1274
  %v2029 = vpack.c.b16 %v1288, %v1275
  %v2030 = vpack.c.b16 %v1289, %v1276
  %v2031 = vpack.c.b16 %v1290, %v1277
  %v2032 = vpack.c.b16 %v1291, %v1278
  %v2033 = vpack.c.b16 %v1292, %v1279
  %v2034 = vpack.c.b16 %v1306, %v1293
  %v2035 = vpack.c.b16 %v1307, %v1294
  %v2036 = vpack.c.b16 %v1308, %v1295
  %v2037 = vpack.c.b16 %v1309, %v1296
  %v2038 = vpack.c.b16 %v1310, %v1297
  %v2039 = vpack.c.b16 %v1311, %v1298
  %v2040 = vpack.c.b16 %v1312, %v1299
  %v2041 = vpack.c.b16 %v1313, %v1300
  %v2042 = vpack.c.b16 %v1314, %v1301
  %v2043 = vpack.c.b16 %v1315, %v1302
  %v2044 = vpack.c.b16 %v1316, %v1303
  %v2045 = vpack.c.b16 %v1317, %v1304
  %v2046 = vpack.c.b16 %v1318, %v1305
  %v2047 = vpack.c.b16 %v1332, %v1319
  %v2048 = vpack.c.b16 %v1333, %v1320
  %v2049 = vpack.c.b16 %v1334, %v1321
  %v2050 = vpack.c.b16 %v1335, %v1322
  %v2051 = vpack.c.b16 %v1336, %v1323
  %v2052 = vpack.c.b16 %v1337, %v1324
  %v2053 = vpack.c.b16 %v1338, %v1325
  %v2054 = vpack.c.b16 %v1339, %v1326
  %v2055 = vpack.c.b16 %v1340, %v1327
  %v2056 = vpack.c.b16 %v1341, %v1328
  %v2057 = vpack.c.b16 %v1342, %v1329
  %v2058 = vpack.c.b16 %v1343, %v1330
  %v2059 = vpack.c.b16 %v1344, %v1331
  %v2060 = vpack.c.b16 %v1358, %v1345
  %v2061 = vpack.c.b16 %v1359, %v1346
  %v2062 = vpack.c.b16 %v1360, %v1347
  %v2063 = vpack.c.b16 %v1361, %v1348
  %v2064 = vpack.c.b16 %v1362, %v1349
  %v2065 = vpack.c.b16 %v1363, %v1350
  %v2066 = vpack.c.b16 %v1364, %v1351
  %v2067 = vpack.c.b16 %v1365, %v1352
  %v2068 = vpack.c.b16 %v1366, %v1353
  %v2069 = vpack.c.b16 %v1367, %v1354
  %v2070 = vpack.c.b16 %v1368, %v1355
  %v2071 = vpack.c.b16 %v1369, %v1356
  %v2072 = vpack.c.b16 %v1370, %v1357
  %v2073 = vpack.c.b16 %v1384, %v1371
  %v2074 = vpack.c.b16 %v1385, %v1372
  %v2075 = vpack.c.b16 %v1386, %v1373
  %v2076 = vpack.c.b16 %v1387, %v1374
  %v2077 = vpack.c.b16 %v1388, %v1375
  %v2078 = vpack.c.b16 %v1389, %v1376
  %v2079 = vpack.c.b16 %v1390, %v1377
  %v2080 = vpack.c.b16 %v1391, %v1378
  %v2081 = vpack.c.b16 %v1392, %v1379
  %v2082 = vpack.c.b16 %v1393, %v1380
  %v2083 = vpack.c.b16 %v1394, %v1381
  %v2084 = vpack.c.b16 %v1395, %v1382
  %v2085 = vpack.c.b16 %v1396, %v1383
  %v2086 = vpack.c.b16 %v1410, %v1397
  %v2087 = vpack.c.b16 %v1411, %v1398
  %v2088 = vpack.c.b16 %v1412, %v1399
  %v2089 = vpack.c.b16 %v1413, %v1400
  %v2090 = vpack.c.b16 %v1414, %v1401
  %v2091 = vpack.c.b16 %v1415, %v1402
  %v2092 = vpack.c.b16 %v1416, %v1403
  %v2093 = vpack.c.b16 %v1417, %v1404
  %v2094 = vpack.c.b16 %v1418, %v1405
  %v2095 = vpack.c.b16 %v1419, %v1406
  %v2096 = vpack.c.b16 %v1420, %v1407
  %v2097 = vpack.c.b16 %v1421, %v1408
  %v2098 = vpack.c.b16 %v1422, %v1409
  %v2099 = vpack.c.b16 %v1436, %v1423
  %v2100 = vpack.c.b16 %v1437, %v1424
  %v2101 = vpack.c.b16 %v1438, %v1425
  %v2102 = vpack.c.b16 %v1439, %v1426
  %v2103 = vpack.c.b16 %v1440, %v1427
  %v2104 = vpack.c.b16 %v1441, %v1428
  %v2105 = vpack.c.b16 %v1442, %v1429
  %v2106 = vpack.c.b16 %v1443, %v1430
  %v2107 = vpack.c.b16 %v1444, %v1431
  %v2108 = vpack.c.b16 %v1445, %v1432
  %v2109 = vpack.c.b16 %v1446, %v1433
  %v2110 = vpack.c.b16 %v1447, %v1434
  %v2111 = vpack.c.b16 %v1448, %v1435
  %v2112 = vpack.c.b16 %v1462, %v1449
  %v2113 = vpack.c.b16 %v1463, %v1450
  %v2114 = vpack.c.b16 %v1464, %v1451
  %v2115 = vpack.c.b16 %v1465, %v1452
  %v2116 = vpack.c.b16 %v1466, %v1453
  %v2117 = vpack.c.b16 %v1467, %v1454
  %v2118 = vpack.c.b16 %v1468, %v1455
  %v2119 = vpack.c.b16 %v1469, %v1456
  %v2120 = vpack.c.b16 %v1470, %v1457
  %v2121 = vpack.c.b16 %v1471, %v1458
  %v2122 = vpack.c.b16 %v1472, %v1459
  %v2123 = vpack.c.b16 %v1473, %v1460
  %v2124 = vpack.c.b16 %v1474, %v1461
  %v2125 = vpack.c.b16 %v1488, %v1475
  %v2126 = vpack.c.b16 %v1489, %v1476
  %v2127 = vpack.c.b16 %v1490, %v1477
  %v2128 = vpack.c.b16 %v1491, %v1478
  %v2129 = vpack.c.b16 %v1492, %v1479
  %v2130 = vpack.c.b16 %v1493, %v1480
  %v2131 = vpack.c.b16 %v1494, %v1481
  %v2132 = vpack.c.b16 %v1495, %v1482
  %v2133 = vpack.c.b16 %v1496, %v1483
  %v2134 = vpack.c.b16 %v1497, %v1484
  %v2135 = vpack.c.b16 %v1498, %v1485
  %v2136 = vpack.c.b16 %v1499, %v1486
  %v2137 = vpack.c.b16 %v1500, %v1487
  %v2138 = vpack.c.b16 %v1514, %v1501
  %v2139 = vpack.c.b16 %v1515, %v1502
  %v2140 = vpack.c.b16 %v1516, %v1503
  %v2141 = vpack.c.b16 %v1517, %v1504
  %v2142 = vpack.c.b16 %v1518, %v1505
  %v2143 = vpack.c.b16 %v1519, %v1506
  %v2144 = vpack.c.b16 %v1520, %v1507
  %v2145 = vpack.c.b16 %v1521, %v1508
  %v2146 = vpack.c.b16 %v1522, %v1509
  %v2147 = vpack.c.b16 %v1523, %v1510
  %v2148 = vpack.c.b16 %v1524, %v1511
  %v2149 = vpack.c.b16 %v1525, %v1512
  %v2150 = vpack.c.b16 %v1526, %v1513
  %v2151 = vpack.c.b16 %v1540, %v1527
  %v2152 = vpack.c.b16 %v1541, %v1528
  %v2153 = vpack.c.b16 %v1542, %v1529
  %v2154 = vpack.c.b16 %v1543, %v1530
  %v2155 = vpack.c.b16 %v1544, %v1531
  %v2156 = vpack.c.b16 %v1545, %v1532
  %v2157 = vpack.c.b16 %v1546, %v1533
  %v2158 = vpack.c.b16 %v1547, %v1534
  %v2159 = vpack.c.b16 %v1548, %v1535
  %v2160 = vpack.c.b16 %v1549, %v1536
  %v2161 = vpack.c.b16 %v1550, %v1537
  %v2162 = vpack.c.b16 %v1551, %v1538
  %v2163 = vpack.c.b16 %v1552, %v1539
  %v2164 = vpack.c.b16 %v1566, %v1553
  %v2165 = vpack.c.b16 %v1567, %v1554
  %v2166 = vpack.c.b16 %v1568, %v1555
  %v2167 = vpack.c.b16 %v1569, %v1556
  %v2168 = vpack.c.b16 %v1570, %v1557
  %v2169 = vpack.c.b16 %v1571, %v1558
  %v2170 = vpack.c.b16 %v1572, %v1559
  %v2171 = vpack.c.b16 %v1573, %v1560
  %v2172 = vpack.c.b16 %v1574, %v1561
  %v2173 = vpack.c.b16 %v1575, %v1562
  %v2174 = vpack.c.b16 %v1576, %v1563
  %v2175 = vpack.c.b16 %v1577, %v1564
  %v2176 = vpack.c.b16 %v1578, %v1565
  %v2177 = vpack.c.b16 %v1592, %v1579
  %v2178 = vpack.c.b16 %v1593, %v1580
  %v2179 = vpack.c.b16 %v1594, %v1581
  %v2180 = vpack.c.b16 %v1595, %v1582
  %v2181 = vpack.c.b16 %v1596, %v1583
  %v2182 = vpack.c.b16 %v1597, %v1584
  %v2183 = vpack.c.b16 %v1598, %v1585
  %v2184 = vpack.c.b16 %v1599, %v1586
  %v2185 = vpack.c.b16 %v1600, %v1587
  %v2186 = vpack.c.b16 %v1601, %v1588
  %v2187 = vpack.c.b16 %v1602, %v1589
  %v2188 = vpack.c.b16 %v1603, %v1590
  %v2189 = vpack.c.b16 %v1604, %v1591
  %v2190 = vpack.c.b16 %v1618, %v1605
  %v2191 = vpack.c.b16 %v1619, %v1606
  %v2192 = vpack.c.b16 %v1620, %v1607
  %v2193 = vpack.c.b16 %v1621, %v1608
  %v2194 = vpack.c.b16 %v1622, %v1609
  %v2195 = vpack.c.b16 %v1623, %v1610
  %v2196 = vpack.c.b16 %v1624, %v1611
  %v2197 = vpack.c.b16 %v1625, %v1612
  %v2198 = vpack.c.b16 %v1626, %v1613
  %v2199 = vpack.c.b16 %v1627, %v1614
  %v2200 = vpack.c.b16 %v1628, %v1615
  %v2201 = vpack.c.b16 %v1629, %v1616
  %v2202 = vpack.c.b16 %v1630, %v1617
  %v2203 = vpack.c.b16 %v1644, %v1631
  %v2204 = vpack.c.b16 %v1645, %v1632
  %v2205 = vpack.c.b16 %v1646, %v1633
  %v2206 = vpack.c.b16 %v1647, %v1634
  %v2207 = vpack.c.b16 %v1648, %v1635
  %v2208 = vpack.c.b16 %v1649, %v1636
  %v2209 = vpack.c.b16 %v1650, %v1637
  %v2210 = vpack.c.b16 %v1651, %v1638
  %v2211 = vpack.c.b16 %v1652, %v1639
  %v2212 = vpack.c.b16 %v1653, %v1640
  %v2213 = vpack.c.b16 %v1654, %v1641
  %v2214 = vpack.c.b16 %v1655, %v1642
  %v2215 = vpack.c.b16 %v1656, %v1643
  %v2216 = vpack.c.b16 %v1670, %v1657
  %v2217 = vpack.c.b16 %v1671, %v1658
  %v2218 = vpack.c.b16 %v1672, %v1659
  %v2219 = vpack.c.b16 %v1673, %v1660
  %v2220 = vpack.c.b16 %v1674, %v1661
  %v2221 = vpack.c.b16 %v1675, %v1662
  %v2222 = vpack.c.b16 %v1676, %v1663
  %v2223 = vpack.c.b16 %v1677, %v1664
  %v2224 = vpack.c.b16 %v1678, %v1665
  %v2225 = vpack.c.b16 %v1679, %v1666
  %v2226 = vpack.c.b16 %v1680, %v1667
  %v2227 = vpack.c.b16 %v1681, %v1668
  %v2228 = vpack.c.b16 %v1682, %v1669
  %v2229 = vpack.c.b16 %v1696, %v1683
  %v2230 = vpack.c.b16 %v1697, %v1684
  %v2231 = vpack.c.b16 %v1698, %v1685
  %v2232 = vpack.c.b16 %v1699, %v1686
  %v2233 = vpack.c.b16 %v1700, %v1687
  %v2234 = vpack.c.b16 %v1701, %v1688
  %v2235 = vpack.c.b16 %v1702, %v1689
  %v2236 = vpack.c.b16 %v1703, %v1690
  %v2237 = vpack.c.b16 %v1704, %v1691
  %v2238 = vpack.c.b16 %v1705, %v1692
  %v2239 = vpack.c.b16 %v1706, %v1693
  %v2240 = vpack.c.b16 %v1707, %v1694
  %v2241 = vpack.c.b16 %v1708, %v1695
  %v2242 = vpack.c.b16 %v1722, %v1709
  %v2243 = vpack.c.b16 %v1723, %v1710
  %v2244 = vpack.c.b16 %v1724, %v1711
  %v2245 = vpack.c.b16 %v1725, %v1712
  %v2246 = vpack.c.b16 %v1726, %v1713
  %v2247 = vpack.c.b16 %v1727, %v1714
  %v2248 = vpack.c.b16 %v1728, %v1715
  %v2249 = vpack.c.b16 %v1729, %v1716
  %v2250 = vpack.c.b16 %v1730, %v1717
  %v2251 = vpack.c.b16 %v1731, %v1718
  %v2252 = vpack.c.b16 %v1732, %v1719
  %v2253 = vpack.c.b16 %v1733, %v1720
  %v2254 = vpack.c.b16 %v1734, %v1721
  %v2255 = vpack.c.b16 %v1748, %v1735
  %v2256 = vpack.c.b16 %v1749, %v1736
  %v2257 = vpack.c.b16 %v1750, %v1737
  %v2258 = vpack.c.b16 %v1751, %v1738
  %v2259 = vpack.c.b16 %v1752, %v1739
  %v2260 = vpack.c.b16 %v1753, %v1740
  %v2261 = vpack.c.b16 %v1754, %v1741
  %v2262 = vpack.c.b16 %v1755, %v1742
  %v2263 = vpack.c.b16 %v1756, %v1743
  %v2264 = vpack.c.b16 %v1757, %v1744
  %v2265 = vpack.c.b16 %v1758, %v1745
  %v2266 = vpack.c.b16 %v1759, %v1746
  %v2267 = vpack.c.b16 %v1760, %v1747
  %v2268 = vpack.c.b16 %v1774, %v1761
  %v2269 = vpack.c.b16 %v1775, %v1762
  %v2270 = vpack.c.b16 %v1776, %v1763
  %v2271 = vpack.c.b16 %v1777, %v1764
  %v2272 = vpack.c.b16 %v1778, %v1765
  %v2273 = vpack.c.b16 %v1779, %v1766
  %v2274 = vpack.c.b16 %v1780, %v1767
  %v2275 = vpack.c.b16 %v1781, %v1768
  %v2276 = vpack.c.b16 %v1782, %v1769
  %v2277 = vpack.c.b16 %v1783, %v1770
  %v2278 = vpack.c.b16 %v1784, %v1771
  %v2279 = vpack.c.b16 %v1785, %v1772
  %v2280 = vpack.c.b16 %v1786, %v1773
  %v2281 = vpack.c.b16 %v1800, %v1787
  %v2282 = vpack.c.b16 %v1801, %v1788
  %v2283 = vpack.c.b16 %v1802, %v1789
  %v2284 = vpack.c.b16 %v1803, %v1790
  %v2285 = vpack.c.b16 %v1804, %v1791
  %v2286 = vpack.c.b16 %v1805, %v1792
  %v2287 = vpack.c.b16 %v1806, %v1793
  %v2288 = vpack.c.b16 %v1807, %v1794
  %v2289 = vpack.c.b16 %v1808, %v1795
  %v2290 = vpack.c.b16 %v1809, %v1796
  %v2291 = vpack.c.b16 %v1810, %v1797
  %v2292 = vpack.c.b16 %v1811, %v1798
  %v2293 = vpack.c.b16 %v1812, %v1799
  %v2294 = vpack.c.b16 %v1826, %v1813
  %v2295 = vpack.c.b16 %v1827, %v1814
  %v2296 = vpack.c.b16 %v1828, %v1815
  %v2297 = vpack.c.b16 %v1829, %v1816
  %v2298 = vpack.c.b16 %v1830, %v1817
  %v2299 = vpack.c.b16 %v1831, %v1818
  %v2300 = vpack.c.b16 %v1832, %v1819
  %v2301 = vpack.c.b16 %v1833, %v1820
  %v2302 = vpack.c.b16 %v1834, %v1821
  %v2303 = vpack.c.b16 %v1835, %v1822
  %v2304 = vpack.c.b16 %v1836, %v1823
  %v2305 = vpack.c.b16 %v1837, %v1824
  %v2306 = vpack.c.b16 %v1838, %v1825
  %v2307 = vpack.c.b16 %v1852, %v1839
  %v2308 = vpack.c.b16 %v1853, %v1840
  %v2309 = vpack.c.b16 %v1854, %v1841
  %v2310 = vpack.c.b16 %v1855, %v1842
  %v2311 = vpack.c.b16 %v1856, %v1843
  %v2312 = vpack.c.b16 %v1857, %v1844
  %v2313 = vpack.c.b16 %v1858, %v1845
  %v2314 = vpack.c.b16 %v1859, %v1846
  %v2315 = vpack.c.b16 %v1860, %v1847
  %v2316 = vpack.c.b16 %v1861, %v1848
  %v2317 = vpack.c.b16 %v1862, %v1849
  %v2318 = vpack.c.b16 %v1863, %v1850
  %v2319 = vpack.c.b16 %v1864, %v1851
  %v2320 = vpack.c.b16 %v1878, %v1865
  %v2321 = vpack.c.b16 %v1879, %v1866
  %v2322 = vpack.c.b16 %v1880, %v1867
  %v2323 = vpack.c.b16 %v1881, %v1868
  %v2324 = vpack.c.b16 %v1882, %v1869
  %v2325 = vpack.c.b16 %v1883, %v1870
  %v2326 = vpack.c.b16 %v1884, %v1871
  %v2327 = vpack.c.b16 %v1885, %v1872
  %v2328 = vpack.c.b16 %v1886, %v1873
  %v2329 = vpack.c.b16 %v1887, %v1874
  %v2330 = vpack.c.b16 %v1888, %v1875
  %v2331 = vpack.c.b16 %v1889, %v1876
  %v2332 = vpack.c.b16 %v1890, %v1877
  %v2333 = vpack.c.b16 %v1904, %v1891
  %v2334 = vpack.c.b16 %v1905, %v1892
  %v2335 = vpack.c.b16 %v1906, %v1893
  %v2336 = vpack.c.b16 %v1907, %v1894
  %v2337 = vpack.c.b16 %v1908, %v1895
  %v2338 = vpack.c.b16 %v1909, %v1896
  %v2339 = vpack.c.b16 %v1910, %v1897
  %v2340 = vpack.c.b16 %v1911, %v1898
  %v2341 = vpack.c.b16 %v1912, %v1899
  %v2342 = vpack.c.b16 %v1913, %v1900
  %v2343 = vpack.c.b16 %v1914, %v1901
  %v2344 = vpack.c.b16 %v1915, %v1902
  %v2345 = vpack.c.b16 %v1916, %v1903
  %v2346 = vpack.c.b16 %v1930, %v1917
  %v2347 = vpack.c.b16 %v1931, %v1918
  %v2348 = vpack.c.b16 %v1932, %v1919
  %v2349 = vpack.c.b16 %v1933, %v1920
  %v2350 = vpack.c.b16 %v1934, %v1921
  %v2351 = vpack.c.b16 %v1935, %v1922
  %v2352 = vpack.c.b16 %v1936, %v1923
  %v2353 = vpack.c.b16 %v1937, %v1924
  %v2354 = vpack.c.b16 %v1938, %v1925
  %v2355 = vpack.c.b16 %v1939, %v1926
  %v2356 = vpack.c.b16 %v1940, %v1927
  %v2357 = vpack.c.b16 %v1941, %v1928
  %v2358 = vpack.c.b16 %v1942, %v1929
  %v2939 = vunpack.c.l.b16 %v463
  %v2940 = vunpack.c.l.b16 %v464
  %v2941 = vunpack.c.l.b16 %v465
  %v2942 = vunpack.c.l.b16 %v466
  %v2943 = vunpack.c.l.b16 %v467
  %v2944 = vunpack.c.l.b16 %v468
  %v2945 = vunpack.c.l.b16 %v469
  %v2946 = vunpack.c.l.b16 %v470
  %v2947 = vunpack.c.l.b16 %v471
  %v2948 = vunpack.c.l.b16 %v472
  %v2949 = vunpack.c.l.b16 %v473
  %v2950 = vunpack.c.l.b16 %v474
  %v2951 = vunpack.c.l.b16 %v475
  %v2952 = vunpack.c.l.b16 %v476
  %v2953 = vunpack.c.l.b16 %v477
  %v2954 = vunpack.c.l.b16 %v478
  %v2955 = vunpack.c.l.b16 %v479
  %v2956 = vunpack.c.l.b16 %v480
  %v2957 = vunpack.c.l.b16 %v481
  %v2958 = vunpack.c.l.b16 %v482
  %v2959 = vunpack.c.l.b16 %v483
  %v2960 = vunpack.c.l.b16 %v484
  %v2961 = vunpack.c.l.b16 %v485
  %v2962 = vunpack.c.l.b16 %v486
  %v2963 = vunpack.c.l.b16 %v487
  %v2964 = vunpack.c.l.b16 %v488
  %v2965 = vunpack.c.l.b16 %v489
  %v2966 = vunpack.c.l.b16 %v490
  %v2967 = vunpack.c.l.b16 %v491
  %v2968 = vunpack.c.l.b16 %v492
  %v2969 = vunpack.c.l.b16 %v493
  %v2970 = vunpack.c.l.b16 %v494
  %v2971 = vunpack.c.l.b16 %v495
  %v2972 = vunpack.c.l.b16 %v496
  %v2973 = vunpack.c.l.b16 %v497
  %v2974 = vunpack.c.l.b16 %v498
  %v2975 = vunpack.c.l.b16 %v499
  %v2976 = vunpack.c.l.b16 %v500
  %v2977 = vunpack.c.l.b16 %v501
  %v2978 = vunpack.c.l.b16 %v502
  %v2979 = vunpack.c.l.b16 %v503
  %v2980 = vunpack.c.l.b16 %v504
  %v2981 = vunpack.c.l.b16 %v505
  %v2982 = vunpack.c.l.b16 %v506
  %v2983 = vunpack.c.l.b16 %v507
  %v2984 = vunpack.c.l.b16 %v508
  %v2985 = vunpack.c.l.b16 %v509
  %v2986 = vunpack.c.l.b16 %v510
  %v2987 = vunpack.c.l.b16 %v511
  %v2988 = vunpack.c.l.b16 %v512
  %v2989 = vunpack.c.l.b16 %v513
  %v2990 = vunpack.c.l.b16 %v514
  %v2991 = vunpack.c.l.b16 %v515
  %v2992 = vunpack.c.l.b16 %v516
  %v2993 = vunpack.c.l.b16 %v517
  %v2994 = vunpack.c.l.b16 %v518
  %v2995 = vunpack.c.l.b16 %v519
  %v2996 = vunpack.c.l.b16 %v520
  %v2997 = vunpack.c.l.b16 %v521
  %v2998 = vunpack.c.l.b16 %v522
  %v2999 = vunpack.c.l.b16 %v523
  %v3000 = vunpack.c.l.b16 %v524
  %v3001 = vunpack.c.l.b16 %v525
  %v3002 = vunpack.c.l.b16 %v526
  %v3003 = vunpack.c.l.b16 %v527
  %v3004 = vunpack.c.l.b16 %v528
  %v3005 = vunpack.c.l.b16 %v529
  %v3006 = vunpack.c.l.b16 %v530
  %v3007 = vunpack.c.l.b16 %v531
  %v3008 = vunpack.c.l.b16 %v532
  %v3009 = vunpack.c.l.b16 %v533
  %v3010 = vunpack.c.l.b16 %v534
  %v3011 = vunpack.c.l.b16 %v535
  %v3012 = vunpack.c.l.b16 %v536
  %v3013 = vunpack.c.l.b16 %v537
  %v3014 = vunpack.c.l.b16 %v538
  %v3015 = vunpack.c.l.b16 %v539
  %v3016 = vunpack.c.l.b16 %v540
  %v3017 = vunpack.c.l.b16 %v541
  %v3018 = vunpack.c.l.b16 %v542
  %v3019 = vunpack.c.l.b16 %v543
  %v3020 = vunpack.c.l.b16 %v544
  %v3021 = vunpack.c.l.b16 %v545
  %v3022 = vunpack.c.l.b16 %v546
  %v3023 = vunpack.c.l.b16 %v547
  %v3024 = vunpack.c.l.b16 %v548
  %v3025 = vunpack.c.l.b16 %v549
  %v3026 = vunpack.c.l.b16 %v550
  %v3027 = vunpack.c.l.b16 %v551
  %v3028 = vunpack.c.l.b16 %v552
  %v3029 = vunpack.c.l.b16 %v553
  %v3030 = vunpack.c.l.b16 %v554
  %v3031 = vunpack.c.l.b16 %v555
  %v3032 = vunpack.c.l.b16 %v556
  %v3033 = vunpack.c.l.b16 %v557
  %v3034 = vunpack.c.l.b16 %v558
  %v3035 = vunpack.c.l.b16 %v559
  %v3036 = vunpack.c.l.b16 %v560
  %v3037 = vunpack.c.l.b16 %v561
  %v3038 = vunpack.c.l.b16 %v562
  %v3039 = vunpack.c.l.b16 %v563
  %v3040 = vunpack.c.l.b16 %v564
  %v3041 = vunpack.c.l.b16 %v565
  %v3042 = vunpack.c.l.b16 %v566
  %v3043 = vunpack.c.l.b16 %v567
  %v3044 = vunpack.c.l.b16 %v568
  %v3045 = vunpack.c.l.b16 %v569
  %v3046 = vunpack.c.l.b16 %v570
  %v3047 = vunpack.c.l.b16 %v571
  %v3048 = vunpack.c.l.b16 %v572
  %v3049 = vunpack.c.l.b16 %v573
  %v3050 = vunpack.c.l.b16 %v574
  %v3051 = vunpack.c.l.b16 %v575
  %v3052 = vunpack.c.l.b16 %v576
  %v3053 = vunpack.c.l.b16 %v577
  %v3054 = vunpack.c.l.b16 %v578
  %v3055 = vunpack.c.l.b16 %v579
  %v3056 = vunpack.c.l.b16 %v580
  %v3057 = vunpack.c.l.b16 %v581
  %v3058 = vunpack.c.l.b16 %v582
  %v3059 = vunpack.c.l.b16 %v583
  %v3060 = vunpack.c.l.b16 %v584
  %v3061 = vunpack.c.l.b16 %v585
  %v3062 = vunpack.c.l.b16 %v586
  %v3063 = vunpack.c.l.b16 %v587
  %v3064 = vunpack.c.l.b16 %v588
  %v3065 = vunpack.c.l.b16 %v589
  %v3066 = vunpack.c.l.b16 %v590
  %v3067 = vunpack.c.l.b16 %v591
  %v3068 = vunpack.c.l.b16 %v592
  %v3069 = vunpack.c.l.b16 %v593
  %v3070 = vunpack.c.l.b16 %v594
  %v3071 = vunpack.c.l.b16 %v595
  %v3072 = vunpack.c.l.b16 %v596
  %v3073 = vunpack.c.l.b16 %v597
  %v3074 = vunpack.c.l.b16 %v598
  %v3075 = vunpack.c.l.b16 %v599
  %v3076 = vunpack.c.l.b16 %v600
  %v3077 = vunpack.c.l.b16 %v601
  %v3078 = vunpack.c.l.b16 %v602
  %v3079 = vunpack.c.l.b16 %v603
  %v3080 = vunpack.c.l.b16 %v604
  %v3081 = vunpack.c.l.b16 %v605
  %v3082 = vunpack.c.l.b16 %v606
  %v3083 = vunpack.c.l.b16 %v607
  %v3084 = vunpack.c.l.b16 %v608
  %v3085 = vunpack.c.l.b16 %v609
  %v3086 = vunpack.c.l.b16 %v610
  %v3087 = vunpack.c.l.b16 %v611
  %v3088 = vunpack.c.l.b16 %v612
  %v3089 = vunpack.c.l.b16 %v613
  %v3090 = vunpack.c.l.b16 %v614
  %v3091 = vunpack.c.l.b16 %v615
  %v3092 = vunpack.c.l.b16 %v616
  %v3093 = vunpack.c.l.b16 %v617
  %v3094 = vunpack.c.l.b16 %v618
  %v3095 = vunpack.c.l.b16 %v619
  %v3096 = vunpack.c.l.b16 %v620
  %v3097 = vunpack.c.l.b16 %v621
  %v3098 = vunpack.c.l.b16 %v622
  %v3099 = vunpack.c.l.b16 %v623
  %v3100 = vunpack.c.l.b16 %v624
  %v3101 = vunpack.c.l.b16 %v625
  %v3102 = vunpack.c.l.b16 %v626
  %v3103 = vunpack.c.l.b16 %v627
  %v3104 = vunpack.c.l.b16 %v628
  %v3105 = vunpack.c.l.b16 %v629
  %v3106 = vunpack.c.l.b16 %v630
  %v3107 = vunpack.c.l.b16 %v631
  %v3108 = vunpack.c.l.b16 %v632
  %v3109 = vunpack.c.l.b16 %v633
  %v3110 = vunpack.c.l.b16 %v634
  %v3111 = vunpack.c.l.b16 %v635
  %v3112 = vunpack.c.l.b16 %v636
  %v3113 = vunpack.c.l.b16 %v637
  %v3114 = vunpack.c.l.b16 %v638
  %v3115 = vunpack.c.l.b16 %v639
  %v3116 = vunpack.c.l.b16 %v640
  %v3117 = vunpack.c.l.b16 %v641
  %v3118 = vunpack.c.l.b16 %v642
  %v3119 = vunpack.c.l.b16 %v643
  %v3120 = vunpack.c.l.b16 %v644
  %v3121 = vunpack.c.l.b16 %v645
  %v3122 = vunpack.c.l.b16 %v646
  %v3123 = vunpack.c.l.b16 %v647
  %v3124 = vunpack.c.l.b16 %v648
  %v3125 = vunpack.c.l.b16 %v649
  %v3126 = vunpack.c.l.b16 %v650
  %v3127 = vunpack.c.l.b16 %v651
  %v3128 = vunpack.c.l.b16 %v652
  %v3129 = vunpack.c.l.b16 %v653
  %v3130 = vunpack.c.l.b16 %v654
  %v3131 = vunpack.c.l.b16 %v655
  %v3132 = vunpack.c.l.b16 %v656
  %v3133 = vunpack.c.l.b16 %v657
  %v3134 = vunpack.c.l.b16 %v658
  %v3135 = vpack.c.b16 %v2940, %v2939
  %v3136 = vpack.c.b16 %v2942, %v2941
  %v3137 = vpack.c.b16 %v2944, %v2943
  %v3138 = vpack.c.b16 %v2946, %v2945
  %v3139 = vpack.c.b16 %v2948, %v2947
  %v3140 = vpack.c.b16 %v2950, %v2949
  %v3141 = vpack.c.b16 %v2952, %v2951
  %v3142 = vpack.c.b16 %v2954, %v2953
  %v3143 = vpack.c.b16 %v2956, %v2955
  %v3144 = vpack.c.b16 %v2958, %v2957
  %v3145 = vpack.c.b16 %v2960, %v2959
  %v3146 = vpack.c.b16 %v2962, %v2961
  %v3147 = vpack.c.b16 %v2964, %v2963
  %v3148 = vpack.c.b16 %v2966, %v2965
  %v3149 = vpack.c.b16 %v2968, %v2967
  %v3150 = vpack.c.b16 %v2970, %v2969
  %v3151 = vpack.c.b16 %v2972, %v2971
  %v3152 = vpack.c.b16 %v2974, %v2973
  %v3153 = vpack.c.b16 %v2976, %v2975
  %v3154 = vpack.c.b16 %v2978, %v2977
  %v3155 = vpack.c.b16 %v2980, %v2979
  %v3156 = vpack.c.b16 %v2982, %v2981
  %v3157 = vpack.c.b16 %v2984, %v2983
  %v3158 = vpack.c.b16 %v2986, %v2985
  %v3159 = vpack.c.b16 %v2988, %v2987
  %v3160 = vpack.c.b16 %v2990, %v2989
  %v3161 = vpack.c.b16 %v2992, %v2991
  %v3162 = vpack.c.b16 %v2994, %v2993
  %v3163 = vpack.c.b16 %v2996, %v2995
  %v3164 = vpack.c.b16 %v2998, %v2997
  %v3165 = vpack.c.b16 %v3000, %v2999
  %v3166 = vpack.c.b16 %v3002, %v3001
  %v3167 = vpack.c.b16 %v3004, %v3003
  %v3168 = vpack.c.b16 %v3006, %v3005
  %v3169 = vpack.c.b16 %v3008, %v3007
  %v3170 = vpack.c.b16 %v3010, %v3009
  %v3171 = vpack.c.b16 %v3012, %v3011
  %v3172 = vpack.c.b16 %v3014, %v3013
  %v3173 = vpack.c.b16 %v3016, %v3015
  %v3174 = vpack.c.b16 %v3018, %v3017
  %v3175 = vpack.c.b16 %v3020, %v3019
  %v3176 = vpack.c.b16 %v3022, %v3021
  %v3177 = vpack.c.b16 %v3024, %v3023
  %v3178 = vpack.c.b16 %v3026, %v3025
  %v3179 = vpack.c.b16 %v3028, %v3027
  %v3180 = vpack.c.b16 %v3030, %v3029
  %v3181 = vpack.c.b16 %v3032, %v3031
  %v3182 = vpack.c.b16 %v3034, %v3033
  %v3183 = vpack.c.b16 %v3036, %v3035
  %v3184 = vpack.c.b16 %v3038, %v3037
  %v3185 = vpack.c.b16 %v3040, %v3039
  %v3186 = vpack.c.b16 %v3042, %v3041
  %v3187 = vpack.c.b16 %v3044, %v3043
  %v3188 = vpack.c.b16 %v3046, %v3045
  %v3189 = vpack.c.b16 %v3048, %v3047
  %v3190 = vpack.c.b16 %v3050, %v3049
  %v3191 = vpack.c.b16 %v3052, %v3051
  %v3192 = vpack.c.b16 %v3054, %v3053
  %v3193 = vpack.c.b16 %v3056, %v3055
  %v3194 = vpack.c.b16 %v3058, %v3057
  %v3195 = vpack.c.b16 %v3060, %v3059
  %v3196 = vpack.c.b16 %v3062, %v3061
  %v3197 = vpack.c.b16 %v3064, %v3063
  %v3198 = vpack.c.b16 %v3066, %v3065
  %v3199 = vpack.c.b16 %v3068, %v3067
  %v3200 = vpack.c.b16 %v3070, %v3069
  %v3201 = vpack.c.b16 %v3072, %v3071
  %v3202 = vpack.c.b16 %v3074, %v3073
  %v3203 = vpack.c.b16 %v3076, %v3075
  %v3204 = vpack.c.b16 %v3078, %v3077
  %v3205 = vpack.c.b16 %v3080, %v3079
  %v3206 = vpack.c.b16 %v3082, %v3081
  %v3207 = vpack.c.b16 %v3084, %v3083
  %v3208 = vpack.c.b16 %v3086, %v3085
  %v3209 = vpack.c.b16 %v3088, %v3087
  %v3210 = vpack.c.b16 %v3090, %v3089
  %v3211 = vpack.c.b16 %v3092, %v3091
  %v3212 = vpack.c.b16 %v3094, %v3093
  %v3213 = vpack.c.b16 %v3096, %v3095
  %v3214 = vpack.c.b16 %v3098, %v3097
  %v3215 = vpack.c.b16 %v3100, %v3099
  %v3216 = vpack.c.b16 %v3102, %v3101
  %v3217 = vpack.c.b16 %v3104, %v3103
  %v3218 = vpack.c.b16 %v3106, %v3105
  %v3219 = vpack.c.b16 %v3108, %v3107
  %v3220 = vpack.c.b16 %v3110, %v3109
  %v3221 = vpack.c.b16 %v3112, %v3111
  %v3222 = vpack.c.b16 %v3114, %v3113
  %v3223 = vpack.c.b16 %v3116, %v3115
  %v3224 = vpack.c.b16 %v3118, %v3117
  %v3225 = vpack.c.b16 %v3120, %v3119
  %v3226 = vpack.c.b16 %v3122, %v3121
  %v3227 = vpack.c.b16 %v3124, %v3123
  %v3228 = vpack.c.b16 %v3126, %v3125
  %v3229 = vpack.c.b16 %v3128, %v3127
  %v3230 = vpack.c.b16 %v3130, %v3129
  %v3231 = vpack.c.b16 %v3132, %v3131
  %v3232 = vpack.c.b16 %v3134, %v3133
  %vm3331 = vcmask 261120
  %v3333 = vsel %vm3331, %v1955, 0
  %v3336 = vsel %vm3331, %v1968, 0
  %v3339 = vsel %vm3331, %v1981, 0
  %v3342 = vsel %vm3331, %v1994, 0
  %v3345 = vsel %vm3331, %v2007, 0
  %v3348 = vsel %vm3331, %v2020, 0
  %v3351 = vsel %vm3331, %v2033, 0
  %v3354 = vsel %vm3331, %v2046, 0
  %v3357 = vsel %vm3331, %v2059, 0
  %v3360 = vsel %vm3331, %v2072, 0
  %v3363 = vsel %vm3331, %v2085, 0
  %v3366 = vsel %vm3331, %v2098, 0
  %v3369 = vsel %vm3331, %v2111, 0
  %v3372 = vsel %vm3331, %v2124, 0
  %v3375 = vsel %vm3331, %v2137, 0
  %v3378 = vsel %vm3331, %v2150, 0
  %v3381 = vsel %vm3331, %v2163, 0
  %v3384 = vsel %vm3331, %v2176, 0
  %v3387 = vsel %vm3331, %v2189, 0
  %v3390 = vsel %vm3331, %v2202, 0
  %v3393 = vsel %vm3331, %v2215, 0
  %v3396 = vsel %vm3331, %v2228, 0
  %v3399 = vsel %vm3331, %v2241, 0
  %v3402 = vsel %vm3331, %v2254, 0
  %v3405 = vsel %vm3331, %v2267, 0
  %v3408 = vsel %vm3331, %v2280, 0
  %v3411 = vsel %vm3331, %v2293, 0
  %v3414 = vsel %vm3331, %v2306, 0
  %v3417 = vsel %vm3331, %v2319, 0
  %v3420 = vsel %vm3331, %v2332, 0
  %v3423 = vsel %vm3331, %v2345, 0
  %v3426 = vsel %vm3331, %v2358, 0
  %3428 = vmatpush.bf16.msra.mxu0 %v3142
  %3429 = vmatpush.bf16.msra.mxu0 %v3141
  %3430 = vmatpush.bf16.msra.mxu0 %v3140
  %3431 = vmatpush.bf16.msra.mxu0 %v3139
  %3432 = vmatpush.bf16.msra.mxu0 %v3138
  %3433 = vmatpush.bf16.msra.mxu0 %v3137
  %3434 = vmatpush.bf16.msra.mxu0 %v3136
  %3435 = vmatpush.bf16.msra.mxu0 %v3135
  %3436 = vmatmul.bf16.gmra.mxu0 %v1943
  %v3437 = vpop.f32.mrf.mxu0
  %v3438 = vadd.f32 %v661, %v3437
  %v3439 = vpop.f32.mrf.mxu0
  %v3440 = vadd.f32 %v661, %v3439
  %3441 = vmatmul.bf16.gmra.mxu0 %v1956
  %v3442 = vpop.f32.mrf.mxu0
  %v3443 = vadd.f32 %v661, %v3442
  %v3444 = vpop.f32.mrf.mxu0
  %v3445 = vadd.f32 %v661, %v3444
  %3446 = vmatmul.bf16.gmra.mxu0 %v1969
  %v3447 = vpop.f32.mrf.mxu0
  %v3448 = vadd.f32 %v661, %v3447
  %v3449 = vpop.f32.mrf.mxu0
  %v3450 = vadd.f32 %v661, %v3449
  %3451 = vmatmul.bf16.gmra.mxu0 %v1982
  %v3452 = vpop.f32.mrf.mxu0
  %v3453 = vadd.f32 %v661, %v3452
  %v3454 = vpop.f32.mrf.mxu0
  %v3455 = vadd.f32 %v661, %v3454
  %3456 = vmatmul.bf16.gmra.mxu0 %v1995
  %v3457 = vpop.f32.mrf.mxu0
  %v3458 = vadd.f32 %v661, %v3457
  %v3459 = vpop.f32.mrf.mxu0
  %v3460 = vadd.f32 %v661, %v3459
  %3461 = vmatmul.bf16.gmra.mxu0 %v2008
  %v3462 = vpop.f32.mrf.mxu0
  %v3463 = vadd.f32 %v661, %v3462
  %v3464 = vpop.f32.mrf.mxu0
  %v3465 = vadd.f32 %v661, %v3464
  %3466 = vmatmul.bf16.gmra.mxu0 %v2021
  %v3467 = vpop.f32.mrf.mxu0
  %v3468 = vadd.f32 %v661, %v3467
  %v3469 = vpop.f32.mrf.mxu0
  %v3470 = vadd.f32 %v661, %v3469
  %3471 = vmatmul.bf16.gmra.mxu0 %v2034
  %v3472 = vpop.f32.mrf.mxu0
  %v3473 = vadd.f32 %v661, %v3472
  %v3474 = vpop.f32.mrf.mxu0
  %v3475 = vadd.f32 %v661, %v3474
  %3476 = vmatmul.bf16.gmra.mxu0 %v2047
  %v3477 = vpop.f32.mrf.mxu0
  %v3478 = vadd.f32 %v661, %v3477
  %v3479 = vpop.f32.mrf.mxu0
  %v3480 = vadd.f32 %v661, %v3479
  %3481 = vmatmul.bf16.gmra.mxu0 %v2060
  %v3482 = vpop.f32.mrf.mxu0
  %v3483 = vadd.f32 %v661, %v3482
  %v3484 = vpop.f32.mrf.mxu0
  %v3485 = vadd.f32 %v661, %v3484
  %3486 = vmatmul.bf16.gmra.mxu0 %v2073
  %v3487 = vpop.f32.mrf.mxu0
  %v3488 = vadd.f32 %v661, %v3487
  %v3489 = vpop.f32.mrf.mxu0
  %v3490 = vadd.f32 %v661, %v3489
  %3491 = vmatmul.bf16.gmra.mxu0 %v2086
  %v3492 = vpop.f32.mrf.mxu0
  %v3493 = vadd.f32 %v661, %v3492
  %v3494 = vpop.f32.mrf.mxu0
  %v3495 = vadd.f32 %v661, %v3494
  %3496 = vmatmul.bf16.gmra.mxu0 %v2099
  %v3497 = vpop.f32.mrf.mxu0
  %v3498 = vadd.f32 %v661, %v3497
  %v3499 = vpop.f32.mrf.mxu0
  %v3500 = vadd.f32 %v661, %v3499
  %3501 = vmatmul.bf16.gmra.mxu0 %v2112
  %v3502 = vpop.f32.mrf.mxu0
  %v3503 = vadd.f32 %v661, %v3502
  %v3504 = vpop.f32.mrf.mxu0
  %v3505 = vadd.f32 %v661, %v3504
  %3506 = vmatmul.bf16.gmra.mxu0 %v2125
  %v3507 = vpop.f32.mrf.mxu0
  %v3508 = vadd.f32 %v661, %v3507
  %v3509 = vpop.f32.mrf.mxu0
  %v3510 = vadd.f32 %v661, %v3509
  %3511 = vmatmul.bf16.gmra.mxu0 %v2138
  %v3512 = vpop.f32.mrf.mxu0
  %v3513 = vadd.f32 %v661, %v3512
  %v3514 = vpop.f32.mrf.mxu0
  %v3515 = vadd.f32 %v661, %v3514
  %3516 = vmatmul.bf16.gmra.mxu0 %v2151
  %v3517 = vpop.f32.mrf.mxu0
  %v3518 = vadd.f32 %v661, %v3517
  %v3519 = vpop.f32.mrf.mxu0
  %v3520 = vadd.f32 %v661, %v3519
  %3521 = vmatmul.bf16.gmra.mxu0 %v2164
  %v3522 = vpop.f32.mrf.mxu0
  %v3523 = vadd.f32 %v661, %v3522
  %v3524 = vpop.f32.mrf.mxu0
  %v3525 = vadd.f32 %v661, %v3524
  %3526 = vmatmul.bf16.gmra.mxu0 %v2177
  %v3527 = vpop.f32.mrf.mxu0
  %v3528 = vadd.f32 %v661, %v3527
  %v3529 = vpop.f32.mrf.mxu0
  %v3530 = vadd.f32 %v661, %v3529
  %3531 = vmatmul.bf16.gmra.mxu0 %v2190
  %v3532 = vpop.f32.mrf.mxu0
  %v3533 = vadd.f32 %v661, %v3532
  %v3534 = vpop.f32.mrf.mxu0
  %v3535 = vadd.f32 %v661, %v3534
  %3536 = vmatmul.bf16.gmra.mxu0 %v2203
  %v3537 = vpop.f32.mrf.mxu0
  %v3538 = vadd.f32 %v661, %v3537
  %v3539 = vpop.f32.mrf.mxu0
  %v3540 = vadd.f32 %v661, %v3539
  %3541 = vmatmul.bf16.gmra.mxu0 %v2216
  %v3542 = vpop.f32.mrf.mxu0
  %v3543 = vadd.f32 %v661, %v3542
  %v3544 = vpop.f32.mrf.mxu0
  %v3545 = vadd.f32 %v661, %v3544
  %3546 = vmatmul.bf16.gmra.mxu0 %v2229
  %v3547 = vpop.f32.mrf.mxu0
  %v3548 = vadd.f32 %v661, %v3547
  %v3549 = vpop.f32.mrf.mxu0
  %v3550 = vadd.f32 %v661, %v3549
  %3551 = vmatmul.bf16.gmra.mxu0 %v2242
  %v3552 = vpop.f32.mrf.mxu0
  %v3553 = vadd.f32 %v661, %v3552
  %v3554 = vpop.f32.mrf.mxu0
  %v3555 = vadd.f32 %v661, %v3554
  %3556 = vmatmul.bf16.gmra.mxu0 %v2255
  %v3557 = vpop.f32.mrf.mxu0
  %v3558 = vadd.f32 %v661, %v3557
  %v3559 = vpop.f32.mrf.mxu0
  %v3560 = vadd.f32 %v661, %v3559
  %3561 = vmatmul.bf16.gmra.mxu0 %v2268
  %v3562 = vpop.f32.mrf.mxu0
  %v3563 = vadd.f32 %v661, %v3562
  %v3564 = vpop.f32.mrf.mxu0
  %v3565 = vadd.f32 %v661, %v3564
  %3566 = vmatmul.bf16.gmra.mxu0 %v2281
  %v3567 = vpop.f32.mrf.mxu0
  %v3568 = vadd.f32 %v661, %v3567
  %v3569 = vpop.f32.mrf.mxu0
  %v3570 = vadd.f32 %v661, %v3569
  %3571 = vmatmul.bf16.gmra.mxu0 %v2294
  %v3572 = vpop.f32.mrf.mxu0
  %v3573 = vadd.f32 %v661, %v3572
  %v3574 = vpop.f32.mrf.mxu0
  %v3575 = vadd.f32 %v661, %v3574
  %3576 = vmatmul.bf16.gmra.mxu0 %v2307
  %v3577 = vpop.f32.mrf.mxu0
  %v3578 = vadd.f32 %v661, %v3577
  %v3579 = vpop.f32.mrf.mxu0
  %v3580 = vadd.f32 %v661, %v3579
  %3581 = vmatmul.bf16.gmra.mxu0 %v2320
  %v3582 = vpop.f32.mrf.mxu0
  %v3583 = vadd.f32 %v661, %v3582
  %v3584 = vpop.f32.mrf.mxu0
  %v3585 = vadd.f32 %v661, %v3584
  %3586 = vmatmul.bf16.gmra.mxu0 %v2333
  %v3587 = vpop.f32.mrf.mxu0
  %v3588 = vadd.f32 %v661, %v3587
  %v3589 = vpop.f32.mrf.mxu0
  %v3590 = vadd.f32 %v661, %v3589
  %3591 = vmatmul.bf16.gmra.mxu0 %v2346
  %v3592 = vpop.f32.mrf.mxu0
  %v3593 = vadd.f32 %v661, %v3592
  %v3594 = vpop.f32.mrf.mxu0
  %v3595 = vadd.f32 %v661, %v3594
  %3596 = vdwg.mxu0
  %3597 = vmatpush.bf16.msra.mxu0 %v3150
  %3598 = vmatpush.bf16.msra.mxu0 %v3149
  %3599 = vmatpush.bf16.msra.mxu0 %v3148
  %3600 = vmatpush.bf16.msra.mxu0 %v3147
  %3601 = vmatpush.bf16.msra.mxu0 %v3146
  %3602 = vmatpush.bf16.msra.mxu0 %v3145
  %3603 = vmatpush.bf16.msra.mxu0 %v3144
  %3604 = vmatpush.bf16.msra.mxu0 %v3143
  %3605 = vmatmul.bf16.gmra.mxu0 %v1944
  %v3606 = vpop.f32.mrf.mxu0
  %v3607 = vadd.f32 %v3438, %v3606
  %v3608 = vpop.f32.mrf.mxu0
  %v3609 = vadd.f32 %v3440, %v3608
  %3610 = vmatmul.bf16.gmra.mxu0 %v1957
  %v3611 = vpop.f32.mrf.mxu0
  %v3612 = vadd.f32 %v3443, %v3611
  %v3613 = vpop.f32.mrf.mxu0
  %v3614 = vadd.f32 %v3445, %v3613
  %3615 = vmatmul.bf16.gmra.mxu0 %v1970
  %v3616 = vpop.f32.mrf.mxu0
  %v3617 = vadd.f32 %v3448, %v3616
  %v3618 = vpop.f32.mrf.mxu0
  %v3619 = vadd.f32 %v3450, %v3618
  %3620 = vmatmul.bf16.gmra.mxu0 %v1983
  %v3621 = vpop.f32.mrf.mxu0
  %v3622 = vadd.f32 %v3453, %v3621
  %v3623 = vpop.f32.mrf.mxu0
  %v3624 = vadd.f32 %v3455, %v3623
  %3625 = vmatmul.bf16.gmra.mxu0 %v1996
  %v3626 = vpop.f32.mrf.mxu0
  %v3627 = vadd.f32 %v3458, %v3626
  %v3628 = vpop.f32.mrf.mxu0
  %v3629 = vadd.f32 %v3460, %v3628
  %3630 = vmatmul.bf16.gmra.mxu0 %v2009
  %v3631 = vpop.f32.mrf.mxu0
  %v3632 = vadd.f32 %v3463, %v3631
  %v3633 = vpop.f32.mrf.mxu0
  %v3634 = vadd.f32 %v3465, %v3633
  %3635 = vmatmul.bf16.gmra.mxu0 %v2022
  %v3636 = vpop.f32.mrf.mxu0
  %v3637 = vadd.f32 %v3468, %v3636
  %v3638 = vpop.f32.mrf.mxu0
  %v3639 = vadd.f32 %v3470, %v3638
  %3640 = vmatmul.bf16.gmra.mxu0 %v2035
  %v3641 = vpop.f32.mrf.mxu0
  %v3642 = vadd.f32 %v3473, %v3641
  %v3643 = vpop.f32.mrf.mxu0
  %v3644 = vadd.f32 %v3475, %v3643
  %3645 = vmatmul.bf16.gmra.mxu0 %v2048
  %v3646 = vpop.f32.mrf.mxu0
  %v3647 = vadd.f32 %v3478, %v3646
  %v3648 = vpop.f32.mrf.mxu0
  %v3649 = vadd.f32 %v3480, %v3648
  %3650 = vmatmul.bf16.gmra.mxu0 %v2061
  %v3651 = vpop.f32.mrf.mxu0
  %v3652 = vadd.f32 %v3483, %v3651
  %v3653 = vpop.f32.mrf.mxu0
  %v3654 = vadd.f32 %v3485, %v3653
  %3655 = vmatmul.bf16.gmra.mxu0 %v2074
  %v3656 = vpop.f32.mrf.mxu0
  %v3657 = vadd.f32 %v3488, %v3656
  %v3658 = vpop.f32.mrf.mxu0
  %v3659 = vadd.f32 %v3490, %v3658
  %3660 = vmatmul.bf16.gmra.mxu0 %v2087
  %v3661 = vpop.f32.mrf.mxu0
  %v3662 = vadd.f32 %v3493, %v3661
  %v3663 = vpop.f32.mrf.mxu0
  %v3664 = vadd.f32 %v3495, %v3663
  %3665 = vmatmul.bf16.gmra.mxu0 %v2100
  %v3666 = vpop.f32.mrf.mxu0
  %v3667 = vadd.f32 %v3498, %v3666
  %v3668 = vpop.f32.mrf.mxu0
  %v3669 = vadd.f32 %v3500, %v3668
  %3670 = vmatmul.bf16.gmra.mxu0 %v2113
  %v3671 = vpop.f32.mrf.mxu0
  %v3672 = vadd.f32 %v3503, %v3671
  %v3673 = vpop.f32.mrf.mxu0
  %v3674 = vadd.f32 %v3505, %v3673
  %3675 = vmatmul.bf16.gmra.mxu0 %v2126
  %v3676 = vpop.f32.mrf.mxu0
  %v3677 = vadd.f32 %v3508, %v3676
  %v3678 = vpop.f32.mrf.mxu0
  %v3679 = vadd.f32 %v3510, %v3678
  %3680 = vmatmul.bf16.gmra.mxu0 %v2139
  %v3681 = vpop.f32.mrf.mxu0
  %v3682 = vadd.f32 %v3513, %v3681
  %v3683 = vpop.f32.mrf.mxu0
  %v3684 = vadd.f32 %v3515, %v3683
  %3685 = vmatmul.bf16.gmra.mxu0 %v2152
  %v3686 = vpop.f32.mrf.mxu0
  %v3687 = vadd.f32 %v3518, %v3686
  %v3688 = vpop.f32.mrf.mxu0
  %v3689 = vadd.f32 %v3520, %v3688
  %3690 = vmatmul.bf16.gmra.mxu0 %v2165
  %v3691 = vpop.f32.mrf.mxu0
  %v3692 = vadd.f32 %v3523, %v3691
  %v3693 = vpop.f32.mrf.mxu0
  %v3694 = vadd.f32 %v3525, %v3693
  %3695 = vmatmul.bf16.gmra.mxu0 %v2178
  %v3696 = vpop.f32.mrf.mxu0
  %v3697 = vadd.f32 %v3528, %v3696
  %v3698 = vpop.f32.mrf.mxu0
  %v3699 = vadd.f32 %v3530, %v3698
  %3700 = vmatmul.bf16.gmra.mxu0 %v2191
  %v3701 = vpop.f32.mrf.mxu0
  %v3702 = vadd.f32 %v3533, %v3701
  %v3703 = vpop.f32.mrf.mxu0
  %v3704 = vadd.f32 %v3535, %v3703
  %3705 = vmatmul.bf16.gmra.mxu0 %v2204
  %v3706 = vpop.f32.mrf.mxu0
  %v3707 = vadd.f32 %v3538, %v3706
  %v3708 = vpop.f32.mrf.mxu0
  %v3709 = vadd.f32 %v3540, %v3708
  %3710 = vmatmul.bf16.gmra.mxu0 %v2217
  %v3711 = vpop.f32.mrf.mxu0
  %v3712 = vadd.f32 %v3543, %v3711
  %v3713 = vpop.f32.mrf.mxu0
  %v3714 = vadd.f32 %v3545, %v3713
  %3715 = vmatmul.bf16.gmra.mxu0 %v2230
  %v3716 = vpop.f32.mrf.mxu0
  %v3717 = vadd.f32 %v3548, %v3716
  %v3718 = vpop.f32.mrf.mxu0
  %v3719 = vadd.f32 %v3550, %v3718
  %3720 = vmatmul.bf16.gmra.mxu0 %v2243
  %v3721 = vpop.f32.mrf.mxu0
  %v3722 = vadd.f32 %v3553, %v3721
  %v3723 = vpop.f32.mrf.mxu0
  %v3724 = vadd.f32 %v3555, %v3723
  %3725 = vmatmul.bf16.gmra.mxu0 %v2256
  %v3726 = vpop.f32.mrf.mxu0
  %v3727 = vadd.f32 %v3558, %v3726
  %v3728 = vpop.f32.mrf.mxu0
  %v3729 = vadd.f32 %v3560, %v3728
  %3730 = vmatmul.bf16.gmra.mxu0 %v2269
  %v3731 = vpop.f32.mrf.mxu0
  %v3732 = vadd.f32 %v3563, %v3731
  %v3733 = vpop.f32.mrf.mxu0
  %v3734 = vadd.f32 %v3565, %v3733
  %3735 = vmatmul.bf16.gmra.mxu0 %v2282
  %v3736 = vpop.f32.mrf.mxu0
  %v3737 = vadd.f32 %v3568, %v3736
  %v3738 = vpop.f32.mrf.mxu0
  %v3739 = vadd.f32 %v3570, %v3738
  %3740 = vmatmul.bf16.gmra.mxu0 %v2295
  %v3741 = vpop.f32.mrf.mxu0
  %v3742 = vadd.f32 %v3573, %v3741
  %v3743 = vpop.f32.mrf.mxu0
  %v3744 = vadd.f32 %v3575, %v3743
  %3745 = vmatmul.bf16.gmra.mxu0 %v2308
  %v3746 = vpop.f32.mrf.mxu0
  %v3747 = vadd.f32 %v3578, %v3746
  %v3748 = vpop.f32.mrf.mxu0
  %v3749 = vadd.f32 %v3580, %v3748
  %3750 = vmatmul.bf16.gmra.mxu0 %v2321
  %v3751 = vpop.f32.mrf.mxu0
  %v3752 = vadd.f32 %v3583, %v3751
  %v3753 = vpop.f32.mrf.mxu0
  %v3754 = vadd.f32 %v3585, %v3753
  %3755 = vmatmul.bf16.gmra.mxu0 %v2334
  %v3756 = vpop.f32.mrf.mxu0
  %v3757 = vadd.f32 %v3588, %v3756
  %v3758 = vpop.f32.mrf.mxu0
  %v3759 = vadd.f32 %v3590, %v3758
  %3760 = vmatmul.bf16.gmra.mxu0 %v2347
  %v3761 = vpop.f32.mrf.mxu0
  %v3762 = vadd.f32 %v3593, %v3761
  %v3763 = vpop.f32.mrf.mxu0
  %v3764 = vadd.f32 %v3595, %v3763
  %3765 = vdwg.mxu0
  %3766 = vmatpush.bf16.msra.mxu0 %v3158
  %3767 = vmatpush.bf16.msra.mxu0 %v3157
  %3768 = vmatpush.bf16.msra.mxu0 %v3156
  %3769 = vmatpush.bf16.msra.mxu0 %v3155
  %3770 = vmatpush.bf16.msra.mxu0 %v3154
  %3771 = vmatpush.bf16.msra.mxu0 %v3153
  %3772 = vmatpush.bf16.msra.mxu0 %v3152
  %3773 = vmatpush.bf16.msra.mxu0 %v3151
  %3774 = vmatmul.bf16.gmra.mxu0 %v1945
  %v3775 = vpop.f32.mrf.mxu0
  %v3776 = vadd.f32 %v3607, %v3775
  %v3777 = vpop.f32.mrf.mxu0
  %v3778 = vadd.f32 %v3609, %v3777
  %3779 = vmatmul.bf16.gmra.mxu0 %v1958
  %v3780 = vpop.f32.mrf.mxu0
  %v3781 = vadd.f32 %v3612, %v3780
  %v3782 = vpop.f32.mrf.mxu0
  %v3783 = vadd.f32 %v3614, %v3782
  %3784 = vmatmul.bf16.gmra.mxu0 %v1971
  %v3785 = vpop.f32.mrf.mxu0
  %v3786 = vadd.f32 %v3617, %v3785
  %v3787 = vpop.f32.mrf.mxu0
  %v3788 = vadd.f32 %v3619, %v3787
  %3789 = vmatmul.bf16.gmra.mxu0 %v1984
  %v3790 = vpop.f32.mrf.mxu0
  %v3791 = vadd.f32 %v3622, %v3790
  %v3792 = vpop.f32.mrf.mxu0
  %v3793 = vadd.f32 %v3624, %v3792
  %3794 = vmatmul.bf16.gmra.mxu0 %v1997
  %v3795 = vpop.f32.mrf.mxu0
  %v3796 = vadd.f32 %v3627, %v3795
  %v3797 = vpop.f32.mrf.mxu0
  %v3798 = vadd.f32 %v3629, %v3797
  %3799 = vmatmul.bf16.gmra.mxu0 %v2010
  %v3800 = vpop.f32.mrf.mxu0
  %v3801 = vadd.f32 %v3632, %v3800
  %v3802 = vpop.f32.mrf.mxu0
  %v3803 = vadd.f32 %v3634, %v3802
  %3804 = vmatmul.bf16.gmra.mxu0 %v2023
  %v3805 = vpop.f32.mrf.mxu0
  %v3806 = vadd.f32 %v3637, %v3805
  %v3807 = vpop.f32.mrf.mxu0
  %v3808 = vadd.f32 %v3639, %v3807
  %3809 = vmatmul.bf16.gmra.mxu0 %v2036
  %v3810 = vpop.f32.mrf.mxu0
  %v3811 = vadd.f32 %v3642, %v3810
  %v3812 = vpop.f32.mrf.mxu0
  %v3813 = vadd.f32 %v3644, %v3812
  %3814 = vmatmul.bf16.gmra.mxu0 %v2049
  %v3815 = vpop.f32.mrf.mxu0
  %v3816 = vadd.f32 %v3647, %v3815
  %v3817 = vpop.f32.mrf.mxu0
  %v3818 = vadd.f32 %v3649, %v3817
  %3819 = vmatmul.bf16.gmra.mxu0 %v2062
  %v3820 = vpop.f32.mrf.mxu0
  %v3821 = vadd.f32 %v3652, %v3820
  %v3822 = vpop.f32.mrf.mxu0
  %v3823 = vadd.f32 %v3654, %v3822
  %3824 = vmatmul.bf16.gmra.mxu0 %v2075
  %v3825 = vpop.f32.mrf.mxu0
  %v3826 = vadd.f32 %v3657, %v3825
  %v3827 = vpop.f32.mrf.mxu0
  %v3828 = vadd.f32 %v3659, %v3827
  %3829 = vmatmul.bf16.gmra.mxu0 %v2088
  %v3830 = vpop.f32.mrf.mxu0
  %v3831 = vadd.f32 %v3662, %v3830
  %v3832 = vpop.f32.mrf.mxu0
  %v3833 = vadd.f32 %v3664, %v3832
  %3834 = vmatmul.bf16.gmra.mxu0 %v2101
  %v3835 = vpop.f32.mrf.mxu0
  %v3836 = vadd.f32 %v3667, %v3835
  %v3837 = vpop.f32.mrf.mxu0
  %v3838 = vadd.f32 %v3669, %v3837
  %3839 = vmatmul.bf16.gmra.mxu0 %v2114
  %v3840 = vpop.f32.mrf.mxu0
  %v3841 = vadd.f32 %v3672, %v3840
  %v3842 = vpop.f32.mrf.mxu0
  %v3843 = vadd.f32 %v3674, %v3842
  %3844 = vmatmul.bf16.gmra.mxu0 %v2127
  %v3845 = vpop.f32.mrf.mxu0
  %v3846 = vadd.f32 %v3677, %v3845
  %v3847 = vpop.f32.mrf.mxu0
  %v3848 = vadd.f32 %v3679, %v3847
  %3849 = vmatmul.bf16.gmra.mxu0 %v2140
  %v3850 = vpop.f32.mrf.mxu0
  %v3851 = vadd.f32 %v3682, %v3850
  %v3852 = vpop.f32.mrf.mxu0
  %v3853 = vadd.f32 %v3684, %v3852
  %3854 = vmatmul.bf16.gmra.mxu0 %v2153
  %v3855 = vpop.f32.mrf.mxu0
  %v3856 = vadd.f32 %v3687, %v3855
  %v3857 = vpop.f32.mrf.mxu0
  %v3858 = vadd.f32 %v3689, %v3857
  %3859 = vmatmul.bf16.gmra.mxu0 %v2166
  %v3860 = vpop.f32.mrf.mxu0
  %v3861 = vadd.f32 %v3692, %v3860
  %v3862 = vpop.f32.mrf.mxu0
  %v3863 = vadd.f32 %v3694, %v3862
  %3864 = vmatmul.bf16.gmra.mxu0 %v2179
  %v3865 = vpop.f32.mrf.mxu0
  %v3866 = vadd.f32 %v3697, %v3865
  %v3867 = vpop.f32.mrf.mxu0
  %v3868 = vadd.f32 %v3699, %v3867
  %3869 = vmatmul.bf16.gmra.mxu0 %v2192
  %v3870 = vpop.f32.mrf.mxu0
  %v3871 = vadd.f32 %v3702, %v3870
  %v3872 = vpop.f32.mrf.mxu0
  %v3873 = vadd.f32 %v3704, %v3872
  %3874 = vmatmul.bf16.gmra.mxu0 %v2205
  %v3875 = vpop.f32.mrf.mxu0
  %v3876 = vadd.f32 %v3707, %v3875
  %v3877 = vpop.f32.mrf.mxu0
  %v3878 = vadd.f32 %v3709, %v3877
  %3879 = vmatmul.bf16.gmra.mxu0 %v2218
  %v3880 = vpop.f32.mrf.mxu0
  %v3881 = vadd.f32 %v3712, %v3880
  %v3882 = vpop.f32.mrf.mxu0
  %v3883 = vadd.f32 %v3714, %v3882
  %3884 = vmatmul.bf16.gmra.mxu0 %v2231
  %v3885 = vpop.f32.mrf.mxu0
  %v3886 = vadd.f32 %v3717, %v3885
  %v3887 = vpop.f32.mrf.mxu0
  %v3888 = vadd.f32 %v3719, %v3887
  %3889 = vmatmul.bf16.gmra.mxu0 %v2244
  %v3890 = vpop.f32.mrf.mxu0
  %v3891 = vadd.f32 %v3722, %v3890
  %v3892 = vpop.f32.mrf.mxu0
  %v3893 = vadd.f32 %v3724, %v3892
  %3894 = vmatmul.bf16.gmra.mxu0 %v2257
  %v3895 = vpop.f32.mrf.mxu0
  %v3896 = vadd.f32 %v3727, %v3895
  %v3897 = vpop.f32.mrf.mxu0
  %v3898 = vadd.f32 %v3729, %v3897
  %3899 = vmatmul.bf16.gmra.mxu0 %v2270
  %v3900 = vpop.f32.mrf.mxu0
  %v3901 = vadd.f32 %v3732, %v3900
  %v3902 = vpop.f32.mrf.mxu0
  %v3903 = vadd.f32 %v3734, %v3902
  %3904 = vmatmul.bf16.gmra.mxu0 %v2283
  %v3905 = vpop.f32.mrf.mxu0
  %v3906 = vadd.f32 %v3737, %v3905
  %v3907 = vpop.f32.mrf.mxu0
  %v3908 = vadd.f32 %v3739, %v3907
  %3909 = vmatmul.bf16.gmra.mxu0 %v2296
  %v3910 = vpop.f32.mrf.mxu0
  %v3911 = vadd.f32 %v3742, %v3910
  %v3912 = vpop.f32.mrf.mxu0
  %v3913 = vadd.f32 %v3744, %v3912
  %3914 = vmatmul.bf16.gmra.mxu0 %v2309
  %v3915 = vpop.f32.mrf.mxu0
  %v3916 = vadd.f32 %v3747, %v3915
  %v3917 = vpop.f32.mrf.mxu0
  %v3918 = vadd.f32 %v3749, %v3917
  %3919 = vmatmul.bf16.gmra.mxu0 %v2322
  %v3920 = vpop.f32.mrf.mxu0
  %v3921 = vadd.f32 %v3752, %v3920
  %v3922 = vpop.f32.mrf.mxu0
  %v3923 = vadd.f32 %v3754, %v3922
  %3924 = vmatmul.bf16.gmra.mxu0 %v2335
  %v3925 = vpop.f32.mrf.mxu0
  %v3926 = vadd.f32 %v3757, %v3925
  %v3927 = vpop.f32.mrf.mxu0
  %v3928 = vadd.f32 %v3759, %v3927
  %3929 = vmatmul.bf16.gmra.mxu0 %v2348
  %v3930 = vpop.f32.mrf.mxu0
  %v3931 = vadd.f32 %v3762, %v3930
  %v3932 = vpop.f32.mrf.mxu0
  %v3933 = vadd.f32 %v3764, %v3932
  %3934 = vdwg.mxu0
  %3935 = vmatpush.bf16.msra.mxu0 %v3166
  %3936 = vmatpush.bf16.msra.mxu0 %v3165
  %3937 = vmatpush.bf16.msra.mxu0 %v3164
  %3938 = vmatpush.bf16.msra.mxu0 %v3163
  %3939 = vmatpush.bf16.msra.mxu0 %v3162
  %3940 = vmatpush.bf16.msra.mxu0 %v3161
  %3941 = vmatpush.bf16.msra.mxu0 %v3160
  %3942 = vmatpush.bf16.msra.mxu0 %v3159
  %3943 = vmatmul.bf16.gmra.mxu0 %v1946
  %v3944 = vpop.f32.mrf.mxu0
  %v3945 = vadd.f32 %v3776, %v3944
  %v3946 = vpop.f32.mrf.mxu0
  %v3947 = vadd.f32 %v3778, %v3946
  %3948 = vmatmul.bf16.gmra.mxu0 %v1959
  %v3949 = vpop.f32.mrf.mxu0
  %v3950 = vadd.f32 %v3781, %v3949
  %v3951 = vpop.f32.mrf.mxu0
  %v3952 = vadd.f32 %v3783, %v3951
  %3953 = vmatmul.bf16.gmra.mxu0 %v1972
  %v3954 = vpop.f32.mrf.mxu0
  %v3955 = vadd.f32 %v3786, %v3954
  %v3956 = vpop.f32.mrf.mxu0
  %v3957 = vadd.f32 %v3788, %v3956
  %3958 = vmatmul.bf16.gmra.mxu0 %v1985
  %v3959 = vpop.f32.mrf.mxu0
  %v3960 = vadd.f32 %v3791, %v3959
  %v3961 = vpop.f32.mrf.mxu0
  %v3962 = vadd.f32 %v3793, %v3961
  %3963 = vmatmul.bf16.gmra.mxu0 %v1998
  %v3964 = vpop.f32.mrf.mxu0
  %v3965 = vadd.f32 %v3796, %v3964
  %v3966 = vpop.f32.mrf.mxu0
  %v3967 = vadd.f32 %v3798, %v3966
  %3968 = vmatmul.bf16.gmra.mxu0 %v2011
  %v3969 = vpop.f32.mrf.mxu0
  %v3970 = vadd.f32 %v3801, %v3969
  %v3971 = vpop.f32.mrf.mxu0
  %v3972 = vadd.f32 %v3803, %v3971
  %3973 = vmatmul.bf16.gmra.mxu0 %v2024
  %v3974 = vpop.f32.mrf.mxu0
  %v3975 = vadd.f32 %v3806, %v3974
  %v3976 = vpop.f32.mrf.mxu0
  %v3977 = vadd.f32 %v3808, %v3976
  %3978 = vmatmul.bf16.gmra.mxu0 %v2037
  %v3979 = vpop.f32.mrf.mxu0
  %v3980 = vadd.f32 %v3811, %v3979
  %v3981 = vpop.f32.mrf.mxu0
  %v3982 = vadd.f32 %v3813, %v3981
  %3983 = vmatmul.bf16.gmra.mxu0 %v2050
  %v3984 = vpop.f32.mrf.mxu0
  %v3985 = vadd.f32 %v3816, %v3984
  %v3986 = vpop.f32.mrf.mxu0
  %v3987 = vadd.f32 %v3818, %v3986
  %3988 = vmatmul.bf16.gmra.mxu0 %v2063
  %v3989 = vpop.f32.mrf.mxu0
  %v3990 = vadd.f32 %v3821, %v3989
  %v3991 = vpop.f32.mrf.mxu0
  %v3992 = vadd.f32 %v3823, %v3991
  %3993 = vmatmul.bf16.gmra.mxu0 %v2076
  %v3994 = vpop.f32.mrf.mxu0
  %v3995 = vadd.f32 %v3826, %v3994
  %v3996 = vpop.f32.mrf.mxu0
  %v3997 = vadd.f32 %v3828, %v3996
  %3998 = vmatmul.bf16.gmra.mxu0 %v2089
  %v3999 = vpop.f32.mrf.mxu0
  %v4000 = vadd.f32 %v3831, %v3999
  %v4001 = vpop.f32.mrf.mxu0
  %v4002 = vadd.f32 %v3833, %v4001
  %4003 = vmatmul.bf16.gmra.mxu0 %v2102
  %v4004 = vpop.f32.mrf.mxu0
  %v4005 = vadd.f32 %v3836, %v4004
  %v4006 = vpop.f32.mrf.mxu0
  %v4007 = vadd.f32 %v3838, %v4006
  %4008 = vmatmul.bf16.gmra.mxu0 %v2115
  %v4009 = vpop.f32.mrf.mxu0
  %v4010 = vadd.f32 %v3841, %v4009
  %v4011 = vpop.f32.mrf.mxu0
  %v4012 = vadd.f32 %v3843, %v4011
  %4013 = vmatmul.bf16.gmra.mxu0 %v2128
  %v4014 = vpop.f32.mrf.mxu0
  %v4015 = vadd.f32 %v3846, %v4014
  %v4016 = vpop.f32.mrf.mxu0
  %v4017 = vadd.f32 %v3848, %v4016
  %4018 = vmatmul.bf16.gmra.mxu0 %v2141
  %v4019 = vpop.f32.mrf.mxu0
  %v4020 = vadd.f32 %v3851, %v4019
  %v4021 = vpop.f32.mrf.mxu0
  %v4022 = vadd.f32 %v3853, %v4021
  %4023 = vmatmul.bf16.gmra.mxu0 %v2154
  %v4024 = vpop.f32.mrf.mxu0
  %v4025 = vadd.f32 %v3856, %v4024
  %v4026 = vpop.f32.mrf.mxu0
  %v4027 = vadd.f32 %v3858, %v4026
  %4028 = vmatmul.bf16.gmra.mxu0 %v2167
  %v4029 = vpop.f32.mrf.mxu0
  %v4030 = vadd.f32 %v3861, %v4029
  %v4031 = vpop.f32.mrf.mxu0
  %v4032 = vadd.f32 %v3863, %v4031
  %4033 = vmatmul.bf16.gmra.mxu0 %v2180
  %v4034 = vpop.f32.mrf.mxu0
  %v4035 = vadd.f32 %v3866, %v4034
  %v4036 = vpop.f32.mrf.mxu0
  %v4037 = vadd.f32 %v3868, %v4036
  %4038 = vmatmul.bf16.gmra.mxu0 %v2193
  %v4039 = vpop.f32.mrf.mxu0
  %v4040 = vadd.f32 %v3871, %v4039
  %v4041 = vpop.f32.mrf.mxu0
  %v4042 = vadd.f32 %v3873, %v4041
  %4043 = vmatmul.bf16.gmra.mxu0 %v2206
  %v4044 = vpop.f32.mrf.mxu0
  %v4045 = vadd.f32 %v3876, %v4044
  %v4046 = vpop.f32.mrf.mxu0
  %v4047 = vadd.f32 %v3878, %v4046
  %4048 = vmatmul.bf16.gmra.mxu0 %v2219
  %v4049 = vpop.f32.mrf.mxu0
  %v4050 = vadd.f32 %v3881, %v4049
  %v4051 = vpop.f32.mrf.mxu0
  %v4052 = vadd.f32 %v3883, %v4051
  %4053 = vmatmul.bf16.gmra.mxu0 %v2232
  %v4054 = vpop.f32.mrf.mxu0
  %v4055 = vadd.f32 %v3886, %v4054
  %v4056 = vpop.f32.mrf.mxu0
  %v4057 = vadd.f32 %v3888, %v4056
  %4058 = vmatmul.bf16.gmra.mxu0 %v2245
  %v4059 = vpop.f32.mrf.mxu0
  %v4060 = vadd.f32 %v3891, %v4059
  %v4061 = vpop.f32.mrf.mxu0
  %v4062 = vadd.f32 %v3893, %v4061
  %4063 = vmatmul.bf16.gmra.mxu0 %v2258
  %v4064 = vpop.f32.mrf.mxu0
  %v4065 = vadd.f32 %v3896, %v4064
  %v4066 = vpop.f32.mrf.mxu0
  %v4067 = vadd.f32 %v3898, %v4066
  %4068 = vmatmul.bf16.gmra.mxu0 %v2271
  %v4069 = vpop.f32.mrf.mxu0
  %v4070 = vadd.f32 %v3901, %v4069
  %v4071 = vpop.f32.mrf.mxu0
  %v4072 = vadd.f32 %v3903, %v4071
  %4073 = vmatmul.bf16.gmra.mxu0 %v2284
  %v4074 = vpop.f32.mrf.mxu0
  %v4075 = vadd.f32 %v3906, %v4074
  %v4076 = vpop.f32.mrf.mxu0
  %v4077 = vadd.f32 %v3908, %v4076
  %4078 = vmatmul.bf16.gmra.mxu0 %v2297
  %v4079 = vpop.f32.mrf.mxu0
  %v4080 = vadd.f32 %v3911, %v4079
  %v4081 = vpop.f32.mrf.mxu0
  %v4082 = vadd.f32 %v3913, %v4081
  %4083 = vmatmul.bf16.gmra.mxu0 %v2310
  %v4084 = vpop.f32.mrf.mxu0
  %v4085 = vadd.f32 %v3916, %v4084
  %v4086 = vpop.f32.mrf.mxu0
  %v4087 = vadd.f32 %v3918, %v4086
  %4088 = vmatmul.bf16.gmra.mxu0 %v2323
  %v4089 = vpop.f32.mrf.mxu0
  %v4090 = vadd.f32 %v3921, %v4089
  %v4091 = vpop.f32.mrf.mxu0
  %v4092 = vadd.f32 %v3923, %v4091
  %4093 = vmatmul.bf16.gmra.mxu0 %v2336
  %v4094 = vpop.f32.mrf.mxu0
  %v4095 = vadd.f32 %v3926, %v4094
  %v4096 = vpop.f32.mrf.mxu0
  %v4097 = vadd.f32 %v3928, %v4096
  %4098 = vmatmul.bf16.gmra.mxu0 %v2349
  %v4099 = vpop.f32.mrf.mxu0
  %v4100 = vadd.f32 %v3931, %v4099
  %v4101 = vpop.f32.mrf.mxu0
  %v4102 = vadd.f32 %v3933, %v4101
  %4103 = vdwg.mxu0
  %4104 = vmatpush.bf16.msra.mxu0 %v3174
  %4105 = vmatpush.bf16.msra.mxu0 %v3173
  %4106 = vmatpush.bf16.msra.mxu0 %v3172
  %4107 = vmatpush.bf16.msra.mxu0 %v3171
  %4108 = vmatpush.bf16.msra.mxu0 %v3170
  %4109 = vmatpush.bf16.msra.mxu0 %v3169
  %4110 = vmatpush.bf16.msra.mxu0 %v3168
  %4111 = vmatpush.bf16.msra.mxu0 %v3167
  %4112 = vmatmul.bf16.gmra.mxu0 %v1947
  %v4113 = vpop.f32.mrf.mxu0
  %v4114 = vadd.f32 %v3945, %v4113
  %v4115 = vpop.f32.mrf.mxu0
  %v4116 = vadd.f32 %v3947, %v4115
  %4117 = vmatmul.bf16.gmra.mxu0 %v1960
  %v4118 = vpop.f32.mrf.mxu0
  %v4119 = vadd.f32 %v3950, %v4118
  %v4120 = vpop.f32.mrf.mxu0
  %v4121 = vadd.f32 %v3952, %v4120
  %4122 = vmatmul.bf16.gmra.mxu0 %v1973
  %v4123 = vpop.f32.mrf.mxu0
  %v4124 = vadd.f32 %v3955, %v4123
  %v4125 = vpop.f32.mrf.mxu0
  %v4126 = vadd.f32 %v3957, %v4125
  %4127 = vmatmul.bf16.gmra.mxu0 %v1986
  %v4128 = vpop.f32.mrf.mxu0
  %v4129 = vadd.f32 %v3960, %v4128
  %v4130 = vpop.f32.mrf.mxu0
  %v4131 = vadd.f32 %v3962, %v4130
  %4132 = vmatmul.bf16.gmra.mxu0 %v1999
  %v4133 = vpop.f32.mrf.mxu0
  %v4134 = vadd.f32 %v3965, %v4133
  %v4135 = vpop.f32.mrf.mxu0
  %v4136 = vadd.f32 %v3967, %v4135
  %4137 = vmatmul.bf16.gmra.mxu0 %v2012
  %v4138 = vpop.f32.mrf.mxu0
  %v4139 = vadd.f32 %v3970, %v4138
  %v4140 = vpop.f32.mrf.mxu0
  %v4141 = vadd.f32 %v3972, %v4140
  %4142 = vmatmul.bf16.gmra.mxu0 %v2025
  %v4143 = vpop.f32.mrf.mxu0
  %v4144 = vadd.f32 %v3975, %v4143
  %v4145 = vpop.f32.mrf.mxu0
  %v4146 = vadd.f32 %v3977, %v4145
  %4147 = vmatmul.bf16.gmra.mxu0 %v2038
  %v4148 = vpop.f32.mrf.mxu0
  %v4149 = vadd.f32 %v3980, %v4148
  %v4150 = vpop.f32.mrf.mxu0
  %v4151 = vadd.f32 %v3982, %v4150
  %4152 = vmatmul.bf16.gmra.mxu0 %v2051
  %v4153 = vpop.f32.mrf.mxu0
  %v4154 = vadd.f32 %v3985, %v4153
  %v4155 = vpop.f32.mrf.mxu0
  %v4156 = vadd.f32 %v3987, %v4155
  %4157 = vmatmul.bf16.gmra.mxu0 %v2064
  %v4158 = vpop.f32.mrf.mxu0
  %v4159 = vadd.f32 %v3990, %v4158
  %v4160 = vpop.f32.mrf.mxu0
  %v4161 = vadd.f32 %v3992, %v4160
  %4162 = vmatmul.bf16.gmra.mxu0 %v2077
  %v4163 = vpop.f32.mrf.mxu0
  %v4164 = vadd.f32 %v3995, %v4163
  %v4165 = vpop.f32.mrf.mxu0
  %v4166 = vadd.f32 %v3997, %v4165
  %4167 = vmatmul.bf16.gmra.mxu0 %v2090
  %v4168 = vpop.f32.mrf.mxu0
  %v4169 = vadd.f32 %v4000, %v4168
  %v4170 = vpop.f32.mrf.mxu0
  %v4171 = vadd.f32 %v4002, %v4170
  %4172 = vmatmul.bf16.gmra.mxu0 %v2103
  %v4173 = vpop.f32.mrf.mxu0
  %v4174 = vadd.f32 %v4005, %v4173
  %v4175 = vpop.f32.mrf.mxu0
  %v4176 = vadd.f32 %v4007, %v4175
  %4177 = vmatmul.bf16.gmra.mxu0 %v2116
  %v4178 = vpop.f32.mrf.mxu0
  %v4179 = vadd.f32 %v4010, %v4178
  %v4180 = vpop.f32.mrf.mxu0
  %v4181 = vadd.f32 %v4012, %v4180
  %4182 = vmatmul.bf16.gmra.mxu0 %v2129
  %v4183 = vpop.f32.mrf.mxu0
  %v4184 = vadd.f32 %v4015, %v4183
  %v4185 = vpop.f32.mrf.mxu0
  %v4186 = vadd.f32 %v4017, %v4185
  %4187 = vmatmul.bf16.gmra.mxu0 %v2142
  %v4188 = vpop.f32.mrf.mxu0
  %v4189 = vadd.f32 %v4020, %v4188
  %v4190 = vpop.f32.mrf.mxu0
  %v4191 = vadd.f32 %v4022, %v4190
  %4192 = vmatmul.bf16.gmra.mxu0 %v2155
  %v4193 = vpop.f32.mrf.mxu0
  %v4194 = vadd.f32 %v4025, %v4193
  %v4195 = vpop.f32.mrf.mxu0
  %v4196 = vadd.f32 %v4027, %v4195
  %4197 = vmatmul.bf16.gmra.mxu0 %v2168
  %v4198 = vpop.f32.mrf.mxu0
  %v4199 = vadd.f32 %v4030, %v4198
  %v4200 = vpop.f32.mrf.mxu0
  %v4201 = vadd.f32 %v4032, %v4200
  %4202 = vmatmul.bf16.gmra.mxu0 %v2181
  %v4203 = vpop.f32.mrf.mxu0
  %v4204 = vadd.f32 %v4035, %v4203
  %v4205 = vpop.f32.mrf.mxu0
  %v4206 = vadd.f32 %v4037, %v4205
  %4207 = vmatmul.bf16.gmra.mxu0 %v2194
  %v4208 = vpop.f32.mrf.mxu0
  %v4209 = vadd.f32 %v4040, %v4208
  %v4210 = vpop.f32.mrf.mxu0
  %v4211 = vadd.f32 %v4042, %v4210
  %4212 = vmatmul.bf16.gmra.mxu0 %v2207
  %v4213 = vpop.f32.mrf.mxu0
  %v4214 = vadd.f32 %v4045, %v4213
  %v4215 = vpop.f32.mrf.mxu0
  %v4216 = vadd.f32 %v4047, %v4215
  %4217 = vmatmul.bf16.gmra.mxu0 %v2220
  %v4218 = vpop.f32.mrf.mxu0
  %v4219 = vadd.f32 %v4050, %v4218
  %v4220 = vpop.f32.mrf.mxu0
  %v4221 = vadd.f32 %v4052, %v4220
  %4222 = vmatmul.bf16.gmra.mxu0 %v2233
  %v4223 = vpop.f32.mrf.mxu0
  %v4224 = vadd.f32 %v4055, %v4223
  %v4225 = vpop.f32.mrf.mxu0
  %v4226 = vadd.f32 %v4057, %v4225
  %4227 = vmatmul.bf16.gmra.mxu0 %v2246
  %v4228 = vpop.f32.mrf.mxu0
  %v4229 = vadd.f32 %v4060, %v4228
  %v4230 = vpop.f32.mrf.mxu0
  %v4231 = vadd.f32 %v4062, %v4230
  %4232 = vmatmul.bf16.gmra.mxu0 %v2259
  %v4233 = vpop.f32.mrf.mxu0
  %v4234 = vadd.f32 %v4065, %v4233
  %v4235 = vpop.f32.mrf.mxu0
  %v4236 = vadd.f32 %v4067, %v4235
  %4237 = vmatmul.bf16.gmra.mxu0 %v2272
  %v4238 = vpop.f32.mrf.mxu0
  %v4239 = vadd.f32 %v4070, %v4238
  %v4240 = vpop.f32.mrf.mxu0
  %v4241 = vadd.f32 %v4072, %v4240
  %4242 = vmatmul.bf16.gmra.mxu0 %v2285
  %v4243 = vpop.f32.mrf.mxu0
  %v4244 = vadd.f32 %v4075, %v4243
  %v4245 = vpop.f32.mrf.mxu0
  %v4246 = vadd.f32 %v4077, %v4245
  %4247 = vmatmul.bf16.gmra.mxu0 %v2298
  %v4248 = vpop.f32.mrf.mxu0
  %v4249 = vadd.f32 %v4080, %v4248
  %v4250 = vpop.f32.mrf.mxu0
  %v4251 = vadd.f32 %v4082, %v4250
  %4252 = vmatmul.bf16.gmra.mxu0 %v2311
  %v4253 = vpop.f32.mrf.mxu0
  %v4254 = vadd.f32 %v4085, %v4253
  %v4255 = vpop.f32.mrf.mxu0
  %v4256 = vadd.f32 %v4087, %v4255
  %4257 = vmatmul.bf16.gmra.mxu0 %v2324
  %v4258 = vpop.f32.mrf.mxu0
  %v4259 = vadd.f32 %v4090, %v4258
  %v4260 = vpop.f32.mrf.mxu0
  %v4261 = vadd.f32 %v4092, %v4260
  %4262 = vmatmul.bf16.gmra.mxu0 %v2337
  %v4263 = vpop.f32.mrf.mxu0
  %v4264 = vadd.f32 %v4095, %v4263
  %v4265 = vpop.f32.mrf.mxu0
  %v4266 = vadd.f32 %v4097, %v4265
  %4267 = vmatmul.bf16.gmra.mxu0 %v2350
  %v4268 = vpop.f32.mrf.mxu0
  %v4269 = vadd.f32 %v4100, %v4268
  %v4270 = vpop.f32.mrf.mxu0
  %v4271 = vadd.f32 %v4102, %v4270
  %4272 = vdwg.mxu0
  %4273 = vmatpush.bf16.msra.mxu0 %v3182
  %4274 = vmatpush.bf16.msra.mxu0 %v3181
  %4275 = vmatpush.bf16.msra.mxu0 %v3180
  %4276 = vmatpush.bf16.msra.mxu0 %v3179
  %4277 = vmatpush.bf16.msra.mxu0 %v3178
  %4278 = vmatpush.bf16.msra.mxu0 %v3177
  %4279 = vmatpush.bf16.msra.mxu0 %v3176
  %4280 = vmatpush.bf16.msra.mxu0 %v3175
  %4281 = vmatmul.bf16.gmra.mxu0 %v1948
  %v4282 = vpop.f32.mrf.mxu0
  %v4283 = vadd.f32 %v4114, %v4282
  %v4284 = vpop.f32.mrf.mxu0
  %v4285 = vadd.f32 %v4116, %v4284
  %4286 = vmatmul.bf16.gmra.mxu0 %v1961
  %v4287 = vpop.f32.mrf.mxu0
  %v4288 = vadd.f32 %v4119, %v4287
  %v4289 = vpop.f32.mrf.mxu0
  %v4290 = vadd.f32 %v4121, %v4289
  %4291 = vmatmul.bf16.gmra.mxu0 %v1974
  %v4292 = vpop.f32.mrf.mxu0
  %v4293 = vadd.f32 %v4124, %v4292
  %v4294 = vpop.f32.mrf.mxu0
  %v4295 = vadd.f32 %v4126, %v4294
  %4296 = vmatmul.bf16.gmra.mxu0 %v1987
  %v4297 = vpop.f32.mrf.mxu0
  %v4298 = vadd.f32 %v4129, %v4297
  %v4299 = vpop.f32.mrf.mxu0
  %v4300 = vadd.f32 %v4131, %v4299
  %4301 = vmatmul.bf16.gmra.mxu0 %v2000
  %v4302 = vpop.f32.mrf.mxu0
  %v4303 = vadd.f32 %v4134, %v4302
  %v4304 = vpop.f32.mrf.mxu0
  %v4305 = vadd.f32 %v4136, %v4304
  %4306 = vmatmul.bf16.gmra.mxu0 %v2013
  %v4307 = vpop.f32.mrf.mxu0
  %v4308 = vadd.f32 %v4139, %v4307
  %v4309 = vpop.f32.mrf.mxu0
  %v4310 = vadd.f32 %v4141, %v4309
  %4311 = vmatmul.bf16.gmra.mxu0 %v2026
  %v4312 = vpop.f32.mrf.mxu0
  %v4313 = vadd.f32 %v4144, %v4312
  %v4314 = vpop.f32.mrf.mxu0
  %v4315 = vadd.f32 %v4146, %v4314
  %4316 = vmatmul.bf16.gmra.mxu0 %v2039
  %v4317 = vpop.f32.mrf.mxu0
  %v4318 = vadd.f32 %v4149, %v4317
  %v4319 = vpop.f32.mrf.mxu0
  %v4320 = vadd.f32 %v4151, %v4319
  %4321 = vmatmul.bf16.gmra.mxu0 %v2052
  %v4322 = vpop.f32.mrf.mxu0
  %v4323 = vadd.f32 %v4154, %v4322
  %v4324 = vpop.f32.mrf.mxu0
  %v4325 = vadd.f32 %v4156, %v4324
  %4326 = vmatmul.bf16.gmra.mxu0 %v2065
  %v4327 = vpop.f32.mrf.mxu0
  %v4328 = vadd.f32 %v4159, %v4327
  %v4329 = vpop.f32.mrf.mxu0
  %v4330 = vadd.f32 %v4161, %v4329
  %4331 = vmatmul.bf16.gmra.mxu0 %v2078
  %v4332 = vpop.f32.mrf.mxu0
  %v4333 = vadd.f32 %v4164, %v4332
  %v4334 = vpop.f32.mrf.mxu0
  %v4335 = vadd.f32 %v4166, %v4334
  %4336 = vmatmul.bf16.gmra.mxu0 %v2091
  %v4337 = vpop.f32.mrf.mxu0
  %v4338 = vadd.f32 %v4169, %v4337
  %v4339 = vpop.f32.mrf.mxu0
  %v4340 = vadd.f32 %v4171, %v4339
  %4341 = vmatmul.bf16.gmra.mxu0 %v2104
  %v4342 = vpop.f32.mrf.mxu0
  %v4343 = vadd.f32 %v4174, %v4342
  %v4344 = vpop.f32.mrf.mxu0
  %v4345 = vadd.f32 %v4176, %v4344
  %4346 = vmatmul.bf16.gmra.mxu0 %v2117
  %v4347 = vpop.f32.mrf.mxu0
  %v4348 = vadd.f32 %v4179, %v4347
  %v4349 = vpop.f32.mrf.mxu0
  %v4350 = vadd.f32 %v4181, %v4349
  %4351 = vmatmul.bf16.gmra.mxu0 %v2130
  %v4352 = vpop.f32.mrf.mxu0
  %v4353 = vadd.f32 %v4184, %v4352
  %v4354 = vpop.f32.mrf.mxu0
  %v4355 = vadd.f32 %v4186, %v4354
  %4356 = vmatmul.bf16.gmra.mxu0 %v2143
  %v4357 = vpop.f32.mrf.mxu0
  %v4358 = vadd.f32 %v4189, %v4357
  %v4359 = vpop.f32.mrf.mxu0
  %v4360 = vadd.f32 %v4191, %v4359
  %4361 = vmatmul.bf16.gmra.mxu0 %v2156
  %v4362 = vpop.f32.mrf.mxu0
  %v4363 = vadd.f32 %v4194, %v4362
  %v4364 = vpop.f32.mrf.mxu0
  %v4365 = vadd.f32 %v4196, %v4364
  %4366 = vmatmul.bf16.gmra.mxu0 %v2169
  %v4367 = vpop.f32.mrf.mxu0
  %v4368 = vadd.f32 %v4199, %v4367
  %v4369 = vpop.f32.mrf.mxu0
  %v4370 = vadd.f32 %v4201, %v4369
  %4371 = vmatmul.bf16.gmra.mxu0 %v2182
  %v4372 = vpop.f32.mrf.mxu0
  %v4373 = vadd.f32 %v4204, %v4372
  %v4374 = vpop.f32.mrf.mxu0
  %v4375 = vadd.f32 %v4206, %v4374
  %4376 = vmatmul.bf16.gmra.mxu0 %v2195
  %v4377 = vpop.f32.mrf.mxu0
  %v4378 = vadd.f32 %v4209, %v4377
  %v4379 = vpop.f32.mrf.mxu0
  %v4380 = vadd.f32 %v4211, %v4379
  %4381 = vmatmul.bf16.gmra.mxu0 %v2208
  %v4382 = vpop.f32.mrf.mxu0
  %v4383 = vadd.f32 %v4214, %v4382
  %v4384 = vpop.f32.mrf.mxu0
  %v4385 = vadd.f32 %v4216, %v4384
  %4386 = vmatmul.bf16.gmra.mxu0 %v2221
  %v4387 = vpop.f32.mrf.mxu0
  %v4388 = vadd.f32 %v4219, %v4387
  %v4389 = vpop.f32.mrf.mxu0
  %v4390 = vadd.f32 %v4221, %v4389
  %4391 = vmatmul.bf16.gmra.mxu0 %v2234
  %v4392 = vpop.f32.mrf.mxu0
  %v4393 = vadd.f32 %v4224, %v4392
  %v4394 = vpop.f32.mrf.mxu0
  %v4395 = vadd.f32 %v4226, %v4394
  %4396 = vmatmul.bf16.gmra.mxu0 %v2247
  %v4397 = vpop.f32.mrf.mxu0
  %v4398 = vadd.f32 %v4229, %v4397
  %v4399 = vpop.f32.mrf.mxu0
  %v4400 = vadd.f32 %v4231, %v4399
  %4401 = vmatmul.bf16.gmra.mxu0 %v2260
  %v4402 = vpop.f32.mrf.mxu0
  %v4403 = vadd.f32 %v4234, %v4402
  %v4404 = vpop.f32.mrf.mxu0
  %v4405 = vadd.f32 %v4236, %v4404
  %4406 = vmatmul.bf16.gmra.mxu0 %v2273
  %v4407 = vpop.f32.mrf.mxu0
  %v4408 = vadd.f32 %v4239, %v4407
  %v4409 = vpop.f32.mrf.mxu0
  %v4410 = vadd.f32 %v4241, %v4409
  %4411 = vmatmul.bf16.gmra.mxu0 %v2286
  %v4412 = vpop.f32.mrf.mxu0
  %v4413 = vadd.f32 %v4244, %v4412
  %v4414 = vpop.f32.mrf.mxu0
  %v4415 = vadd.f32 %v4246, %v4414
  %4416 = vmatmul.bf16.gmra.mxu0 %v2299
  %v4417 = vpop.f32.mrf.mxu0
  %v4418 = vadd.f32 %v4249, %v4417
  %v4419 = vpop.f32.mrf.mxu0
  %v4420 = vadd.f32 %v4251, %v4419
  %4421 = vmatmul.bf16.gmra.mxu0 %v2312
  %v4422 = vpop.f32.mrf.mxu0
  %v4423 = vadd.f32 %v4254, %v4422
  %v4424 = vpop.f32.mrf.mxu0
  %v4425 = vadd.f32 %v4256, %v4424
  %4426 = vmatmul.bf16.gmra.mxu0 %v2325
  %v4427 = vpop.f32.mrf.mxu0
  %v4428 = vadd.f32 %v4259, %v4427
  %v4429 = vpop.f32.mrf.mxu0
  %v4430 = vadd.f32 %v4261, %v4429
  %4431 = vmatmul.bf16.gmra.mxu0 %v2338
  %v4432 = vpop.f32.mrf.mxu0
  %v4433 = vadd.f32 %v4264, %v4432
  %v4434 = vpop.f32.mrf.mxu0
  %v4435 = vadd.f32 %v4266, %v4434
  %4436 = vmatmul.bf16.gmra.mxu0 %v2351
  %v4437 = vpop.f32.mrf.mxu0
  %v4438 = vadd.f32 %v4269, %v4437
  %v4439 = vpop.f32.mrf.mxu0
  %v4440 = vadd.f32 %v4271, %v4439
  %4441 = vdwg.mxu0
  %4442 = vmatpush.bf16.msra.mxu0 %v3190
  %4443 = vmatpush.bf16.msra.mxu0 %v3189
  %4444 = vmatpush.bf16.msra.mxu0 %v3188
  %4445 = vmatpush.bf16.msra.mxu0 %v3187
  %4446 = vmatpush.bf16.msra.mxu0 %v3186
  %4447 = vmatpush.bf16.msra.mxu0 %v3185
  %4448 = vmatpush.bf16.msra.mxu0 %v3184
  %4449 = vmatpush.bf16.msra.mxu0 %v3183
  %4450 = vmatmul.bf16.gmra.mxu0 %v1949
  %v4451 = vpop.f32.mrf.mxu0
  %v4452 = vadd.f32 %v4283, %v4451
  %v4453 = vpop.f32.mrf.mxu0
  %v4454 = vadd.f32 %v4285, %v4453
  %4455 = vmatmul.bf16.gmra.mxu0 %v1962
  %v4456 = vpop.f32.mrf.mxu0
  %v4457 = vadd.f32 %v4288, %v4456
  %v4458 = vpop.f32.mrf.mxu0
  %v4459 = vadd.f32 %v4290, %v4458
  %4460 = vmatmul.bf16.gmra.mxu0 %v1975
  %v4461 = vpop.f32.mrf.mxu0
  %v4462 = vadd.f32 %v4293, %v4461
  %v4463 = vpop.f32.mrf.mxu0
  %v4464 = vadd.f32 %v4295, %v4463
  %4465 = vmatmul.bf16.gmra.mxu0 %v1988
  %v4466 = vpop.f32.mrf.mxu0
  %v4467 = vadd.f32 %v4298, %v4466
  %v4468 = vpop.f32.mrf.mxu0
  %v4469 = vadd.f32 %v4300, %v4468
  %4470 = vmatmul.bf16.gmra.mxu0 %v2001
  %v4471 = vpop.f32.mrf.mxu0
  %v4472 = vadd.f32 %v4303, %v4471
  %v4473 = vpop.f32.mrf.mxu0
  %v4474 = vadd.f32 %v4305, %v4473
  %4475 = vmatmul.bf16.gmra.mxu0 %v2014
  %v4476 = vpop.f32.mrf.mxu0
  %v4477 = vadd.f32 %v4308, %v4476
  %v4478 = vpop.f32.mrf.mxu0
  %v4479 = vadd.f32 %v4310, %v4478
  %4480 = vmatmul.bf16.gmra.mxu0 %v2027
  %v4481 = vpop.f32.mrf.mxu0
  %v4482 = vadd.f32 %v4313, %v4481
  %v4483 = vpop.f32.mrf.mxu0
  %v4484 = vadd.f32 %v4315, %v4483
  %4485 = vmatmul.bf16.gmra.mxu0 %v2040
  %v4486 = vpop.f32.mrf.mxu0
  %v4487 = vadd.f32 %v4318, %v4486
  %v4488 = vpop.f32.mrf.mxu0
  %v4489 = vadd.f32 %v4320, %v4488
  %4490 = vmatmul.bf16.gmra.mxu0 %v2053
  %v4491 = vpop.f32.mrf.mxu0
  %v4492 = vadd.f32 %v4323, %v4491
  %v4493 = vpop.f32.mrf.mxu0
  %v4494 = vadd.f32 %v4325, %v4493
  %4495 = vmatmul.bf16.gmra.mxu0 %v2066
  %v4496 = vpop.f32.mrf.mxu0
  %v4497 = vadd.f32 %v4328, %v4496
  %v4498 = vpop.f32.mrf.mxu0
  %v4499 = vadd.f32 %v4330, %v4498
  %4500 = vmatmul.bf16.gmra.mxu0 %v2079
  %v4501 = vpop.f32.mrf.mxu0
  %v4502 = vadd.f32 %v4333, %v4501
  %v4503 = vpop.f32.mrf.mxu0
  %v4504 = vadd.f32 %v4335, %v4503
  %4505 = vmatmul.bf16.gmra.mxu0 %v2092
  %v4506 = vpop.f32.mrf.mxu0
  %v4507 = vadd.f32 %v4338, %v4506
  %v4508 = vpop.f32.mrf.mxu0
  %v4509 = vadd.f32 %v4340, %v4508
  %4510 = vmatmul.bf16.gmra.mxu0 %v2105
  %v4511 = vpop.f32.mrf.mxu0
  %v4512 = vadd.f32 %v4343, %v4511
  %v4513 = vpop.f32.mrf.mxu0
  %v4514 = vadd.f32 %v4345, %v4513
  %4515 = vmatmul.bf16.gmra.mxu0 %v2118
  %v4516 = vpop.f32.mrf.mxu0
  %v4517 = vadd.f32 %v4348, %v4516
  %v4518 = vpop.f32.mrf.mxu0
  %v4519 = vadd.f32 %v4350, %v4518
  %4520 = vmatmul.bf16.gmra.mxu0 %v2131
  %v4521 = vpop.f32.mrf.mxu0
  %v4522 = vadd.f32 %v4353, %v4521
  %v4523 = vpop.f32.mrf.mxu0
  %v4524 = vadd.f32 %v4355, %v4523
  %4525 = vmatmul.bf16.gmra.mxu0 %v2144
  %v4526 = vpop.f32.mrf.mxu0
  %v4527 = vadd.f32 %v4358, %v4526
  %v4528 = vpop.f32.mrf.mxu0
  %v4529 = vadd.f32 %v4360, %v4528
  %4530 = vmatmul.bf16.gmra.mxu0 %v2157
  %v4531 = vpop.f32.mrf.mxu0
  %v4532 = vadd.f32 %v4363, %v4531
  %v4533 = vpop.f32.mrf.mxu0
  %v4534 = vadd.f32 %v4365, %v4533
  %4535 = vmatmul.bf16.gmra.mxu0 %v2170
  %v4536 = vpop.f32.mrf.mxu0
  %v4537 = vadd.f32 %v4368, %v4536
  %v4538 = vpop.f32.mrf.mxu0
  %v4539 = vadd.f32 %v4370, %v4538
  %4540 = vmatmul.bf16.gmra.mxu0 %v2183
  %v4541 = vpop.f32.mrf.mxu0
  %v4542 = vadd.f32 %v4373, %v4541
  %v4543 = vpop.f32.mrf.mxu0
  %v4544 = vadd.f32 %v4375, %v4543
  %4545 = vmatmul.bf16.gmra.mxu0 %v2196
  %v4546 = vpop.f32.mrf.mxu0
  %v4547 = vadd.f32 %v4378, %v4546
  %v4548 = vpop.f32.mrf.mxu0
  %v4549 = vadd.f32 %v4380, %v4548
  %4550 = vmatmul.bf16.gmra.mxu0 %v2209
  %v4551 = vpop.f32.mrf.mxu0
  %v4552 = vadd.f32 %v4383, %v4551
  %v4553 = vpop.f32.mrf.mxu0
  %v4554 = vadd.f32 %v4385, %v4553
  %4555 = vmatmul.bf16.gmra.mxu0 %v2222
  %v4556 = vpop.f32.mrf.mxu0
  %v4557 = vadd.f32 %v4388, %v4556
  %v4558 = vpop.f32.mrf.mxu0
  %v4559 = vadd.f32 %v4390, %v4558
  %4560 = vmatmul.bf16.gmra.mxu0 %v2235
  %v4561 = vpop.f32.mrf.mxu0
  %v4562 = vadd.f32 %v4393, %v4561
  %v4563 = vpop.f32.mrf.mxu0
  %v4564 = vadd.f32 %v4395, %v4563
  %4565 = vmatmul.bf16.gmra.mxu0 %v2248
  %v4566 = vpop.f32.mrf.mxu0
  %v4567 = vadd.f32 %v4398, %v4566
  %v4568 = vpop.f32.mrf.mxu0
  %v4569 = vadd.f32 %v4400, %v4568
  %4570 = vmatmul.bf16.gmra.mxu0 %v2261
  %v4571 = vpop.f32.mrf.mxu0
  %v4572 = vadd.f32 %v4403, %v4571
  %v4573 = vpop.f32.mrf.mxu0
  %v4574 = vadd.f32 %v4405, %v4573
  %4575 = vmatmul.bf16.gmra.mxu0 %v2274
  %v4576 = vpop.f32.mrf.mxu0
  %v4577 = vadd.f32 %v4408, %v4576
  %v4578 = vpop.f32.mrf.mxu0
  %v4579 = vadd.f32 %v4410, %v4578
  %4580 = vmatmul.bf16.gmra.mxu0 %v2287
  %v4581 = vpop.f32.mrf.mxu0
  %v4582 = vadd.f32 %v4413, %v4581
  %v4583 = vpop.f32.mrf.mxu0
  %v4584 = vadd.f32 %v4415, %v4583
  %4585 = vmatmul.bf16.gmra.mxu0 %v2300
  %v4586 = vpop.f32.mrf.mxu0
  %v4587 = vadd.f32 %v4418, %v4586
  %v4588 = vpop.f32.mrf.mxu0
  %v4589 = vadd.f32 %v4420, %v4588
  %4590 = vmatmul.bf16.gmra.mxu0 %v2313
  %v4591 = vpop.f32.mrf.mxu0
  %v4592 = vadd.f32 %v4423, %v4591
  %v4593 = vpop.f32.mrf.mxu0
  %v4594 = vadd.f32 %v4425, %v4593
  %4595 = vmatmul.bf16.gmra.mxu0 %v2326
  %v4596 = vpop.f32.mrf.mxu0
  %v4597 = vadd.f32 %v4428, %v4596
  %v4598 = vpop.f32.mrf.mxu0
  %v4599 = vadd.f32 %v4430, %v4598
  %4600 = vmatmul.bf16.gmra.mxu0 %v2339
  %v4601 = vpop.f32.mrf.mxu0
  %v4602 = vadd.f32 %v4433, %v4601
  %v4603 = vpop.f32.mrf.mxu0
  %v4604 = vadd.f32 %v4435, %v4603
  %4605 = vmatmul.bf16.gmra.mxu0 %v2352
  %v4606 = vpop.f32.mrf.mxu0
  %v4607 = vadd.f32 %v4438, %v4606
  %v4608 = vpop.f32.mrf.mxu0
  %v4609 = vadd.f32 %v4440, %v4608
  %4610 = vdwg.mxu0
  %4611 = vmatpush.bf16.msra.mxu0 %v3198
  %4612 = vmatpush.bf16.msra.mxu0 %v3197
  %4613 = vmatpush.bf16.msra.mxu0 %v3196
  %4614 = vmatpush.bf16.msra.mxu0 %v3195
  %4615 = vmatpush.bf16.msra.mxu0 %v3194
  %4616 = vmatpush.bf16.msra.mxu0 %v3193
  %4617 = vmatpush.bf16.msra.mxu0 %v3192
  %4618 = vmatpush.bf16.msra.mxu0 %v3191
  %4619 = vmatmul.bf16.gmra.mxu0 %v1950
  %v4620 = vpop.f32.mrf.mxu0
  %v4621 = vadd.f32 %v4452, %v4620
  %v4622 = vpop.f32.mrf.mxu0
  %v4623 = vadd.f32 %v4454, %v4622
  %4624 = vmatmul.bf16.gmra.mxu0 %v1963
  %v4625 = vpop.f32.mrf.mxu0
  %v4626 = vadd.f32 %v4457, %v4625
  %v4627 = vpop.f32.mrf.mxu0
  %v4628 = vadd.f32 %v4459, %v4627
  %4629 = vmatmul.bf16.gmra.mxu0 %v1976
  %v4630 = vpop.f32.mrf.mxu0
  %v4631 = vadd.f32 %v4462, %v4630
  %v4632 = vpop.f32.mrf.mxu0
  %v4633 = vadd.f32 %v4464, %v4632
  %4634 = vmatmul.bf16.gmra.mxu0 %v1989
  %v4635 = vpop.f32.mrf.mxu0
  %v4636 = vadd.f32 %v4467, %v4635
  %v4637 = vpop.f32.mrf.mxu0
  %v4638 = vadd.f32 %v4469, %v4637
  %4639 = vmatmul.bf16.gmra.mxu0 %v2002
  %v4640 = vpop.f32.mrf.mxu0
  %v4641 = vadd.f32 %v4472, %v4640
  %v4642 = vpop.f32.mrf.mxu0
  %v4643 = vadd.f32 %v4474, %v4642
  %4644 = vmatmul.bf16.gmra.mxu0 %v2015
  %v4645 = vpop.f32.mrf.mxu0
  %v4646 = vadd.f32 %v4477, %v4645
  %v4647 = vpop.f32.mrf.mxu0
  %v4648 = vadd.f32 %v4479, %v4647
  %4649 = vmatmul.bf16.gmra.mxu0 %v2028
  %v4650 = vpop.f32.mrf.mxu0
  %v4651 = vadd.f32 %v4482, %v4650
  %v4652 = vpop.f32.mrf.mxu0
  %v4653 = vadd.f32 %v4484, %v4652
  %4654 = vmatmul.bf16.gmra.mxu0 %v2041
  %v4655 = vpop.f32.mrf.mxu0
  %v4656 = vadd.f32 %v4487, %v4655
  %v4657 = vpop.f32.mrf.mxu0
  %v4658 = vadd.f32 %v4489, %v4657
  %4659 = vmatmul.bf16.gmra.mxu0 %v2054
  %v4660 = vpop.f32.mrf.mxu0
  %v4661 = vadd.f32 %v4492, %v4660
  %v4662 = vpop.f32.mrf.mxu0
  %v4663 = vadd.f32 %v4494, %v4662
  %4664 = vmatmul.bf16.gmra.mxu0 %v2067
  %v4665 = vpop.f32.mrf.mxu0
  %v4666 = vadd.f32 %v4497, %v4665
  %v4667 = vpop.f32.mrf.mxu0
  %v4668 = vadd.f32 %v4499, %v4667
  %4669 = vmatmul.bf16.gmra.mxu0 %v2080
  %v4670 = vpop.f32.mrf.mxu0
  %v4671 = vadd.f32 %v4502, %v4670
  %v4672 = vpop.f32.mrf.mxu0
  %v4673 = vadd.f32 %v4504, %v4672
  %4674 = vmatmul.bf16.gmra.mxu0 %v2093
  %v4675 = vpop.f32.mrf.mxu0
  %v4676 = vadd.f32 %v4507, %v4675
  %v4677 = vpop.f32.mrf.mxu0
  %v4678 = vadd.f32 %v4509, %v4677
  %4679 = vmatmul.bf16.gmra.mxu0 %v2106
  %v4680 = vpop.f32.mrf.mxu0
  %v4681 = vadd.f32 %v4512, %v4680
  %v4682 = vpop.f32.mrf.mxu0
  %v4683 = vadd.f32 %v4514, %v4682
  %4684 = vmatmul.bf16.gmra.mxu0 %v2119
  %v4685 = vpop.f32.mrf.mxu0
  %v4686 = vadd.f32 %v4517, %v4685
  %v4687 = vpop.f32.mrf.mxu0
  %v4688 = vadd.f32 %v4519, %v4687
  %4689 = vmatmul.bf16.gmra.mxu0 %v2132
  %v4690 = vpop.f32.mrf.mxu0
  %v4691 = vadd.f32 %v4522, %v4690
  %v4692 = vpop.f32.mrf.mxu0
  %v4693 = vadd.f32 %v4524, %v4692
  %4694 = vmatmul.bf16.gmra.mxu0 %v2145
  %v4695 = vpop.f32.mrf.mxu0
  %v4696 = vadd.f32 %v4527, %v4695
  %v4697 = vpop.f32.mrf.mxu0
  %v4698 = vadd.f32 %v4529, %v4697
  %4699 = vmatmul.bf16.gmra.mxu0 %v2158
  %v4700 = vpop.f32.mrf.mxu0
  %v4701 = vadd.f32 %v4532, %v4700
  %v4702 = vpop.f32.mrf.mxu0
  %v4703 = vadd.f32 %v4534, %v4702
  %4704 = vmatmul.bf16.gmra.mxu0 %v2171
  %v4705 = vpop.f32.mrf.mxu0
  %v4706 = vadd.f32 %v4537, %v4705
  %v4707 = vpop.f32.mrf.mxu0
  %v4708 = vadd.f32 %v4539, %v4707
  %4709 = vmatmul.bf16.gmra.mxu0 %v2184
  %v4710 = vpop.f32.mrf.mxu0
  %v4711 = vadd.f32 %v4542, %v4710
  %v4712 = vpop.f32.mrf.mxu0
  %v4713 = vadd.f32 %v4544, %v4712
  %4714 = vmatmul.bf16.gmra.mxu0 %v2197
  %v4715 = vpop.f32.mrf.mxu0
  %v4716 = vadd.f32 %v4547, %v4715
  %v4717 = vpop.f32.mrf.mxu0
  %v4718 = vadd.f32 %v4549, %v4717
  %4719 = vmatmul.bf16.gmra.mxu0 %v2210
  %v4720 = vpop.f32.mrf.mxu0
  %v4721 = vadd.f32 %v4552, %v4720
  %v4722 = vpop.f32.mrf.mxu0
  %v4723 = vadd.f32 %v4554, %v4722
  %4724 = vmatmul.bf16.gmra.mxu0 %v2223
  %v4725 = vpop.f32.mrf.mxu0
  %v4726 = vadd.f32 %v4557, %v4725
  %v4727 = vpop.f32.mrf.mxu0
  %v4728 = vadd.f32 %v4559, %v4727
  %4729 = vmatmul.bf16.gmra.mxu0 %v2236
  %v4730 = vpop.f32.mrf.mxu0
  %v4731 = vadd.f32 %v4562, %v4730
  %v4732 = vpop.f32.mrf.mxu0
  %v4733 = vadd.f32 %v4564, %v4732
  %4734 = vmatmul.bf16.gmra.mxu0 %v2249
  %v4735 = vpop.f32.mrf.mxu0
  %v4736 = vadd.f32 %v4567, %v4735
  %v4737 = vpop.f32.mrf.mxu0
  %v4738 = vadd.f32 %v4569, %v4737
  %4739 = vmatmul.bf16.gmra.mxu0 %v2262
  %v4740 = vpop.f32.mrf.mxu0
  %v4741 = vadd.f32 %v4572, %v4740
  %v4742 = vpop.f32.mrf.mxu0
  %v4743 = vadd.f32 %v4574, %v4742
  %4744 = vmatmul.bf16.gmra.mxu0 %v2275
  %v4745 = vpop.f32.mrf.mxu0
  %v4746 = vadd.f32 %v4577, %v4745
  %v4747 = vpop.f32.mrf.mxu0
  %v4748 = vadd.f32 %v4579, %v4747
  %4749 = vmatmul.bf16.gmra.mxu0 %v2288
  %v4750 = vpop.f32.mrf.mxu0
  %v4751 = vadd.f32 %v4582, %v4750
  %v4752 = vpop.f32.mrf.mxu0
  %v4753 = vadd.f32 %v4584, %v4752
  %4754 = vmatmul.bf16.gmra.mxu0 %v2301
  %v4755 = vpop.f32.mrf.mxu0
  %v4756 = vadd.f32 %v4587, %v4755
  %v4757 = vpop.f32.mrf.mxu0
  %v4758 = vadd.f32 %v4589, %v4757
  %4759 = vmatmul.bf16.gmra.mxu0 %v2314
  %v4760 = vpop.f32.mrf.mxu0
  %v4761 = vadd.f32 %v4592, %v4760
  %v4762 = vpop.f32.mrf.mxu0
  %v4763 = vadd.f32 %v4594, %v4762
  %4764 = vmatmul.bf16.gmra.mxu0 %v2327
  %v4765 = vpop.f32.mrf.mxu0
  %v4766 = vadd.f32 %v4597, %v4765
  %v4767 = vpop.f32.mrf.mxu0
  %v4768 = vadd.f32 %v4599, %v4767
  %4769 = vmatmul.bf16.gmra.mxu0 %v2340
  %v4770 = vpop.f32.mrf.mxu0
  %v4771 = vadd.f32 %v4602, %v4770
  %v4772 = vpop.f32.mrf.mxu0
  %v4773 = vadd.f32 %v4604, %v4772
  %4774 = vmatmul.bf16.gmra.mxu0 %v2353
  %v4775 = vpop.f32.mrf.mxu0
  %v4776 = vadd.f32 %v4607, %v4775
  %v4777 = vpop.f32.mrf.mxu0
  %v4778 = vadd.f32 %v4609, %v4777
  %4779 = vdwg.mxu0
  %4780 = vmatpush.bf16.msra.mxu0 %v3206
  %4781 = vmatpush.bf16.msra.mxu0 %v3205
  %4782 = vmatpush.bf16.msra.mxu0 %v3204
  %4783 = vmatpush.bf16.msra.mxu0 %v3203
  %4784 = vmatpush.bf16.msra.mxu0 %v3202
  %4785 = vmatpush.bf16.msra.mxu0 %v3201
  %4786 = vmatpush.bf16.msra.mxu0 %v3200
  %4787 = vmatpush.bf16.msra.mxu0 %v3199
  %4788 = vmatmul.bf16.gmra.mxu0 %v1951
  %v4789 = vpop.f32.mrf.mxu0
  %v4790 = vadd.f32 %v4621, %v4789
  %v4791 = vpop.f32.mrf.mxu0
  %v4792 = vadd.f32 %v4623, %v4791
  %4793 = vmatmul.bf16.gmra.mxu0 %v1964
  %v4794 = vpop.f32.mrf.mxu0
  %v4795 = vadd.f32 %v4626, %v4794
  %v4796 = vpop.f32.mrf.mxu0
  %v4797 = vadd.f32 %v4628, %v4796
  %4798 = vmatmul.bf16.gmra.mxu0 %v1977
  %v4799 = vpop.f32.mrf.mxu0
  %v4800 = vadd.f32 %v4631, %v4799
  %v4801 = vpop.f32.mrf.mxu0
  %v4802 = vadd.f32 %v4633, %v4801
  %4803 = vmatmul.bf16.gmra.mxu0 %v1990
  %v4804 = vpop.f32.mrf.mxu0
  %v4805 = vadd.f32 %v4636, %v4804
  %v4806 = vpop.f32.mrf.mxu0
  %v4807 = vadd.f32 %v4638, %v4806
  %4808 = vmatmul.bf16.gmra.mxu0 %v2003
  %v4809 = vpop.f32.mrf.mxu0
  %v4810 = vadd.f32 %v4641, %v4809
  %v4811 = vpop.f32.mrf.mxu0
  %v4812 = vadd.f32 %v4643, %v4811
  %4813 = vmatmul.bf16.gmra.mxu0 %v2016
  %v4814 = vpop.f32.mrf.mxu0
  %v4815 = vadd.f32 %v4646, %v4814
  %v4816 = vpop.f32.mrf.mxu0
  %v4817 = vadd.f32 %v4648, %v4816
  %4818 = vmatmul.bf16.gmra.mxu0 %v2029
  %v4819 = vpop.f32.mrf.mxu0
  %v4820 = vadd.f32 %v4651, %v4819
  %v4821 = vpop.f32.mrf.mxu0
  %v4822 = vadd.f32 %v4653, %v4821
  %4823 = vmatmul.bf16.gmra.mxu0 %v2042
  %v4824 = vpop.f32.mrf.mxu0
  %v4825 = vadd.f32 %v4656, %v4824
  %v4826 = vpop.f32.mrf.mxu0
  %v4827 = vadd.f32 %v4658, %v4826
  %4828 = vmatmul.bf16.gmra.mxu0 %v2055
  %v4829 = vpop.f32.mrf.mxu0
  %v4830 = vadd.f32 %v4661, %v4829
  %v4831 = vpop.f32.mrf.mxu0
  %v4832 = vadd.f32 %v4663, %v4831
  %4833 = vmatmul.bf16.gmra.mxu0 %v2068
  %v4834 = vpop.f32.mrf.mxu0
  %v4835 = vadd.f32 %v4666, %v4834
  %v4836 = vpop.f32.mrf.mxu0
  %v4837 = vadd.f32 %v4668, %v4836
  %4838 = vmatmul.bf16.gmra.mxu0 %v2081
  %v4839 = vpop.f32.mrf.mxu0
  %v4840 = vadd.f32 %v4671, %v4839
  %v4841 = vpop.f32.mrf.mxu0
  %v4842 = vadd.f32 %v4673, %v4841
  %4843 = vmatmul.bf16.gmra.mxu0 %v2094
  %v4844 = vpop.f32.mrf.mxu0
  %v4845 = vadd.f32 %v4676, %v4844
  %v4846 = vpop.f32.mrf.mxu0
  %v4847 = vadd.f32 %v4678, %v4846
  %4848 = vmatmul.bf16.gmra.mxu0 %v2107
  %v4849 = vpop.f32.mrf.mxu0
  %v4850 = vadd.f32 %v4681, %v4849
  %v4851 = vpop.f32.mrf.mxu0
  %v4852 = vadd.f32 %v4683, %v4851
  %4853 = vmatmul.bf16.gmra.mxu0 %v2120
  %v4854 = vpop.f32.mrf.mxu0
  %v4855 = vadd.f32 %v4686, %v4854
  %v4856 = vpop.f32.mrf.mxu0
  %v4857 = vadd.f32 %v4688, %v4856
  %4858 = vmatmul.bf16.gmra.mxu0 %v2133
  %v4859 = vpop.f32.mrf.mxu0
  %v4860 = vadd.f32 %v4691, %v4859
  %v4861 = vpop.f32.mrf.mxu0
  %v4862 = vadd.f32 %v4693, %v4861
  %4863 = vmatmul.bf16.gmra.mxu0 %v2146
  %v4864 = vpop.f32.mrf.mxu0
  %v4865 = vadd.f32 %v4696, %v4864
  %v4866 = vpop.f32.mrf.mxu0
  %v4867 = vadd.f32 %v4698, %v4866
  %4868 = vmatmul.bf16.gmra.mxu0 %v2159
  %v4869 = vpop.f32.mrf.mxu0
  %v4870 = vadd.f32 %v4701, %v4869
  %v4871 = vpop.f32.mrf.mxu0
  %v4872 = vadd.f32 %v4703, %v4871
  %4873 = vmatmul.bf16.gmra.mxu0 %v2172
  %v4874 = vpop.f32.mrf.mxu0
  %v4875 = vadd.f32 %v4706, %v4874
  %v4876 = vpop.f32.mrf.mxu0
  %v4877 = vadd.f32 %v4708, %v4876
  %4878 = vmatmul.bf16.gmra.mxu0 %v2185
  %v4879 = vpop.f32.mrf.mxu0
  %v4880 = vadd.f32 %v4711, %v4879
  %v4881 = vpop.f32.mrf.mxu0
  %v4882 = vadd.f32 %v4713, %v4881
  %4883 = vmatmul.bf16.gmra.mxu0 %v2198
  %v4884 = vpop.f32.mrf.mxu0
  %v4885 = vadd.f32 %v4716, %v4884
  %v4886 = vpop.f32.mrf.mxu0
  %v4887 = vadd.f32 %v4718, %v4886
  %4888 = vmatmul.bf16.gmra.mxu0 %v2211
  %v4889 = vpop.f32.mrf.mxu0
  %v4890 = vadd.f32 %v4721, %v4889
  %v4891 = vpop.f32.mrf.mxu0
  %v4892 = vadd.f32 %v4723, %v4891
  %4893 = vmatmul.bf16.gmra.mxu0 %v2224
  %v4894 = vpop.f32.mrf.mxu0
  %v4895 = vadd.f32 %v4726, %v4894
  %v4896 = vpop.f32.mrf.mxu0
  %v4897 = vadd.f32 %v4728, %v4896
  %4898 = vmatmul.bf16.gmra.mxu0 %v2237
  %v4899 = vpop.f32.mrf.mxu0
  %v4900 = vadd.f32 %v4731, %v4899
  %v4901 = vpop.f32.mrf.mxu0
  %v4902 = vadd.f32 %v4733, %v4901
  %4903 = vmatmul.bf16.gmra.mxu0 %v2250
  %v4904 = vpop.f32.mrf.mxu0
  %v4905 = vadd.f32 %v4736, %v4904
  %v4906 = vpop.f32.mrf.mxu0
  %v4907 = vadd.f32 %v4738, %v4906
  %4908 = vmatmul.bf16.gmra.mxu0 %v2263
  %v4909 = vpop.f32.mrf.mxu0
  %v4910 = vadd.f32 %v4741, %v4909
  %v4911 = vpop.f32.mrf.mxu0
  %v4912 = vadd.f32 %v4743, %v4911
  %4913 = vmatmul.bf16.gmra.mxu0 %v2276
  %v4914 = vpop.f32.mrf.mxu0
  %v4915 = vadd.f32 %v4746, %v4914
  %v4916 = vpop.f32.mrf.mxu0
  %v4917 = vadd.f32 %v4748, %v4916
  %4918 = vmatmul.bf16.gmra.mxu0 %v2289
  %v4919 = vpop.f32.mrf.mxu0
  %v4920 = vadd.f32 %v4751, %v4919
  %v4921 = vpop.f32.mrf.mxu0
  %v4922 = vadd.f32 %v4753, %v4921
  %4923 = vmatmul.bf16.gmra.mxu0 %v2302
  %v4924 = vpop.f32.mrf.mxu0
  %v4925 = vadd.f32 %v4756, %v4924
  %v4926 = vpop.f32.mrf.mxu0
  %v4927 = vadd.f32 %v4758, %v4926
  %4928 = vmatmul.bf16.gmra.mxu0 %v2315
  %v4929 = vpop.f32.mrf.mxu0
  %v4930 = vadd.f32 %v4761, %v4929
  %v4931 = vpop.f32.mrf.mxu0
  %v4932 = vadd.f32 %v4763, %v4931
  %4933 = vmatmul.bf16.gmra.mxu0 %v2328
  %v4934 = vpop.f32.mrf.mxu0
  %v4935 = vadd.f32 %v4766, %v4934
  %v4936 = vpop.f32.mrf.mxu0
  %v4937 = vadd.f32 %v4768, %v4936
  %4938 = vmatmul.bf16.gmra.mxu0 %v2341
  %v4939 = vpop.f32.mrf.mxu0
  %v4940 = vadd.f32 %v4771, %v4939
  %v4941 = vpop.f32.mrf.mxu0
  %v4942 = vadd.f32 %v4773, %v4941
  %4943 = vmatmul.bf16.gmra.mxu0 %v2354
  %v4944 = vpop.f32.mrf.mxu0
  %v4945 = vadd.f32 %v4776, %v4944
  %v4946 = vpop.f32.mrf.mxu0
  %v4947 = vadd.f32 %v4778, %v4946
  %4948 = vdwg.mxu0
  %4949 = vmatpush.bf16.msra.mxu0 %v3214
  %4950 = vmatpush.bf16.msra.mxu0 %v3213
  %4951 = vmatpush.bf16.msra.mxu0 %v3212
  %4952 = vmatpush.bf16.msra.mxu0 %v3211
  %4953 = vmatpush.bf16.msra.mxu0 %v3210
  %4954 = vmatpush.bf16.msra.mxu0 %v3209
  %4955 = vmatpush.bf16.msra.mxu0 %v3208
  %4956 = vmatpush.bf16.msra.mxu0 %v3207
  %4957 = vmatmul.bf16.gmra.mxu0 %v1952
  %v4958 = vpop.f32.mrf.mxu0
  %v4959 = vadd.f32 %v4790, %v4958
  %v4960 = vpop.f32.mrf.mxu0
  %v4961 = vadd.f32 %v4792, %v4960
  %4962 = vmatmul.bf16.gmra.mxu0 %v1965
  %v4963 = vpop.f32.mrf.mxu0
  %v4964 = vadd.f32 %v4795, %v4963
  %v4965 = vpop.f32.mrf.mxu0
  %v4966 = vadd.f32 %v4797, %v4965
  %4967 = vmatmul.bf16.gmra.mxu0 %v1978
  %v4968 = vpop.f32.mrf.mxu0
  %v4969 = vadd.f32 %v4800, %v4968
  %v4970 = vpop.f32.mrf.mxu0
  %v4971 = vadd.f32 %v4802, %v4970
  %4972 = vmatmul.bf16.gmra.mxu0 %v1991
  %v4973 = vpop.f32.mrf.mxu0
  %v4974 = vadd.f32 %v4805, %v4973
  %v4975 = vpop.f32.mrf.mxu0
  %v4976 = vadd.f32 %v4807, %v4975
  %4977 = vmatmul.bf16.gmra.mxu0 %v2004
  %v4978 = vpop.f32.mrf.mxu0
  %v4979 = vadd.f32 %v4810, %v4978
  %v4980 = vpop.f32.mrf.mxu0
  %v4981 = vadd.f32 %v4812, %v4980
  %4982 = vmatmul.bf16.gmra.mxu0 %v2017
  %v4983 = vpop.f32.mrf.mxu0
  %v4984 = vadd.f32 %v4815, %v4983
  %v4985 = vpop.f32.mrf.mxu0
  %v4986 = vadd.f32 %v4817, %v4985
  %4987 = vmatmul.bf16.gmra.mxu0 %v2030
  %v4988 = vpop.f32.mrf.mxu0
  %v4989 = vadd.f32 %v4820, %v4988
  %v4990 = vpop.f32.mrf.mxu0
  %v4991 = vadd.f32 %v4822, %v4990
  %4992 = vmatmul.bf16.gmra.mxu0 %v2043
  %v4993 = vpop.f32.mrf.mxu0
  %v4994 = vadd.f32 %v4825, %v4993
  %v4995 = vpop.f32.mrf.mxu0
  %v4996 = vadd.f32 %v4827, %v4995
  %4997 = vmatmul.bf16.gmra.mxu0 %v2056
  %v4998 = vpop.f32.mrf.mxu0
  %v4999 = vadd.f32 %v4830, %v4998
  %v5000 = vpop.f32.mrf.mxu0
  %v5001 = vadd.f32 %v4832, %v5000
  %5002 = vmatmul.bf16.gmra.mxu0 %v2069
  %v5003 = vpop.f32.mrf.mxu0
  %v5004 = vadd.f32 %v4835, %v5003
  %v5005 = vpop.f32.mrf.mxu0
  %v5006 = vadd.f32 %v4837, %v5005
  %5007 = vmatmul.bf16.gmra.mxu0 %v2082
  %v5008 = vpop.f32.mrf.mxu0
  %v5009 = vadd.f32 %v4840, %v5008
  %v5010 = vpop.f32.mrf.mxu0
  %v5011 = vadd.f32 %v4842, %v5010
  %5012 = vmatmul.bf16.gmra.mxu0 %v2095
  %v5013 = vpop.f32.mrf.mxu0
  %v5014 = vadd.f32 %v4845, %v5013
  %v5015 = vpop.f32.mrf.mxu0
  %v5016 = vadd.f32 %v4847, %v5015
  %5017 = vmatmul.bf16.gmra.mxu0 %v2108
  %v5018 = vpop.f32.mrf.mxu0
  %v5019 = vadd.f32 %v4850, %v5018
  %v5020 = vpop.f32.mrf.mxu0
  %v5021 = vadd.f32 %v4852, %v5020
  %5022 = vmatmul.bf16.gmra.mxu0 %v2121
  %v5023 = vpop.f32.mrf.mxu0
  %v5024 = vadd.f32 %v4855, %v5023
  %v5025 = vpop.f32.mrf.mxu0
  %v5026 = vadd.f32 %v4857, %v5025
  %5027 = vmatmul.bf16.gmra.mxu0 %v2134
  %v5028 = vpop.f32.mrf.mxu0
  %v5029 = vadd.f32 %v4860, %v5028
  %v5030 = vpop.f32.mrf.mxu0
  %v5031 = vadd.f32 %v4862, %v5030
  %5032 = vmatmul.bf16.gmra.mxu0 %v2147
  %v5033 = vpop.f32.mrf.mxu0
  %v5034 = vadd.f32 %v4865, %v5033
  %v5035 = vpop.f32.mrf.mxu0
  %v5036 = vadd.f32 %v4867, %v5035
  %5037 = vmatmul.bf16.gmra.mxu0 %v2160
  %v5038 = vpop.f32.mrf.mxu0
  %v5039 = vadd.f32 %v4870, %v5038
  %v5040 = vpop.f32.mrf.mxu0
  %v5041 = vadd.f32 %v4872, %v5040
  %5042 = vmatmul.bf16.gmra.mxu0 %v2173
  %v5043 = vpop.f32.mrf.mxu0
  %v5044 = vadd.f32 %v4875, %v5043
  %v5045 = vpop.f32.mrf.mxu0
  %v5046 = vadd.f32 %v4877, %v5045
  %5047 = vmatmul.bf16.gmra.mxu0 %v2186
  %v5048 = vpop.f32.mrf.mxu0
  %v5049 = vadd.f32 %v4880, %v5048
  %v5050 = vpop.f32.mrf.mxu0
  %v5051 = vadd.f32 %v4882, %v5050
  %5052 = vmatmul.bf16.gmra.mxu0 %v2199
  %v5053 = vpop.f32.mrf.mxu0
  %v5054 = vadd.f32 %v4885, %v5053
  %v5055 = vpop.f32.mrf.mxu0
  %v5056 = vadd.f32 %v4887, %v5055
  %5057 = vmatmul.bf16.gmra.mxu0 %v2212
  %v5058 = vpop.f32.mrf.mxu0
  %v5059 = vadd.f32 %v4890, %v5058
  %v5060 = vpop.f32.mrf.mxu0
  %v5061 = vadd.f32 %v4892, %v5060
  %5062 = vmatmul.bf16.gmra.mxu0 %v2225
  %v5063 = vpop.f32.mrf.mxu0
  %v5064 = vadd.f32 %v4895, %v5063
  %v5065 = vpop.f32.mrf.mxu0
  %v5066 = vadd.f32 %v4897, %v5065
  %5067 = vmatmul.bf16.gmra.mxu0 %v2238
  %v5068 = vpop.f32.mrf.mxu0
  %v5069 = vadd.f32 %v4900, %v5068
  %v5070 = vpop.f32.mrf.mxu0
  %v5071 = vadd.f32 %v4902, %v5070
  %5072 = vmatmul.bf16.gmra.mxu0 %v2251
  %v5073 = vpop.f32.mrf.mxu0
  %v5074 = vadd.f32 %v4905, %v5073
  %v5075 = vpop.f32.mrf.mxu0
  %v5076 = vadd.f32 %v4907, %v5075
  %5077 = vmatmul.bf16.gmra.mxu0 %v2264
  %v5078 = vpop.f32.mrf.mxu0
  %v5079 = vadd.f32 %v4910, %v5078
  %v5080 = vpop.f32.mrf.mxu0
  %v5081 = vadd.f32 %v4912, %v5080
  %5082 = vmatmul.bf16.gmra.mxu0 %v2277
  %v5083 = vpop.f32.mrf.mxu0
  %v5084 = vadd.f32 %v4915, %v5083
  %v5085 = vpop.f32.mrf.mxu0
  %v5086 = vadd.f32 %v4917, %v5085
  %5087 = vmatmul.bf16.gmra.mxu0 %v2290
  %v5088 = vpop.f32.mrf.mxu0
  %v5089 = vadd.f32 %v4920, %v5088
  %v5090 = vpop.f32.mrf.mxu0
  %v5091 = vadd.f32 %v4922, %v5090
  %5092 = vmatmul.bf16.gmra.mxu0 %v2303
  %v5093 = vpop.f32.mrf.mxu0
  %v5094 = vadd.f32 %v4925, %v5093
  %v5095 = vpop.f32.mrf.mxu0
  %v5096 = vadd.f32 %v4927, %v5095
  %5097 = vmatmul.bf16.gmra.mxu0 %v2316
  %v5098 = vpop.f32.mrf.mxu0
  %v5099 = vadd.f32 %v4930, %v5098
  %v5100 = vpop.f32.mrf.mxu0
  %v5101 = vadd.f32 %v4932, %v5100
  %5102 = vmatmul.bf16.gmra.mxu0 %v2329
  %v5103 = vpop.f32.mrf.mxu0
  %v5104 = vadd.f32 %v4935, %v5103
  %v5105 = vpop.f32.mrf.mxu0
  %v5106 = vadd.f32 %v4937, %v5105
  %5107 = vmatmul.bf16.gmra.mxu0 %v2342
  %v5108 = vpop.f32.mrf.mxu0
  %v5109 = vadd.f32 %v4940, %v5108
  %v5110 = vpop.f32.mrf.mxu0
  %v5111 = vadd.f32 %v4942, %v5110
  %5112 = vmatmul.bf16.gmra.mxu0 %v2355
  %v5113 = vpop.f32.mrf.mxu0
  %v5114 = vadd.f32 %v4945, %v5113
  %v5115 = vpop.f32.mrf.mxu0
  %v5116 = vadd.f32 %v4947, %v5115
  %5117 = vdwg.mxu0
  %5118 = vmatpush.bf16.msra.mxu0 %v3222
  %5119 = vmatpush.bf16.msra.mxu0 %v3221
  %5120 = vmatpush.bf16.msra.mxu0 %v3220
  %5121 = vmatpush.bf16.msra.mxu0 %v3219
  %5122 = vmatpush.bf16.msra.mxu0 %v3218
  %5123 = vmatpush.bf16.msra.mxu0 %v3217
  %5124 = vmatpush.bf16.msra.mxu0 %v3216
  %5125 = vmatpush.bf16.msra.mxu0 %v3215
  %5126 = vmatmul.bf16.gmra.mxu0 %v1953
  %v5127 = vpop.f32.mrf.mxu0
  %v5128 = vadd.f32 %v4959, %v5127
  %v5129 = vpop.f32.mrf.mxu0
  %v5130 = vadd.f32 %v4961, %v5129
  %5131 = vmatmul.bf16.gmra.mxu0 %v1966
  %v5132 = vpop.f32.mrf.mxu0
  %v5133 = vadd.f32 %v4964, %v5132
  %v5134 = vpop.f32.mrf.mxu0
  %v5135 = vadd.f32 %v4966, %v5134
  %5136 = vmatmul.bf16.gmra.mxu0 %v1979
  %v5137 = vpop.f32.mrf.mxu0
  %v5138 = vadd.f32 %v4969, %v5137
  %v5139 = vpop.f32.mrf.mxu0
  %v5140 = vadd.f32 %v4971, %v5139
  %5141 = vmatmul.bf16.gmra.mxu0 %v1992
  %v5142 = vpop.f32.mrf.mxu0
  %v5143 = vadd.f32 %v4974, %v5142
  %v5144 = vpop.f32.mrf.mxu0
  %v5145 = vadd.f32 %v4976, %v5144
  %5146 = vmatmul.bf16.gmra.mxu0 %v2005
  %v5147 = vpop.f32.mrf.mxu0
  %v5148 = vadd.f32 %v4979, %v5147
  %v5149 = vpop.f32.mrf.mxu0
  %v5150 = vadd.f32 %v4981, %v5149
  %5151 = vmatmul.bf16.gmra.mxu0 %v2018
  %v5152 = vpop.f32.mrf.mxu0
  %v5153 = vadd.f32 %v4984, %v5152
  %v5154 = vpop.f32.mrf.mxu0
  %v5155 = vadd.f32 %v4986, %v5154
  %5156 = vmatmul.bf16.gmra.mxu0 %v2031
  %v5157 = vpop.f32.mrf.mxu0
  %v5158 = vadd.f32 %v4989, %v5157
  %v5159 = vpop.f32.mrf.mxu0
  %v5160 = vadd.f32 %v4991, %v5159
  %5161 = vmatmul.bf16.gmra.mxu0 %v2044
  %v5162 = vpop.f32.mrf.mxu0
  %v5163 = vadd.f32 %v4994, %v5162
  %v5164 = vpop.f32.mrf.mxu0
  %v5165 = vadd.f32 %v4996, %v5164
  %5166 = vmatmul.bf16.gmra.mxu0 %v2057
  %v5167 = vpop.f32.mrf.mxu0
  %v5168 = vadd.f32 %v4999, %v5167
  %v5169 = vpop.f32.mrf.mxu0
  %v5170 = vadd.f32 %v5001, %v5169
  %5171 = vmatmul.bf16.gmra.mxu0 %v2070
  %v5172 = vpop.f32.mrf.mxu0
  %v5173 = vadd.f32 %v5004, %v5172
  %v5174 = vpop.f32.mrf.mxu0
  %v5175 = vadd.f32 %v5006, %v5174
  %5176 = vmatmul.bf16.gmra.mxu0 %v2083
  %v5177 = vpop.f32.mrf.mxu0
  %v5178 = vadd.f32 %v5009, %v5177
  %v5179 = vpop.f32.mrf.mxu0
  %v5180 = vadd.f32 %v5011, %v5179
  %5181 = vmatmul.bf16.gmra.mxu0 %v2096
  %v5182 = vpop.f32.mrf.mxu0
  %v5183 = vadd.f32 %v5014, %v5182
  %v5184 = vpop.f32.mrf.mxu0
  %v5185 = vadd.f32 %v5016, %v5184
  %5186 = vmatmul.bf16.gmra.mxu0 %v2109
  %v5187 = vpop.f32.mrf.mxu0
  %v5188 = vadd.f32 %v5019, %v5187
  %v5189 = vpop.f32.mrf.mxu0
  %v5190 = vadd.f32 %v5021, %v5189
  %5191 = vmatmul.bf16.gmra.mxu0 %v2122
  %v5192 = vpop.f32.mrf.mxu0
  %v5193 = vadd.f32 %v5024, %v5192
  %v5194 = vpop.f32.mrf.mxu0
  %v5195 = vadd.f32 %v5026, %v5194
  %5196 = vmatmul.bf16.gmra.mxu0 %v2135
  %v5197 = vpop.f32.mrf.mxu0
  %v5198 = vadd.f32 %v5029, %v5197
  %v5199 = vpop.f32.mrf.mxu0
  %v5200 = vadd.f32 %v5031, %v5199
  %5201 = vmatmul.bf16.gmra.mxu0 %v2148
  %v5202 = vpop.f32.mrf.mxu0
  %v5203 = vadd.f32 %v5034, %v5202
  %v5204 = vpop.f32.mrf.mxu0
  %v5205 = vadd.f32 %v5036, %v5204
  %5206 = vmatmul.bf16.gmra.mxu0 %v2161
  %v5207 = vpop.f32.mrf.mxu0
  %v5208 = vadd.f32 %v5039, %v5207
  %v5209 = vpop.f32.mrf.mxu0
  %v5210 = vadd.f32 %v5041, %v5209
  %5211 = vmatmul.bf16.gmra.mxu0 %v2174
  %v5212 = vpop.f32.mrf.mxu0
  %v5213 = vadd.f32 %v5044, %v5212
  %v5214 = vpop.f32.mrf.mxu0
  %v5215 = vadd.f32 %v5046, %v5214
  %5216 = vmatmul.bf16.gmra.mxu0 %v2187
  %v5217 = vpop.f32.mrf.mxu0
  %v5218 = vadd.f32 %v5049, %v5217
  %v5219 = vpop.f32.mrf.mxu0
  %v5220 = vadd.f32 %v5051, %v5219
  %5221 = vmatmul.bf16.gmra.mxu0 %v2200
  %v5222 = vpop.f32.mrf.mxu0
  %v5223 = vadd.f32 %v5054, %v5222
  %v5224 = vpop.f32.mrf.mxu0
  %v5225 = vadd.f32 %v5056, %v5224
  %5226 = vmatmul.bf16.gmra.mxu0 %v2213
  %v5227 = vpop.f32.mrf.mxu0
  %v5228 = vadd.f32 %v5059, %v5227
  %v5229 = vpop.f32.mrf.mxu0
  %v5230 = vadd.f32 %v5061, %v5229
  %5231 = vmatmul.bf16.gmra.mxu0 %v2226
  %v5232 = vpop.f32.mrf.mxu0
  %v5233 = vadd.f32 %v5064, %v5232
  %v5234 = vpop.f32.mrf.mxu0
  %v5235 = vadd.f32 %v5066, %v5234
  %5236 = vmatmul.bf16.gmra.mxu0 %v2239
  %v5237 = vpop.f32.mrf.mxu0
  %v5238 = vadd.f32 %v5069, %v5237
  %v5239 = vpop.f32.mrf.mxu0
  %v5240 = vadd.f32 %v5071, %v5239
  %5241 = vmatmul.bf16.gmra.mxu0 %v2252
  %v5242 = vpop.f32.mrf.mxu0
  %v5243 = vadd.f32 %v5074, %v5242
  %v5244 = vpop.f32.mrf.mxu0
  %v5245 = vadd.f32 %v5076, %v5244
  %5246 = vmatmul.bf16.gmra.mxu0 %v2265
  %v5247 = vpop.f32.mrf.mxu0
  %v5248 = vadd.f32 %v5079, %v5247
  %v5249 = vpop.f32.mrf.mxu0
  %v5250 = vadd.f32 %v5081, %v5249
  %5251 = vmatmul.bf16.gmra.mxu0 %v2278
  %v5252 = vpop.f32.mrf.mxu0
  %v5253 = vadd.f32 %v5084, %v5252
  %v5254 = vpop.f32.mrf.mxu0
  %v5255 = vadd.f32 %v5086, %v5254
  %5256 = vmatmul.bf16.gmra.mxu0 %v2291
  %v5257 = vpop.f32.mrf.mxu0
  %v5258 = vadd.f32 %v5089, %v5257
  %v5259 = vpop.f32.mrf.mxu0
  %v5260 = vadd.f32 %v5091, %v5259
  %5261 = vmatmul.bf16.gmra.mxu0 %v2304
  %v5262 = vpop.f32.mrf.mxu0
  %v5263 = vadd.f32 %v5094, %v5262
  %v5264 = vpop.f32.mrf.mxu0
  %v5265 = vadd.f32 %v5096, %v5264
  %5266 = vmatmul.bf16.gmra.mxu0 %v2317
  %v5267 = vpop.f32.mrf.mxu0
  %v5268 = vadd.f32 %v5099, %v5267
  %v5269 = vpop.f32.mrf.mxu0
  %v5270 = vadd.f32 %v5101, %v5269
  %5271 = vmatmul.bf16.gmra.mxu0 %v2330
  %v5272 = vpop.f32.mrf.mxu0
  %v5273 = vadd.f32 %v5104, %v5272
  %v5274 = vpop.f32.mrf.mxu0
  %v5275 = vadd.f32 %v5106, %v5274
  %5276 = vmatmul.bf16.gmra.mxu0 %v2343
  %v5277 = vpop.f32.mrf.mxu0
  %v5278 = vadd.f32 %v5109, %v5277
  %v5279 = vpop.f32.mrf.mxu0
  %v5280 = vadd.f32 %v5111, %v5279
  %5281 = vmatmul.bf16.gmra.mxu0 %v2356
  %v5282 = vpop.f32.mrf.mxu0
  %v5283 = vadd.f32 %v5114, %v5282
  %v5284 = vpop.f32.mrf.mxu0
  %v5285 = vadd.f32 %v5116, %v5284
  %5286 = vdwg.mxu0
  %5287 = vmatpush.bf16.msra.mxu0 %v3230
  %5288 = vmatpush.bf16.msra.mxu0 %v3229
  %5289 = vmatpush.bf16.msra.mxu0 %v3228
  %5290 = vmatpush.bf16.msra.mxu0 %v3227
  %5291 = vmatpush.bf16.msra.mxu0 %v3226
  %5292 = vmatpush.bf16.msra.mxu0 %v3225
  %5293 = vmatpush.bf16.msra.mxu0 %v3224
  %5294 = vmatpush.bf16.msra.mxu0 %v3223
  %5295 = vmatmul.bf16.gmra.mxu0 %v1954
  %v5296 = vpop.f32.mrf.mxu0
  %v5297 = vadd.f32 %v5128, %v5296
  %v5298 = vpop.f32.mrf.mxu0
  %v5299 = vadd.f32 %v5130, %v5298
  %5300 = vmatmul.bf16.gmra.mxu0 %v1967
  %v5301 = vpop.f32.mrf.mxu0
  %v5302 = vadd.f32 %v5133, %v5301
  %v5303 = vpop.f32.mrf.mxu0
  %v5304 = vadd.f32 %v5135, %v5303
  %5305 = vmatmul.bf16.gmra.mxu0 %v1980
  %v5306 = vpop.f32.mrf.mxu0
  %v5307 = vadd.f32 %v5138, %v5306
  %v5308 = vpop.f32.mrf.mxu0
  %v5309 = vadd.f32 %v5140, %v5308
  %5310 = vmatmul.bf16.gmra.mxu0 %v1993
  %v5311 = vpop.f32.mrf.mxu0
  %v5312 = vadd.f32 %v5143, %v5311
  %v5313 = vpop.f32.mrf.mxu0
  %v5314 = vadd.f32 %v5145, %v5313
  %5315 = vmatmul.bf16.gmra.mxu0 %v2006
  %v5316 = vpop.f32.mrf.mxu0
  %v5317 = vadd.f32 %v5148, %v5316
  %v5318 = vpop.f32.mrf.mxu0
  %v5319 = vadd.f32 %v5150, %v5318
  %5320 = vmatmul.bf16.gmra.mxu0 %v2019
  %v5321 = vpop.f32.mrf.mxu0
  %v5322 = vadd.f32 %v5153, %v5321
  %v5323 = vpop.f32.mrf.mxu0
  %v5324 = vadd.f32 %v5155, %v5323
  %5325 = vmatmul.bf16.gmra.mxu0 %v2032
  %v5326 = vpop.f32.mrf.mxu0
  %v5327 = vadd.f32 %v5158, %v5326
  %v5328 = vpop.f32.mrf.mxu0
  %v5329 = vadd.f32 %v5160, %v5328
  %5330 = vmatmul.bf16.gmra.mxu0 %v2045
  %v5331 = vpop.f32.mrf.mxu0
  %v5332 = vadd.f32 %v5163, %v5331
  %v5333 = vpop.f32.mrf.mxu0
  %v5334 = vadd.f32 %v5165, %v5333
  %5335 = vmatmul.bf16.gmra.mxu0 %v2058
  %v5336 = vpop.f32.mrf.mxu0
  %v5337 = vadd.f32 %v5168, %v5336
  %v5338 = vpop.f32.mrf.mxu0
  %v5339 = vadd.f32 %v5170, %v5338
  %5340 = vmatmul.bf16.gmra.mxu0 %v2071
  %v5341 = vpop.f32.mrf.mxu0
  %v5342 = vadd.f32 %v5173, %v5341
  %v5343 = vpop.f32.mrf.mxu0
  %v5344 = vadd.f32 %v5175, %v5343
  %5345 = vmatmul.bf16.gmra.mxu0 %v2084
  %v5346 = vpop.f32.mrf.mxu0
  %v5347 = vadd.f32 %v5178, %v5346
  %v5348 = vpop.f32.mrf.mxu0
  %v5349 = vadd.f32 %v5180, %v5348
  %5350 = vmatmul.bf16.gmra.mxu0 %v2097
  %v5351 = vpop.f32.mrf.mxu0
  %v5352 = vadd.f32 %v5183, %v5351
  %v5353 = vpop.f32.mrf.mxu0
  %v5354 = vadd.f32 %v5185, %v5353
  %5355 = vmatmul.bf16.gmra.mxu0 %v2110
  %v5356 = vpop.f32.mrf.mxu0
  %v5357 = vadd.f32 %v5188, %v5356
  %v5358 = vpop.f32.mrf.mxu0
  %v5359 = vadd.f32 %v5190, %v5358
  %5360 = vmatmul.bf16.gmra.mxu0 %v2123
  %v5361 = vpop.f32.mrf.mxu0
  %v5362 = vadd.f32 %v5193, %v5361
  %v5363 = vpop.f32.mrf.mxu0
  %v5364 = vadd.f32 %v5195, %v5363
  %5365 = vmatmul.bf16.gmra.mxu0 %v2136
  %v5366 = vpop.f32.mrf.mxu0
  %v5367 = vadd.f32 %v5198, %v5366
  %v5368 = vpop.f32.mrf.mxu0
  %v5369 = vadd.f32 %v5200, %v5368
  %5370 = vmatmul.bf16.gmra.mxu0 %v2149
  %v5371 = vpop.f32.mrf.mxu0
  %v5372 = vadd.f32 %v5203, %v5371
  %v5373 = vpop.f32.mrf.mxu0
  %v5374 = vadd.f32 %v5205, %v5373
  %5375 = vmatmul.bf16.gmra.mxu0 %v2162
  %v5376 = vpop.f32.mrf.mxu0
  %v5377 = vadd.f32 %v5208, %v5376
  %v5378 = vpop.f32.mrf.mxu0
  %v5379 = vadd.f32 %v5210, %v5378
  %5380 = vmatmul.bf16.gmra.mxu0 %v2175
  %v5381 = vpop.f32.mrf.mxu0
  %v5382 = vadd.f32 %v5213, %v5381
  %v5383 = vpop.f32.mrf.mxu0
  %v5384 = vadd.f32 %v5215, %v5383
  %5385 = vmatmul.bf16.gmra.mxu0 %v2188
  %v5386 = vpop.f32.mrf.mxu0
  %v5387 = vadd.f32 %v5218, %v5386
  %v5388 = vpop.f32.mrf.mxu0
  %v5389 = vadd.f32 %v5220, %v5388
  %5390 = vmatmul.bf16.gmra.mxu0 %v2201
  %v5391 = vpop.f32.mrf.mxu0
  %v5392 = vadd.f32 %v5223, %v5391
  %v5393 = vpop.f32.mrf.mxu0
  %v5394 = vadd.f32 %v5225, %v5393
  %5395 = vmatmul.bf16.gmra.mxu0 %v2214
  %v5396 = vpop.f32.mrf.mxu0
  %v5397 = vadd.f32 %v5228, %v5396
  %v5398 = vpop.f32.mrf.mxu0
  %v5399 = vadd.f32 %v5230, %v5398
  %5400 = vmatmul.bf16.gmra.mxu0 %v2227
  %v5401 = vpop.f32.mrf.mxu0
  %v5402 = vadd.f32 %v5233, %v5401
  %v5403 = vpop.f32.mrf.mxu0
  %v5404 = vadd.f32 %v5235, %v5403
  %5405 = vmatmul.bf16.gmra.mxu0 %v2240
  %v5406 = vpop.f32.mrf.mxu0
  %v5407 = vadd.f32 %v5238, %v5406
  %v5408 = vpop.f32.mrf.mxu0
  %v5409 = vadd.f32 %v5240, %v5408
  %5410 = vmatmul.bf16.gmra.mxu0 %v2253
  %v5411 = vpop.f32.mrf.mxu0
  %v5412 = vadd.f32 %v5243, %v5411
  %v5413 = vpop.f32.mrf.mxu0
  %v5414 = vadd.f32 %v5245, %v5413
  %5415 = vmatmul.bf16.gmra.mxu0 %v2266
  %v5416 = vpop.f32.mrf.mxu0
  %v5417 = vadd.f32 %v5248, %v5416
  %v5418 = vpop.f32.mrf.mxu0
  %v5419 = vadd.f32 %v5250, %v5418
  %5420 = vmatmul.bf16.gmra.mxu0 %v2279
  %v5421 = vpop.f32.mrf.mxu0
  %v5422 = vadd.f32 %v5253, %v5421
  %v5423 = vpop.f32.mrf.mxu0
  %v5424 = vadd.f32 %v5255, %v5423
  %5425 = vmatmul.bf16.gmra.mxu0 %v2292
  %v5426 = vpop.f32.mrf.mxu0
  %v5427 = vadd.f32 %v5258, %v5426
  %v5428 = vpop.f32.mrf.mxu0
  %v5429 = vadd.f32 %v5260, %v5428
  %5430 = vmatmul.bf16.gmra.mxu0 %v2305
  %v5431 = vpop.f32.mrf.mxu0
  %v5432 = vadd.f32 %v5263, %v5431
  %v5433 = vpop.f32.mrf.mxu0
  %v5434 = vadd.f32 %v5265, %v5433
  %5435 = vmatmul.bf16.gmra.mxu0 %v2318
  %v5436 = vpop.f32.mrf.mxu0
  %v5437 = vadd.f32 %v5268, %v5436
  %v5438 = vpop.f32.mrf.mxu0
  %v5439 = vadd.f32 %v5270, %v5438
  %5440 = vmatmul.bf16.gmra.mxu0 %v2331
  %v5441 = vpop.f32.mrf.mxu0
  %v5442 = vadd.f32 %v5273, %v5441
  %v5443 = vpop.f32.mrf.mxu0
  %v5444 = vadd.f32 %v5275, %v5443
  %5445 = vmatmul.bf16.gmra.mxu0 %v2344
  %v5446 = vpop.f32.mrf.mxu0
  %v5447 = vadd.f32 %v5278, %v5446
  %v5448 = vpop.f32.mrf.mxu0
  %v5449 = vadd.f32 %v5280, %v5448
  %5450 = vmatmul.bf16.gmra.mxu0 %v2357
  %v5451 = vpop.f32.mrf.mxu0
  %v5452 = vadd.f32 %v5283, %v5451
  %v5453 = vpop.f32.mrf.mxu0
  %v5454 = vadd.f32 %v5285, %v5453
  %5455 = vdwg.mxu0
  %5456 = vmatpush.bf16.msra.mxu0 0
  %5457 = vmatpush.bf16.msra.mxu0 0
  %5458 = vmatpush.bf16.msra.mxu0 0
  %5459 = vmatpush.bf16.msra.mxu0 0
  %5460 = vmatpush.bf16.msra.mxu0 0
  %5461 = vmatpush.bf16.msra.mxu0 0
  %5462 = vmatpush.bf16.msra.mxu0 %v3232
  %5463 = vmatpush.bf16.msra.mxu0 %v3231
  %5464 = vmatmul.bf16.gmra.mxu0 %v3333
  %v5465 = vpop.f32.mrf.mxu0
  %v5466 = vadd.f32 %v5297, %v5465
  %v5467 = vpop.f32.mrf.mxu0
  %v5468 = vadd.f32 %v5299, %v5467
  %5469 = vmatmul.bf16.gmra.mxu0 %v3336
  %v5470 = vpop.f32.mrf.mxu0
  %v5471 = vadd.f32 %v5302, %v5470
  %v5472 = vpop.f32.mrf.mxu0
  %v5473 = vadd.f32 %v5304, %v5472
  %5474 = vmatmul.bf16.gmra.mxu0 %v3339
  %v5475 = vpop.f32.mrf.mxu0
  %v5476 = vadd.f32 %v5307, %v5475
  %v5477 = vpop.f32.mrf.mxu0
  %v5478 = vadd.f32 %v5309, %v5477
  %5479 = vmatmul.bf16.gmra.mxu0 %v3342
  %v5480 = vpop.f32.mrf.mxu0
  %v5481 = vadd.f32 %v5312, %v5480
  %v5482 = vpop.f32.mrf.mxu0
  %v5483 = vadd.f32 %v5314, %v5482
  %5484 = vmatmul.bf16.gmra.mxu0 %v3345
  %v5485 = vpop.f32.mrf.mxu0
  %v5486 = vadd.f32 %v5317, %v5485
  %v5487 = vpop.f32.mrf.mxu0
  %v5488 = vadd.f32 %v5319, %v5487
  %5489 = vmatmul.bf16.gmra.mxu0 %v3348
  %v5490 = vpop.f32.mrf.mxu0
  %v5491 = vadd.f32 %v5322, %v5490
  %v5492 = vpop.f32.mrf.mxu0
  %v5493 = vadd.f32 %v5324, %v5492
  %5494 = vmatmul.bf16.gmra.mxu0 %v3351
  %v5495 = vpop.f32.mrf.mxu0
  %v5496 = vadd.f32 %v5327, %v5495
  %v5497 = vpop.f32.mrf.mxu0
  %v5498 = vadd.f32 %v5329, %v5497
  %5499 = vmatmul.bf16.gmra.mxu0 %v3354
  %v5500 = vpop.f32.mrf.mxu0
  %v5501 = vadd.f32 %v5332, %v5500
  %v5502 = vpop.f32.mrf.mxu0
  %v5503 = vadd.f32 %v5334, %v5502
  %5504 = vmatmul.bf16.gmra.mxu0 %v3357
  %v5505 = vpop.f32.mrf.mxu0
  %v5506 = vadd.f32 %v5337, %v5505
  %v5507 = vpop.f32.mrf.mxu0
  %v5508 = vadd.f32 %v5339, %v5507
  %5509 = vmatmul.bf16.gmra.mxu0 %v3360
  %v5510 = vpop.f32.mrf.mxu0
  %v5511 = vadd.f32 %v5342, %v5510
  %v5512 = vpop.f32.mrf.mxu0
  %v5513 = vadd.f32 %v5344, %v5512
  %5514 = vmatmul.bf16.gmra.mxu0 %v3363
  %v5515 = vpop.f32.mrf.mxu0
  %v5516 = vadd.f32 %v5347, %v5515
  %v5517 = vpop.f32.mrf.mxu0
  %v5518 = vadd.f32 %v5349, %v5517
  %5519 = vmatmul.bf16.gmra.mxu0 %v3366
  %v5520 = vpop.f32.mrf.mxu0
  %v5521 = vadd.f32 %v5352, %v5520
  %v5522 = vpop.f32.mrf.mxu0
  %v5523 = vadd.f32 %v5354, %v5522
  %5524 = vmatmul.bf16.gmra.mxu0 %v3369
  %v5525 = vpop.f32.mrf.mxu0
  %v5526 = vadd.f32 %v5357, %v5525
  %v5527 = vpop.f32.mrf.mxu0
  %v5528 = vadd.f32 %v5359, %v5527
  %5529 = vmatmul.bf16.gmra.mxu0 %v3372
  %v5530 = vpop.f32.mrf.mxu0
  %v5531 = vadd.f32 %v5362, %v5530
  %v5532 = vpop.f32.mrf.mxu0
  %v5533 = vadd.f32 %v5364, %v5532
  %5534 = vmatmul.bf16.gmra.mxu0 %v3375
  %v5535 = vpop.f32.mrf.mxu0
  %v5536 = vadd.f32 %v5367, %v5535
  %v5537 = vpop.f32.mrf.mxu0
  %v5538 = vadd.f32 %v5369, %v5537
  %5539 = vmatmul.bf16.gmra.mxu0 %v3378
  %v5540 = vpop.f32.mrf.mxu0
  %v5541 = vadd.f32 %v5372, %v5540
  %v5542 = vpop.f32.mrf.mxu0
  %v5543 = vadd.f32 %v5374, %v5542
  %5544 = vmatmul.bf16.gmra.mxu0 %v3381
  %v5545 = vpop.f32.mrf.mxu0
  %v5546 = vadd.f32 %v5377, %v5545
  %v5547 = vpop.f32.mrf.mxu0
  %v5548 = vadd.f32 %v5379, %v5547
  %5549 = vmatmul.bf16.gmra.mxu0 %v3384
  %v5550 = vpop.f32.mrf.mxu0
  %v5551 = vadd.f32 %v5382, %v5550
  %v5552 = vpop.f32.mrf.mxu0
  %v5553 = vadd.f32 %v5384, %v5552
  %5554 = vmatmul.bf16.gmra.mxu0 %v3387
  %v5555 = vpop.f32.mrf.mxu0
  %v5556 = vadd.f32 %v5387, %v5555
  %v5557 = vpop.f32.mrf.mxu0
  %v5558 = vadd.f32 %v5389, %v5557
  %5559 = vmatmul.bf16.gmra.mxu0 %v3390
  %v5560 = vpop.f32.mrf.mxu0
  %v5561 = vadd.f32 %v5392, %v5560
  %v5562 = vpop.f32.mrf.mxu0
  %v5563 = vadd.f32 %v5394, %v5562
  %5564 = vmatmul.bf16.gmra.mxu0 %v3393
  %v5565 = vpop.f32.mrf.mxu0
  %v5566 = vadd.f32 %v5397, %v5565
  %v5567 = vpop.f32.mrf.mxu0
  %v5568 = vadd.f32 %v5399, %v5567
  %5569 = vmatmul.bf16.gmra.mxu0 %v3396
  %v5570 = vpop.f32.mrf.mxu0
  %v5571 = vadd.f32 %v5402, %v5570
  %v5572 = vpop.f32.mrf.mxu0
  %v5573 = vadd.f32 %v5404, %v5572
  %5574 = vmatmul.bf16.gmra.mxu0 %v3399
  %v5575 = vpop.f32.mrf.mxu0
  %v5576 = vadd.f32 %v5407, %v5575
  %v5577 = vpop.f32.mrf.mxu0
  %v5578 = vadd.f32 %v5409, %v5577
  %5579 = vmatmul.bf16.gmra.mxu0 %v3402
  %v5580 = vpop.f32.mrf.mxu0
  %v5581 = vadd.f32 %v5412, %v5580
  %v5582 = vpop.f32.mrf.mxu0
  %v5583 = vadd.f32 %v5414, %v5582
  %5584 = vmatmul.bf16.gmra.mxu0 %v3405
  %v5585 = vpop.f32.mrf.mxu0
  %v5586 = vadd.f32 %v5417, %v5585
  %v5587 = vpop.f32.mrf.mxu0
  %v5588 = vadd.f32 %v5419, %v5587
  %5589 = vmatmul.bf16.gmra.mxu0 %v3408
  %v5590 = vpop.f32.mrf.mxu0
  %v5591 = vadd.f32 %v5422, %v5590
  %v5592 = vpop.f32.mrf.mxu0
  %v5593 = vadd.f32 %v5424, %v5592
  %5594 = vmatmul.bf16.gmra.mxu0 %v3411
  %v5595 = vpop.f32.mrf.mxu0
  %v5596 = vadd.f32 %v5427, %v5595
  %v5597 = vpop.f32.mrf.mxu0
  %v5598 = vadd.f32 %v5429, %v5597
  %5599 = vmatmul.bf16.gmra.mxu0 %v3414
  %v5600 = vpop.f32.mrf.mxu0
  %v5601 = vadd.f32 %v5432, %v5600
  %v5602 = vpop.f32.mrf.mxu0
  %v5603 = vadd.f32 %v5434, %v5602
  %5604 = vmatmul.bf16.gmra.mxu0 %v3417
  %v5605 = vpop.f32.mrf.mxu0
  %v5606 = vadd.f32 %v5437, %v5605
  %v5607 = vpop.f32.mrf.mxu0
  %v5608 = vadd.f32 %v5439, %v5607
  %5609 = vmatmul.bf16.gmra.mxu0 %v3420
  %v5610 = vpop.f32.mrf.mxu0
  %v5611 = vadd.f32 %v5442, %v5610
  %v5612 = vpop.f32.mrf.mxu0
  %v5613 = vadd.f32 %v5444, %v5612
  %5614 = vmatmul.bf16.gmra.mxu0 %v3423
  %v5615 = vpop.f32.mrf.mxu0
  %v5616 = vadd.f32 %v5447, %v5615
  %v5617 = vpop.f32.mrf.mxu0
  %v5618 = vadd.f32 %v5449, %v5617
  %5619 = vmatmul.bf16.gmra.mxu0 %v3426
  %v5620 = vpop.f32.mrf.mxu0
  %v5621 = vadd.f32 %v5452, %v5620
  %v5622 = vpop.f32.mrf.mxu0
  %v5623 = vadd.f32 %v5454, %v5622
  %5624 = vdwg.mxu0
  %v5625 = vtanh.pop %v5466
  %v5626 = vtanh.pop %v5468
  %v5627 = vtanh.pop %v5471
  %v5628 = vtanh.pop %v5473
  %v5629 = vtanh.pop %v5476
  %v5630 = vtanh.pop %v5478
  %v5631 = vtanh.pop %v5481
  %v5632 = vtanh.pop %v5483
  %v5633 = vtanh.pop %v5486
  %v5634 = vtanh.pop %v5488
  %v5635 = vtanh.pop %v5491
  %v5636 = vtanh.pop %v5493
  %v5637 = vtanh.pop %v5496
  %v5638 = vtanh.pop %v5498
  %v5639 = vtanh.pop %v5501
  %v5640 = vtanh.pop %v5503
  %v5641 = vtanh.pop %v5506
  %v5642 = vtanh.pop %v5508
  %v5643 = vtanh.pop %v5511
  %v5644 = vtanh.pop %v5513
  %v5645 = vtanh.pop %v5516
  %v5646 = vtanh.pop %v5518
  %v5647 = vtanh.pop %v5521
  %v5648 = vtanh.pop %v5523
  %v5649 = vtanh.pop %v5526
  %v5650 = vtanh.pop %v5528
  %v5651 = vtanh.pop %v5531
  %v5652 = vtanh.pop %v5533
  %v5653 = vtanh.pop %v5536
  %v5654 = vtanh.pop %v5538
  %v5655 = vtanh.pop %v5541
  %v5656 = vtanh.pop %v5543
  %v5657 = vtanh.pop %v5546
  %v5658 = vtanh.pop %v5548
  %v5659 = vtanh.pop %v5551
  %v5660 = vtanh.pop %v5553
  %v5661 = vtanh.pop %v5556
  %v5662 = vtanh.pop %v5558
  %v5663 = vtanh.pop %v5561
  %v5664 = vtanh.pop %v5563
  %v5665 = vtanh.pop %v5566
  %v5666 = vtanh.pop %v5568
  %v5667 = vtanh.pop %v5571
  %v5668 = vtanh.pop %v5573
  %v5669 = vtanh.pop %v5576
  %v5670 = vtanh.pop %v5578
  %v5671 = vtanh.pop %v5581
  %v5672 = vtanh.pop %v5583
  %v5673 = vtanh.pop %v5586
  %v5674 = vtanh.pop %v5588
  %v5675 = vtanh.pop %v5591
  %v5676 = vtanh.pop %v5593
  %v5677 = vtanh.pop %v5596
  %v5678 = vtanh.pop %v5598
  %v5679 = vtanh.pop %v5601
  %v5680 = vtanh.pop %v5603
  %v5681 = vtanh.pop %v5606
  %v5682 = vtanh.pop %v5608
  %v5683 = vtanh.pop %v5611
  %v5684 = vtanh.pop %v5613
  %v5685 = vtanh.pop %v5616
  %v5686 = vtanh.pop %v5618
  %v5687 = vtanh.pop %v5621
  %v5688 = vtanh.pop %v5623
  %v5689 = vpack.c.bf16 %v5625, %v5625
  %v5690 = vpack.c.bf16 %v5626, %v5626
  %v5691 = vpack.c.bf16 %v5627, %v5627
  %v5692 = vpack.c.bf16 %v5628, %v5628
  %v5693 = vpack.c.bf16 %v5629, %v5629
  %v5694 = vpack.c.bf16 %v5630, %v5630
  %v5695 = vpack.c.bf16 %v5631, %v5631
  %v5696 = vpack.c.bf16 %v5632, %v5632
  %v5697 = vpack.c.bf16 %v5633, %v5633
  %v5698 = vpack.c.bf16 %v5634, %v5634
  %v5699 = vpack.c.bf16 %v5635, %v5635
  %v5700 = vpack.c.bf16 %v5636, %v5636
  %v5701 = vpack.c.bf16 %v5637, %v5637
  %v5702 = vpack.c.bf16 %v5638, %v5638
  %v5703 = vpack.c.bf16 %v5639, %v5639
  %v5704 = vpack.c.bf16 %v5640, %v5640
  %v5705 = vpack.c.bf16 %v5641, %v5641
  %v5706 = vpack.c.bf16 %v5642, %v5642
  %v5707 = vpack.c.bf16 %v5643, %v5643
  %v5708 = vpack.c.bf16 %v5644, %v5644
  %v5709 = vpack.c.bf16 %v5645, %v5645
  %v5710 = vpack.c.bf16 %v5646, %v5646
  %v5711 = vpack.c.bf16 %v5647, %v5647
  %v5712 = vpack.c.bf16 %v5648, %v5648
  %v5713 = vpack.c.bf16 %v5649, %v5649
  %v5714 = vpack.c.bf16 %v5650, %v5650
  %v5715 = vpack.c.bf16 %v5651, %v5651
  %v5716 = vpack.c.bf16 %v5652, %v5652
  %v5717 = vpack.c.bf16 %v5653, %v5653
  %v5718 = vpack.c.bf16 %v5654, %v5654
  %v5719 = vpack.c.bf16 %v5655, %v5655
  %v5720 = vpack.c.bf16 %v5656, %v5656
  %v5721 = vpack.c.bf16 %v5657, %v5657
  %v5722 = vpack.c.bf16 %v5658, %v5658
  %v5723 = vpack.c.bf16 %v5659, %v5659
  %v5724 = vpack.c.bf16 %v5660, %v5660
  %v5725 = vpack.c.bf16 %v5661, %v5661
  %v5726 = vpack.c.bf16 %v5662, %v5662
  %v5727 = vpack.c.bf16 %v5663, %v5663
  %v5728 = vpack.c.bf16 %v5664, %v5664
  %v5729 = vpack.c.bf16 %v5665, %v5665
  %v5730 = vpack.c.bf16 %v5666, %v5666
  %v5731 = vpack.c.bf16 %v5667, %v5667
  %v5732 = vpack.c.bf16 %v5668, %v5668
  %v5733 = vpack.c.bf16 %v5669, %v5669
  %v5734 = vpack.c.bf16 %v5670, %v5670
  %v5735 = vpack.c.bf16 %v5671, %v5671
  %v5736 = vpack.c.bf16 %v5672, %v5672
  %v5737 = vpack.c.bf16 %v5673, %v5673
  %v5738 = vpack.c.bf16 %v5674, %v5674
  %v5739 = vpack.c.bf16 %v5675, %v5675
  %v5740 = vpack.c.bf16 %v5676, %v5676
  %v5741 = vpack.c.bf16 %v5677, %v5677
  %v5742 = vpack.c.bf16 %v5678, %v5678
  %v5743 = vpack.c.bf16 %v5679, %v5679
  %v5744 = vpack.c.bf16 %v5680, %v5680
  %v5745 = vpack.c.bf16 %v5681, %v5681
  %v5746 = vpack.c.bf16 %v5682, %v5682
  %v5747 = vpack.c.bf16 %v5683, %v5683
  %v5748 = vpack.c.bf16 %v5684, %v5684
  %v5749 = vpack.c.bf16 %v5685, %v5685
  %v5750 = vpack.c.bf16 %v5686, %v5686
  %v5751 = vpack.c.bf16 %v5687, %v5687
  %v5752 = vpack.c.bf16 %v5688, %v5688
  %5753 = vst [vmem:[%s3] sm:$0xf] %v5689
  %5754 = vst [vmem:[%s3 + $0x4] sm:$0xf] %v5690
  %5755 = vst [vmem:[%s3 + $0x8] sm:$0xf] %v5691
  %5756 = vst [vmem:[%s3 + $0xc] sm:$0xf] %v5692
  %5757 = vst [vmem:[%s3 + $0x10] sm:$0xf] %v5693
  %5758 = vst [vmem:[%s3 + $0x14] sm:$0xf] %v5694
  %5759 = vst [vmem:[%s3 + $0x18] sm:$0xf] %v5695
  %5760 = vst [vmem:[%s3 + $0x1c] sm:$0xf] %v5696
  %5761 = vst [vmem:[%s3 + $0x20] sm:$0xf] %v5697
  %5762 = vst [vmem:[%s3 + $0x24] sm:$0xf] %v5698
  %5763 = vst [vmem:[%s3 + $0x28] sm:$0xf] %v5699
  %5764 = vst [vmem:[%s3 + $0x2c] sm:$0xf] %v5700
  %5765 = vst [vmem:[%s3 + $0x30] sm:$0xf] %v5701
  %5766 = vst [vmem:[%s3 + $0x34] sm:$0xf] %v5702
  %5767 = vst [vmem:[%s3 + $0x38] sm:$0xf] %v5703
  %5768 = vst [vmem:[%s3 + $0x3c] sm:$0xf] %v5704
  %5769 = vst [vmem:[%s3 + $0x40] sm:$0xf] %v5705
  %5770 = vst [vmem:[%s3 + $0x44] sm:$0xf] %v5706
  %5771 = vst [vmem:[%s3 + $0x48] sm:$0xf] %v5707
  %5772 = vst [vmem:[%s3 + $0x4c] sm:$0xf] %v5708
  %5773 = vst [vmem:[%s3 + $0x50] sm:$0xf] %v5709
  %5774 = vst [vmem:[%s3 + $0x54] sm:$0xf] %v5710
  %5775 = vst [vmem:[%s3 + $0x58] sm:$0xf] %v5711
  %5776 = vst [vmem:[%s3 + $0x5c] sm:$0xf] %v5712
  %5777 = vst [vmem:[%s3 + $0x60] sm:$0xf] %v5713
  %5778 = vst [vmem:[%s3 + $0x64] sm:$0xf] %v5714
  %5779 = vst [vmem:[%s3 + $0x68] sm:$0xf] %v5715
  %5780 = vst [vmem:[%s3 + $0x6c] sm:$0xf] %v5716
  %5781 = vst [vmem:[%s3 + $0x70] sm:$0xf] %v5717
  %5782 = vst [vmem:[%s3 + $0x74] sm:$0xf] %v5718
  %5783 = vst [vmem:[%s3 + $0x78] sm:$0xf] %v5719
  %5784 = vst [vmem:[%s3 + $0x7c] sm:$0xf] %v5720
  %5785 = vst [vmem:[%s3 + $0x80] sm:$0xf] %v5721
  %5786 = vst [vmem:[%s3 + $0x84] sm:$0xf] %v5722
  %5787 = vst [vmem:[%s3 + $0x88] sm:$0xf] %v5723
  %5788 = vst [vmem:[%s3 + $0x8c] sm:$0xf] %v5724
  %5789 = vst [vmem:[%s3 + $0x90] sm:$0xf] %v5725
  %5790 = vst [vmem:[%s3 + $0x94] sm:$0xf] %v5726
  %5791 = vst [vmem:[%s3 + $0x98] sm:$0xf] %v5727
  %5792 = vst [vmem:[%s3 + $0x9c] sm:$0xf] %v5728
  %5793 = vst [vmem:[%s3 + $0xa0] sm:$0xf] %v5729
  %5794 = vst [vmem:[%s3 + $0xa4] sm:$0xf] %v5730
  %5795 = vst [vmem:[%s3 + $0xa8] sm:$0xf] %v5731
  %5796 = vst [vmem:[%s3 + $0xac] sm:$0xf] %v5732
  %5797 = vst [vmem:[%s3 + $0xb0] sm:$0xf] %v5733
  %5798 = vst [vmem:[%s3 + $0xb4] sm:$0xf] %v5734
  %5799 = vst [vmem:[%s3 + $0xb8] sm:$0xf] %v5735
  %5800 = vst [vmem:[%s3 + $0xbc] sm:$0xf] %v5736
  %5801 = vst [vmem:[%s3 + $0xc0] sm:$0xf] %v5737
  %5802 = vst [vmem:[%s3 + $0xc4] sm:$0xf] %v5738
  %5803 = vst [vmem:[%s3 + $0xc8] sm:$0xf] %v5739
  %5804 = vst [vmem:[%s3 + $0xcc] sm:$0xf] %v5740
  %5805 = vst [vmem:[%s3 + $0xd0] sm:$0xf] %v5741
  %5806 = vst [vmem:[%s3 + $0xd4] sm:$0xf] %v5742
  %5807 = vst [vmem:[%s3 + $0xd8] sm:$0xf] %v5743
  %5808 = vst [vmem:[%s3 + $0xdc] sm:$0xf] %v5744
  %5809 = vst [vmem:[%s3 + $0xe0] sm:$0xf] %v5745
  %5810 = vst [vmem:[%s3 + $0xe4] sm:$0xf] %v5746
  %5811 = vst [vmem:[%s3 + $0xe8] sm:$0xf] %v5747
  %5812 = vst [vmem:[%s3 + $0xec] sm:$0xf] %v5748
  %5813 = vst [vmem:[%s3 + $0xf0] sm:$0xf] %v5749
  %5814 = vst [vmem:[%s3 + $0xf4] sm:$0xf] %v5750
  %5815 = vst [vmem:[%s3 + $0xf8] sm:$0xf] %v5751
  %5816 = vst [vmem:[%s3 + $0xfc] sm:$0xf] %v5752
  // Predicated region
  $region14: #{_lambda_.85} parent=0 // pred_check
    _
  $region15: #{_lambda_.85} parent=0 // pred_check_branch
    %5818 = sbr.rel (0) target = $region17
  $region16: #{_lambda_.85} parent=0 // pred_region
    _
  $region17: #{_lambda_.85} parent=0 // pred_fallthru
    _
  // Predicated region
  $region18: #{_lambda_.85} parent=0 // pred_check
    _
  $region19: #{_lambda_.85} parent=0 // pred_check_branch
    %5820 = sbr.rel (0) target = $region21
  $region20: #{_lambda_.85} parent=0 // pred_region
    _
  $region21: #{_lambda_.85} parent=0 // pred_fallthru
    _

</llo_original>
